<compile_context>
chip_gen: v6e
topology: v6e:2x2x1
jax: 0.10.0
libtpu: 0.0.40
codegen_flags: <defaults>
</compile_context>

<pallas_src>
import jax
import jax.numpy as jnp
from jax import lax
from jax.experimental import pallas as pl
from jax.experimental.pallas import tpu as pltpu

EMBED = 32      # e
HID = 32        # h
V_SRC = 48
V_TGT = 64
PAD = 0
SRC_LEN = 8     # max source length
TGT_LEN = 8     # max target length (incl. <s>, </s>)
BATCH = 2
BPAD = 8        # batch padded to the sublane width
NEG = -1e30


# ----------------------- packed-weight layout (static) -----------------------
# All parameters ride in ONE (rows, 256) f32 buffer -> one DMA instead of ~15.
_PACK_LANES = 8 * HID          # 256 = widest packed tensor (bi-dir encoder W_ih)


def _make_pack_layout(entries):
    off, r = {}, 0
    for name, (nr, nc) in entries:
        off[name] = (r, nr, nc)
        r += -(-nr // 8) * 8   # row-pad each tensor to full sublanes
    return off, r


_PACK_ENTRIES = [
    ("w_ih_enc",  (EMBED, 8 * HID)),   # [fwd | bwd] encoder input->gates
    ("b_enc",     (1, 8 * HID)),       # fused (bias_ih + bias_hh), both dirs
    ("whh_f",     (HID, 4 * HID)),
    ("whh_b",     (HID, 4 * HID)),
    ("w_hproj",   (2 * HID, HID)),
    ("w_cproj",   (2 * HID, HID)),
    ("w_attproj", (2 * HID, HID)),
    ("dec_w_in",  (EMBED, 4 * HID)),   # decoder W_ih rows acting on Y_t
    ("dec_b",     (1, 4 * HID)),       # fused decoder bias
    ("dec_whcat", (2 * HID, 4 * HID)), # [W_ih rows for o_prev ; W_hh] fused
    ("w_comb",    (3 * HID, HID)),     # combined_output_projection (3h -> h)
    ("w_vocab",   (HID, V_TGT)),
]
_WOFF, _PACK_ROWS = _make_pack_layout(_PACK_ENTRIES)     # 528 rows x 256 lanes


# --------------------------- fused forward kernel ---------------------------

def _nmt_fused_kernel(x_ref, menc_ref, y_ref, gold_ref, sel_ref, wpack_ref,
                      scores_ref,
                      xp_s, yp_s, ench_f_s, ench_b_s, php_s, o_s):
    """Whole NMT forward: encode -> decode+attend -> score, in one kernel."""
    S, BP, _ = menc_ref.shape
    H = HID
    Tm1 = o_s.shape[0] // BP
    f32 = jnp.float32

    def w(name):                       # zero-cost static slice of the weight pack
        r0, nr, nc = _WOFF[name]
        return wpack_ref[r0:r0 + nr, 0:nc]

    # ---- hoisted input-to-gate projections (one 256-col + one 128-col matmul).
    # NOTE: the single bias per gate block stands in for PyTorch's
    # bias_ih + bias_hh (fuse the two at checkpoint-load time for parity).
    xp_s[...] = (jnp.dot(x_ref[...], w("w_ih_enc"), preferred_element_type=f32)
                 + w("b_enc"))                                   # (S*BP, 8H)
    yp_s[...] = (jnp.dot(y_ref[...], w("dec_w_in"), preferred_element_type=f32)
                 + w("dec_b"))                                   # (Tm1*BP, 4H)

    whh_f = w("whh_f")
    whh_b = w("whh_b")

    def lstm_gates(pre):
        # Full-width EUP ops (one sigmoid + one tanh over all 4H=128 lanes),
        # then static lane slices.  PyTorch gate order: i, f, g, o.
        sg = jax.nn.sigmoid(pre)
        tg = jnp.tanh(pre)
        return sg[:, 0:H], sg[:, H:2 * H], tg[:, 2 * H:3 * H], sg[:, 3 * H:4 * H]

    zeros_bh = jnp.zeros((BP, H), f32)

    # --------------------- encoder: forward direction ---------------------
    # mask m: True -> real timestep (update state, emit hidden),
    #         False -> padded (carry state, emit zeros) == packed-seq semantics.
    def fwd_body(t, carry):
        h, c = carry
        base = pl.multiple_of(t * BP, BP)
        xg = xp_s[pl.ds(base, BP), :][:, 0:4 * H]
        pre = xg + jnp.dot(h, whh_f, preferred_element_type=f32)
        i_g, f_g, g_g, o_g = lstm_gates(pre)
        c_new = f_g * c + i_g * g_g
        h_new = o_g * jnp.tanh(c_new)
        m = menc_ref[t] > 0.5                                     # (BP, 1)
        ench_f_s[t] = jnp.where(m, h_new, 0.0)
        return jnp.where(m, h_new, h), jnp.where(m, c_new, c)

    h_f, c_f = lax.fori_loop(0, S, fwd_body, (zeros_bh, zeros_bh), unroll=True)

    # --------------------- encoder: backward direction ---------------------
    def bwd_body(i, carry):
        h, c = carry
        t = S - 1 - i
        base = pl.multiple_of(t * BP, BP)
        xg = xp_s[pl.ds(base, BP), :][:, 4 * H:8 * H]
        pre = xg + jnp.dot(h, whh_b, preferred_element_type=f32)
        i_g, f_g, g_g, o_g = lstm_gates(pre)
        c_new = f_g * c + i_g * g_g
        h_new = o_g * jnp.tanh(c_new)
        m = menc_ref[t] > 0.5
        ench_b_s[t] = jnp.where(m, h_new, 0.0)
        return jnp.where(m, h_new, h), jnp.where(m, c_new, c)

    h_b, c_b = lax.fori_loop(0, S, bwd_body, (zeros_bh, zeros_bh), unroll=True)

    # ---------------- decoder initial state (single fused matmuls) ----------------
    hcat = jnp.concatenate([h_f, h_b], axis=1)                    # (BP, 2H)
    ccat = jnp.concatenate([c_f, c_b], axis=1)
    h0 = jnp.dot(hcat, w("w_hproj"), preferred_element_type=f32)
    c0 = jnp.dot(ccat, w("w_cproj"), preferred_element_type=f32)

    # ---------- attention projection: hoisted OFF the recurrent chain ----------
    # Independent per-timestep matmuls (no carried state), done after both loops.
    w_att = w("w_attproj")
    for t in range(S):
        ec = jnp.concatenate([ench_f_s[t], ench_b_s[t]], axis=1)  # (BP, 2H)
        php_s[t] = jnp.dot(ec, w_att, preferred_element_type=f32)

    # Encoder states / attention projection / mask bias stay resident for the
    # whole decode loop (no HBM round-trips between steps).
    ench_f_v = ench_f_s[...]                                      # (S, BP, H)
    ench_b_v = ench_b_s[...]
    php_v = php_s[...]
    att_bias = jnp.where(menc_ref[...] > 0.5, f32(0.0), f32(NEG))  # (S, BP, 1)
    dec_whcat = w("dec_whcat")                                    # (2H, 4H)
    w_comb = w("w_comb")                                          # (3H, H)

    # --------------- decoder LSTMCell + attention loop (recurrent part only) ---------------
    # Padded target steps still update h/c (mask applied on the loss side only),
    # matching the PyTorch reference.  Assumes src_lengths >= 1 for real rows.
    def dec_body(t, carry):
        h, c, o_prev = carry
        base = pl.multiple_of(t * BP, BP)
        oh = jnp.concatenate([o_prev, h], axis=1)                 # (BP, 2H)
        pre = (yp_s[pl.ds(base, BP), :]
               + jnp.dot(oh, dec_whcat, preferred_element_type=f32))
        i_g, f_g, g_g, o_g = lstm_gates(pre)
        c_new = f_g * c + i_g * g_g
        h_new = o_g * jnp.tanh(c_new)

        # Luong global attention (time-major layout), additive -inf mask.
        e = jnp.sum(php_v * h_new[None, :, :], axis=-1, keepdims=True) + att_bias
        e_max = jnp.max(e, axis=0, keepdims=True)
        p = jnp.exp(e - e_max)
        alpha = p / jnp.sum(p, axis=0, keepdims=True)             # softmax over S
        a_f = jnp.sum(alpha * ench_f_v, axis=0)                   # (BP, H)
        a_b = jnp.sum(alpha * ench_b_v, axis=0)
        u = jnp.concatenate([a_f, a_b, h_new], axis=1)            # (BP, 3H)
        o_t = jnp.tanh(jnp.dot(u, w_comb, preferred_element_type=f32))
        o_s[pl.ds(base, BP), :] = o_t     # dropout = identity in eval mode
        return h_new, c_new, o_t

    lax.fori_loop(0, Tm1, dec_body, (h0, c0, zeros_bh), unroll=True)

    # ------- vocab projection + log-softmax + gold gather: hoisted, batched -------
    logits = jnp.dot(o_s[...], w("w_vocab"), preferred_element_type=f32)  # (Tm1*BP, V)
    lmax = jnp.max(logits, axis=-1, keepdims=True)
    lse = lmax + jnp.log(jnp.sum(jnp.exp(logits - lmax), axis=-1, keepdims=True))
    contrib = (logits - lse) * gold_ref[...]          # gold one-hot * target mask
    # sel[b, t*BP + b] = 1  -> one MXU push sums contributions over time per sentence.
    acc_bv = jnp.dot(sel_ref[...], contrib, preferred_element_type=f32)   # (BP, V)
    scores_ref[...] = jnp.sum(acc_bv, axis=-1, keepdims=True)             # (BP, 1)


# ------------------------------- model glue -------------------------------

def nmt_forward(p, src_padded, src_lengths, tgt_padded):
    """Equivalent of NMT.forward: returns per-example gold log-likelihood (b,)."""
    S, b = src_padded.shape
    T = tgt_padded.shape[0]
    Tm1 = T - 1
    assert b <= BPAD
    pad_b = BPAD - b

    # pad the batch dimension to the sublane width (extra columns fully masked)
    src_p = jnp.pad(src_padded, ((0, 0), (0, pad_b)), constant_values=PAD)
    tgt_p = jnp.pad(tgt_padded, ((0, 0), (0, pad_b)), constant_values=PAD)
    len_p = jnp.pad(src_lengths, (0, pad_b))          # padded columns: length 0

    # embedding lookups + mask / one-hot construction (cheap XLA glue)
    X = p['emb_src'][src_p]                                       # (S, BP, E)
    Y = p['emb_tgt'][tgt_p[:-1]]                                  # (T-1, BP, E)
    menc = (jnp.arange(S, dtype=jnp.int32)[:, None]
            < len_p[None, :]).astype(jnp.float32)[:, :, None]     # (S, BP, 1)
    tmask = (tgt_p[1:] != PAD).astype(jnp.float32)                # (T-1, BP)
    gold = (jax.nn.one_hot(tgt_p[1:], V_TGT, dtype=jnp.float32)
            * tmask[:, :, None])                                  # (T-1, BP, V)

    x_flat = X.reshape(S * BPAD, EMBED)
    y_flat = Y.reshape(Tm1 * BPAD, EMBED)
    gold_flat = gold.reshape(Tm1 * BPAD, V_TGT)
    sel = jnp.tile(jnp.eye(BPAD, dtype=jnp.float32), (1, Tm1))    # (BP, Tm1*BP)

    # static parameter repacking into ONE VMEM buffer (single DMA).
    packed = {
        "w_ih_enc":  jnp.concatenate([p['enc_f_wih'], p['enc_b_wih']], axis=1),
        "b_enc":     jnp.concatenate([p['enc_f_b'], p['enc_b_b']], axis=1),
        "whh_f":     p['enc_f_whh'],
        "whh_b":     p['enc_b_whh'],
        "w_hproj":   p['w_hproj'],
        "w_cproj":   p['w_cproj'],
        "w_attproj": p['w_attproj'],
        "dec_w_in":  p['dec_wih'][:EMBED],
        "dec_b":     p['dec_b'],
        "dec_whcat": jnp.concatenate([p['dec_wih'][EMBED:], p['dec_whh']], axis=0),
        "w_comb":    jnp.concatenate([p['w_comb_a'], p['w_comb_h']], axis=0),
        "w_vocab":   p['w_vocab'],
    }
    wpack = jnp.zeros((_PACK_ROWS, _PACK_LANES), jnp.float32)
    for name, arr in packed.items():
        r0, nr, nc = _WOFF[name]
        wpack = wpack.at[r0:r0 + nr, 0:nc].set(arr.astype(jnp.float32))

    scores = pl.pallas_call(
        _nmt_fused_kernel,
        out_shape=jax.ShapeDtypeStruct((BPAD, 1), jnp.float32),
        in_specs=[pl.BlockSpec(memory_space=pltpu.MemorySpace.VMEM)] * 6,
        out_specs=pl.BlockSpec(memory_space=pltpu.MemorySpace.VMEM),
        scratch_shapes=[
            pltpu.VMEM((S * BPAD, 8 * HID), jnp.float32),     # hoisted enc input proj
            pltpu.VMEM((Tm1 * BPAD, 4 * HID), jnp.float32),   # hoisted dec input proj
            pltpu.VMEM((S, BPAD, HID), jnp.float32),          # fwd encoder hiddens
            pltpu.VMEM((S, BPAD, HID), jnp.float32),          # bwd encoder hiddens
            pltpu.VMEM((S, BPAD, HID), jnp.float32),          # att-projected enc hiddens
            pltpu.VMEM((Tm1 * BPAD, HID), jnp.float32),       # combined outputs o_t
        ],
    )(x_flat, menc, y_flat, gold_flat, sel, wpack)
    return scores[:b, 0]

# TODO(synk): dropout on the combined output is treated as eval-mode identity
# (stochastic in PyTorch train mode); beam_search / vocab string handling are
# host-side python and not translated.


def init_params(key):
    ks = jax.random.split(key, 16)

    def n(k, shape):
        return jax.random.normal(k, shape, jnp.float32) * 0.1

    emb_src = n(ks[0], (V_SRC, EMBED)).at[PAD].set(0.0)
    emb_tgt = n(ks[1], (V_TGT, EMBED)).at[PAD].set(0.0)
    return dict(
        emb_src=emb_src,
        emb_tgt=emb_tgt,
        # encoder (bidirectional LSTM), weights stored transposed, biases fused
        enc_f_wih=n(ks[2], (EMBED, 4 * HID)),
        enc_f_whh=n(ks[3], (HID, 4 * HID)),
        enc_f_b=n(ks[4], (1, 4 * HID)),
        enc_b_wih=n(ks[5], (EMBED, 4 * HID)),
        enc_b_whh=n(ks[6], (HID, 4 * HID)),
        enc_b_b=n(ks[7], (1, 4 * HID)),
        # decoder LSTMCell (input = [Y_t ; o_prev] of size E + H)
        dec_wih=n(ks[8], (EMBED + HID, 4 * HID)),
        dec_whh=n(ks[9], (HID, 4 * HID)),
        dec_b=n(ks[10], (1, 4 * HID)),
        # projections (stored as W^T)
        w_hproj=n(ks[11], (2 * HID, HID)),
        w_cproj=n(ks[12], (2 * HID, HID)),
        w_attproj=n(ks[13], (2 * HID, HID)),
        # combined_output_projection (3H -> H), split along the concat axis
        w_comb_a=n(ks[14], (2 * HID, HID)),
        w_comb_h=n(ks[15], (HID, HID)),
        w_vocab=n(jax.random.fold_in(key, 99), (HID, V_TGT)),
    )


if __name__ == "__main__":
    key = jax.random.PRNGKey(0)
    params = init_params(key)

    # source: (src_len, b), sorted longest -> shortest; pad id = 0
    src_lengths = jnp.array([SRC_LEN, 5], dtype=jnp.int32)
    src_ids = jax.random.randint(jax.random.fold_in(key, 1),
                                 (SRC_LEN, BATCH), 1, V_SRC, dtype=jnp.int32)
    valid_src = (jnp.arange(SRC_LEN, dtype=jnp.int32)[:, None]
                 < src_lengths[None, :])
    src_padded = jnp.where(valid_src, src_ids, PAD)

    # target: (tgt_len, b), wrapped by <s>=1 ... </s>=2, pad id = 0
    tgt_lengths = jnp.array([TGT_LEN, 6], dtype=jnp.int32)
    tgt_ids = jax.random.randint(jax.random.fold_in(key, 2),
                                 (TGT_LEN, BATCH), 3, V_TGT, dtype=jnp.int32)
    pos = jnp.arange(TGT_LEN, dtype=jnp.int32)[:, None]
    tgt_padded = jnp.where(pos == 0, 1, tgt_ids)                              # <s>
    tgt_padded = jnp.where(pos == (tgt_lengths[None, :] - 1), 2, tgt_padded)  # </s>
    tgt_padded = jnp.where(pos < tgt_lengths[None, :], tgt_padded, PAD)

    fwd = jax.jit(nmt_forward)
    scores = fwd(params, src_padded, src_lengths, tgt_padded)
    jax.block_until_ready(scores)
    assert scores.shape == (BATCH,)
    assert bool(jnp.all(jnp.isfinite(scores)))
    print("KERNEL_OK")
</pallas_src>

<mosaic_0001>
module attributes {stable_mosaic.version = 11 : i64} {
  func.func @_nmt_fused_kernel(%arg0: memref<64x32xf32, #tpu.memory_space<vmem>>, %arg1: memref<8x8x1xf32, #tpu.memory_space<vmem>>, %arg2: memref<56x32xf32, #tpu.memory_space<vmem>>, %arg3: memref<56x64xf32, #tpu.memory_space<vmem>>, %arg4: memref<8x56xf32, #tpu.memory_space<vmem>>, %arg5: memref<528x256xf32, #tpu.memory_space<vmem>>, %arg6: memref<8x1xf32, #tpu.memory_space<vmem>>, %arg7: memref<64x256xf32, #tpu.memory_space<vmem>>, %arg8: memref<56x128xf32, #tpu.memory_space<vmem>>, %arg9: memref<8x8x32xf32, #tpu.memory_space<vmem>>, %arg10: memref<8x8x32xf32, #tpu.memory_space<vmem>>, %arg11: memref<8x8x32xf32, #tpu.memory_space<vmem>>, %arg12: memref<56x32xf32, #tpu.memory_space<vmem>>) attributes {dimension_semantics = [], scalar_prefetch = 0 : i64, scratch_operands = 6 : i64, tpu.core_type = #tpu.core_type<tc>} {
    %c0 = arith.constant 0 : index
    %c0_0 = arith.constant 0 : index
    %0 = vector.load %arg0[%c0, %c0_0] : memref<64x32xf32, #tpu.memory_space<vmem>>, vector<64x32xf32>
    %c0_1 = arith.constant 0 : index
    %c0_2 = arith.constant 0 : index
    %1 = vector.load %arg5[%c0_1, %c0_2] : memref<528x256xf32, #tpu.memory_space<vmem>>, vector<32x256xf32>
    %cst = arith.constant dense<0.000000e+00> : vector<64x256xf32>
    %2 = tpu.matmul %0, %1, %cst {dimension_numbers = #tpu.dot_dimension_numbers<[1], [0], [0], [1], [0, 0, 1, 1], [], []>} : vector<64x32xf32>, vector<32x256xf32>, vector<64x256xf32> -> vector<64x256xf32>
    %c32 = arith.constant 32 : index
    %c0_3 = arith.constant 0 : index
    %3 = vector.load %arg5[%c32, %c0_3] : memref<528x256xf32, #tpu.memory_space<vmem>>, vector<1x256xf32>
    %4 = vector.broadcast %3 : vector<1x256xf32> to vector<64x256xf32>
    %5 = arith.addf %2, %4 : vector<64x256xf32>
    %c0_4 = arith.constant 0 : index
    %c0_5 = arith.constant 0 : index
    %6 = vector.load %arg7[%c0_4, %c0_5] : memref<64x256xf32, #tpu.memory_space<vmem>>, vector<64x256xf32>
    tpu.vector_store %arg7[%c0_4, %c0_5], %5 {strides = array<i32>} : memref<64x256xf32, #tpu.memory_space<vmem>>, vector<64x256xf32>,
    %c0_6 = arith.constant 0 : index
    %c0_7 = arith.constant 0 : index
    %7 = vector.load %arg2[%c0_6, %c0_7] : memref<56x32xf32, #tpu.memory_space<vmem>>, vector<56x32xf32>
    %c296 = arith.constant 296 : index
    %c0_8 = arith.constant 0 : index
    %8 = vector.load %arg5[%c296, %c0_8] : memref<528x256xf32, #tpu.memory_space<vmem>>, vector<32x128xf32>
    %cst_9 = arith.constant dense<0.000000e+00> : vector<56x128xf32>
    %9 = tpu.matmul %7, %8, %cst_9 {dimension_numbers = #tpu.dot_dimension_numbers<[1], [0], [0], [1], [0, 0, 1, 1], [], []>} : vector<56x32xf32>, vector<32x128xf32>, vector<56x128xf32> -> vector<56x128xf32>
    %c328 = arith.constant 328 : index
    %c0_10 = arith.constant 0 : index
    %10 = vector.load %arg5[%c328, %c0_10] : memref<528x256xf32, #tpu.memory_space<vmem>>, vector<1x128xf32>
    %11 = vector.broadcast %10 : vector<1x128xf32> to vector<56x128xf32>
    %12 = arith.addf %9, %11 : vector<56x128xf32>
    %c0_11 = arith.constant 0 : index
    %c0_12 = arith.constant 0 : index
    %13 = vector.load %arg8[%c0_11, %c0_12] : memref<56x128xf32, #tpu.memory_space<vmem>>, vector<56x128xf32>
    tpu.vector_store %arg8[%c0_11, %c0_12], %12 {strides = array<i32>} : memref<56x128xf32, #tpu.memory_space<vmem>>, vector<56x128xf32>,
    %c40 = arith.constant 40 : index
    %c0_13 = arith.constant 0 : index
    %14 = vector.load %arg5[%c40, %c0_13] : memref<528x256xf32, #tpu.memory_space<vmem>>, vector<32x128xf32>
    %c72 = arith.constant 72 : index
    %c0_14 = arith.constant 0 : index
    %15 = vector.load %arg5[%c72, %c0_14] : memref<528x256xf32, #tpu.memory_space<vmem>>, vector<32x128xf32>
    %cst_15 = arith.constant 0.000000e+00 : f32
    %16 = vector.broadcast %cst_15 : f32 to vector<8x32xf32>
    %c0_i32 = arith.constant 0 : i32
    %c8_i32 = arith.constant 8 : i32
    %17 = arith.muli %c0_i32, %c8_i32 : i32
    %18 = tpu.assume_multiple %17, 8 : i32
    %19 = arith.index_cast %18 : i32 to index
    %c0_16 = arith.constant 0 : index
    %20 = vector.load %arg7[%19, %c0_16] : memref<64x256xf32, #tpu.memory_space<vmem>>, vector<8x256xf32>
    %21 = vector.extract_strided_slice %20 {offsets = [0, 0], sizes = [8, 128], strides = [1, 1]} : vector<8x256xf32> to vector<8x128xf32>
    %cst_17 = arith.constant dense<0.000000e+00> : vector<8x128xf32>
    %22 = tpu.matmul %16, %14, %cst_17 {dimension_numbers = #tpu.dot_dimension_numbers<[1], [0], [0], [1], [0, 0, 1, 1], [], []>} : vector<8x32xf32>, vector<32x128xf32>, vector<8x128xf32> -> vector<8x128xf32>
    %23 = arith.addf %21, %22 : vector<8x128xf32>
    %24 = arith.negf %23 : vector<8x128xf32>
    %25 = math.exp %24 : vector<8x128xf32>
    %cst_18 = arith.constant 1.000000e+00 : f32
    %26 = vector.broadcast %cst_18 : f32 to vector<8x128xf32>
    %27 = arith.addf %26, %25 : vector<8x128xf32>
    %28 = arith.divf %26, %27 : vector<8x128xf32>
    %29 = math.tanh %23 : vector<8x128xf32>
    %30 = vector.extract_strided_slice %28 {offsets = [0, 0], sizes = [8, 32], strides = [1, 1]} : vector<8x128xf32> to vector<8x32xf32>
    %31 = vector.extract_strided_slice %28 {offsets = [0, 32], sizes = [8, 32], strides = [1, 1]} : vector<8x128xf32> to vector<8x32xf32>
    %32 = vector.extract_strided_slice %29 {offsets = [0, 64], sizes = [8, 32], strides = [1, 1]} : vector<8x128xf32> to vector<8x32xf32>
    %33 = vector.extract_strided_slice %28 {offsets = [0, 96], sizes = [8, 32], strides = [1, 1]} : vector<8x128xf32> to vector<8x32xf32>
    %34 = arith.mulf %31, %16 : vector<8x32xf32>
    %35 = arith.mulf %30, %32 : vector<8x32xf32>
    %36 = arith.addf %34, %35 : vector<8x32xf32>
    %37 = math.tanh %36 : vector<8x32xf32>
    %38 = arith.mulf %33, %37 : vector<8x32xf32>
    %39 = arith.index_cast %c0_i32 : i32 to index
    %c0_19 = arith.constant 0 : index
    %c0_20 = arith.constant 0 : index
    %40 = vector.load %arg1[%39, %c0_19, %c0_20] : memref<8x8x1xf32, #tpu.memory_space<vmem>>, vector<1x8x1xf32>
    %41 = vector.shape_cast %40 : vector<1x8x1xf32> to vector<8x1xf32>
    %cst_21 = arith.constant 5.000000e-01 : f32
    %42 = vector.broadcast %cst_21 : f32 to vector<8x1xf32>
    %43 = arith.cmpf ogt, %41, %42 : vector<8x1xf32>
    %cst_22 = arith.constant 0.000000e+00 : f32
    %44 = vector.shape_cast %43 : vector<8x1xi1> to vector<8x1xi1>
    %45 = vector.broadcast %44 : vector<8x1xi1> to vector<8x32xi1>
    %46 = vector.broadcast %cst_22 : f32 to vector<8x32xf32>
    %47 = arith.select %45, %38, %46 : vector<8x32xi1>, vector<8x32xf32>
    %48 = arith.index_cast %c0_i32 : i32 to index
    %c0_23 = arith.constant 0 : index
    %c0_24 = arith.constant 0 : index
    %49 = vector.load %arg9[%48, %c0_23, %c0_24] : memref<8x8x32xf32, #tpu.memory_space<vmem>>, vector<1x8x32xf32>
    %50 = vector.shape_cast %49 : vector<1x8x32xf32> to vector<8x32xf32>
    %51 = vector.shape_cast %47 : vector<8x32xf32> to vector<1x8x32xf32>
    tpu.vector_store %arg9[%48, %c0_23, %c0_24], %51 {strides = array<i32>} : memref<8x8x32xf32, #tpu.memory_space<vmem>>, vector<1x8x32xf32>,
    %52 = vector.shape_cast %43 : vector<8x1xi1> to vector<8x1xi1>
    %53 = vector.broadcast %52 : vector<8x1xi1> to vector<8x32xi1>
    %54 = arith.select %53, %38, %16 : vector<8x32xi1>, vector<8x32xf32>
    %55 = vector.shape_cast %43 : vector<8x1xi1> to vector<8x1xi1>
    %56 = vector.broadcast %55 : vector<8x1xi1> to vector<8x32xi1>
    %57 = arith.select %56, %36, %16 : vector<8x32xi1>, vector<8x32xf32>
    %c1_i32 = arith.constant 1 : i32
    %c8_i32_25 = arith.constant 8 : i32
    %58 = arith.muli %c1_i32, %c8_i32_25 : i32
    %59 = tpu.assume_multiple %58, 8 : i32
    %60 = arith.index_cast %59 : i32 to index
    %c0_26 = arith.constant 0 : index
    %61 = vector.load %arg7[%60, %c0_26] : memref<64x256xf32, #tpu.memory_space<vmem>>, vector<8x256xf32>
    %62 = vector.extract_strided_slice %61 {offsets = [0, 0], sizes = [8, 128], strides = [1, 1]} : vector<8x256xf32> to vector<8x128xf32>
    %cst_27 = arith.constant dense<0.000000e+00> : vector<8x128xf32>
    %63 = tpu.matmul %54, %14, %cst_27 {dimension_numbers = #tpu.dot_dimension_numbers<[1], [0], [0], [1], [0, 0, 1, 1], [], []>} : vector<8x32xf32>, vector<32x128xf32>, vector<8x128xf32> -> vector<8x128xf32>
    %64 = arith.addf %62, %63 : vector<8x128xf32>
    %65 = arith.negf %64 : vector<8x128xf32>
    %66 = math.exp %65 : vector<8x128xf32>
    %cst_28 = arith.constant 1.000000e+00 : f32
    %67 = vector.broadcast %cst_28 : f32 to vector<8x128xf32>
    %68 = arith.addf %67, %66 : vector<8x128xf32>
    %69 = arith.divf %67, %68 : vector<8x128xf32>
    %70 = math.tanh %64 : vector<8x128xf32>
    %71 = vector.extract_strided_slice %69 {offsets = [0, 0], sizes = [8, 32], strides = [1, 1]} : vector<8x128xf32> to vector<8x32xf32>
    %72 = vector.extract_strided_slice %69 {offsets = [0, 32], sizes = [8, 32], strides = [1, 1]} : vector<8x128xf32> to vector<8x32xf32>
    %73 = vector.extract_strided_slice %70 {offsets = [0, 64], sizes = [8, 32], strides = [1, 1]} : vector<8x128xf32> to vector<8x32xf32>
    %74 = vector.extract_strided_slice %69 {offsets = [0, 96], sizes = [8, 32], strides = [1, 1]} : vector<8x128xf32> to vector<8x32xf32>
    %75 = arith.mulf %72, %57 : vector<8x32xf32>
    %76 = arith.mulf %71, %73 : vector<8x32xf32>
    %77 = arith.addf %75, %76 : vector<8x32xf32>
    %78 = math.tanh %77 : vector<8x32xf32>
    %79 = arith.mulf %74, %78 : vector<8x32xf32>
    %80 = arith.index_cast %c1_i32 : i32 to index
    %c0_29 = arith.constant 0 : index
    %c0_30 = arith.constant 0 : index
    %81 = vector.load %arg1[%80, %c0_29, %c0_30] : memref<8x8x1xf32, #tpu.memory_space<vmem>>, vector<1x8x1xf32>
    %82 = vector.shape_cast %81 : vector<1x8x1xf32> to vector<8x1xf32>
    %cst_31 = arith.constant 5.000000e-01 : f32
    %83 = vector.broadcast %cst_31 : f32 to vector<8x1xf32>
    %84 = arith.cmpf ogt, %82, %83 : vector<8x1xf32>
    %cst_32 = arith.constant 0.000000e+00 : f32
    %85 = vector.shape_cast %84 : vector<8x1xi1> to vector<8x1xi1>
    %86 = vector.broadcast %85 : vector<8x1xi1> to vector<8x32xi1>
    %87 = vector.broadcast %cst_32 : f32 to vector<8x32xf32>
    %88 = arith.select %86, %79, %87 : vector<8x32xi1>, vector<8x32xf32>
    %89 = arith.index_cast %c1_i32 : i32 to index
    %c0_33 = arith.constant 0 : index
    %c0_34 = arith.constant 0 : index
    %90 = vector.load %arg9[%89, %c0_33, %c0_34] : memref<8x8x32xf32, #tpu.memory_space<vmem>>, vector<1x8x32xf32>
    %91 = vector.shape_cast %90 : vector<1x8x32xf32> to vector<8x32xf32>
    %92 = vector.shape_cast %88 : vector<8x32xf32> to vector<1x8x32xf32>
    tpu.vector_store %arg9[%89, %c0_33, %c0_34], %92 {strides = array<i32>} : memref<8x8x32xf32, #tpu.memory_space<vmem>>, vector<1x8x32xf32>,
    %93 = vector.shape_cast %84 : vector<8x1xi1> to vector<8x1xi1>
    %94 = vector.broadcast %93 : vector<8x1xi1> to vector<8x32xi1>
    %95 = arith.select %94, %79, %54 : vector<8x32xi1>, vector<8x32xf32>
    %96 = vector.shape_cast %84 : vector<8x1xi1> to vector<8x1xi1>
    %97 = vector.broadcast %96 : vector<8x1xi1> to vector<8x32xi1>
    %98 = arith.select %97, %77, %57 : vector<8x32xi1>, vector<8x32xf32>
    %c2_i32 = arith.constant 2 : i32
    %c8_i32_35 = arith.constant 8 : i32
    %99 = arith.muli %c2_i32, %c8_i32_35 : i32
    %100 = tpu.assume_multiple %99, 8 : i32
    %101 = arith.index_cast %100 : i32 to index
    %c0_36 = arith.constant 0 : index
    %102 = vector.load %arg7[%101, %c0_36] : memref<64x256xf32, #tpu.memory_space<vmem>>, vector<8x256xf32>
    %103 = vector.extract_strided_slice %102 {offsets = [0, 0], sizes = [8, 128], strides = [1, 1]} : vector<8x256xf32> to vector<8x128xf32>
    %cst_37 = arith.constant dense<0.000000e+00> : vector<8x128xf32>
    %104 = tpu.matmul %95, %14, %cst_37 {dimension_numbers = #tpu.dot_dimension_numbers<[1], [0], [0], [1], [0, 0, 1, 1], [], []>} : vector<8x32xf32>, vector<32x128xf32>, vector<8x128xf32> -> vector<8x128xf32>
    %105 = arith.addf %103, %104 : vector<8x128xf32>
    %106 = arith.negf %105 : vector<8x128xf32>
    %107 = math.exp %106 : vector<8x128xf32>
    %cst_38 = arith.constant 1.000000e+00 : f32
    %108 = vector.broadcast %cst_38 : f32 to vector<8x128xf32>
    %109 = arith.addf %108, %107 : vector<8x128xf32>
    %110 = arith.divf %108, %109 : vector<8x128xf32>
    %111 = math.tanh %105 : vector<8x128xf32>
    %112 = vector.extract_strided_slice %110 {offsets = [0, 0], sizes = [8, 32], strides = [1, 1]} : vector<8x128xf32> to vector<8x32xf32>
    %113 = vector.extract_strided_slice %110 {offsets = [0, 32], sizes = [8, 32], strides = [1, 1]} : vector<8x128xf32> to vector<8x32xf32>
    %114 = vector.extract_strided_slice %111 {offsets = [0, 64], sizes = [8, 32], strides = [1, 1]} : vector<8x128xf32> to vector<8x32xf32>
    %115 = vector.extract_strided_slice %110 {offsets = [0, 96], sizes = [8, 32], strides = [1, 1]} : vector<8x128xf32> to vector<8x32xf32>
    %116 = arith.mulf %113, %98 : vector<8x32xf32>
    %117 = arith.mulf %112, %114 : vector<8x32xf32>
    %118 = arith.addf %116, %117 : vector<8x32xf32>
    %119 = math.tanh %118 : vector<8x32xf32>
    %120 = arith.mulf %115, %119 : vector<8x32xf32>
    %121 = arith.index_cast %c2_i32 : i32 to index
    %c0_39 = arith.constant 0 : index
    %c0_40 = arith.constant 0 : index
    %122 = vector.load %arg1[%121, %c0_39, %c0_40] : memref<8x8x1xf32, #tpu.memory_space<vmem>>, vector<1x8x1xf32>
    %123 = vector.shape_cast %122 : vector<1x8x1xf32> to vector<8x1xf32>
    %cst_41 = arith.constant 5.000000e-01 : f32
    %124 = vector.broadcast %cst_41 : f32 to vector<8x1xf32>
    %125 = arith.cmpf ogt, %123, %124 : vector<8x1xf32>
    %cst_42 = arith.constant 0.000000e+00 : f32
    %126 = vector.shape_cast %125 : vector<8x1xi1> to vector<8x1xi1>
    %127 = vector.broadcast %126 : vector<8x1xi1> to vector<8x32xi1>
    %128 = vector.broadcast %cst_42 : f32 to vector<8x32xf32>
    %129 = arith.select %127, %120, %128 : vector<8x32xi1>, vector<8x32xf32>
    %130 = arith.index_cast %c2_i32 : i32 to index
    %c0_43 = arith.constant 0 : index
    %c0_44 = arith.constant 0 : index
    %131 = vector.load %arg9[%130, %c0_43, %c0_44] : memref<8x8x32xf32, #tpu.memory_space<vmem>>, vector<1x8x32xf32>
    %132 = vector.shape_cast %131 : vector<1x8x32xf32> to vector<8x32xf32>
    %133 = vector.shape_cast %129 : vector<8x32xf32> to vector<1x8x32xf32>
    tpu.vector_store %arg9[%130, %c0_43, %c0_44], %133 {strides = array<i32>} : memref<8x8x32xf32, #tpu.memory_space<vmem>>, vector<1x8x32xf32>,
    %134 = vector.shape_cast %125 : vector<8x1xi1> to vector<8x1xi1>
    %135 = vector.broadcast %134 : vector<8x1xi1> to vector<8x32xi1>
    %136 = arith.select %135, %120, %95 : vector<8x32xi1>, vector<8x32xf32>
    %137 = vector.shape_cast %125 : vector<8x1xi1> to vector<8x1xi1>
    %138 = vector.broadcast %137 : vector<8x1xi1> to vector<8x32xi1>
    %139 = arith.select %138, %118, %98 : vector<8x32xi1>, vector<8x32xf32>
    %c3_i32 = arith.constant 3 : i32
    %c8_i32_45 = arith.constant 8 : i32
    %140 = arith.muli %c3_i32, %c8_i32_45 : i32
    %141 = tpu.assume_multiple %140, 8 : i32
    %142 = arith.index_cast %141 : i32 to index
    %c0_46 = arith.constant 0 : index
    %143 = vector.load %arg7[%142, %c0_46] : memref<64x256xf32, #tpu.memory_space<vmem>>, vector<8x256xf32>
    %144 = vector.extract_strided_slice %143 {offsets = [0, 0], sizes = [8, 128], strides = [1, 1]} : vector<8x256xf32> to vector<8x128xf32>
    %cst_47 = arith.constant dense<0.000000e+00> : vector<8x128xf32>
    %145 = tpu.matmul %136, %14, %cst_47 {dimension_numbers = #tpu.dot_dimension_numbers<[1], [0], [0], [1], [0, 0, 1, 1], [], []>} : vector<8x32xf32>, vector<32x128xf32>, vector<8x128xf32> -> vector<8x128xf32>
    %146 = arith.addf %144, %145 : vector<8x128xf32>
    %147 = arith.negf %146 : vector<8x128xf32>
    %148 = math.exp %147 : vector<8x128xf32>
    %cst_48 = arith.constant 1.000000e+00 : f32
    %149 = vector.broadcast %cst_48 : f32 to vector<8x128xf32>
    %150 = arith.addf %149, %148 : vector<8x128xf32>
    %151 = arith.divf %149, %150 : vector<8x128xf32>
    %152 = math.tanh %146 : vector<8x128xf32>
    %153 = vector.extract_strided_slice %151 {offsets = [0, 0], sizes = [8, 32], strides = [1, 1]} : vector<8x128xf32> to vector<8x32xf32>
    %154 = vector.extract_strided_slice %151 {offsets = [0, 32], sizes = [8, 32], strides = [1, 1]} : vector<8x128xf32> to vector<8x32xf32>
    %155 = vector.extract_strided_slice %152 {offsets = [0, 64], sizes = [8, 32], strides = [1, 1]} : vector<8x128xf32> to vector<8x32xf32>
    %156 = vector.extract_strided_slice %151 {offsets = [0, 96], sizes = [8, 32], strides = [1, 1]} : vector<8x128xf32> to vector<8x32xf32>
    %157 = arith.mulf %154, %139 : vector<8x32xf32>
    %158 = arith.mulf %153, %155 : vector<8x32xf32>
    %159 = arith.addf %157, %158 : vector<8x32xf32>
    %160 = math.tanh %159 : vector<8x32xf32>
    %161 = arith.mulf %156, %160 : vector<8x32xf32>
    %162 = arith.index_cast %c3_i32 : i32 to index
    %c0_49 = arith.constant 0 : index
    %c0_50 = arith.constant 0 : index
    %163 = vector.load %arg1[%162, %c0_49, %c0_50] : memref<8x8x1xf32, #tpu.memory_space<vmem>>, vector<1x8x1xf32>
    %164 = vector.shape_cast %163 : vector<1x8x1xf32> to vector<8x1xf32>
    %cst_51 = arith.constant 5.000000e-01 : f32
    %165 = vector.broadcast %cst_51 : f32 to vector<8x1xf32>
    %166 = arith.cmpf ogt, %164, %165 : vector<8x1xf32>
    %cst_52 = arith.constant 0.000000e+00 : f32
    %167 = vector.shape_cast %166 : vector<8x1xi1> to vector<8x1xi1>
    %168 = vector.broadcast %167 : vector<8x1xi1> to vector<8x32xi1>
    %169 = vector.broadcast %cst_52 : f32 to vector<8x32xf32>
    %170 = arith.select %168, %161, %169 : vector<8x32xi1>, vector<8x32xf32>
    %171 = arith.index_cast %c3_i32 : i32 to index
    %c0_53 = arith.constant 0 : index
    %c0_54 = arith.constant 0 : index
    %172 = vector.load %arg9[%171, %c0_53, %c0_54] : memref<8x8x32xf32, #tpu.memory_space<vmem>>, vector<1x8x32xf32>
    %173 = vector.shape_cast %172 : vector<1x8x32xf32> to vector<8x32xf32>
    %174 = vector.shape_cast %170 : vector<8x32xf32> to vector<1x8x32xf32>
    tpu.vector_store %arg9[%171, %c0_53, %c0_54], %174 {strides = array<i32>} : memref<8x8x32xf32, #tpu.memory_space<vmem>>, vector<1x8x32xf32>,
    %175 = vector.shape_cast %166 : vector<8x1xi1> to vector<8x1xi1>
    %176 = vector.broadcast %175 : vector<8x1xi1> to vector<8x32xi1>
    %177 = arith.select %176, %161, %136 : vector<8x32xi1>, vector<8x32xf32>
    %178 = vector.shape_cast %166 : vector<8x1xi1> to vector<8x1xi1>
    %179 = vector.broadcast %178 : vector<8x1xi1> to vector<8x32xi1>
    %180 = arith.select %179, %159, %139 : vector<8x32xi1>, vector<8x32xf32>
    %c4_i32 = arith.constant 4 : i32
    %c8_i32_55 = arith.constant 8 : i32
    %181 = arith.muli %c4_i32, %c8_i32_55 : i32
    %182 = tpu.assume_multiple %181, 8 : i32
    %183 = arith.index_cast %182 : i32 to index
    %c0_56 = arith.constant 0 : index
    %184 = vector.load %arg7[%183, %c0_56] : memref<64x256xf32, #tpu.memory_space<vmem>>, vector<8x256xf32>
    %185 = vector.extract_strided_slice %184 {offsets = [0, 0], sizes = [8, 128], strides = [1, 1]} : vector<8x256xf32> to vector<8x128xf32>
    %cst_57 = arith.constant dense<0.000000e+00> : vector<8x128xf32>
    %186 = tpu.matmul %177, %14, %cst_57 {dimension_numbers = #tpu.dot_dimension_numbers<[1], [0], [0], [1], [0, 0, 1, 1], [], []>} : vector<8x32xf32>, vector<32x128xf32>, vector<8x128xf32> -> vector<8x128xf32>
    %187 = arith.addf %185, %186 : vector<8x128xf32>
    %188 = arith.negf %187 : vector<8x128xf32>
    %189 = math.exp %188 : vector<8x128xf32>
    %cst_58 = arith.constant 1.000000e+00 : f32
    %190 = vector.broadcast %cst_58 : f32 to vector<8x128xf32>
    %191 = arith.addf %190, %189 : vector<8x128xf32>
    %192 = arith.divf %190, %191 : vector<8x128xf32>
    %193 = math.tanh %187 : vector<8x128xf32>
    %194 = vector.extract_strided_slice %192 {offsets = [0, 0], sizes = [8, 32], strides = [1, 1]} : vector<8x128xf32> to vector<8x32xf32>
    %195 = vector.extract_strided_slice %192 {offsets = [0, 32], sizes = [8, 32], strides = [1, 1]} : vector<8x128xf32> to vector<8x32xf32>
    %196 = vector.extract_strided_slice %193 {offsets = [0, 64], sizes = [8, 32], strides = [1, 1]} : vector<8x128xf32> to vector<8x32xf32>
    %197 = vector.extract_strided_slice %192 {offsets = [0, 96], sizes = [8, 32], strides = [1, 1]} : vector<8x128xf32> to vector<8x32xf32>
    %198 = arith.mulf %195, %180 : vector<8x32xf32>
    %199 = arith.mulf %194, %196 : vector<8x32xf32>
    %200 = arith.addf %198, %199 : vector<8x32xf32>
    %201 = math.tanh %200 : vector<8x32xf32>
    %202 = arith.mulf %197, %201 : vector<8x32xf32>
    %203 = arith.index_cast %c4_i32 : i32 to index
    %c0_59 = arith.constant 0 : index
    %c0_60 = arith.constant 0 : index
    %204 = vector.load %arg1[%203, %c0_59, %c0_60] : memref<8x8x1xf32, #tpu.memory_space<vmem>>, vector<1x8x1xf32>
    %205 = vector.shape_cast %204 : vector<1x8x1xf32> to vector<8x1xf32>
    %cst_61 = arith.constant 5.000000e-01 : f32
    %206 = vector.broadcast %cst_61 : f32 to vector<8x1xf32>
    %207 = arith.cmpf ogt, %205, %206 : vector<8x1xf32>
    %cst_62 = arith.constant 0.000000e+00 : f32
    %208 = vector.shape_cast %207 : vector<8x1xi1> to vector<8x1xi1>
    %209 = vector.broadcast %208 : vector<8x1xi1> to vector<8x32xi1>
    %210 = vector.broadcast %cst_62 : f32 to vector<8x32xf32>
    %211 = arith.select %209, %202, %210 : vector<8x32xi1>, vector<8x32xf32>
    %212 = arith.index_cast %c4_i32 : i32 to index
    %c0_63 = arith.constant 0 : index
    %c0_64 = arith.constant 0 : index
    %213 = vector.load %arg9[%212, %c0_63, %c0_64] : memref<8x8x32xf32, #tpu.memory_space<vmem>>, vector<1x8x32xf32>
    %214 = vector.shape_cast %213 : vector<1x8x32xf32> to vector<8x32xf32>
    %215 = vector.shape_cast %211 : vector<8x32xf32> to vector<1x8x32xf32>
    tpu.vector_store %arg9[%212, %c0_63, %c0_64], %215 {strides = array<i32>} : memref<8x8x32xf32, #tpu.memory_space<vmem>>, vector<1x8x32xf32>,
    %216 = vector.shape_cast %207 : vector<8x1xi1> to vector<8x1xi1>
    %217 = vector.broadcast %216 : vector<8x1xi1> to vector<8x32xi1>
    %218 = arith.select %217, %202, %177 : vector<8x32xi1>, vector<8x32xf32>
    %219 = vector.shape_cast %207 : vector<8x1xi1> to vector<8x1xi1>
    %220 = vector.broadcast %219 : vector<8x1xi1> to vector<8x32xi1>
    %221 = arith.select %220, %200, %180 : vector<8x32xi1>, vector<8x32xf32>
    %c5_i32 = arith.constant 5 : i32
    %c8_i32_65 = arith.constant 8 : i32
    %222 = arith.muli %c5_i32, %c8_i32_65 : i32
    %223 = tpu.assume_multiple %222, 8 : i32
    %224 = arith.index_cast %223 : i32 to index
    %c0_66 = arith.constant 0 : index
    %225 = vector.load %arg7[%224, %c0_66] : memref<64x256xf32, #tpu.memory_space<vmem>>, vector<8x256xf32>
    %226 = vector.extract_strided_slice %225 {offsets = [0, 0], sizes = [8, 128], strides = [1, 1]} : vector<8x256xf32> to vector<8x128xf32>
    %cst_67 = arith.constant dense<0.000000e+00> : vector<8x128xf32>
    %227 = tpu.matmul %218, %14, %cst_67 {dimension_numbers = #tpu.dot_dimension_numbers<[1], [0], [0], [1], [0, 0, 1, 1], [], []>} : vector<8x32xf32>, vector<32x128xf32>, vector<8x128xf32> -> vector<8x128xf32>
    %228 = arith.addf %226, %227 : vector<8x128xf32>
    %229 = arith.negf %228 : vector<8x128xf32>
    %230 = math.exp %229 : vector<8x128xf32>
    %cst_68 = arith.constant 1.000000e+00 : f32
    %231 = vector.broadcast %cst_68 : f32 to vector<8x128xf32>
    %232 = arith.addf %231, %230 : vector<8x128xf32>
    %233 = arith.divf %231, %232 : vector<8x128xf32>
    %234 = math.tanh %228 : vector<8x128xf32>
    %235 = vector.extract_strided_slice %233 {offsets = [0, 0], sizes = [8, 32], strides = [1, 1]} : vector<8x128xf32> to vector<8x32xf32>
    %236 = vector.extract_strided_slice %233 {offsets = [0, 32], sizes = [8, 32], strides = [1, 1]} : vector<8x128xf32> to vector<8x32xf32>
    %237 = vector.extract_strided_slice %234 {offsets = [0, 64], sizes = [8, 32], strides = [1, 1]} : vector<8x128xf32> to vector<8x32xf32>
    %238 = vector.extract_strided_slice %233 {offsets = [0, 96], sizes = [8, 32], strides = [1, 1]} : vector<8x128xf32> to vector<8x32xf32>
    %239 = arith.mulf %236, %221 : vector<8x32xf32>
    %240 = arith.mulf %235, %237 : vector<8x32xf32>
    %241 = arith.addf %239, %240 : vector<8x32xf32>
    %242 = math.tanh %241 : vector<8x32xf32>
    %243 = arith.mulf %238, %242 : vector<8x32xf32>
    %244 = arith.index_cast %c5_i32 : i32 to index
    %c0_69 = arith.constant 0 : index
    %c0_70 = arith.constant 0 : index
    %245 = vector.load %arg1[%244, %c0_69, %c0_70] : memref<8x8x1xf32, #tpu.memory_space<vmem>>, vector<1x8x1xf32>
    %246 = vector.shape_cast %245 : vector<1x8x1xf32> to vector<8x1xf32>
    %cst_71 = arith.constant 5.000000e-01 : f32
    %247 = vector.broadcast %cst_71 : f32 to vector<8x1xf32>
    %248 = arith.cmpf ogt, %246, %247 : vector<8x1xf32>
    %cst_72 = arith.constant 0.000000e+00 : f32
    %249 = vector.shape_cast %248 : vector<8x1xi1> to vector<8x1xi1>
    %250 = vector.broadcast %249 : vector<8x1xi1> to vector<8x32xi1>
    %251 = vector.broadcast %cst_72 : f32 to vector<8x32xf32>
    %252 = arith.select %250, %243, %251 : vector<8x32xi1>, vector<8x32xf32>
    %253 = arith.index_cast %c5_i32 : i32 to index
    %c0_73 = arith.constant 0 : index
    %c0_74 = arith.constant 0 : index
    %254 = vector.load %arg9[%253, %c0_73, %c0_74] : memref<8x8x32xf32, #tpu.memory_space<vmem>>, vector<1x8x32xf32>
    %255 = vector.shape_cast %254 : vector<1x8x32xf32> to vector<8x32xf32>
    %256 = vector.shape_cast %252 : vector<8x32xf32> to vector<1x8x32xf32>
    tpu.vector_store %arg9[%253, %c0_73, %c0_74], %256 {strides = array<i32>} : memref<8x8x32xf32, #tpu.memory_space<vmem>>, vector<1x8x32xf32>,
    %257 = vector.shape_cast %248 : vector<8x1xi1> to vector<8x1xi1>
    %258 = vector.broadcast %257 : vector<8x1xi1> to vector<8x32xi1>
    %259 = arith.select %258, %243, %218 : vector<8x32xi1>, vector<8x32xf32>
    %260 = vector.shape_cast %248 : vector<8x1xi1> to vector<8x1xi1>
    %261 = vector.broadcast %260 : vector<8x1xi1> to vector<8x32xi1>
    %262 = arith.select %261, %241, %221 : vector<8x32xi1>, vector<8x32xf32>
    %c6_i32 = arith.constant 6 : i32
    %c8_i32_75 = arith.constant 8 : i32
    %263 = arith.muli %c6_i32, %c8_i32_75 : i32
    %264 = tpu.assume_multiple %263, 8 : i32
    %265 = arith.index_cast %264 : i32 to index
    %c0_76 = arith.constant 0 : index
    %266 = vector.load %arg7[%265, %c0_76] : memref<64x256xf32, #tpu.memory_space<vmem>>, vector<8x256xf32>
    %267 = vector.extract_strided_slice %266 {offsets = [0, 0], sizes = [8, 128], strides = [1, 1]} : vector<8x256xf32> to vector<8x128xf32>
    %cst_77 = arith.constant dense<0.000000e+00> : vector<8x128xf32>
    %268 = tpu.matmul %259, %14, %cst_77 {dimension_numbers = #tpu.dot_dimension_numbers<[1], [0], [0], [1], [0, 0, 1, 1], [], []>} : vector<8x32xf32>, vector<32x128xf32>, vector<8x128xf32> -> vector<8x128xf32>
    %269 = arith.addf %267, %268 : vector<8x128xf32>
    %270 = arith.negf %269 : vector<8x128xf32>
    %271 = math.exp %270 : vector<8x128xf32>
    %cst_78 = arith.constant 1.000000e+00 : f32
    %272 = vector.broadcast %cst_78 : f32 to vector<8x128xf32>
    %273 = arith.addf %272, %271 : vector<8x128xf32>
    %274 = arith.divf %272, %273 : vector<8x128xf32>
    %275 = math.tanh %269 : vector<8x128xf32>
    %276 = vector.extract_strided_slice %274 {offsets = [0, 0], sizes = [8, 32], strides = [1, 1]} : vector<8x128xf32> to vector<8x32xf32>
    %277 = vector.extract_strided_slice %274 {offsets = [0, 32], sizes = [8, 32], strides = [1, 1]} : vector<8x128xf32> to vector<8x32xf32>
    %278 = vector.extract_strided_slice %275 {offsets = [0, 64], sizes = [8, 32], strides = [1, 1]} : vector<8x128xf32> to vector<8x32xf32>
    %279 = vector.extract_strided_slice %274 {offsets = [0, 96], sizes = [8, 32], strides = [1, 1]} : vector<8x128xf32> to vector<8x32xf32>
    %280 = arith.mulf %277, %262 : vector<8x32xf32>
    %281 = arith.mulf %276, %278 : vector<8x32xf32>
    %282 = arith.addf %280, %281 : vector<8x32xf32>
    %283 = math.tanh %282 : vector<8x32xf32>
    %284 = arith.mulf %279, %283 : vector<8x32xf32>
    %285 = arith.index_cast %c6_i32 : i32 to index
    %c0_79 = arith.constant 0 : index
    %c0_80 = arith.constant 0 : index
    %286 = vector.load %arg1[%285, %c0_79, %c0_80] : memref<8x8x1xf32, #tpu.memory_space<vmem>>, vector<1x8x1xf32>
    %287 = vector.shape_cast %286 : vector<1x8x1xf32> to vector<8x1xf32>
    %cst_81 = arith.constant 5.000000e-01 : f32
    %288 = vector.broadcast %cst_81 : f32 to vector<8x1xf32>
    %289 = arith.cmpf ogt, %287, %288 : vector<8x1xf32>
    %cst_82 = arith.constant 0.000000e+00 : f32
    %290 = vector.shape_cast %289 : vector<8x1xi1> to vector<8x1xi1>
    %291 = vector.broadcast %290 : vector<8x1xi1> to vector<8x32xi1>
    %292 = vector.broadcast %cst_82 : f32 to vector<8x32xf32>
    %293 = arith.select %291, %284, %292 : vector<8x32xi1>, vector<8x32xf32>
    %294 = arith.index_cast %c6_i32 : i32 to index
    %c0_83 = arith.constant 0 : index
    %c0_84 = arith.constant 0 : index
    %295 = vector.load %arg9[%294, %c0_83, %c0_84] : memref<8x8x32xf32, #tpu.memory_space<vmem>>, vector<1x8x32xf32>
    %296 = vector.shape_cast %295 : vector<1x8x32xf32> to vector<8x32xf32>
    %297 = vector.shape_cast %293 : vector<8x32xf32> to vector<1x8x32xf32>
    tpu.vector_store %arg9[%294, %c0_83, %c0_84], %297 {strides = array<i32>} : memref<8x8x32xf32, #tpu.memory_space<vmem>>, vector<1x8x32xf32>,
    %298 = vector.shape_cast %289 : vector<8x1xi1> to vector<8x1xi1>
    %299 = vector.broadcast %298 : vector<8x1xi1> to vector<8x32xi1>
    %300 = arith.select %299, %284, %259 : vector<8x32xi1>, vector<8x32xf32>
    %301 = vector.shape_cast %289 : vector<8x1xi1> to vector<8x1xi1>
    %302 = vector.broadcast %301 : vector<8x1xi1> to vector<8x32xi1>
    %303 = arith.select %302, %282, %262 : vector<8x32xi1>, vector<8x32xf32>
    %c7_i32 = arith.constant 7 : i32
    %c8_i32_85 = arith.constant 8 : i32
    %304 = arith.muli %c7_i32, %c8_i32_85 : i32
    %305 = tpu.assume_multiple %304, 8 : i32
    %306 = arith.index_cast %305 : i32 to index
    %c0_86 = arith.constant 0 : index
    %307 = vector.load %arg7[%306, %c0_86] : memref<64x256xf32, #tpu.memory_space<vmem>>, vector<8x256xf32>
    %308 = vector.extract_strided_slice %307 {offsets = [0, 0], sizes = [8, 128], strides = [1, 1]} : vector<8x256xf32> to vector<8x128xf32>
    %cst_87 = arith.constant dense<0.000000e+00> : vector<8x128xf32>
    %309 = tpu.matmul %300, %14, %cst_87 {dimension_numbers = #tpu.dot_dimension_numbers<[1], [0], [0], [1], [0, 0, 1, 1], [], []>} : vector<8x32xf32>, vector<32x128xf32>, vector<8x128xf32> -> vector<8x128xf32>
    %310 = arith.addf %308, %309 : vector<8x128xf32>
    %311 = arith.negf %310 : vector<8x128xf32>
    %312 = math.exp %311 : vector<8x128xf32>
    %cst_88 = arith.constant 1.000000e+00 : f32
    %313 = vector.broadcast %cst_88 : f32 to vector<8x128xf32>
    %314 = arith.addf %313, %312 : vector<8x128xf32>
    %315 = arith.divf %313, %314 : vector<8x128xf32>
    %316 = math.tanh %310 : vector<8x128xf32>
    %317 = vector.extract_strided_slice %315 {offsets = [0, 0], sizes = [8, 32], strides = [1, 1]} : vector<8x128xf32> to vector<8x32xf32>
    %318 = vector.extract_strided_slice %315 {offsets = [0, 32], sizes = [8, 32], strides = [1, 1]} : vector<8x128xf32> to vector<8x32xf32>
    %319 = vector.extract_strided_slice %316 {offsets = [0, 64], sizes = [8, 32], strides = [1, 1]} : vector<8x128xf32> to vector<8x32xf32>
    %320 = vector.extract_strided_slice %315 {offsets = [0, 96], sizes = [8, 32], strides = [1, 1]} : vector<8x128xf32> to vector<8x32xf32>
    %321 = arith.mulf %318, %303 : vector<8x32xf32>
    %322 = arith.mulf %317, %319 : vector<8x32xf32>
    %323 = arith.addf %321, %322 : vector<8x32xf32>
    %324 = math.tanh %323 : vector<8x32xf32>
    %325 = arith.mulf %320, %324 : vector<8x32xf32>
    %326 = arith.index_cast %c7_i32 : i32 to index
    %c0_89 = arith.constant 0 : index
    %c0_90 = arith.constant 0 : index
    %327 = vector.load %arg1[%326, %c0_89, %c0_90] : memref<8x8x1xf32, #tpu.memory_space<vmem>>, vector<1x8x1xf32>
    %328 = vector.shape_cast %327 : vector<1x8x1xf32> to vector<8x1xf32>
    %cst_91 = arith.constant 5.000000e-01 : f32
    %329 = vector.broadcast %cst_91 : f32 to vector<8x1xf32>
    %330 = arith.cmpf ogt, %328, %329 : vector<8x1xf32>
    %cst_92 = arith.constant 0.000000e+00 : f32
    %331 = vector.shape_cast %330 : vector<8x1xi1> to vector<8x1xi1>
    %332 = vector.broadcast %331 : vector<8x1xi1> to vector<8x32xi1>
    %333 = vector.broadcast %cst_92 : f32 to vector<8x32xf32>
    %334 = arith.select %332, %325, %333 : vector<8x32xi1>, vector<8x32xf32>
    %335 = arith.index_cast %c7_i32 : i32 to index
    %c0_93 = arith.constant 0 : index
    %c0_94 = arith.constant 0 : index
    %336 = vector.load %arg9[%335, %c0_93, %c0_94] : memref<8x8x32xf32, #tpu.memory_space<vmem>>, vector<1x8x32xf32>
    %337 = vector.shape_cast %336 : vector<1x8x32xf32> to vector<8x32xf32>
    %338 = vector.shape_cast %334 : vector<8x32xf32> to vector<1x8x32xf32>
    tpu.vector_store %arg9[%335, %c0_93, %c0_94], %338 {strides = array<i32>} : memref<8x8x32xf32, #tpu.memory_space<vmem>>, vector<1x8x32xf32>,
    %339 = vector.shape_cast %330 : vector<8x1xi1> to vector<8x1xi1>
    %340 = vector.broadcast %339 : vector<8x1xi1> to vector<8x32xi1>
    %341 = arith.select %340, %325, %300 : vector<8x32xi1>, vector<8x32xf32>
    %342 = vector.shape_cast %330 : vector<8x1xi1> to vector<8x1xi1>
    %343 = vector.broadcast %342 : vector<8x1xi1> to vector<8x32xi1>
    %344 = arith.select %343, %323, %303 : vector<8x32xi1>, vector<8x32xf32>
    %c8_i32_95 = arith.constant 8 : i32
    %c0_i32_96 = arith.constant 0 : i32
    %c7_i32_97 = arith.constant 7 : i32
    %345 = arith.subi %c7_i32_97, %c0_i32_96 : i32
    %c8_i32_98 = arith.constant 8 : i32
    %346 = arith.muli %345, %c8_i32_98 : i32
    %347 = tpu.assume_multiple %346, 8 : i32
    %348 = arith.index_cast %347 : i32 to index
    %c0_99 = arith.constant 0 : index
    %349 = vector.load %arg7[%348, %c0_99] : memref<64x256xf32, #tpu.memory_space<vmem>>, vector<8x256xf32>
    %350 = vector.extract_strided_slice %349 {offsets = [0, 128], sizes = [8, 128], strides = [1, 1]} : vector<8x256xf32> to vector<8x128xf32>
    %cst_100 = arith.constant dense<0.000000e+00> : vector<8x128xf32>
    %351 = tpu.matmul %16, %15, %cst_100 {dimension_numbers = #tpu.dot_dimension_numbers<[1], [0], [0], [1], [0, 0, 1, 1], [], []>} : vector<8x32xf32>, vector<32x128xf32>, vector<8x128xf32> -> vector<8x128xf32>
    %352 = arith.addf %350, %351 : vector<8x128xf32>
    %353 = arith.negf %352 : vector<8x128xf32>
    %354 = math.exp %353 : vector<8x128xf32>
    %cst_101 = arith.constant 1.000000e+00 : f32
    %355 = vector.broadcast %cst_101 : f32 to vector<8x128xf32>
    %356 = arith.addf %355, %354 : vector<8x128xf32>
    %357 = arith.divf %355, %356 : vector<8x128xf32>
    %358 = math.tanh %352 : vector<8x128xf32>
    %359 = vector.extract_strided_slice %357 {offsets = [0, 0], sizes = [8, 32], strides = [1, 1]} : vector<8x128xf32> to vector<8x32xf32>
    %360 = vector.extract_strided_slice %357 {offsets = [0, 32], sizes = [8, 32], strides = [1, 1]} : vector<8x128xf32> to vector<8x32xf32>
    %361 = vector.extract_strided_slice %358 {offsets = [0, 64], sizes = [8, 32], strides = [1, 1]} : vector<8x128xf32> to vector<8x32xf32>
    %362 = vector.extract_strided_slice %357 {offsets = [0, 96], sizes = [8, 32], strides = [1, 1]} : vector<8x128xf32> to vector<8x32xf32>
    %363 = arith.mulf %360, %16 : vector<8x32xf32>
    %364 = arith.mulf %359, %361 : vector<8x32xf32>
    %365 = arith.addf %363, %364 : vector<8x32xf32>
    %366 = math.tanh %365 : vector<8x32xf32>
    %367 = arith.mulf %362, %366 : vector<8x32xf32>
    %368 = arith.index_cast %345 : i32 to index
    %c0_102 = arith.constant 0 : index
    %c0_103 = arith.constant 0 : index
    %369 = vector.load %arg1[%368, %c0_102, %c0_103] : memref<8x8x1xf32, #tpu.memory_space<vmem>>, vector<1x8x1xf32>
    %370 = vector.shape_cast %369 : vector<1x8x1xf32> to vector<8x1xf32>
    %cst_104 = arith.constant 5.000000e-01 : f32
    %371 = vector.broadcast %cst_104 : f32 to vector<8x1xf32>
    %372 = arith.cmpf ogt, %370, %371 : vector<8x1xf32>
    %cst_105 = arith.constant 0.000000e+00 : f32
    %373 = vector.shape_cast %372 : vector<8x1xi1> to vector<8x1xi1>
    %374 = vector.broadcast %373 : vector<8x1xi1> to vector<8x32xi1>
    %375 = vector.broadcast %cst_105 : f32 to vector<8x32xf32>
    %376 = arith.select %374, %367, %375 : vector<8x32xi1>, vector<8x32xf32>
    %377 = arith.index_cast %345 : i32 to index
    %c0_106 = arith.constant 0 : index
    %c0_107 = arith.constant 0 : index
    %378 = vector.load %arg10[%377, %c0_106, %c0_107] : memref<8x8x32xf32, #tpu.memory_space<vmem>>, vector<1x8x32xf32>
    %379 = vector.shape_cast %378 : vector<1x8x32xf32> to vector<8x32xf32>
    %380 = vector.shape_cast %376 : vector<8x32xf32> to vector<1x8x32xf32>
    tpu.vector_store %arg10[%377, %c0_106, %c0_107], %380 {strides = array<i32>} : memref<8x8x32xf32, #tpu.memory_space<vmem>>, vector<1x8x32xf32>,
    %381 = vector.shape_cast %372 : vector<8x1xi1> to vector<8x1xi1>
    %382 = vector.broadcast %381 : vector<8x1xi1> to vector<8x32xi1>
    %383 = arith.select %382, %367, %16 : vector<8x32xi1>, vector<8x32xf32>
    %384 = vector.shape_cast %372 : vector<8x1xi1> to vector<8x1xi1>
    %385 = vector.broadcast %384 : vector<8x1xi1> to vector<8x32xi1>
    %386 = arith.select %385, %365, %16 : vector<8x32xi1>, vector<8x32xf32>
    %c1_i32_108 = arith.constant 1 : i32
    %c7_i32_109 = arith.constant 7 : i32
    %387 = arith.subi %c7_i32_109, %c1_i32_108 : i32
    %c8_i32_110 = arith.constant 8 : i32
    %388 = arith.muli %387, %c8_i32_110 : i32
    %389 = tpu.assume_multiple %388, 8 : i32
    %390 = arith.index_cast %389 : i32 to index
    %c0_111 = arith.constant 0 : index
    %391 = vector.load %arg7[%390, %c0_111] : memref<64x256xf32, #tpu.memory_space<vmem>>, vector<8x256xf32>
    %392 = vector.extract_strided_slice %391 {offsets = [0, 128], sizes = [8, 128], strides = [1, 1]} : vector<8x256xf32> to vector<8x128xf32>
    %cst_112 = arith.constant dense<0.000000e+00> : vector<8x128xf32>
    %393 = tpu.matmul %383, %15, %cst_112 {dimension_numbers = #tpu.dot_dimension_numbers<[1], [0], [0], [1], [0, 0, 1, 1], [], []>} : vector<8x32xf32>, vector<32x128xf32>, vector<8x128xf32> -> vector<8x128xf32>
    %394 = arith.addf %392, %393 : vector<8x128xf32>
    %395 = arith.negf %394 : vector<8x128xf32>
    %396 = math.exp %395 : vector<8x128xf32>
    %cst_113 = arith.constant 1.000000e+00 : f32
    %397 = vector.broadcast %cst_113 : f32 to vector<8x128xf32>
    %398 = arith.addf %397, %396 : vector<8x128xf32>
    %399 = arith.divf %397, %398 : vector<8x128xf32>
    %400 = math.tanh %394 : vector<8x128xf32>
    %401 = vector.extract_strided_slice %399 {offsets = [0, 0], sizes = [8, 32], strides = [1, 1]} : vector<8x128xf32> to vector<8x32xf32>
    %402 = vector.extract_strided_slice %399 {offsets = [0, 32], sizes = [8, 32], strides = [1, 1]} : vector<8x128xf32> to vector<8x32xf32>
    %403 = vector.extract_strided_slice %400 {offsets = [0, 64], sizes = [8, 32], strides = [1, 1]} : vector<8x128xf32> to vector<8x32xf32>
    %404 = vector.extract_strided_slice %399 {offsets = [0, 96], sizes = [8, 32], strides = [1, 1]} : vector<8x128xf32> to vector<8x32xf32>
    %405 = arith.mulf %402, %386 : vector<8x32xf32>
    %406 = arith.mulf %401, %403 : vector<8x32xf32>
    %407 = arith.addf %405, %406 : vector<8x32xf32>
    %408 = math.tanh %407 : vector<8x32xf32>
    %409 = arith.mulf %404, %408 : vector<8x32xf32>
    %410 = arith.index_cast %387 : i32 to index
    %c0_114 = arith.constant 0 : index
    %c0_115 = arith.constant 0 : index
    %411 = vector.load %arg1[%410, %c0_114, %c0_115] : memref<8x8x1xf32, #tpu.memory_space<vmem>>, vector<1x8x1xf32>
    %412 = vector.shape_cast %411 : vector<1x8x1xf32> to vector<8x1xf32>
    %cst_116 = arith.constant 5.000000e-01 : f32
    %413 = vector.broadcast %cst_116 : f32 to vector<8x1xf32>
    %414 = arith.cmpf ogt, %412, %413 : vector<8x1xf32>
    %cst_117 = arith.constant 0.000000e+00 : f32
    %415 = vector.shape_cast %414 : vector<8x1xi1> to vector<8x1xi1>
    %416 = vector.broadcast %415 : vector<8x1xi1> to vector<8x32xi1>
    %417 = vector.broadcast %cst_117 : f32 to vector<8x32xf32>
    %418 = arith.select %416, %409, %417 : vector<8x32xi1>, vector<8x32xf32>
    %419 = arith.index_cast %387 : i32 to index
    %c0_118 = arith.constant 0 : index
    %c0_119 = arith.constant 0 : index
    %420 = vector.load %arg10[%419, %c0_118, %c0_119] : memref<8x8x32xf32, #tpu.memory_space<vmem>>, vector<1x8x32xf32>
    %421 = vector.shape_cast %420 : vector<1x8x32xf32> to vector<8x32xf32>
    %422 = vector.shape_cast %418 : vector<8x32xf32> to vector<1x8x32xf32>
    tpu.vector_store %arg10[%419, %c0_118, %c0_119], %422 {strides = array<i32>} : memref<8x8x32xf32, #tpu.memory_space<vmem>>, vector<1x8x32xf32>,
    %423 = vector.shape_cast %414 : vector<8x1xi1> to vector<8x1xi1>
    %424 = vector.broadcast %423 : vector<8x1xi1> to vector<8x32xi1>
    %425 = arith.select %424, %409, %383 : vector<8x32xi1>, vector<8x32xf32>
    %426 = vector.shape_cast %414 : vector<8x1xi1> to vector<8x1xi1>
    %427 = vector.broadcast %426 : vector<8x1xi1> to vector<8x32xi1>
    %428 = arith.select %427, %407, %386 : vector<8x32xi1>, vector<8x32xf32>
    %c2_i32_120 = arith.constant 2 : i32
    %c7_i32_121 = arith.constant 7 : i32
    %429 = arith.subi %c7_i32_121, %c2_i32_120 : i32
    %c8_i32_122 = arith.constant 8 : i32
    %430 = arith.muli %429, %c8_i32_122 : i32
    %431 = tpu.assume_multiple %430, 8 : i32
    %432 = arith.index_cast %431 : i32 to index
    %c0_123 = arith.constant 0 : index
    %433 = vector.load %arg7[%432, %c0_123] : memref<64x256xf32, #tpu.memory_space<vmem>>, vector<8x256xf32>
    %434 = vector.extract_strided_slice %433 {offsets = [0, 128], sizes = [8, 128], strides = [1, 1]} : vector<8x256xf32> to vector<8x128xf32>
    %cst_124 = arith.constant dense<0.000000e+00> : vector<8x128xf32>
    %435 = tpu.matmul %425, %15, %cst_124 {dimension_numbers = #tpu.dot_dimension_numbers<[1], [0], [0], [1], [0, 0, 1, 1], [], []>} : vector<8x32xf32>, vector<32x128xf32>, vector<8x128xf32> -> vector<8x128xf32>
    %436 = arith.addf %434, %435 : vector<8x128xf32>
    %437 = arith.negf %436 : vector<8x128xf32>
    %438 = math.exp %437 : vector<8x128xf32>
    %cst_125 = arith.constant 1.000000e+00 : f32
    %439 = vector.broadcast %cst_125 : f32 to vector<8x128xf32>
    %440 = arith.addf %439, %438 : vector<8x128xf32>
    %441 = arith.divf %439, %440 : vector<8x128xf32>
    %442 = math.tanh %436 : vector<8x128xf32>
    %443 = vector.extract_strided_slice %441 {offsets = [0, 0], sizes = [8, 32], strides = [1, 1]} : vector<8x128xf32> to vector<8x32xf32>
    %444 = vector.extract_strided_slice %441 {offsets = [0, 32], sizes = [8, 32], strides = [1, 1]} : vector<8x128xf32> to vector<8x32xf32>
    %445 = vector.extract_strided_slice %442 {offsets = [0, 64], sizes = [8, 32], strides = [1, 1]} : vector<8x128xf32> to vector<8x32xf32>
    %446 = vector.extract_strided_slice %441 {offsets = [0, 96], sizes = [8, 32], strides = [1, 1]} : vector<8x128xf32> to vector<8x32xf32>
    %447 = arith.mulf %444, %428 : vector<8x32xf32>
    %448 = arith.mulf %443, %445 : vector<8x32xf32>
    %449 = arith.addf %447, %448 : vector<8x32xf32>
    %450 = math.tanh %449 : vector<8x32xf32>
    %451 = arith.mulf %446, %450 : vector<8x32xf32>
    %452 = arith.index_cast %429 : i32 to index
    %c0_126 = arith.constant 0 : index
    %c0_127 = arith.constant 0 : index
    %453 = vector.load %arg1[%452, %c0_126, %c0_127] : memref<8x8x1xf32, #tpu.memory_space<vmem>>, vector<1x8x1xf32>
    %454 = vector.shape_cast %453 : vector<1x8x1xf32> to vector<8x1xf32>
    %cst_128 = arith.constant 5.000000e-01 : f32
    %455 = vector.broadcast %cst_128 : f32 to vector<8x1xf32>
    %456 = arith.cmpf ogt, %454, %455 : vector<8x1xf32>
    %cst_129 = arith.constant 0.000000e+00 : f32
    %457 = vector.shape_cast %456 : vector<8x1xi1> to vector<8x1xi1>
    %458 = vector.broadcast %457 : vector<8x1xi1> to vector<8x32xi1>
    %459 = vector.broadcast %cst_129 : f32 to vector<8x32xf32>
    %460 = arith.select %458, %451, %459 : vector<8x32xi1>, vector<8x32xf32>
    %461 = arith.index_cast %429 : i32 to index
    %c0_130 = arith.constant 0 : index
    %c0_131 = arith.constant 0 : index
    %462 = vector.load %arg10[%461, %c0_130, %c0_131] : memref<8x8x32xf32, #tpu.memory_space<vmem>>, vector<1x8x32xf32>
    %463 = vector.shape_cast %462 : vector<1x8x32xf32> to vector<8x32xf32>
    %464 = vector.shape_cast %460 : vector<8x32xf32> to vector<1x8x32xf32>
    tpu.vector_store %arg10[%461, %c0_130, %c0_131], %464 {strides = array<i32>} : memref<8x8x32xf32, #tpu.memory_space<vmem>>, vector<1x8x32xf32>,
    %465 = vector.shape_cast %456 : vector<8x1xi1> to vector<8x1xi1>
    %466 = vector.broadcast %465 : vector<8x1xi1> to vector<8x32xi1>
    %467 = arith.select %466, %451, %425 : vector<8x32xi1>, vector<8x32xf32>
    %468 = vector.shape_cast %456 : vector<8x1xi1> to vector<8x1xi1>
    %469 = vector.broadcast %468 : vector<8x1xi1> to vector<8x32xi1>
    %470 = arith.select %469, %449, %428 : vector<8x32xi1>, vector<8x32xf32>
    %c3_i32_132 = arith.constant 3 : i32
    %c7_i32_133 = arith.constant 7 : i32
    %471 = arith.subi %c7_i32_133, %c3_i32_132 : i32
    %c8_i32_134 = arith.constant 8 : i32
    %472 = arith.muli %471, %c8_i32_134 : i32
    %473 = tpu.assume_multiple %472, 8 : i32
    %474 = arith.index_cast %473 : i32 to index
    %c0_135 = arith.constant 0 : index
    %475 = vector.load %arg7[%474, %c0_135] : memref<64x256xf32, #tpu.memory_space<vmem>>, vector<8x256xf32>
    %476 = vector.extract_strided_slice %475 {offsets = [0, 128], sizes = [8, 128], strides = [1, 1]} : vector<8x256xf32> to vector<8x128xf32>
    %cst_136 = arith.constant dense<0.000000e+00> : vector<8x128xf32>
    %477 = tpu.matmul %467, %15, %cst_136 {dimension_numbers = #tpu.dot_dimension_numbers<[1], [0], [0], [1], [0, 0, 1, 1], [], []>} : vector<8x32xf32>, vector<32x128xf32>, vector<8x128xf32> -> vector<8x128xf32>
    %478 = arith.addf %476, %477 : vector<8x128xf32>
    %479 = arith.negf %478 : vector<8x128xf32>
    %480 = math.exp %479 : vector<8x128xf32>
    %cst_137 = arith.constant 1.000000e+00 : f32
    %481 = vector.broadcast %cst_137 : f32 to vector<8x128xf32>
    %482 = arith.addf %481, %480 : vector<8x128xf32>
    %483 = arith.divf %481, %482 : vector<8x128xf32>
    %484 = math.tanh %478 : vector<8x128xf32>
    %485 = vector.extract_strided_slice %483 {offsets = [0, 0], sizes = [8, 32], strides = [1, 1]} : vector<8x128xf32> to vector<8x32xf32>
    %486 = vector.extract_strided_slice %483 {offsets = [0, 32], sizes = [8, 32], strides = [1, 1]} : vector<8x128xf32> to vector<8x32xf32>
    %487 = vector.extract_strided_slice %484 {offsets = [0, 64], sizes = [8, 32], strides = [1, 1]} : vector<8x128xf32> to vector<8x32xf32>
    %488 = vector.extract_strided_slice %483 {offsets = [0, 96], sizes = [8, 32], strides = [1, 1]} : vector<8x128xf32> to vector<8x32xf32>
    %489 = arith.mulf %486, %470 : vector<8x32xf32>
    %490 = arith.mulf %485, %487 : vector<8x32xf32>
    %491 = arith.addf %489, %490 : vector<8x32xf32>
    %492 = math.tanh %491 : vector<8x32xf32>
    %493 = arith.mulf %488, %492 : vector<8x32xf32>
    %494 = arith.index_cast %471 : i32 to index
    %c0_138 = arith.constant 0 : index
    %c0_139 = arith.constant 0 : index
    %495 = vector.load %arg1[%494, %c0_138, %c0_139] : memref<8x8x1xf32, #tpu.memory_space<vmem>>, vector<1x8x1xf32>
    %496 = vector.shape_cast %495 : vector<1x8x1xf32> to vector<8x1xf32>
    %cst_140 = arith.constant 5.000000e-01 : f32
    %497 = vector.broadcast %cst_140 : f32 to vector<8x1xf32>
    %498 = arith.cmpf ogt, %496, %497 : vector<8x1xf32>
    %cst_141 = arith.constant 0.000000e+00 : f32
    %499 = vector.shape_cast %498 : vector<8x1xi1> to vector<8x1xi1>
    %500 = vector.broadcast %499 : vector<8x1xi1> to vector<8x32xi1>
    %501 = vector.broadcast %cst_141 : f32 to vector<8x32xf32>
    %502 = arith.select %500, %493, %501 : vector<8x32xi1>, vector<8x32xf32>
    %503 = arith.index_cast %471 : i32 to index
    %c0_142 = arith.constant 0 : index
    %c0_143 = arith.constant 0 : index
    %504 = vector.load %arg10[%503, %c0_142, %c0_143] : memref<8x8x32xf32, #tpu.memory_space<vmem>>, vector<1x8x32xf32>
    %505 = vector.shape_cast %504 : vector<1x8x32xf32> to vector<8x32xf32>
    %506 = vector.shape_cast %502 : vector<8x32xf32> to vector<1x8x32xf32>
    tpu.vector_store %arg10[%503, %c0_142, %c0_143], %506 {strides = array<i32>} : memref<8x8x32xf32, #tpu.memory_space<vmem>>, vector<1x8x32xf32>,
    %507 = vector.shape_cast %498 : vector<8x1xi1> to vector<8x1xi1>
    %508 = vector.broadcast %507 : vector<8x1xi1> to vector<8x32xi1>
    %509 = arith.select %508, %493, %467 : vector<8x32xi1>, vector<8x32xf32>
    %510 = vector.shape_cast %498 : vector<8x1xi1> to vector<8x1xi1>
    %511 = vector.broadcast %510 : vector<8x1xi1> to vector<8x32xi1>
    %512 = arith.select %511, %491, %470 : vector<8x32xi1>, vector<8x32xf32>
    %c4_i32_144 = arith.constant 4 : i32
    %c7_i32_145 = arith.constant 7 : i32
    %513 = arith.subi %c7_i32_145, %c4_i32_144 : i32
    %c8_i32_146 = arith.constant 8 : i32
    %514 = arith.muli %513, %c8_i32_146 : i32
    %515 = tpu.assume_multiple %514, 8 : i32
    %516 = arith.index_cast %515 : i32 to index
    %c0_147 = arith.constant 0 : index
    %517 = vector.load %arg7[%516, %c0_147] : memref<64x256xf32, #tpu.memory_space<vmem>>, vector<8x256xf32>
    %518 = vector.extract_strided_slice %517 {offsets = [0, 128], sizes = [8, 128], strides = [1, 1]} : vector<8x256xf32> to vector<8x128xf32>
    %cst_148 = arith.constant dense<0.000000e+00> : vector<8x128xf32>
    %519 = tpu.matmul %509, %15, %cst_148 {dimension_numbers = #tpu.dot_dimension_numbers<[1], [0], [0], [1], [0, 0, 1, 1], [], []>} : vector<8x32xf32>, vector<32x128xf32>, vector<8x128xf32> -> vector<8x128xf32>
    %520 = arith.addf %518, %519 : vector<8x128xf32>
    %521 = arith.negf %520 : vector<8x128xf32>
    %522 = math.exp %521 : vector<8x128xf32>
    %cst_149 = arith.constant 1.000000e+00 : f32
    %523 = vector.broadcast %cst_149 : f32 to vector<8x128xf32>
    %524 = arith.addf %523, %522 : vector<8x128xf32>
    %525 = arith.divf %523, %524 : vector<8x128xf32>
    %526 = math.tanh %520 : vector<8x128xf32>
    %527 = vector.extract_strided_slice %525 {offsets = [0, 0], sizes = [8, 32], strides = [1, 1]} : vector<8x128xf32> to vector<8x32xf32>
    %528 = vector.extract_strided_slice %525 {offsets = [0, 32], sizes = [8, 32], strides = [1, 1]} : vector<8x128xf32> to vector<8x32xf32>
    %529 = vector.extract_strided_slice %526 {offsets = [0, 64], sizes = [8, 32], strides = [1, 1]} : vector<8x128xf32> to vector<8x32xf32>
    %530 = vector.extract_strided_slice %525 {offsets = [0, 96], sizes = [8, 32], strides = [1, 1]} : vector<8x128xf32> to vector<8x32xf32>
    %531 = arith.mulf %528, %512 : vector<8x32xf32>
    %532 = arith.mulf %527, %529 : vector<8x32xf32>
    %533 = arith.addf %531, %532 : vector<8x32xf32>
    %534 = math.tanh %533 : vector<8x32xf32>
    %535 = arith.mulf %530, %534 : vector<8x32xf32>
    %536 = arith.index_cast %513 : i32 to index
    %c0_150 = arith.constant 0 : index
    %c0_151 = arith.constant 0 : index
    %537 = vector.load %arg1[%536, %c0_150, %c0_151] : memref<8x8x1xf32, #tpu.memory_space<vmem>>, vector<1x8x1xf32>
    %538 = vector.shape_cast %537 : vector<1x8x1xf32> to vector<8x1xf32>
    %cst_152 = arith.constant 5.000000e-01 : f32
    %539 = vector.broadcast %cst_152 : f32 to vector<8x1xf32>
    %540 = arith.cmpf ogt, %538, %539 : vector<8x1xf32>
    %cst_153 = arith.constant 0.000000e+00 : f32
    %541 = vector.shape_cast %540 : vector<8x1xi1> to vector<8x1xi1>
    %542 = vector.broadcast %541 : vector<8x1xi1> to vector<8x32xi1>
    %543 = vector.broadcast %cst_153 : f32 to vector<8x32xf32>
    %544 = arith.select %542, %535, %543 : vector<8x32xi1>, vector<8x32xf32>
    %545 = arith.index_cast %513 : i32 to index
    %c0_154 = arith.constant 0 : index
    %c0_155 = arith.constant 0 : index
    %546 = vector.load %arg10[%545, %c0_154, %c0_155] : memref<8x8x32xf32, #tpu.memory_space<vmem>>, vector<1x8x32xf32>
    %547 = vector.shape_cast %546 : vector<1x8x32xf32> to vector<8x32xf32>
    %548 = vector.shape_cast %544 : vector<8x32xf32> to vector<1x8x32xf32>
    tpu.vector_store %arg10[%545, %c0_154, %c0_155], %548 {strides = array<i32>} : memref<8x8x32xf32, #tpu.memory_space<vmem>>, vector<1x8x32xf32>,
    %549 = vector.shape_cast %540 : vector<8x1xi1> to vector<8x1xi1>
    %550 = vector.broadcast %549 : vector<8x1xi1> to vector<8x32xi1>
    %551 = arith.select %550, %535, %509 : vector<8x32xi1>, vector<8x32xf32>
    %552 = vector.shape_cast %540 : vector<8x1xi1> to vector<8x1xi1>
    %553 = vector.broadcast %552 : vector<8x1xi1> to vector<8x32xi1>
    %554 = arith.select %553, %533, %512 : vector<8x32xi1>, vector<8x32xf32>
    %c5_i32_156 = arith.constant 5 : i32
    %c7_i32_157 = arith.constant 7 : i32
    %555 = arith.subi %c7_i32_157, %c5_i32_156 : i32
    %c8_i32_158 = arith.constant 8 : i32
    %556 = arith.muli %555, %c8_i32_158 : i32
    %557 = tpu.assume_multiple %556, 8 : i32
    %558 = arith.index_cast %557 : i32 to index
    %c0_159 = arith.constant 0 : index
    %559 = vector.load %arg7[%558, %c0_159] : memref<64x256xf32, #tpu.memory_space<vmem>>, vector<8x256xf32>
    %560 = vector.extract_strided_slice %559 {offsets = [0, 128], sizes = [8, 128], strides = [1, 1]} : vector<8x256xf32> to vector<8x128xf32>
    %cst_160 = arith.constant dense<0.000000e+00> : vector<8x128xf32>
    %561 = tpu.matmul %551, %15, %cst_160 {dimension_numbers = #tpu.dot_dimension_numbers<[1], [0], [0], [1], [0, 0, 1, 1], [], []>} : vector<8x32xf32>, vector<32x128xf32>, vector<8x128xf32> -> vector<8x128xf32>
    %562 = arith.addf %560, %561 : vector<8x128xf32>
    %563 = arith.negf %562 : vector<8x128xf32>
    %564 = math.exp %563 : vector<8x128xf32>
    %cst_161 = arith.constant 1.000000e+00 : f32
    %565 = vector.broadcast %cst_161 : f32 to vector<8x128xf32>
    %566 = arith.addf %565, %564 : vector<8x128xf32>
    %567 = arith.divf %565, %566 : vector<8x128xf32>
    %568 = math.tanh %562 : vector<8x128xf32>
    %569 = vector.extract_strided_slice %567 {offsets = [0, 0], sizes = [8, 32], strides = [1, 1]} : vector<8x128xf32> to vector<8x32xf32>
    %570 = vector.extract_strided_slice %567 {offsets = [0, 32], sizes = [8, 32], strides = [1, 1]} : vector<8x128xf32> to vector<8x32xf32>
    %571 = vector.extract_strided_slice %568 {offsets = [0, 64], sizes = [8, 32], strides = [1, 1]} : vector<8x128xf32> to vector<8x32xf32>
    %572 = vector.extract_strided_slice %567 {offsets = [0, 96], sizes = [8, 32], strides = [1, 1]} : vector<8x128xf32> to vector<8x32xf32>
    %573 = arith.mulf %570, %554 : vector<8x32xf32>
    %574 = arith.mulf %569, %571 : vector<8x32xf32>
    %575 = arith.addf %573, %574 : vector<8x32xf32>
    %576 = math.tanh %575 : vector<8x32xf32>
    %577 = arith.mulf %572, %576 : vector<8x32xf32>
    %578 = arith.index_cast %555 : i32 to index
    %c0_162 = arith.constant 0 : index
    %c0_163 = arith.constant 0 : index
    %579 = vector.load %arg1[%578, %c0_162, %c0_163] : memref<8x8x1xf32, #tpu.memory_space<vmem>>, vector<1x8x1xf32>
    %580 = vector.shape_cast %579 : vector<1x8x1xf32> to vector<8x1xf32>
    %cst_164 = arith.constant 5.000000e-01 : f32
    %581 = vector.broadcast %cst_164 : f32 to vector<8x1xf32>
    %582 = arith.cmpf ogt, %580, %581 : vector<8x1xf32>
    %cst_165 = arith.constant 0.000000e+00 : f32
    %583 = vector.shape_cast %582 : vector<8x1xi1> to vector<8x1xi1>
    %584 = vector.broadcast %583 : vector<8x1xi1> to vector<8x32xi1>
    %585 = vector.broadcast %cst_165 : f32 to vector<8x32xf32>
    %586 = arith.select %584, %577, %585 : vector<8x32xi1>, vector<8x32xf32>
    %587 = arith.index_cast %555 : i32 to index
    %c0_166 = arith.constant 0 : index
    %c0_167 = arith.constant 0 : index
    %588 = vector.load %arg10[%587, %c0_166, %c0_167] : memref<8x8x32xf32, #tpu.memory_space<vmem>>, vector<1x8x32xf32>
    %589 = vector.shape_cast %588 : vector<1x8x32xf32> to vector<8x32xf32>
    %590 = vector.shape_cast %586 : vector<8x32xf32> to vector<1x8x32xf32>
    tpu.vector_store %arg10[%587, %c0_166, %c0_167], %590 {strides = array<i32>} : memref<8x8x32xf32, #tpu.memory_space<vmem>>, vector<1x8x32xf32>,
    %591 = vector.shape_cast %582 : vector<8x1xi1> to vector<8x1xi1>
    %592 = vector.broadcast %591 : vector<8x1xi1> to vector<8x32xi1>
    %593 = arith.select %592, %577, %551 : vector<8x32xi1>, vector<8x32xf32>
    %594 = vector.shape_cast %582 : vector<8x1xi1> to vector<8x1xi1>
    %595 = vector.broadcast %594 : vector<8x1xi1> to vector<8x32xi1>
    %596 = arith.select %595, %575, %554 : vector<8x32xi1>, vector<8x32xf32>
    %c6_i32_168 = arith.constant 6 : i32
    %c7_i32_169 = arith.constant 7 : i32
    %597 = arith.subi %c7_i32_169, %c6_i32_168 : i32
    %c8_i32_170 = arith.constant 8 : i32
    %598 = arith.muli %597, %c8_i32_170 : i32
    %599 = tpu.assume_multiple %598, 8 : i32
    %600 = arith.index_cast %599 : i32 to index
    %c0_171 = arith.constant 0 : index
    %601 = vector.load %arg7[%600, %c0_171] : memref<64x256xf32, #tpu.memory_space<vmem>>, vector<8x256xf32>
    %602 = vector.extract_strided_slice %601 {offsets = [0, 128], sizes = [8, 128], strides = [1, 1]} : vector<8x256xf32> to vector<8x128xf32>
    %cst_172 = arith.constant dense<0.000000e+00> : vector<8x128xf32>
    %603 = tpu.matmul %593, %15, %cst_172 {dimension_numbers = #tpu.dot_dimension_numbers<[1], [0], [0], [1], [0, 0, 1, 1], [], []>} : vector<8x32xf32>, vector<32x128xf32>, vector<8x128xf32> -> vector<8x128xf32>
    %604 = arith.addf %602, %603 : vector<8x128xf32>
    %605 = arith.negf %604 : vector<8x128xf32>
    %606 = math.exp %605 : vector<8x128xf32>
    %cst_173 = arith.constant 1.000000e+00 : f32
    %607 = vector.broadcast %cst_173 : f32 to vector<8x128xf32>
    %608 = arith.addf %607, %606 : vector<8x128xf32>
    %609 = arith.divf %607, %608 : vector<8x128xf32>
    %610 = math.tanh %604 : vector<8x128xf32>
    %611 = vector.extract_strided_slice %609 {offsets = [0, 0], sizes = [8, 32], strides = [1, 1]} : vector<8x128xf32> to vector<8x32xf32>
    %612 = vector.extract_strided_slice %609 {offsets = [0, 32], sizes = [8, 32], strides = [1, 1]} : vector<8x128xf32> to vector<8x32xf32>
    %613 = vector.extract_strided_slice %610 {offsets = [0, 64], sizes = [8, 32], strides = [1, 1]} : vector<8x128xf32> to vector<8x32xf32>
    %614 = vector.extract_strided_slice %609 {offsets = [0, 96], sizes = [8, 32], strides = [1, 1]} : vector<8x128xf32> to vector<8x32xf32>
    %615 = arith.mulf %612, %596 : vector<8x32xf32>
    %616 = arith.mulf %611, %613 : vector<8x32xf32>
    %617 = arith.addf %615, %616 : vector<8x32xf32>
    %618 = math.tanh %617 : vector<8x32xf32>
    %619 = arith.mulf %614, %618 : vector<8x32xf32>
    %620 = arith.index_cast %597 : i32 to index
    %c0_174 = arith.constant 0 : index
    %c0_175 = arith.constant 0 : index
    %621 = vector.load %arg1[%620, %c0_174, %c0_175] : memref<8x8x1xf32, #tpu.memory_space<vmem>>, vector<1x8x1xf32>
    %622 = vector.shape_cast %621 : vector<1x8x1xf32> to vector<8x1xf32>
    %cst_176 = arith.constant 5.000000e-01 : f32
    %623 = vector.broadcast %cst_176 : f32 to vector<8x1xf32>
    %624 = arith.cmpf ogt, %622, %623 : vector<8x1xf32>
    %cst_177 = arith.constant 0.000000e+00 : f32
    %625 = vector.shape_cast %624 : vector<8x1xi1> to vector<8x1xi1>
    %626 = vector.broadcast %625 : vector<8x1xi1> to vector<8x32xi1>
    %627 = vector.broadcast %cst_177 : f32 to vector<8x32xf32>
    %628 = arith.select %626, %619, %627 : vector<8x32xi1>, vector<8x32xf32>
    %629 = arith.index_cast %597 : i32 to index
    %c0_178 = arith.constant 0 : index
    %c0_179 = arith.constant 0 : index
    %630 = vector.load %arg10[%629, %c0_178, %c0_179] : memref<8x8x32xf32, #tpu.memory_space<vmem>>, vector<1x8x32xf32>
    %631 = vector.shape_cast %630 : vector<1x8x32xf32> to vector<8x32xf32>
    %632 = vector.shape_cast %628 : vector<8x32xf32> to vector<1x8x32xf32>
    tpu.vector_store %arg10[%629, %c0_178, %c0_179], %632 {strides = array<i32>} : memref<8x8x32xf32, #tpu.memory_space<vmem>>, vector<1x8x32xf32>,
    %633 = vector.shape_cast %624 : vector<8x1xi1> to vector<8x1xi1>
    %634 = vector.broadcast %633 : vector<8x1xi1> to vector<8x32xi1>
    %635 = arith.select %634, %619, %593 : vector<8x32xi1>, vector<8x32xf32>
    %636 = vector.shape_cast %624 : vector<8x1xi1> to vector<8x1xi1>
    %637 = vector.broadcast %636 : vector<8x1xi1> to vector<8x32xi1>
    %638 = arith.select %637, %617, %596 : vector<8x32xi1>, vector<8x32xf32>
    %c7_i32_180 = arith.constant 7 : i32
    %c7_i32_181 = arith.constant 7 : i32
    %639 = arith.subi %c7_i32_181, %c7_i32_180 : i32
    %c8_i32_182 = arith.constant 8 : i32
    %640 = arith.muli %639, %c8_i32_182 : i32
    %641 = tpu.assume_multiple %640, 8 : i32
    %642 = arith.index_cast %641 : i32 to index
    %c0_183 = arith.constant 0 : index
    %643 = vector.load %arg7[%642, %c0_183] : memref<64x256xf32, #tpu.memory_space<vmem>>, vector<8x256xf32>
    %644 = vector.extract_strided_slice %643 {offsets = [0, 128], sizes = [8, 128], strides = [1, 1]} : vector<8x256xf32> to vector<8x128xf32>
    %cst_184 = arith.constant dense<0.000000e+00> : vector<8x128xf32>
    %645 = tpu.matmul %635, %15, %cst_184 {dimension_numbers = #tpu.dot_dimension_numbers<[1], [0], [0], [1], [0, 0, 1, 1], [], []>} : vector<8x32xf32>, vector<32x128xf32>, vector<8x128xf32> -> vector<8x128xf32>
    %646 = arith.addf %644, %645 : vector<8x128xf32>
    %647 = arith.negf %646 : vector<8x128xf32>
    %648 = math.exp %647 : vector<8x128xf32>
    %cst_185 = arith.constant 1.000000e+00 : f32
    %649 = vector.broadcast %cst_185 : f32 to vector<8x128xf32>
    %650 = arith.addf %649, %648 : vector<8x128xf32>
    %651 = arith.divf %649, %650 : vector<8x128xf32>
    %652 = math.tanh %646 : vector<8x128xf32>
    %653 = vector.extract_strided_slice %651 {offsets = [0, 0], sizes = [8, 32], strides = [1, 1]} : vector<8x128xf32> to vector<8x32xf32>
    %654 = vector.extract_strided_slice %651 {offsets = [0, 32], sizes = [8, 32], strides = [1, 1]} : vector<8x128xf32> to vector<8x32xf32>
    %655 = vector.extract_strided_slice %652 {offsets = [0, 64], sizes = [8, 32], strides = [1, 1]} : vector<8x128xf32> to vector<8x32xf32>
    %656 = vector.extract_strided_slice %651 {offsets = [0, 96], sizes = [8, 32], strides = [1, 1]} : vector<8x128xf32> to vector<8x32xf32>
    %657 = arith.mulf %654, %638 : vector<8x32xf32>
    %658 = arith.mulf %653, %655 : vector<8x32xf32>
    %659 = arith.addf %657, %658 : vector<8x32xf32>
    %660 = math.tanh %659 : vector<8x32xf32>
    %661 = arith.mulf %656, %660 : vector<8x32xf32>
    %662 = arith.index_cast %639 : i32 to index
    %c0_186 = arith.constant 0 : index
    %c0_187 = arith.constant 0 : index
    %663 = vector.load %arg1[%662, %c0_186, %c0_187] : memref<8x8x1xf32, #tpu.memory_space<vmem>>, vector<1x8x1xf32>
    %664 = vector.shape_cast %663 : vector<1x8x1xf32> to vector<8x1xf32>
    %cst_188 = arith.constant 5.000000e-01 : f32
    %665 = vector.broadcast %cst_188 : f32 to vector<8x1xf32>
    %666 = arith.cmpf ogt, %664, %665 : vector<8x1xf32>
    %cst_189 = arith.constant 0.000000e+00 : f32
    %667 = vector.shape_cast %666 : vector<8x1xi1> to vector<8x1xi1>
    %668 = vector.broadcast %667 : vector<8x1xi1> to vector<8x32xi1>
    %669 = vector.broadcast %cst_189 : f32 to vector<8x32xf32>
    %670 = arith.select %668, %661, %669 : vector<8x32xi1>, vector<8x32xf32>
    %671 = arith.index_cast %639 : i32 to index
    %c0_190 = arith.constant 0 : index
    %c0_191 = arith.constant 0 : index
    %672 = vector.load %arg10[%671, %c0_190, %c0_191] : memref<8x8x32xf32, #tpu.memory_space<vmem>>, vector<1x8x32xf32>
    %673 = vector.shape_cast %672 : vector<1x8x32xf32> to vector<8x32xf32>
    %674 = vector.shape_cast %670 : vector<8x32xf32> to vector<1x8x32xf32>
    tpu.vector_store %arg10[%671, %c0_190, %c0_191], %674 {strides = array<i32>} : memref<8x8x32xf32, #tpu.memory_space<vmem>>, vector<1x8x32xf32>,
    %675 = vector.shape_cast %666 : vector<8x1xi1> to vector<8x1xi1>
    %676 = vector.broadcast %675 : vector<8x1xi1> to vector<8x32xi1>
    %677 = arith.select %676, %661, %635 : vector<8x32xi1>, vector<8x32xf32>
    %678 = vector.shape_cast %666 : vector<8x1xi1> to vector<8x1xi1>
    %679 = vector.broadcast %678 : vector<8x1xi1> to vector<8x32xi1>
    %680 = arith.select %679, %659, %638 : vector<8x32xi1>, vector<8x32xf32>
    %c8_i32_192 = arith.constant 8 : i32
    %681 = tpu.concatenate %341, %677 in 1 : vector<8x32xf32>, vector<8x32xf32> -> vector<8x64xf32>
    %682 = tpu.concatenate %344, %680 in 1 : vector<8x32xf32>, vector<8x32xf32> -> vector<8x64xf32>
    %c104 = arith.constant 104 : index
    %c0_193 = arith.constant 0 : index
    %683 = vector.load %arg5[%c104, %c0_193] : memref<528x256xf32, #tpu.memory_space<vmem>>, vector<64x32xf32>
    %cst_194 = arith.constant dense<0.000000e+00> : vector<8x32xf32>
    %684 = tpu.matmul %681, %683, %cst_194 {dimension_numbers = #tpu.dot_dimension_numbers<[1], [0], [0], [1], [0, 0, 1, 1], [], []>} : vector<8x64xf32>, vector<64x32xf32>, vector<8x32xf32> -> vector<8x32xf32>
    %c168 = arith.constant 168 : index
    %c0_195 = arith.constant 0 : index
    %685 = vector.load %arg5[%c168, %c0_195] : memref<528x256xf32, #tpu.memory_space<vmem>>, vector<64x32xf32>
    %cst_196 = arith.constant dense<0.000000e+00> : vector<8x32xf32>
    %686 = tpu.matmul %682, %685, %cst_196 {dimension_numbers = #tpu.dot_dimension_numbers<[1], [0], [0], [1], [0, 0, 1, 1], [], []>} : vector<8x64xf32>, vector<64x32xf32>, vector<8x32xf32> -> vector<8x32xf32>
    %c232 = arith.constant 232 : index
    %c0_197 = arith.constant 0 : index
    %687 = vector.load %arg5[%c232, %c0_197] : memref<528x256xf32, #tpu.memory_space<vmem>>, vector<64x32xf32>
    %c0_198 = arith.constant 0 : index
    %c0_199 = arith.constant 0 : index
    %c0_200 = arith.constant 0 : index
    %688 = vector.load %arg9[%c0_198, %c0_199, %c0_200] : memref<8x8x32xf32, #tpu.memory_space<vmem>>, vector<1x8x32xf32>
    %689 = vector.shape_cast %688 : vector<1x8x32xf32> to vector<8x32xf32>
    %c0_201 = arith.constant 0 : index
    %c0_202 = arith.constant 0 : index
    %c0_203 = arith.constant 0 : index
    %690 = vector.load %arg10[%c0_201, %c0_202, %c0_203] : memref<8x8x32xf32, #tpu.memory_space<vmem>>, vector<1x8x32xf32>
    %691 = vector.shape_cast %690 : vector<1x8x32xf32> to vector<8x32xf32>
    %692 = tpu.concatenate %689, %691 in 1 : vector<8x32xf32>, vector<8x32xf32> -> vector<8x64xf32>
    %cst_204 = arith.constant dense<0.000000e+00> : vector<8x32xf32>
    %693 = tpu.matmul %692, %687, %cst_204 {dimension_numbers = #tpu.dot_dimension_numbers<[1], [0], [0], [1], [0, 0, 1, 1], [], []>} : vector<8x64xf32>, vector<64x32xf32>, vector<8x32xf32> -> vector<8x32xf32>
    %c0_205 = arith.constant 0 : index
    %c0_206 = arith.constant 0 : index
    %c0_207 = arith.constant 0 : index
    %694 = vector.load %arg11[%c0_205, %c0_206, %c0_207] : memref<8x8x32xf32, #tpu.memory_space<vmem>>, vector<1x8x32xf32>
    %695 = vector.shape_cast %694 : vector<1x8x32xf32> to vector<8x32xf32>
    %696 = vector.shape_cast %693 : vector<8x32xf32> to vector<1x8x32xf32>
    tpu.vector_store %arg11[%c0_205, %c0_206, %c0_207], %696 {strides = array<i32>} : memref<8x8x32xf32, #tpu.memory_space<vmem>>, vector<1x8x32xf32>,
    %c1 = arith.constant 1 : index
    %c0_208 = arith.constant 0 : index
    %c0_209 = arith.constant 0 : index
    %697 = vector.load %arg9[%c1, %c0_208, %c0_209] : memref<8x8x32xf32, #tpu.memory_space<vmem>>, vector<1x8x32xf32>
    %698 = vector.shape_cast %697 : vector<1x8x32xf32> to vector<8x32xf32>
    %c1_210 = arith.constant 1 : index
    %c0_211 = arith.constant 0 : index
    %c0_212 = arith.constant 0 : index
    %699 = vector.load %arg10[%c1_210, %c0_211, %c0_212] : memref<8x8x32xf32, #tpu.memory_space<vmem>>, vector<1x8x32xf32>
    %700 = vector.shape_cast %699 : vector<1x8x32xf32> to vector<8x32xf32>
    %701 = tpu.concatenate %698, %700 in 1 : vector<8x32xf32>, vector<8x32xf32> -> vector<8x64xf32>
    %cst_213 = arith.constant dense<0.000000e+00> : vector<8x32xf32>
    %702 = tpu.matmul %701, %687, %cst_213 {dimension_numbers = #tpu.dot_dimension_numbers<[1], [0], [0], [1], [0, 0, 1, 1], [], []>} : vector<8x64xf32>, vector<64x32xf32>, vector<8x32xf32> -> vector<8x32xf32>
    %c1_214 = arith.constant 1 : index
    %c0_215 = arith.constant 0 : index
    %c0_216 = arith.constant 0 : index
    %703 = vector.load %arg11[%c1_214, %c0_215, %c0_216] : memref<8x8x32xf32, #tpu.memory_space<vmem>>, vector<1x8x32xf32>
    %704 = vector.shape_cast %703 : vector<1x8x32xf32> to vector<8x32xf32>
    %705 = vector.shape_cast %702 : vector<8x32xf32> to vector<1x8x32xf32>
    tpu.vector_store %arg11[%c1_214, %c0_215, %c0_216], %705 {strides = array<i32>} : memref<8x8x32xf32, #tpu.memory_space<vmem>>, vector<1x8x32xf32>,
    %c2 = arith.constant 2 : index
    %c0_217 = arith.constant 0 : index
    %c0_218 = arith.constant 0 : index
    %706 = vector.load %arg9[%c2, %c0_217, %c0_218] : memref<8x8x32xf32, #tpu.memory_space<vmem>>, vector<1x8x32xf32>
    %707 = vector.shape_cast %706 : vector<1x8x32xf32> to vector<8x32xf32>
    %c2_219 = arith.constant 2 : index
    %c0_220 = arith.constant 0 : index
    %c0_221 = arith.constant 0 : index
    %708 = vector.load %arg10[%c2_219, %c0_220, %c0_221] : memref<8x8x32xf32, #tpu.memory_space<vmem>>, vector<1x8x32xf32>
    %709 = vector.shape_cast %708 : vector<1x8x32xf32> to vector<8x32xf32>
    %710 = tpu.concatenate %707, %709 in 1 : vector<8x32xf32>, vector<8x32xf32> -> vector<8x64xf32>
    %cst_222 = arith.constant dense<0.000000e+00> : vector<8x32xf32>
    %711 = tpu.matmul %710, %687, %cst_222 {dimension_numbers = #tpu.dot_dimension_numbers<[1], [0], [0], [1], [0, 0, 1, 1], [], []>} : vector<8x64xf32>, vector<64x32xf32>, vector<8x32xf32> -> vector<8x32xf32>
    %c2_223 = arith.constant 2 : index
    %c0_224 = arith.constant 0 : index
    %c0_225 = arith.constant 0 : index
    %712 = vector.load %arg11[%c2_223, %c0_224, %c0_225] : memref<8x8x32xf32, #tpu.memory_space<vmem>>, vector<1x8x32xf32>
    %713 = vector.shape_cast %712 : vector<1x8x32xf32> to vector<8x32xf32>
    %714 = vector.shape_cast %711 : vector<8x32xf32> to vector<1x8x32xf32>
    tpu.vector_store %arg11[%c2_223, %c0_224, %c0_225], %714 {strides = array<i32>} : memref<8x8x32xf32, #tpu.memory_space<vmem>>, vector<1x8x32xf32>,
    %c3 = arith.constant 3 : index
    %c0_226 = arith.constant 0 : index
    %c0_227 = arith.constant 0 : index
    %715 = vector.load %arg9[%c3, %c0_226, %c0_227] : memref<8x8x32xf32, #tpu.memory_space<vmem>>, vector<1x8x32xf32>
    %716 = vector.shape_cast %715 : vector<1x8x32xf32> to vector<8x32xf32>
    %c3_228 = arith.constant 3 : index
    %c0_229 = arith.constant 0 : index
    %c0_230 = arith.constant 0 : index
    %717 = vector.load %arg10[%c3_228, %c0_229, %c0_230] : memref<8x8x32xf32, #tpu.memory_space<vmem>>, vector<1x8x32xf32>
    %718 = vector.shape_cast %717 : vector<1x8x32xf32> to vector<8x32xf32>
    %719 = tpu.concatenate %716, %718 in 1 : vector<8x32xf32>, vector<8x32xf32> -> vector<8x64xf32>
    %cst_231 = arith.constant dense<0.000000e+00> : vector<8x32xf32>
    %720 = tpu.matmul %719, %687, %cst_231 {dimension_numbers = #tpu.dot_dimension_numbers<[1], [0], [0], [1], [0, 0, 1, 1], [], []>} : vector<8x64xf32>, vector<64x32xf32>, vector<8x32xf32> -> vector<8x32xf32>
    %c3_232 = arith.constant 3 : index
    %c0_233 = arith.constant 0 : index
    %c0_234 = arith.constant 0 : index
    %721 = vector.load %arg11[%c3_232, %c0_233, %c0_234] : memref<8x8x32xf32, #tpu.memory_space<vmem>>, vector<1x8x32xf32>
    %722 = vector.shape_cast %721 : vector<1x8x32xf32> to vector<8x32xf32>
    %723 = vector.shape_cast %720 : vector<8x32xf32> to vector<1x8x32xf32>
    tpu.vector_store %arg11[%c3_232, %c0_233, %c0_234], %723 {strides = array<i32>} : memref<8x8x32xf32, #tpu.memory_space<vmem>>, vector<1x8x32xf32>,
    %c4 = arith.constant 4 : index
    %c0_235 = arith.constant 0 : index
    %c0_236 = arith.constant 0 : index
    %724 = vector.load %arg9[%c4, %c0_235, %c0_236] : memref<8x8x32xf32, #tpu.memory_space<vmem>>, vector<1x8x32xf32>
    %725 = vector.shape_cast %724 : vector<1x8x32xf32> to vector<8x32xf32>
    %c4_237 = arith.constant 4 : index
    %c0_238 = arith.constant 0 : index
    %c0_239 = arith.constant 0 : index
    %726 = vector.load %arg10[%c4_237, %c0_238, %c0_239] : memref<8x8x32xf32, #tpu.memory_space<vmem>>, vector<1x8x32xf32>
    %727 = vector.shape_cast %726 : vector<1x8x32xf32> to vector<8x32xf32>
    %728 = tpu.concatenate %725, %727 in 1 : vector<8x32xf32>, vector<8x32xf32> -> vector<8x64xf32>
    %cst_240 = arith.constant dense<0.000000e+00> : vector<8x32xf32>
    %729 = tpu.matmul %728, %687, %cst_240 {dimension_numbers = #tpu.dot_dimension_numbers<[1], [0], [0], [1], [0, 0, 1, 1], [], []>} : vector<8x64xf32>, vector<64x32xf32>, vector<8x32xf32> -> vector<8x32xf32>
    %c4_241 = arith.constant 4 : index
    %c0_242 = arith.constant 0 : index
    %c0_243 = arith.constant 0 : index
    %730 = vector.load %arg11[%c4_241, %c0_242, %c0_243] : memref<8x8x32xf32, #tpu.memory_space<vmem>>, vector<1x8x32xf32>
    %731 = vector.shape_cast %730 : vector<1x8x32xf32> to vector<8x32xf32>
    %732 = vector.shape_cast %729 : vector<8x32xf32> to vector<1x8x32xf32>
    tpu.vector_store %arg11[%c4_241, %c0_242, %c0_243], %732 {strides = array<i32>} : memref<8x8x32xf32, #tpu.memory_space<vmem>>, vector<1x8x32xf32>,
    %c5 = arith.constant 5 : index
    %c0_244 = arith.constant 0 : index
    %c0_245 = arith.constant 0 : index
    %733 = vector.load %arg9[%c5, %c0_244, %c0_245] : memref<8x8x32xf32, #tpu.memory_space<vmem>>, vector<1x8x32xf32>
    %734 = vector.shape_cast %733 : vector<1x8x32xf32> to vector<8x32xf32>
    %c5_246 = arith.constant 5 : index
    %c0_247 = arith.constant 0 : index
    %c0_248 = arith.constant 0 : index
    %735 = vector.load %arg10[%c5_246, %c0_247, %c0_248] : memref<8x8x32xf32, #tpu.memory_space<vmem>>, vector<1x8x32xf32>
    %736 = vector.shape_cast %735 : vector<1x8x32xf32> to vector<8x32xf32>
    %737 = tpu.concatenate %734, %736 in 1 : vector<8x32xf32>, vector<8x32xf32> -> vector<8x64xf32>
    %cst_249 = arith.constant dense<0.000000e+00> : vector<8x32xf32>
    %738 = tpu.matmul %737, %687, %cst_249 {dimension_numbers = #tpu.dot_dimension_numbers<[1], [0], [0], [1], [0, 0, 1, 1], [], []>} : vector<8x64xf32>, vector<64x32xf32>, vector<8x32xf32> -> vector<8x32xf32>
    %c5_250 = arith.constant 5 : index
    %c0_251 = arith.constant 0 : index
    %c0_252 = arith.constant 0 : index
    %739 = vector.load %arg11[%c5_250, %c0_251, %c0_252] : memref<8x8x32xf32, #tpu.memory_space<vmem>>, vector<1x8x32xf32>
    %740 = vector.shape_cast %739 : vector<1x8x32xf32> to vector<8x32xf32>
    %741 = vector.shape_cast %738 : vector<8x32xf32> to vector<1x8x32xf32>
    tpu.vector_store %arg11[%c5_250, %c0_251, %c0_252], %741 {strides = array<i32>} : memref<8x8x32xf32, #tpu.memory_space<vmem>>, vector<1x8x32xf32>,
    %c6 = arith.constant 6 : index
    %c0_253 = arith.constant 0 : index
    %c0_254 = arith.constant 0 : index
    %742 = vector.load %arg9[%c6, %c0_253, %c0_254] : memref<8x8x32xf32, #tpu.memory_space<vmem>>, vector<1x8x32xf32>
    %743 = vector.shape_cast %742 : vector<1x8x32xf32> to vector<8x32xf32>
    %c6_255 = arith.constant 6 : index
    %c0_256 = arith.constant 0 : index
    %c0_257 = arith.constant 0 : index
    %744 = vector.load %arg10[%c6_255, %c0_256, %c0_257] : memref<8x8x32xf32, #tpu.memory_space<vmem>>, vector<1x8x32xf32>
    %745 = vector.shape_cast %744 : vector<1x8x32xf32> to vector<8x32xf32>
    %746 = tpu.concatenate %743, %745 in 1 : vector<8x32xf32>, vector<8x32xf32> -> vector<8x64xf32>
    %cst_258 = arith.constant dense<0.000000e+00> : vector<8x32xf32>
    %747 = tpu.matmul %746, %687, %cst_258 {dimension_numbers = #tpu.dot_dimension_numbers<[1], [0], [0], [1], [0, 0, 1, 1], [], []>} : vector<8x64xf32>, vector<64x32xf32>, vector<8x32xf32> -> vector<8x32xf32>
    %c6_259 = arith.constant 6 : index
    %c0_260 = arith.constant 0 : index
    %c0_261 = arith.constant 0 : index
    %748 = vector.load %arg11[%c6_259, %c0_260, %c0_261] : memref<8x8x32xf32, #tpu.memory_space<vmem>>, vector<1x8x32xf32>
    %749 = vector.shape_cast %748 : vector<1x8x32xf32> to vector<8x32xf32>
    %750 = vector.shape_cast %747 : vector<8x32xf32> to vector<1x8x32xf32>
    tpu.vector_store %arg11[%c6_259, %c0_260, %c0_261], %750 {strides = array<i32>} : memref<8x8x32xf32, #tpu.memory_space<vmem>>, vector<1x8x32xf32>,
    %c7 = arith.constant 7 : index
    %c0_262 = arith.constant 0 : index
    %c0_263 = arith.constant 0 : index
    %751 = vector.load %arg9[%c7, %c0_262, %c0_263] : memref<8x8x32xf32, #tpu.memory_space<vmem>>, vector<1x8x32xf32>
    %752 = vector.shape_cast %751 : vector<1x8x32xf32> to vector<8x32xf32>
    %c7_264 = arith.constant 7 : index
    %c0_265 = arith.constant 0 : index
    %c0_266 = arith.constant 0 : index
    %753 = vector.load %arg10[%c7_264, %c0_265, %c0_266] : memref<8x8x32xf32, #tpu.memory_space<vmem>>, vector<1x8x32xf32>
    %754 = vector.shape_cast %753 : vector<1x8x32xf32> to vector<8x32xf32>
    %755 = tpu.concatenate %752, %754 in 1 : vector<8x32xf32>, vector<8x32xf32> -> vector<8x64xf32>
    %cst_267 = arith.constant dense<0.000000e+00> : vector<8x32xf32>
    %756 = tpu.matmul %755, %687, %cst_267 {dimension_numbers = #tpu.dot_dimension_numbers<[1], [0], [0], [1], [0, 0, 1, 1], [], []>} : vector<8x64xf32>, vector<64x32xf32>, vector<8x32xf32> -> vector<8x32xf32>
    %c7_268 = arith.constant 7 : index
    %c0_269 = arith.constant 0 : index
    %c0_270 = arith.constant 0 : index
    %757 = vector.load %arg11[%c7_268, %c0_269, %c0_270] : memref<8x8x32xf32, #tpu.memory_space<vmem>>, vector<1x8x32xf32>
    %758 = vector.shape_cast %757 : vector<1x8x32xf32> to vector<8x32xf32>
    %759 = vector.shape_cast %756 : vector<8x32xf32> to vector<1x8x32xf32>
    tpu.vector_store %arg11[%c7_268, %c0_269, %c0_270], %759 {strides = array<i32>} : memref<8x8x32xf32, #tpu.memory_space<vmem>>, vector<1x8x32xf32>,
    %c0_271 = arith.constant 0 : index
    %c0_272 = arith.constant 0 : index
    %c0_273 = arith.constant 0 : index
    %760 = vector.load %arg9[%c0_271, %c0_272, %c0_273] : memref<8x8x32xf32, #tpu.memory_space<vmem>>, vector<8x8x32xf32>
    %c0_274 = arith.constant 0 : index
    %c0_275 = arith.constant 0 : index
    %c0_276 = arith.constant 0 : index
    %761 = vector.load %arg10[%c0_274, %c0_275, %c0_276] : memref<8x8x32xf32, #tpu.memory_space<vmem>>, vector<8x8x32xf32>
    %c0_277 = arith.constant 0 : index
    %c0_278 = arith.constant 0 : index
    %c0_279 = arith.constant 0 : index
    %762 = vector.load %arg11[%c0_277, %c0_278, %c0_279] : memref<8x8x32xf32, #tpu.memory_space<vmem>>, vector<8x8x32xf32>
    %c0_280 = arith.constant 0 : index
    %c0_281 = arith.constant 0 : index
    %c0_282 = arith.constant 0 : index
    %763 = vector.load %arg1[%c0_280, %c0_281, %c0_282] : memref<8x8x1xf32, #tpu.memory_space<vmem>>, vector<8x8x1xf32>
    %cst_283 = arith.constant 5.000000e-01 : f32
    %764 = vector.broadcast %cst_283 : f32 to vector<8x8x1xf32>
    %765 = arith.cmpf ogt, %763, %764 : vector<8x8x1xf32>
    %cst_284 = arith.constant 0.000000e+00 : f32
    %cst_285 = arith.constant -1.000000e+30 : f32
    %766 = vector.broadcast %cst_284 : f32 to vector<8x8x1xf32>
    %767 = vector.broadcast %cst_285 : f32 to vector<8x8x1xf32>
    %768 = arith.select %765, %766, %767 : vector<8x8x1xi1>, vector<8x8x1xf32>
    %c336 = arith.constant 336 : index
    %c0_286 = arith.constant 0 : index
    %769 = vector.load %arg5[%c336, %c0_286] : memref<528x256xf32, #tpu.memory_space<vmem>>, vector<64x128xf32>
    %c400 = arith.constant 400 : index
    %c0_287 = arith.constant 0 : index
    %770 = vector.load %arg5[%c400, %c0_287] : memref<528x256xf32, #tpu.memory_space<vmem>>, vector<96x32xf32>
    %c0_i32_288 = arith.constant 0 : i32
    %c8_i32_289 = arith.constant 8 : i32
    %771 = arith.muli %c0_i32_288, %c8_i32_289 : i32
    %772 = tpu.assume_multiple %771, 8 : i32
    %773 = tpu.concatenate %16, %684 in 1 : vector<8x32xf32>, vector<8x32xf32> -> vector<8x64xf32>
    %774 = arith.index_cast %772 : i32 to index
    %c0_290 = arith.constant 0 : index
    %775 = vector.load %arg8[%774, %c0_290] : memref<56x128xf32, #tpu.memory_space<vmem>>, vector<8x128xf32>
    %cst_291 = arith.constant dense<0.000000e+00> : vector<8x128xf32>
    %776 = tpu.matmul %773, %769, %cst_291 {dimension_numbers = #tpu.dot_dimension_numbers<[1], [0], [0], [1], [0, 0, 1, 1], [], []>} : vector<8x64xf32>, vector<64x128xf32>, vector<8x128xf32> -> vector<8x128xf32>
    %777 = arith.addf %775, %776 : vector<8x128xf32>
    %778 = arith.negf %777 : vector<8x128xf32>
    %779 = math.exp %778 : vector<8x128xf32>
    %cst_292 = arith.constant 1.000000e+00 : f32
    %780 = vector.broadcast %cst_292 : f32 to vector<8x128xf32>
    %781 = arith.addf %780, %779 : vector<8x128xf32>
    %782 = arith.divf %780, %781 : vector<8x128xf32>
    %783 = math.tanh %777 : vector<8x128xf32>
    %784 = vector.extract_strided_slice %782 {offsets = [0, 0], sizes = [8, 32], strides = [1, 1]} : vector<8x128xf32> to vector<8x32xf32>
    %785 = vector.extract_strided_slice %782 {offsets = [0, 32], sizes = [8, 32], strides = [1, 1]} : vector<8x128xf32> to vector<8x32xf32>
    %786 = vector.extract_strided_slice %783 {offsets = [0, 64], sizes = [8, 32], strides = [1, 1]} : vector<8x128xf32> to vector<8x32xf32>
    %787 = vector.extract_strided_slice %782 {offsets = [0, 96], sizes = [8, 32], strides = [1, 1]} : vector<8x128xf32> to vector<8x32xf32>
    %788 = arith.mulf %785, %686 : vector<8x32xf32>
    %789 = arith.mulf %784, %786 : vector<8x32xf32>
    %790 = arith.addf %788, %789 : vector<8x32xf32>
    %791 = math.tanh %790 : vector<8x32xf32>
    %792 = arith.mulf %787, %791 : vector<8x32xf32>
    %793 = vector.shape_cast %792 : vector<8x32xf32> to vector<1x8x32xf32>
    %794 = vector.broadcast %793 : vector<1x8x32xf32> to vector<8x8x32xf32>
    %795 = arith.mulf %762, %794 : vector<8x8x32xf32>
    %cst_293 = arith.constant dense<0.000000e+00> : vector<8x8xf32>
    %796 = vector.multi_reduction <add>, %795, %cst_293 [2] : vector<8x8x32xf32> to vector<8x8xf32>
    %797 = vector.shape_cast %796 : vector<8x8xf32> to vector<8x8x1xf32>
    %798 = arith.addf %797, %768 : vector<8x8x1xf32>
    %cst_294 = arith.constant dense<0xFF800000> : vector<8x1xf32>
    %799 = vector.multi_reduction <maximumf>, %798, %cst_294 [0] : vector<8x8x1xf32> to vector<8x1xf32>
    %800 = vector.shape_cast %799 : vector<8x1xf32> to vector<1x8x1xf32>
    %801 = vector.broadcast %800 : vector<1x8x1xf32> to vector<8x8x1xf32>
    %802 = arith.subf %798, %801 : vector<8x8x1xf32>
    %803 = math.exp %802 : vector<8x8x1xf32>
    %cst_295 = arith.constant dense<0.000000e+00> : vector<8x1xf32>
    %804 = vector.multi_reduction <add>, %803, %cst_295 [0] : vector<8x8x1xf32> to vector<8x1xf32>
    %805 = vector.shape_cast %804 : vector<8x1xf32> to vector<1x8x1xf32>
    %806 = vector.broadcast %805 : vector<1x8x1xf32> to vector<8x8x1xf32>
    %807 = arith.divf %803, %806 : vector<8x8x1xf32>
    %808 = vector.broadcast %807 : vector<8x8x1xf32> to vector<8x8x32xf32>
    %809 = arith.mulf %808, %760 : vector<8x8x32xf32>
    %cst_296 = arith.constant dense<0.000000e+00> : vector<8x32xf32>
    %810 = vector.multi_reduction <add>, %809, %cst_296 [0] : vector<8x8x32xf32> to vector<8x32xf32>
    %811 = vector.broadcast %807 : vector<8x8x1xf32> to vector<8x8x32xf32>
    %812 = arith.mulf %811, %761 : vector<8x8x32xf32>
    %cst_297 = arith.constant dense<0.000000e+00> : vector<8x32xf32>
    %813 = vector.multi_reduction <add>, %812, %cst_297 [0] : vector<8x8x32xf32> to vector<8x32xf32>
    %814 = tpu.concatenate %810, %813, %792 in 1 : vector<8x32xf32>, vector<8x32xf32>, vector<8x32xf32> -> vector<8x96xf32>
    %cst_298 = arith.constant dense<0.000000e+00> : vector<8x32xf32>
    %815 = tpu.matmul %814, %770, %cst_298 {dimension_numbers = #tpu.dot_dimension_numbers<[1], [0], [0], [1], [0, 0, 1, 1], [], []>} : vector<8x96xf32>, vector<96x32xf32>, vector<8x32xf32> -> vector<8x32xf32>
    %816 = math.tanh %815 : vector<8x32xf32>
    %817 = arith.index_cast %772 : i32 to index
    %c0_299 = arith.constant 0 : index
    %818 = vector.load %arg12[%817, %c0_299] : memref<56x32xf32, #tpu.memory_space<vmem>>, vector<8x32xf32>
    tpu.vector_store %arg12[%817, %c0_299], %816 {strides = array<i32>} : memref<56x32xf32, #tpu.memory_space<vmem>>, vector<8x32xf32>,
    %c1_i32_300 = arith.constant 1 : i32
    %c8_i32_301 = arith.constant 8 : i32
    %819 = arith.muli %c1_i32_300, %c8_i32_301 : i32
    %820 = tpu.assume_multiple %819, 8 : i32
    %821 = tpu.concatenate %816, %792 in 1 : vector<8x32xf32>, vector<8x32xf32> -> vector<8x64xf32>
    %822 = arith.index_cast %820 : i32 to index
    %c0_302 = arith.constant 0 : index
    %823 = vector.load %arg8[%822, %c0_302] : memref<56x128xf32, #tpu.memory_space<vmem>>, vector<8x128xf32>
    %cst_303 = arith.constant dense<0.000000e+00> : vector<8x128xf32>
    %824 = tpu.matmul %821, %769, %cst_303 {dimension_numbers = #tpu.dot_dimension_numbers<[1], [0], [0], [1], [0, 0, 1, 1], [], []>} : vector<8x64xf32>, vector<64x128xf32>, vector<8x128xf32> -> vector<8x128xf32>
    %825 = arith.addf %823, %824 : vector<8x128xf32>
    %826 = arith.negf %825 : vector<8x128xf32>
    %827 = math.exp %826 : vector<8x128xf32>
    %cst_304 = arith.constant 1.000000e+00 : f32
    %828 = vector.broadcast %cst_304 : f32 to vector<8x128xf32>
    %829 = arith.addf %828, %827 : vector<8x128xf32>
    %830 = arith.divf %828, %829 : vector<8x128xf32>
    %831 = math.tanh %825 : vector<8x128xf32>
    %832 = vector.extract_strided_slice %830 {offsets = [0, 0], sizes = [8, 32], strides = [1, 1]} : vector<8x128xf32> to vector<8x32xf32>
    %833 = vector.extract_strided_slice %830 {offsets = [0, 32], sizes = [8, 32], strides = [1, 1]} : vector<8x128xf32> to vector<8x32xf32>
    %834 = vector.extract_strided_slice %831 {offsets = [0, 64], sizes = [8, 32], strides = [1, 1]} : vector<8x128xf32> to vector<8x32xf32>
    %835 = vector.extract_strided_slice %830 {offsets = [0, 96], sizes = [8, 32], strides = [1, 1]} : vector<8x128xf32> to vector<8x32xf32>
    %836 = arith.mulf %833, %790 : vector<8x32xf32>
    %837 = arith.mulf %832, %834 : vector<8x32xf32>
    %838 = arith.addf %836, %837 : vector<8x32xf32>
    %839 = math.tanh %838 : vector<8x32xf32>
    %840 = arith.mulf %835, %839 : vector<8x32xf32>
    %841 = vector.shape_cast %840 : vector<8x32xf32> to vector<1x8x32xf32>
    %842 = vector.broadcast %841 : vector<1x8x32xf32> to vector<8x8x32xf32>
    %843 = arith.mulf %762, %842 : vector<8x8x32xf32>
    %cst_305 = arith.constant dense<0.000000e+00> : vector<8x8xf32>
    %844 = vector.multi_reduction <add>, %843, %cst_305 [2] : vector<8x8x32xf32> to vector<8x8xf32>
    %845 = vector.shape_cast %844 : vector<8x8xf32> to vector<8x8x1xf32>
    %846 = arith.addf %845, %768 : vector<8x8x1xf32>
    %cst_306 = arith.constant dense<0xFF800000> : vector<8x1xf32>
    %847 = vector.multi_reduction <maximumf>, %846, %cst_306 [0] : vector<8x8x1xf32> to vector<8x1xf32>
    %848 = vector.shape_cast %847 : vector<8x1xf32> to vector<1x8x1xf32>
    %849 = vector.broadcast %848 : vector<1x8x1xf32> to vector<8x8x1xf32>
    %850 = arith.subf %846, %849 : vector<8x8x1xf32>
    %851 = math.exp %850 : vector<8x8x1xf32>
    %cst_307 = arith.constant dense<0.000000e+00> : vector<8x1xf32>
    %852 = vector.multi_reduction <add>, %851, %cst_307 [0] : vector<8x8x1xf32> to vector<8x1xf32>
    %853 = vector.shape_cast %852 : vector<8x1xf32> to vector<1x8x1xf32>
    %854 = vector.broadcast %853 : vector<1x8x1xf32> to vector<8x8x1xf32>
    %855 = arith.divf %851, %854 : vector<8x8x1xf32>
    %856 = vector.broadcast %855 : vector<8x8x1xf32> to vector<8x8x32xf32>
    %857 = arith.mulf %856, %760 : vector<8x8x32xf32>
    %cst_308 = arith.constant dense<0.000000e+00> : vector<8x32xf32>
    %858 = vector.multi_reduction <add>, %857, %cst_308 [0] : vector<8x8x32xf32> to vector<8x32xf32>
    %859 = vector.broadcast %855 : vector<8x8x1xf32> to vector<8x8x32xf32>
    %860 = arith.mulf %859, %761 : vector<8x8x32xf32>
    %cst_309 = arith.constant dense<0.000000e+00> : vector<8x32xf32>
    %861 = vector.multi_reduction <add>, %860, %cst_309 [0] : vector<8x8x32xf32> to vector<8x32xf32>
    %862 = tpu.concatenate %858, %861, %840 in 1 : vector<8x32xf32>, vector<8x32xf32>, vector<8x32xf32> -> vector<8x96xf32>
    %cst_310 = arith.constant dense<0.000000e+00> : vector<8x32xf32>
    %863 = tpu.matmul %862, %770, %cst_310 {dimension_numbers = #tpu.dot_dimension_numbers<[1], [0], [0], [1], [0, 0, 1, 1], [], []>} : vector<8x96xf32>, vector<96x32xf32>, vector<8x32xf32> -> vector<8x32xf32>
    %864 = math.tanh %863 : vector<8x32xf32>
    %865 = arith.index_cast %820 : i32 to index
    %c0_311 = arith.constant 0 : index
    %866 = vector.load %arg12[%865, %c0_311] : memref<56x32xf32, #tpu.memory_space<vmem>>, vector<8x32xf32>
    tpu.vector_store %arg12[%865, %c0_311], %864 {strides = array<i32>} : memref<56x32xf32, #tpu.memory_space<vmem>>, vector<8x32xf32>,
    %c2_i32_312 = arith.constant 2 : i32
    %c8_i32_313 = arith.constant 8 : i32
    %867 = arith.muli %c2_i32_312, %c8_i32_313 : i32
    %868 = tpu.assume_multiple %867, 8 : i32
    %869 = tpu.concatenate %864, %840 in 1 : vector<8x32xf32>, vector<8x32xf32> -> vector<8x64xf32>
    %870 = arith.index_cast %868 : i32 to index
    %c0_314 = arith.constant 0 : index
    %871 = vector.load %arg8[%870, %c0_314] : memref<56x128xf32, #tpu.memory_space<vmem>>, vector<8x128xf32>
    %cst_315 = arith.constant dense<0.000000e+00> : vector<8x128xf32>
    %872 = tpu.matmul %869, %769, %cst_315 {dimension_numbers = #tpu.dot_dimension_numbers<[1], [0], [0], [1], [0, 0, 1, 1], [], []>} : vector<8x64xf32>, vector<64x128xf32>, vector<8x128xf32> -> vector<8x128xf32>
    %873 = arith.addf %871, %872 : vector<8x128xf32>
    %874 = arith.negf %873 : vector<8x128xf32>
    %875 = math.exp %874 : vector<8x128xf32>
    %cst_316 = arith.constant 1.000000e+00 : f32
    %876 = vector.broadcast %cst_316 : f32 to vector<8x128xf32>
    %877 = arith.addf %876, %875 : vector<8x128xf32>
    %878 = arith.divf %876, %877 : vector<8x128xf32>
    %879 = math.tanh %873 : vector<8x128xf32>
    %880 = vector.extract_strided_slice %878 {offsets = [0, 0], sizes = [8, 32], strides = [1, 1]} : vector<8x128xf32> to vector<8x32xf32>
    %881 = vector.extract_strided_slice %878 {offsets = [0, 32], sizes = [8, 32], strides = [1, 1]} : vector<8x128xf32> to vector<8x32xf32>
    %882 = vector.extract_strided_slice %879 {offsets = [0, 64], sizes = [8, 32], strides = [1, 1]} : vector<8x128xf32> to vector<8x32xf32>
    %883 = vector.extract_strided_slice %878 {offsets = [0, 96], sizes = [8, 32], strides = [1, 1]} : vector<8x128xf32> to vector<8x32xf32>
    %884 = arith.mulf %881, %838 : vector<8x32xf32>
    %885 = arith.mulf %880, %882 : vector<8x32xf32>
    %886 = arith.addf %884, %885 : vector<8x32xf32>
    %887 = math.tanh %886 : vector<8x32xf32>
    %888 = arith.mulf %883, %887 : vector<8x32xf32>
    %889 = vector.shape_cast %888 : vector<8x32xf32> to vector<1x8x32xf32>
    %890 = vector.broadcast %889 : vector<1x8x32xf32> to vector<8x8x32xf32>
    %891 = arith.mulf %762, %890 : vector<8x8x32xf32>
    %cst_317 = arith.constant dense<0.000000e+00> : vector<8x8xf32>
    %892 = vector.multi_reduction <add>, %891, %cst_317 [2] : vector<8x8x32xf32> to vector<8x8xf32>
    %893 = vector.shape_cast %892 : vector<8x8xf32> to vector<8x8x1xf32>
    %894 = arith.addf %893, %768 : vector<8x8x1xf32>
    %cst_318 = arith.constant dense<0xFF800000> : vector<8x1xf32>
    %895 = vector.multi_reduction <maximumf>, %894, %cst_318 [0] : vector<8x8x1xf32> to vector<8x1xf32>
    %896 = vector.shape_cast %895 : vector<8x1xf32> to vector<1x8x1xf32>
    %897 = vector.broadcast %896 : vector<1x8x1xf32> to vector<8x8x1xf32>
    %898 = arith.subf %894, %897 : vector<8x8x1xf32>
    %899 = math.exp %898 : vector<8x8x1xf32>
    %cst_319 = arith.constant dense<0.000000e+00> : vector<8x1xf32>
    %900 = vector.multi_reduction <add>, %899, %cst_319 [0] : vector<8x8x1xf32> to vector<8x1xf32>
    %901 = vector.shape_cast %900 : vector<8x1xf32> to vector<1x8x1xf32>
    %902 = vector.broadcast %901 : vector<1x8x1xf32> to vector<8x8x1xf32>
    %903 = arith.divf %899, %902 : vector<8x8x1xf32>
    %904 = vector.broadcast %903 : vector<8x8x1xf32> to vector<8x8x32xf32>
    %905 = arith.mulf %904, %760 : vector<8x8x32xf32>
    %cst_320 = arith.constant dense<0.000000e+00> : vector<8x32xf32>
    %906 = vector.multi_reduction <add>, %905, %cst_320 [0] : vector<8x8x32xf32> to vector<8x32xf32>
    %907 = vector.broadcast %903 : vector<8x8x1xf32> to vector<8x8x32xf32>
    %908 = arith.mulf %907, %761 : vector<8x8x32xf32>
    %cst_321 = arith.constant dense<0.000000e+00> : vector<8x32xf32>
    %909 = vector.multi_reduction <add>, %908, %cst_321 [0] : vector<8x8x32xf32> to vector<8x32xf32>
    %910 = tpu.concatenate %906, %909, %888 in 1 : vector<8x32xf32>, vector<8x32xf32>, vector<8x32xf32> -> vector<8x96xf32>
    %cst_322 = arith.constant dense<0.000000e+00> : vector<8x32xf32>
    %911 = tpu.matmul %910, %770, %cst_322 {dimension_numbers = #tpu.dot_dimension_numbers<[1], [0], [0], [1], [0, 0, 1, 1], [], []>} : vector<8x96xf32>, vector<96x32xf32>, vector<8x32xf32> -> vector<8x32xf32>
    %912 = math.tanh %911 : vector<8x32xf32>
    %913 = arith.index_cast %868 : i32 to index
    %c0_323 = arith.constant 0 : index
    %914 = vector.load %arg12[%913, %c0_323] : memref<56x32xf32, #tpu.memory_space<vmem>>, vector<8x32xf32>
    tpu.vector_store %arg12[%913, %c0_323], %912 {strides = array<i32>} : memref<56x32xf32, #tpu.memory_space<vmem>>, vector<8x32xf32>,
    %c3_i32_324 = arith.constant 3 : i32
    %c8_i32_325 = arith.constant 8 : i32
    %915 = arith.muli %c3_i32_324, %c8_i32_325 : i32
    %916 = tpu.assume_multiple %915, 8 : i32
    %917 = tpu.concatenate %912, %888 in 1 : vector<8x32xf32>, vector<8x32xf32> -> vector<8x64xf32>
    %918 = arith.index_cast %916 : i32 to index
    %c0_326 = arith.constant 0 : index
    %919 = vector.load %arg8[%918, %c0_326] : memref<56x128xf32, #tpu.memory_space<vmem>>, vector<8x128xf32>
    %cst_327 = arith.constant dense<0.000000e+00> : vector<8x128xf32>
    %920 = tpu.matmul %917, %769, %cst_327 {dimension_numbers = #tpu.dot_dimension_numbers<[1], [0], [0], [1], [0, 0, 1, 1], [], []>} : vector<8x64xf32>, vector<64x128xf32>, vector<8x128xf32> -> vector<8x128xf32>
    %921 = arith.addf %919, %920 : vector<8x128xf32>
    %922 = arith.negf %921 : vector<8x128xf32>
    %923 = math.exp %922 : vector<8x128xf32>
    %cst_328 = arith.constant 1.000000e+00 : f32
    %924 = vector.broadcast %cst_328 : f32 to vector<8x128xf32>
    %925 = arith.addf %924, %923 : vector<8x128xf32>
    %926 = arith.divf %924, %925 : vector<8x128xf32>
    %927 = math.tanh %921 : vector<8x128xf32>
    %928 = vector.extract_strided_slice %926 {offsets = [0, 0], sizes = [8, 32], strides = [1, 1]} : vector<8x128xf32> to vector<8x32xf32>
    %929 = vector.extract_strided_slice %926 {offsets = [0, 32], sizes = [8, 32], strides = [1, 1]} : vector<8x128xf32> to vector<8x32xf32>
    %930 = vector.extract_strided_slice %927 {offsets = [0, 64], sizes = [8, 32], strides = [1, 1]} : vector<8x128xf32> to vector<8x32xf32>
    %931 = vector.extract_strided_slice %926 {offsets = [0, 96], sizes = [8, 32], strides = [1, 1]} : vector<8x128xf32> to vector<8x32xf32>
    %932 = arith.mulf %929, %886 : vector<8x32xf32>
    %933 = arith.mulf %928, %930 : vector<8x32xf32>
    %934 = arith.addf %932, %933 : vector<8x32xf32>
    %935 = math.tanh %934 : vector<8x32xf32>
    %936 = arith.mulf %931, %935 : vector<8x32xf32>
    %937 = vector.shape_cast %936 : vector<8x32xf32> to vector<1x8x32xf32>
    %938 = vector.broadcast %937 : vector<1x8x32xf32> to vector<8x8x32xf32>
    %939 = arith.mulf %762, %938 : vector<8x8x32xf32>
    %cst_329 = arith.constant dense<0.000000e+00> : vector<8x8xf32>
    %940 = vector.multi_reduction <add>, %939, %cst_329 [2] : vector<8x8x32xf32> to vector<8x8xf32>
    %941 = vector.shape_cast %940 : vector<8x8xf32> to vector<8x8x1xf32>
    %942 = arith.addf %941, %768 : vector<8x8x1xf32>
    %cst_330 = arith.constant dense<0xFF800000> : vector<8x1xf32>
    %943 = vector.multi_reduction <maximumf>, %942, %cst_330 [0] : vector<8x8x1xf32> to vector<8x1xf32>
    %944 = vector.shape_cast %943 : vector<8x1xf32> to vector<1x8x1xf32>
    %945 = vector.broadcast %944 : vector<1x8x1xf32> to vector<8x8x1xf32>
    %946 = arith.subf %942, %945 : vector<8x8x1xf32>
    %947 = math.exp %946 : vector<8x8x1xf32>
    %cst_331 = arith.constant dense<0.000000e+00> : vector<8x1xf32>
    %948 = vector.multi_reduction <add>, %947, %cst_331 [0] : vector<8x8x1xf32> to vector<8x1xf32>
    %949 = vector.shape_cast %948 : vector<8x1xf32> to vector<1x8x1xf32>
    %950 = vector.broadcast %949 : vector<1x8x1xf32> to vector<8x8x1xf32>
    %951 = arith.divf %947, %950 : vector<8x8x1xf32>
    %952 = vector.broadcast %951 : vector<8x8x1xf32> to vector<8x8x32xf32>
    %953 = arith.mulf %952, %760 : vector<8x8x32xf32>
    %cst_332 = arith.constant dense<0.000000e+00> : vector<8x32xf32>
    %954 = vector.multi_reduction <add>, %953, %cst_332 [0] : vector<8x8x32xf32> to vector<8x32xf32>
    %955 = vector.broadcast %951 : vector<8x8x1xf32> to vector<8x8x32xf32>
    %956 = arith.mulf %955, %761 : vector<8x8x32xf32>
    %cst_333 = arith.constant dense<0.000000e+00> : vector<8x32xf32>
    %957 = vector.multi_reduction <add>, %956, %cst_333 [0] : vector<8x8x32xf32> to vector<8x32xf32>
    %958 = tpu.concatenate %954, %957, %936 in 1 : vector<8x32xf32>, vector<8x32xf32>, vector<8x32xf32> -> vector<8x96xf32>
    %cst_334 = arith.constant dense<0.000000e+00> : vector<8x32xf32>
    %959 = tpu.matmul %958, %770, %cst_334 {dimension_numbers = #tpu.dot_dimension_numbers<[1], [0], [0], [1], [0, 0, 1, 1], [], []>} : vector<8x96xf32>, vector<96x32xf32>, vector<8x32xf32> -> vector<8x32xf32>
    %960 = math.tanh %959 : vector<8x32xf32>
    %961 = arith.index_cast %916 : i32 to index
    %c0_335 = arith.constant 0 : index
    %962 = vector.load %arg12[%961, %c0_335] : memref<56x32xf32, #tpu.memory_space<vmem>>, vector<8x32xf32>
    tpu.vector_store %arg12[%961, %c0_335], %960 {strides = array<i32>} : memref<56x32xf32, #tpu.memory_space<vmem>>, vector<8x32xf32>,
    %c4_i32_336 = arith.constant 4 : i32
    %c8_i32_337 = arith.constant 8 : i32
    %963 = arith.muli %c4_i32_336, %c8_i32_337 : i32
    %964 = tpu.assume_multiple %963, 8 : i32
    %965 = tpu.concatenate %960, %936 in 1 : vector<8x32xf32>, vector<8x32xf32> -> vector<8x64xf32>
    %966 = arith.index_cast %964 : i32 to index
    %c0_338 = arith.constant 0 : index
    %967 = vector.load %arg8[%966, %c0_338] : memref<56x128xf32, #tpu.memory_space<vmem>>, vector<8x128xf32>
    %cst_339 = arith.constant dense<0.000000e+00> : vector<8x128xf32>
    %968 = tpu.matmul %965, %769, %cst_339 {dimension_numbers = #tpu.dot_dimension_numbers<[1], [0], [0], [1], [0, 0, 1, 1], [], []>} : vector<8x64xf32>, vector<64x128xf32>, vector<8x128xf32> -> vector<8x128xf32>
    %969 = arith.addf %967, %968 : vector<8x128xf32>
    %970 = arith.negf %969 : vector<8x128xf32>
    %971 = math.exp %970 : vector<8x128xf32>
    %cst_340 = arith.constant 1.000000e+00 : f32
    %972 = vector.broadcast %cst_340 : f32 to vector<8x128xf32>
    %973 = arith.addf %972, %971 : vector<8x128xf32>
    %974 = arith.divf %972, %973 : vector<8x128xf32>
    %975 = math.tanh %969 : vector<8x128xf32>
    %976 = vector.extract_strided_slice %974 {offsets = [0, 0], sizes = [8, 32], strides = [1, 1]} : vector<8x128xf32> to vector<8x32xf32>
    %977 = vector.extract_strided_slice %974 {offsets = [0, 32], sizes = [8, 32], strides = [1, 1]} : vector<8x128xf32> to vector<8x32xf32>
    %978 = vector.extract_strided_slice %975 {offsets = [0, 64], sizes = [8, 32], strides = [1, 1]} : vector<8x128xf32> to vector<8x32xf32>
    %979 = vector.extract_strided_slice %974 {offsets = [0, 96], sizes = [8, 32], strides = [1, 1]} : vector<8x128xf32> to vector<8x32xf32>
    %980 = arith.mulf %977, %934 : vector<8x32xf32>
    %981 = arith.mulf %976, %978 : vector<8x32xf32>
    %982 = arith.addf %980, %981 : vector<8x32xf32>
    %983 = math.tanh %982 : vector<8x32xf32>
    %984 = arith.mulf %979, %983 : vector<8x32xf32>
    %985 = vector.shape_cast %984 : vector<8x32xf32> to vector<1x8x32xf32>
    %986 = vector.broadcast %985 : vector<1x8x32xf32> to vector<8x8x32xf32>
    %987 = arith.mulf %762, %986 : vector<8x8x32xf32>
    %cst_341 = arith.constant dense<0.000000e+00> : vector<8x8xf32>
    %988 = vector.multi_reduction <add>, %987, %cst_341 [2] : vector<8x8x32xf32> to vector<8x8xf32>
    %989 = vector.shape_cast %988 : vector<8x8xf32> to vector<8x8x1xf32>
    %990 = arith.addf %989, %768 : vector<8x8x1xf32>
    %cst_342 = arith.constant dense<0xFF800000> : vector<8x1xf32>
    %991 = vector.multi_reduction <maximumf>, %990, %cst_342 [0] : vector<8x8x1xf32> to vector<8x1xf32>
    %992 = vector.shape_cast %991 : vector<8x1xf32> to vector<1x8x1xf32>
    %993 = vector.broadcast %992 : vector<1x8x1xf32> to vector<8x8x1xf32>
    %994 = arith.subf %990, %993 : vector<8x8x1xf32>
    %995 = math.exp %994 : vector<8x8x1xf32>
    %cst_343 = arith.constant dense<0.000000e+00> : vector<8x1xf32>
    %996 = vector.multi_reduction <add>, %995, %cst_343 [0] : vector<8x8x1xf32> to vector<8x1xf32>
    %997 = vector.shape_cast %996 : vector<8x1xf32> to vector<1x8x1xf32>
    %998 = vector.broadcast %997 : vector<1x8x1xf32> to vector<8x8x1xf32>
    %999 = arith.divf %995, %998 : vector<8x8x1xf32>
    %1000 = vector.broadcast %999 : vector<8x8x1xf32> to vector<8x8x32xf32>
    %1001 = arith.mulf %1000, %760 : vector<8x8x32xf32>
    %cst_344 = arith.constant dense<0.000000e+00> : vector<8x32xf32>
    %1002 = vector.multi_reduction <add>, %1001, %cst_344 [0] : vector<8x8x32xf32> to vector<8x32xf32>
    %1003 = vector.broadcast %999 : vector<8x8x1xf32> to vector<8x8x32xf32>
    %1004 = arith.mulf %1003, %761 : vector<8x8x32xf32>
    %cst_345 = arith.constant dense<0.000000e+00> : vector<8x32xf32>
    %1005 = vector.multi_reduction <add>, %1004, %cst_345 [0] : vector<8x8x32xf32> to vector<8x32xf32>
    %1006 = tpu.concatenate %1002, %1005, %984 in 1 : vector<8x32xf32>, vector<8x32xf32>, vector<8x32xf32> -> vector<8x96xf32>
    %cst_346 = arith.constant dense<0.000000e+00> : vector<8x32xf32>
    %1007 = tpu.matmul %1006, %770, %cst_346 {dimension_numbers = #tpu.dot_dimension_numbers<[1], [0], [0], [1], [0, 0, 1, 1], [], []>} : vector<8x96xf32>, vector<96x32xf32>, vector<8x32xf32> -> vector<8x32xf32>
    %1008 = math.tanh %1007 : vector<8x32xf32>
    %1009 = arith.index_cast %964 : i32 to index
    %c0_347 = arith.constant 0 : index
    %1010 = vector.load %arg12[%1009, %c0_347] : memref<56x32xf32, #tpu.memory_space<vmem>>, vector<8x32xf32>
    tpu.vector_store %arg12[%1009, %c0_347], %1008 {strides = array<i32>} : memref<56x32xf32, #tpu.memory_space<vmem>>, vector<8x32xf32>,
    %c5_i32_348 = arith.constant 5 : i32
    %c8_i32_349 = arith.constant 8 : i32
    %1011 = arith.muli %c5_i32_348, %c8_i32_349 : i32
    %1012 = tpu.assume_multiple %1011, 8 : i32
    %1013 = tpu.concatenate %1008, %984 in 1 : vector<8x32xf32>, vector<8x32xf32> -> vector<8x64xf32>
    %1014 = arith.index_cast %1012 : i32 to index
    %c0_350 = arith.constant 0 : index
    %1015 = vector.load %arg8[%1014, %c0_350] : memref<56x128xf32, #tpu.memory_space<vmem>>, vector<8x128xf32>
    %cst_351 = arith.constant dense<0.000000e+00> : vector<8x128xf32>
    %1016 = tpu.matmul %1013, %769, %cst_351 {dimension_numbers = #tpu.dot_dimension_numbers<[1], [0], [0], [1], [0, 0, 1, 1], [], []>} : vector<8x64xf32>, vector<64x128xf32>, vector<8x128xf32> -> vector<8x128xf32>
    %1017 = arith.addf %1015, %1016 : vector<8x128xf32>
    %1018 = arith.negf %1017 : vector<8x128xf32>
    %1019 = math.exp %1018 : vector<8x128xf32>
    %cst_352 = arith.constant 1.000000e+00 : f32
    %1020 = vector.broadcast %cst_352 : f32 to vector<8x128xf32>
    %1021 = arith.addf %1020, %1019 : vector<8x128xf32>
    %1022 = arith.divf %1020, %1021 : vector<8x128xf32>
    %1023 = math.tanh %1017 : vector<8x128xf32>
    %1024 = vector.extract_strided_slice %1022 {offsets = [0, 0], sizes = [8, 32], strides = [1, 1]} : vector<8x128xf32> to vector<8x32xf32>
    %1025 = vector.extract_strided_slice %1022 {offsets = [0, 32], sizes = [8, 32], strides = [1, 1]} : vector<8x128xf32> to vector<8x32xf32>
    %1026 = vector.extract_strided_slice %1023 {offsets = [0, 64], sizes = [8, 32], strides = [1, 1]} : vector<8x128xf32> to vector<8x32xf32>
    %1027 = vector.extract_strided_slice %1022 {offsets = [0, 96], sizes = [8, 32], strides = [1, 1]} : vector<8x128xf32> to vector<8x32xf32>
    %1028 = arith.mulf %1025, %982 : vector<8x32xf32>
    %1029 = arith.mulf %1024, %1026 : vector<8x32xf32>
    %1030 = arith.addf %1028, %1029 : vector<8x32xf32>
    %1031 = math.tanh %1030 : vector<8x32xf32>
    %1032 = arith.mulf %1027, %1031 : vector<8x32xf32>
    %1033 = vector.shape_cast %1032 : vector<8x32xf32> to vector<1x8x32xf32>
    %1034 = vector.broadcast %1033 : vector<1x8x32xf32> to vector<8x8x32xf32>
    %1035 = arith.mulf %762, %1034 : vector<8x8x32xf32>
    %cst_353 = arith.constant dense<0.000000e+00> : vector<8x8xf32>
    %1036 = vector.multi_reduction <add>, %1035, %cst_353 [2] : vector<8x8x32xf32> to vector<8x8xf32>
    %1037 = vector.shape_cast %1036 : vector<8x8xf32> to vector<8x8x1xf32>
    %1038 = arith.addf %1037, %768 : vector<8x8x1xf32>
    %cst_354 = arith.constant dense<0xFF800000> : vector<8x1xf32>
    %1039 = vector.multi_reduction <maximumf>, %1038, %cst_354 [0] : vector<8x8x1xf32> to vector<8x1xf32>
    %1040 = vector.shape_cast %1039 : vector<8x1xf32> to vector<1x8x1xf32>
    %1041 = vector.broadcast %1040 : vector<1x8x1xf32> to vector<8x8x1xf32>
    %1042 = arith.subf %1038, %1041 : vector<8x8x1xf32>
    %1043 = math.exp %1042 : vector<8x8x1xf32>
    %cst_355 = arith.constant dense<0.000000e+00> : vector<8x1xf32>
    %1044 = vector.multi_reduction <add>, %1043, %cst_355 [0] : vector<8x8x1xf32> to vector<8x1xf32>
    %1045 = vector.shape_cast %1044 : vector<8x1xf32> to vector<1x8x1xf32>
    %1046 = vector.broadcast %1045 : vector<1x8x1xf32> to vector<8x8x1xf32>
    %1047 = arith.divf %1043, %1046 : vector<8x8x1xf32>
    %1048 = vector.broadcast %1047 : vector<8x8x1xf32> to vector<8x8x32xf32>
    %1049 = arith.mulf %1048, %760 : vector<8x8x32xf32>
    %cst_356 = arith.constant dense<0.000000e+00> : vector<8x32xf32>
    %1050 = vector.multi_reduction <add>, %1049, %cst_356 [0] : vector<8x8x32xf32> to vector<8x32xf32>
    %1051 = vector.broadcast %1047 : vector<8x8x1xf32> to vector<8x8x32xf32>
    %1052 = arith.mulf %1051, %761 : vector<8x8x32xf32>
    %cst_357 = arith.constant dense<0.000000e+00> : vector<8x32xf32>
    %1053 = vector.multi_reduction <add>, %1052, %cst_357 [0] : vector<8x8x32xf32> to vector<8x32xf32>
    %1054 = tpu.concatenate %1050, %1053, %1032 in 1 : vector<8x32xf32>, vector<8x32xf32>, vector<8x32xf32> -> vector<8x96xf32>
    %cst_358 = arith.constant dense<0.000000e+00> : vector<8x32xf32>
    %1055 = tpu.matmul %1054, %770, %cst_358 {dimension_numbers = #tpu.dot_dimension_numbers<[1], [0], [0], [1], [0, 0, 1, 1], [], []>} : vector<8x96xf32>, vector<96x32xf32>, vector<8x32xf32> -> vector<8x32xf32>
    %1056 = math.tanh %1055 : vector<8x32xf32>
    %1057 = arith.index_cast %1012 : i32 to index
    %c0_359 = arith.constant 0 : index
    %1058 = vector.load %arg12[%1057, %c0_359] : memref<56x32xf32, #tpu.memory_space<vmem>>, vector<8x32xf32>
    tpu.vector_store %arg12[%1057, %c0_359], %1056 {strides = array<i32>} : memref<56x32xf32, #tpu.memory_space<vmem>>, vector<8x32xf32>,
    %c6_i32_360 = arith.constant 6 : i32
    %c8_i32_361 = arith.constant 8 : i32
    %1059 = arith.muli %c6_i32_360, %c8_i32_361 : i32
    %1060 = tpu.assume_multiple %1059, 8 : i32
    %1061 = tpu.concatenate %1056, %1032 in 1 : vector<8x32xf32>, vector<8x32xf32> -> vector<8x64xf32>
    %1062 = arith.index_cast %1060 : i32 to index
    %c0_362 = arith.constant 0 : index
    %1063 = vector.load %arg8[%1062, %c0_362] : memref<56x128xf32, #tpu.memory_space<vmem>>, vector<8x128xf32>
    %cst_363 = arith.constant dense<0.000000e+00> : vector<8x128xf32>
    %1064 = tpu.matmul %1061, %769, %cst_363 {dimension_numbers = #tpu.dot_dimension_numbers<[1], [0], [0], [1], [0, 0, 1, 1], [], []>} : vector<8x64xf32>, vector<64x128xf32>, vector<8x128xf32> -> vector<8x128xf32>
    %1065 = arith.addf %1063, %1064 : vector<8x128xf32>
    %1066 = arith.negf %1065 : vector<8x128xf32>
    %1067 = math.exp %1066 : vector<8x128xf32>
    %cst_364 = arith.constant 1.000000e+00 : f32
    %1068 = vector.broadcast %cst_364 : f32 to vector<8x128xf32>
    %1069 = arith.addf %1068, %1067 : vector<8x128xf32>
    %1070 = arith.divf %1068, %1069 : vector<8x128xf32>
    %1071 = math.tanh %1065 : vector<8x128xf32>
    %1072 = vector.extract_strided_slice %1070 {offsets = [0, 0], sizes = [8, 32], strides = [1, 1]} : vector<8x128xf32> to vector<8x32xf32>
    %1073 = vector.extract_strided_slice %1070 {offsets = [0, 32], sizes = [8, 32], strides = [1, 1]} : vector<8x128xf32> to vector<8x32xf32>
    %1074 = vector.extract_strided_slice %1071 {offsets = [0, 64], sizes = [8, 32], strides = [1, 1]} : vector<8x128xf32> to vector<8x32xf32>
    %1075 = vector.extract_strided_slice %1070 {offsets = [0, 96], sizes = [8, 32], strides = [1, 1]} : vector<8x128xf32> to vector<8x32xf32>
    %1076 = arith.mulf %1073, %1030 : vector<8x32xf32>
    %1077 = arith.mulf %1072, %1074 : vector<8x32xf32>
    %1078 = arith.addf %1076, %1077 : vector<8x32xf32>
    %1079 = math.tanh %1078 : vector<8x32xf32>
    %1080 = arith.mulf %1075, %1079 : vector<8x32xf32>
    %1081 = vector.shape_cast %1080 : vector<8x32xf32> to vector<1x8x32xf32>
    %1082 = vector.broadcast %1081 : vector<1x8x32xf32> to vector<8x8x32xf32>
    %1083 = arith.mulf %762, %1082 : vector<8x8x32xf32>
    %cst_365 = arith.constant dense<0.000000e+00> : vector<8x8xf32>
    %1084 = vector.multi_reduction <add>, %1083, %cst_365 [2] : vector<8x8x32xf32> to vector<8x8xf32>
    %1085 = vector.shape_cast %1084 : vector<8x8xf32> to vector<8x8x1xf32>
    %1086 = arith.addf %1085, %768 : vector<8x8x1xf32>
    %cst_366 = arith.constant dense<0xFF800000> : vector<8x1xf32>
    %1087 = vector.multi_reduction <maximumf>, %1086, %cst_366 [0] : vector<8x8x1xf32> to vector<8x1xf32>
    %1088 = vector.shape_cast %1087 : vector<8x1xf32> to vector<1x8x1xf32>
    %1089 = vector.broadcast %1088 : vector<1x8x1xf32> to vector<8x8x1xf32>
    %1090 = arith.subf %1086, %1089 : vector<8x8x1xf32>
    %1091 = math.exp %1090 : vector<8x8x1xf32>
    %cst_367 = arith.constant dense<0.000000e+00> : vector<8x1xf32>
    %1092 = vector.multi_reduction <add>, %1091, %cst_367 [0] : vector<8x8x1xf32> to vector<8x1xf32>
    %1093 = vector.shape_cast %1092 : vector<8x1xf32> to vector<1x8x1xf32>
    %1094 = vector.broadcast %1093 : vector<1x8x1xf32> to vector<8x8x1xf32>
    %1095 = arith.divf %1091, %1094 : vector<8x8x1xf32>
    %1096 = vector.broadcast %1095 : vector<8x8x1xf32> to vector<8x8x32xf32>
    %1097 = arith.mulf %1096, %760 : vector<8x8x32xf32>
    %cst_368 = arith.constant dense<0.000000e+00> : vector<8x32xf32>
    %1098 = vector.multi_reduction <add>, %1097, %cst_368 [0] : vector<8x8x32xf32> to vector<8x32xf32>
    %1099 = vector.broadcast %1095 : vector<8x8x1xf32> to vector<8x8x32xf32>
    %1100 = arith.mulf %1099, %761 : vector<8x8x32xf32>
    %cst_369 = arith.constant dense<0.000000e+00> : vector<8x32xf32>
    %1101 = vector.multi_reduction <add>, %1100, %cst_369 [0] : vector<8x8x32xf32> to vector<8x32xf32>
    %1102 = tpu.concatenate %1098, %1101, %1080 in 1 : vector<8x32xf32>, vector<8x32xf32>, vector<8x32xf32> -> vector<8x96xf32>
    %cst_370 = arith.constant dense<0.000000e+00> : vector<8x32xf32>
    %1103 = tpu.matmul %1102, %770, %cst_370 {dimension_numbers = #tpu.dot_dimension_numbers<[1], [0], [0], [1], [0, 0, 1, 1], [], []>} : vector<8x96xf32>, vector<96x32xf32>, vector<8x32xf32> -> vector<8x32xf32>
    %1104 = math.tanh %1103 : vector<8x32xf32>
    %1105 = arith.index_cast %1060 : i32 to index
    %c0_371 = arith.constant 0 : index
    %1106 = vector.load %arg12[%1105, %c0_371] : memref<56x32xf32, #tpu.memory_space<vmem>>, vector<8x32xf32>
    tpu.vector_store %arg12[%1105, %c0_371], %1104 {strides = array<i32>} : memref<56x32xf32, #tpu.memory_space<vmem>>, vector<8x32xf32>,
    %c7_i32_372 = arith.constant 7 : i32
    %c0_373 = arith.constant 0 : index
    %c0_374 = arith.constant 0 : index
    %1107 = vector.load %arg12[%c0_373, %c0_374] : memref<56x32xf32, #tpu.memory_space<vmem>>, vector<56x32xf32>
    %c496 = arith.constant 496 : index
    %c0_375 = arith.constant 0 : index
    %1108 = vector.load %arg5[%c496, %c0_375] : memref<528x256xf32, #tpu.memory_space<vmem>>, vector<32x64xf32>
    %cst_376 = arith.constant dense<0.000000e+00> : vector<56x64xf32>
    %1109 = tpu.matmul %1107, %1108, %cst_376 {dimension_numbers = #tpu.dot_dimension_numbers<[1], [0], [0], [1], [0, 0, 1, 1], [], []>} : vector<56x32xf32>, vector<32x64xf32>, vector<56x64xf32> -> vector<56x64xf32>
    %cst_377 = arith.constant dense<0xFF800000> : vector<56xf32>
    %1110 = vector.multi_reduction <maximumf>, %1109, %cst_377 [1] : vector<56x64xf32> to vector<56xf32>
    %1111 = vector.shape_cast %1110 : vector<56xf32> to vector<56x1xf32>
    %1112 = vector.broadcast %1111 : vector<56x1xf32> to vector<56x64xf32>
    %1113 = arith.subf %1109, %1112 : vector<56x64xf32>
    %1114 = math.exp %1113 : vector<56x64xf32>
    %cst_378 = arith.constant dense<0.000000e+00> : vector<56xf32>
    %1115 = vector.multi_reduction <add>, %1114, %cst_378 [1] : vector<56x64xf32> to vector<56xf32>
    %1116 = vector.shape_cast %1115 : vector<56xf32> to vector<56x1xf32>
    %1117 = math.log %1116 : vector<56x1xf32>
    %1118 = arith.addf %1111, %1117 : vector<56x1xf32>
    %1119 = vector.broadcast %1118 : vector<56x1xf32> to vector<56x64xf32>
    %1120 = arith.subf %1109, %1119 : vector<56x64xf32>
    %c0_379 = arith.constant 0 : index
    %c0_380 = arith.constant 0 : index
    %1121 = vector.load %arg3[%c0_379, %c0_380] : memref<56x64xf32, #tpu.memory_space<vmem>>, vector<56x64xf32>
    %1122 = arith.mulf %1120, %1121 : vector<56x64xf32>
    %c0_381 = arith.constant 0 : index
    %c0_382 = arith.constant 0 : index
    %1123 = vector.load %arg4[%c0_381, %c0_382] : memref<8x56xf32, #tpu.memory_space<vmem>>, vector<8x56xf32>
    %cst_383 = arith.constant dense<0.000000e+00> : vector<8x64xf32>
    %1124 = tpu.matmul %1123, %1122, %cst_383 {dimension_numbers = #tpu.dot_dimension_numbers<[1], [0], [0], [1], [0, 0, 1, 1], [], []>} : vector<8x56xf32>, vector<56x64xf32>, vector<8x64xf32> -> vector<8x64xf32>
    %cst_384 = arith.constant dense<0.000000e+00> : vector<8xf32>
    %1125 = vector.multi_reduction <add>, %1124, %cst_384 [1] : vector<8x64xf32> to vector<8xf32>
    %1126 = vector.shape_cast %1125 : vector<8xf32> to vector<8x1xf32>
    %c0_385 = arith.constant 0 : index
    %c0_386 = arith.constant 0 : index
    %1127 = vector.load %arg6[%c0_385, %c0_386] : memref<8x1xf32, #tpu.memory_space<vmem>>, vector<8x1xf32>
    tpu.vector_store %arg6[%c0_385, %c0_386], %1126 {strides = array<i32>} : memref<8x1xf32, #tpu.memory_space<vmem>>, vector<8x1xf32>,
    return
  }
}

</mosaic_0001>

<llo_original>
// kernel: tile.9
$region0: #{tile.9}
  %s0 = inlined_call_operand.vmem [shape: f32[8,7,8], index: 0, kind: input, shape index: {}]
  %s1 = inlined_call_operand.vmem [shape: f32[8,56], index: 1, kind: output, shape index: {}]
  %v2 = vld [vmem:[%s0] ss:$8 sm:$0xf]
  %v3 = vld [vmem:[%s0] ss:$8 sm:$0xf0]
  %vm4 = vcmask 1047556
  %v5 = vsel %vm4, %v3, %v2
  %vm6 = vcmask 64512
  %7 = vst.msk [vmem:[%s1] sm:$0xff] %vm6, %v5
  %s8 = scalar_lea.vmem %s0, 6
  %v9 = vld [vmem:[%s8] ss:$8 sm:$0xf]
  %s10 = scalar_lea.vmem %s0, 6
  %v11 = vld [vmem:[%s10] ss:$8 sm:$0xf0]
  %vm12 = vcmask 1047556
  %v13 = vsel %vm12, %v11, %v9
  %14 = vrot.lane.b32.xlu0 %v13, 48
  %v15 = vpop.permute.xlu0 %14
  %vm16 = vcmask 458112
  %17 = vst.msk [vmem:[%s1] sm:$0xff] %vm16, %v15
  %s18 = scalar_lea.vmem %s0, 5
  %v19 = vld [vmem:[%s18] ss:$8 sm:$0xf]
  %s20 = scalar_lea.vmem %s0, 5
  %v21 = vld [vmem:[%s20] ss:$8 sm:$0xf0]
  %vm22 = vcmask 1047556
  %v23 = vsel %vm22, %v21, %v19
  %24 = vrot.lane.b32.xlu0 %v23, 40
  %v25 = vpop.permute.xlu0 %24
  %vm26 = vcmask 392512
  %27 = vst.msk [vmem:[%s1] sm:$0xff] %vm26, %v25
  %s28 = scalar_lea.vmem %s0, 4
  %v29 = vld [vmem:[%s28] ss:$8 sm:$0xf]
  %s30 = scalar_lea.vmem %s0, 4
  %v31 = vld [vmem:[%s30] ss:$8 sm:$0xf0]
  %vm32 = vcmask 1047556
  %v33 = vsel %vm32, %v31, %v29
  %34 = vrot.lane.b32.xlu0 %v33, 32
  %v35 = vpop.permute.xlu0 %34
  %vm36 = vcmask 326912
  %37 = vst.msk [vmem:[%s1] sm:$0xff] %vm36, %v35
  %s38 = scalar_lea.vmem %s0, 3
  %v39 = vld [vmem:[%s38] ss:$8 sm:$0xf]
  %s40 = scalar_lea.vmem %s0, 3
  %v41 = vld [vmem:[%s40] ss:$8 sm:$0xf0]
  %vm42 = vcmask 1047556
  %v43 = vsel %vm42, %v41, %v39
  %44 = vrot.lane.b32.xlu0 %v43, 24
  %v45 = vpop.permute.xlu0 %44
  %vm46 = vcmask 261312
  %47 = vst.msk [vmem:[%s1] sm:$0xff] %vm46, %v45
  %s48 = scalar_lea.vmem %s0, 2
  %v49 = vld [vmem:[%s48] ss:$8 sm:$0xf]
  %s50 = scalar_lea.vmem %s0, 2
  %v51 = vld [vmem:[%s50] ss:$8 sm:$0xf0]
  %vm52 = vcmask 1047556
  %v53 = vsel %vm52, %v51, %v49
  %54 = vrot.lane.b32.xlu0 %v53, 16
  %v55 = vpop.permute.xlu0 %54
  %vm56 = vcmask 195712
  %57 = vst.msk [vmem:[%s1] sm:$0xff] %vm56, %v55
  %s58 = scalar_lea.vmem %s0, 1
  %v59 = vld [vmem:[%s58] ss:$8 sm:$0xf]
  %s60 = scalar_lea.vmem %s0, 1
  %v61 = vld [vmem:[%s60] ss:$8 sm:$0xf0]
  %vm62 = vcmask 1047556
  %v63 = vsel %vm62, %v61, %v59
  %64 = vrot.lane.b32.xlu0 %v63, 8
  %v65 = vpop.permute.xlu0 %64
  %vm66 = vcmask 130112
  %67 = vst.msk [vmem:[%s1] sm:$0xff] %vm66, %v65

// kernel: nmt_forward.1
$region0: #{nmt_forward.1}
  #allocation0 [shape = 'u32[]', space=smem, size = 0x4, offset = 0x4, fixed_abs, tag = 'smem constant byte address 0x4 - core index']
  #allocation1 [shape = 'u32[144,128]{1,0:T(1,128)}', space=vmem, size = 0x12000, scoped, tag = 'internal scratch']
  #allocation2 [shape = 'f32[64,256]{1,0:T(8,128)}', space=vmem, size = 0x10000, scoped, tag = 'scratch operand']
  #allocation3 [shape = 'f32[56,128]{1,0:T(8,128)}', space=vmem, size = 0x7000, scoped, tag = 'scratch operand']
  #allocation4 [shape = 'f32[8,8,32]{2,1,0:T(8,128)}', space=vmem, size = 0x8000, scoped, tag = 'scratch operand']
  #allocation5 [shape = 'f32[8,8,32]{2,1,0:T(8,128)}', space=vmem, size = 0x8000, scoped, tag = 'scratch operand']
  #allocation6 [shape = 'f32[8,8,32]{2,1,0:T(8,128)}', space=vmem, size = 0x8000, scoped, tag = 'scratch operand']
  #allocation7 [shape = 'f32[56,32]{1,0:T(8,128)}', space=vmem, size = 0x7000, scoped, tag = 'scratch operand']
  %s0 = inlined_call_operand.vmem [shape: f32[64,32], index: 0, kind: input, shape index: {}]
  %s1 = inlined_call_operand.vmem [shape: f32[8,8,1], index: 1, kind: input, shape index: {}]
  %s2 = inlined_call_operand.vmem [shape: f32[56,32], index: 2, kind: input, shape index: {}]
  %s3 = inlined_call_operand.vmem [shape: f32[56,64], index: 3, kind: input, shape index: {}]
  %s4 = inlined_call_operand.vmem [shape: f32[8,56], index: 4, kind: input, shape index: {}]
  %s5 = inlined_call_operand.vmem [shape: f32[528,256], index: 5, kind: input, shape index: {}]
  %s6 = inlined_call_operand.vmem [shape: f32[8,1], index: 6, kind: output, shape index: {}]
  %s7 = sld [smem:[#allocation0]]
  $region34: #{nmt_forward.1} parent=0
    _
  %s9 = ssub.s32 1, %s7
  %s10 = scalar_select 0, %s9, %s7
  // Predicated region
  $region2: #{nmt_forward.1} parent=0 // pred_check
    _
  $region3: #{nmt_forward.1} parent=0 // pred_check_branch
    %12 = sbr.rel (0) target = $region5
  $region4: #{nmt_forward.1} parent=0 // pred_region
    _
  $region5: #{nmt_forward.1} parent=0 // pred_fallthru
    _
  // Predicated region
  $region6: #{nmt_forward.1} parent=0 // pred_check
    _
  $region7: #{nmt_forward.1} parent=0 // pred_check_branch
    %14 = sbr.rel (0) target = $region9
  $region8: #{nmt_forward.1} parent=0 // pred_region
    _
  $region9: #{nmt_forward.1} parent=0 // pred_fallthru
    _
  // Predicated region
  $region10: #{nmt_forward.1} parent=0 // pred_check
    _
  $region11: #{nmt_forward.1} parent=0 // pred_check_branch
    %16 = sbr.rel (0) target = $region13
  $region12: #{nmt_forward.1} parent=0 // pred_region
    _
  $region13: #{nmt_forward.1} parent=0 // pred_fallthru
    _
  // Predicated region
  $region14: #{nmt_forward.1} parent=0 // pred_check
    _
  $region15: #{nmt_forward.1} parent=0 // pred_check_branch
    %18 = sbr.rel (0) target = $region17
  $region16: #{nmt_forward.1} parent=0 // pred_region
    _
  $region17: #{nmt_forward.1} parent=0 // pred_fallthru
    _
  // Predicated region
  $region18: #{nmt_forward.1} parent=0 // pred_check
    _
  $region19: #{nmt_forward.1} parent=0 // pred_check_branch
    %20 = sbr.rel (0) target = $region21
  $region20: #{nmt_forward.1} parent=0 // pred_region
    _
  $region21: #{nmt_forward.1} parent=0 // pred_fallthru
    _
  // Predicated region
  $region22: #{nmt_forward.1} parent=0 // pred_check
    _
  $region23: #{nmt_forward.1} parent=0 // pred_check_branch
    %22 = sbr.rel (0) target = $region25
  $region24: #{nmt_forward.1} parent=0 // pred_region
    _
  $region25: #{nmt_forward.1} parent=0 // pred_fallthru
    _
  %v23 = vld [vmem:[%s0] sm:$0xff]
  %v24 = vld [vmem:[%s0 + $0x8] sm:$0xff]
  %v25 = vld [vmem:[%s0 + $0x10] sm:$0xff]
  %v26 = vld [vmem:[%s0 + $0x18] sm:$0xff]
  %v27 = vld [vmem:[%s0 + $0x20] sm:$0xff]
  %v28 = vld [vmem:[%s0 + $0x28] sm:$0xff]
  %v29 = vld [vmem:[%s0 + $0x30] sm:$0xff]
  %v30 = vld [vmem:[%s0 + $0x38] sm:$0xff]
  %v31 = vld [vmem:[%s5] sm:$0xff]
  %v32 = vld [vmem:[%s5 + $0x8] sm:$0xff]
  %v33 = vld [vmem:[%s5 + $0x10] sm:$0xff]
  %v34 = vld [vmem:[%s5 + $0x18] sm:$0xff]
  %v35 = vld [vmem:[%s5 + $0x20] sm:$0xff]
  %v36 = vld [vmem:[%s5 + $0x28] sm:$0xff]
  %v37 = vld [vmem:[%s5 + $0x30] sm:$0xff]
  %v38 = vld [vmem:[%s5 + $0x38] sm:$0xff]
  %s39 = scalar_lea.vmem %s5, 64
  %v40 = vld [vmem:[%s39] ss:$8 sm:$0x3]
  %v42 = vlaneseq
  %v43 = vshrl.u32 %v42, 7
  %v44 = vsub.s32 0, %v43
  %v45 = vrot.slane %v40, %v44
  %v46 = vlaneseq
  %v47 = vshrl.u32 %v46, 7
  %v48 = vsub.s32 1, %v47
  %v49 = vrot.slane %v40, %v48
  %vm52 = vcmask 261120
  %v54 = vsel %vm52, %v23, 0
  %v57 = vsel %vm52, %v24, 0
  %v60 = vsel %vm52, %v25, 0
  %v63 = vsel %vm52, %v26, 0
  %v66 = vsel %vm52, %v27, 0
  %v69 = vsel %vm52, %v28, 0
  %v72 = vsel %vm52, %v29, 0
  %v75 = vsel %vm52, %v30, 0
  %77 = vmatprep.subr.mxu0 0.0
  %78 = vmatpush1.msra.mxu0 0.0
  %79 = vmatprep.subr.mxu0 0.0
  %80 = vmatpush1.msra.mxu0 0.0
  %81 = vmatprep.subr.mxu0 0.0
  %82 = vmatpush1.msra.mxu0 0.0
  %83 = vmatprep.subr.mxu0 0.0
  %84 = vmatpush1.msra.mxu0 0.0
  %85 = vmatprep.subr.mxu0 0.0
  %86 = vmatpush1.msra.mxu0 0.0
  %87 = vmatprep.subr.mxu0 0.0
  %88 = vmatpush1.msra.mxu0 0.0
  %89 = vmatprep.subr.mxu0 0.0
  %90 = vmatpush1.msra.mxu0 0.0
  %91 = vmatprep.subr.mxu0 0.0
  %92 = vmatpush1.msra.mxu0 0.0
  %93 = vmatprep.subr.mxu0 0.0
  %94 = vmatpush1.msra.mxu0 0.0
  %95 = vmatprep.subr.mxu0 0.0
  %96 = vmatpush1.msra.mxu0 0.0
  %97 = vmatprep.subr.mxu0 0.0
  %98 = vmatpush1.msra.mxu0 0.0
  %99 = vmatprep.subr.mxu0 0.0
  %100 = vmatpush1.msra.mxu0 0.0
  %101 = vmatprep.subr.mxu0 %v38
  %102 = vmatpush1.msra.mxu0 %v37
  %103 = vmatprep.subr.mxu0 %v36
  %104 = vmatpush1.msra.mxu0 %v35
  %105 = vmatprep.subr.mxu0 %v34
  %106 = vmatpush1.msra.mxu0 %v33
  %107 = vmatprep.subr.mxu0 %v32
  %108 = vmatpush1.msra.mxu0 %v31
  %109 = vmatprep.subr.mxu0 0.0
  %110 = vmatpush2.msra.mxu0 0.0
  %111 = vmatprep.subr.mxu0 0.0
  %112 = vmatpush2.msra.mxu0 0.0
  %113 = vmatprep.subr.mxu0 0.0
  %114 = vmatpush2.msra.mxu0 0.0
  %115 = vmatprep.subr.mxu0 0.0
  %116 = vmatpush2.msra.mxu0 0.0
  %117 = vmatprep.subr.mxu0 0.0
  %118 = vmatpush2.msra.mxu0 0.0
  %119 = vmatprep.subr.mxu0 0.0
  %120 = vmatpush2.msra.mxu0 0.0
  %121 = vmatprep.subr.mxu0 0.0
  %122 = vmatpush2.msra.mxu0 0.0
  %123 = vmatprep.subr.mxu0 0.0
  %124 = vmatpush2.msra.mxu0 0.0
  %125 = vmatprep.subr.mxu0 0.0
  %126 = vmatpush2.msra.mxu0 0.0
  %127 = vmatprep.subr.mxu0 0.0
  %128 = vmatpush2.msra.mxu0 0.0
  %129 = vmatprep.subr.mxu0 0.0
  %130 = vmatpush2.msra.mxu0 0.0
  %131 = vmatprep.subr.mxu0 0.0
  %132 = vmatpush2.msra.mxu0 0.0
  %133 = vmatprep.subr.mxu0 0.0
  %134 = vmatpush2.msra.mxu0 0.0
  %135 = vmatprep.subr.mxu0 0.0
  %136 = vmatpush2.msra.mxu0 0.0
  %137 = vmatprep.subr.mxu0 0.0
  %138 = vmatpush2.msra.mxu0 0.0
  %139 = vmatprep.subr.mxu0 0.0
  %140 = vmatpush2.msra.mxu0 0.0
  %141 = vmatprep.mubr.f32.mxu0 0.0
  %142 = vmatmul.mubr.f32.gmra.mxu0 %v54
  %v143 = vpop.f32.mrf.mxu0
  %v144 = vadd.f32 %v45, %v143
  %v145 = vpop.f32.mrf.mxu0
  %v146 = vadd.f32 %v49, %v145
  %147 = vmatprep.mubr.f32.mxu0 0.0
  %148 = vmatmul.mubr.f32.gmra.mxu0 %v57
  %v149 = vpop.f32.mrf.mxu0
  %v150 = vadd.f32 %v45, %v149
  %v151 = vpop.f32.mrf.mxu0
  %v152 = vadd.f32 %v49, %v151
  %153 = vmatprep.mubr.f32.mxu0 0.0
  %154 = vmatmul.mubr.f32.gmra.mxu0 %v60
  %v155 = vpop.f32.mrf.mxu0
  %v156 = vadd.f32 %v45, %v155
  %v157 = vpop.f32.mrf.mxu0
  %v158 = vadd.f32 %v49, %v157
  %159 = vmatprep.mubr.f32.mxu0 0.0
  %160 = vmatmul.mubr.f32.gmra.mxu0 %v63
  %v161 = vpop.f32.mrf.mxu0
  %v162 = vadd.f32 %v45, %v161
  %v163 = vpop.f32.mrf.mxu0
  %v164 = vadd.f32 %v49, %v163
  %165 = vmatprep.mubr.f32.mxu0 0.0
  %166 = vmatmul.mubr.f32.gmra.mxu0 %v66
  %v167 = vpop.f32.mrf.mxu0
  %v168 = vadd.f32 %v45, %v167
  %v169 = vpop.f32.mrf.mxu0
  %v170 = vadd.f32 %v49, %v169
  %171 = vmatprep.mubr.f32.mxu0 0.0
  %172 = vmatmul.mubr.f32.gmra.mxu0 %v69
  %v173 = vpop.f32.mrf.mxu0
  %v174 = vadd.f32 %v45, %v173
  %v175 = vpop.f32.mrf.mxu0
  %v176 = vadd.f32 %v49, %v175
  %177 = vmatprep.mubr.f32.mxu0 0.0
  %178 = vmatmul.mubr.f32.gmra.mxu0 %v72
  %v179 = vpop.f32.mrf.mxu0
  %v180 = vadd.f32 %v45, %v179
  %v181 = vpop.f32.mrf.mxu0
  %v182 = vadd.f32 %v49, %v181
  %183 = vmatprep.mubr.f32.mxu0 0.0
  %184 = vmatmul.mubr.f32.gmra.mxu0 %v75
  %v185 = vpop.f32.mrf.mxu0
  %v186 = vadd.f32 %v45, %v185
  %v187 = vpop.f32.mrf.mxu0
  %v188 = vadd.f32 %v49, %v187
  %189 = vdwg.mxu0
  %190 = vst [vmem:[#allocation2] sm:$0xff] %v144
  %191 = vst [vmem:[#allocation2 + $0x8] sm:$0xff] %v146
  %192 = vst [vmem:[#allocation2 + $0x10] sm:$0xff] %v150
  %193 = vst [vmem:[#allocation2 + $0x18] sm:$0xff] %v152
  %194 = vst [vmem:[#allocation2 + $0x20] sm:$0xff] %v156
  %195 = vst [vmem:[#allocation2 + $0x28] sm:$0xff] %v158
  %196 = vst [vmem:[#allocation2 + $0x30] sm:$0xff] %v162
  %197 = vst [vmem:[#allocation2 + $0x38] sm:$0xff] %v164
  %198 = vst [vmem:[#allocation2 + $0x40] sm:$0xff] %v168
  %199 = vst [vmem:[#allocation2 + $0x48] sm:$0xff] %v170
  %200 = vst [vmem:[#allocation2 + $0x50] sm:$0xff] %v174
  %201 = vst [vmem:[#allocation2 + $0x58] sm:$0xff] %v176
  %202 = vst [vmem:[#allocation2 + $0x60] sm:$0xff] %v180
  %203 = vst [vmem:[#allocation2 + $0x68] sm:$0xff] %v182
  %204 = vst [vmem:[#allocation2 + $0x70] sm:$0xff] %v186
  %205 = vst [vmem:[#allocation2 + $0x78] sm:$0xff] %v188
  %v206 = vld [vmem:[%s2] sm:$0xff]
  %v207 = vld [vmem:[%s2 + $0x8] sm:$0xff]
  %v208 = vld [vmem:[%s2 + $0x10] sm:$0xff]
  %v209 = vld [vmem:[%s2 + $0x18] sm:$0xff]
  %v210 = vld [vmem:[%s2 + $0x20] sm:$0xff]
  %v211 = vld [vmem:[%s2 + $0x28] sm:$0xff]
  %v212 = vld [vmem:[%s2 + $0x30] sm:$0xff]
  %v213 = vld [vmem:[%s5 + $0x250] sm:$0xff]
  %v214 = vld [vmem:[%s5 + $0x260] sm:$0xff]
  %v215 = vld [vmem:[%s5 + $0x270] sm:$0xff]
  %v216 = vld [vmem:[%s5 + $0x280] sm:$0xff]
  %v217 = vld [vmem:[%s5 + $0x290] ss:$0 sm:$0xff]
  %v219 = vsel %vm52, %v206, 0
  %v222 = vsel %vm52, %v207, 0
  %v225 = vsel %vm52, %v208, 0
  %v228 = vsel %vm52, %v209, 0
  %v231 = vsel %vm52, %v210, 0
  %v234 = vsel %vm52, %v211, 0
  %v237 = vsel %vm52, %v212, 0
  %239 = vmatprep.subr.mxu0 0.0
  %240 = vmatpush1.msra.mxu0 0.0
  %241 = vmatprep.subr.mxu0 0.0
  %242 = vmatpush1.msra.mxu0 0.0
  %243 = vmatprep.subr.mxu0 0.0
  %244 = vmatpush1.msra.mxu0 0.0
  %245 = vmatprep.subr.mxu0 0.0
  %246 = vmatpush1.msra.mxu0 0.0
  %247 = vmatprep.subr.mxu0 0.0
  %248 = vmatpush1.msra.mxu0 0.0
  %249 = vmatprep.subr.mxu0 0.0
  %250 = vmatpush1.msra.mxu0 0.0
  %251 = vmatprep.subr.mxu0 0.0
  %252 = vmatpush1.msra.mxu0 0.0
  %253 = vmatprep.subr.mxu0 0.0
  %254 = vmatpush1.msra.mxu0 0.0
  %255 = vmatprep.subr.mxu0 0.0
  %256 = vmatpush1.msra.mxu0 0.0
  %257 = vmatprep.subr.mxu0 0.0
  %258 = vmatpush1.msra.mxu0 0.0
  %259 = vmatprep.subr.mxu0 0.0
  %260 = vmatpush1.msra.mxu0 0.0
  %261 = vmatprep.subr.mxu0 0.0
  %262 = vmatpush1.msra.mxu0 0.0
  %263 = vmatprep.subr.mxu0 0.0
  %264 = vmatpush1.msra.mxu0 %v216
  %265 = vmatprep.subr.mxu0 0.0
  %266 = vmatpush1.msra.mxu0 %v215
  %267 = vmatprep.subr.mxu0 0.0
  %268 = vmatpush1.msra.mxu0 %v214
  %269 = vmatprep.subr.mxu0 0.0
  %270 = vmatpush1.msra.mxu0 %v213
  %271 = vmatprep.subr.mxu0 0.0
  %272 = vmatpush2.msra.mxu0 0.0
  %273 = vmatprep.subr.mxu0 0.0
  %274 = vmatpush2.msra.mxu0 0.0
  %275 = vmatprep.subr.mxu0 0.0
  %276 = vmatpush2.msra.mxu0 0.0
  %277 = vmatprep.subr.mxu0 0.0
  %278 = vmatpush2.msra.mxu0 0.0
  %279 = vmatprep.subr.mxu0 0.0
  %280 = vmatpush2.msra.mxu0 0.0
  %281 = vmatprep.subr.mxu0 0.0
  %282 = vmatpush2.msra.mxu0 0.0
  %283 = vmatprep.subr.mxu0 0.0
  %284 = vmatpush2.msra.mxu0 0.0
  %285 = vmatprep.subr.mxu0 0.0
  %286 = vmatpush2.msra.mxu0 0.0
  %287 = vmatprep.subr.mxu0 0.0
  %288 = vmatpush2.msra.mxu0 0.0
  %289 = vmatprep.subr.mxu0 0.0
  %290 = vmatpush2.msra.mxu0 0.0
  %291 = vmatprep.subr.mxu0 0.0
  %292 = vmatpush2.msra.mxu0 0.0
  %293 = vmatprep.subr.mxu0 0.0
  %294 = vmatpush2.msra.mxu0 0.0
  %295 = vmatprep.subr.mxu0 0.0
  %296 = vmatpush2.msra.mxu0 0.0
  %297 = vmatprep.subr.mxu0 0.0
  %298 = vmatpush2.msra.mxu0 0.0
  %299 = vmatprep.subr.mxu0 0.0
  %300 = vmatpush2.msra.mxu0 0.0
  %301 = vmatprep.subr.mxu0 0.0
  %302 = vmatpush2.msra.mxu0 0.0
  %303 = vmatprep.mubr.f32.mxu0 0.0
  %304 = vmatmul.mubr.f32.gmra.mxu0 %v219
  %v305 = vpop.f32.mrf.mxu0
  %v306 = vadd.f32 %v217, %v305
  %v307 = vpop.f32.mrf.mxu0
  %308 = vmatprep.mubr.f32.mxu0 0.0
  %309 = vmatmul.mubr.f32.gmra.mxu0 %v222
  %v310 = vpop.f32.mrf.mxu0
  %v311 = vadd.f32 %v217, %v310
  %v312 = vpop.f32.mrf.mxu0
  %313 = vmatprep.mubr.f32.mxu0 0.0
  %314 = vmatmul.mubr.f32.gmra.mxu0 %v225
  %v315 = vpop.f32.mrf.mxu0
  %v316 = vadd.f32 %v217, %v315
  %v317 = vpop.f32.mrf.mxu0
  %318 = vmatprep.mubr.f32.mxu0 0.0
  %319 = vmatmul.mubr.f32.gmra.mxu0 %v228
  %v320 = vpop.f32.mrf.mxu0
  %v321 = vadd.f32 %v217, %v320
  %v322 = vpop.f32.mrf.mxu0
  %323 = vmatprep.mubr.f32.mxu0 0.0
  %324 = vmatmul.mubr.f32.gmra.mxu0 %v231
  %v325 = vpop.f32.mrf.mxu0
  %v326 = vadd.f32 %v217, %v325
  %v327 = vpop.f32.mrf.mxu0
  %328 = vmatprep.mubr.f32.mxu0 0.0
  %329 = vmatmul.mubr.f32.gmra.mxu0 %v234
  %v330 = vpop.f32.mrf.mxu0
  %v331 = vadd.f32 %v217, %v330
  %v332 = vpop.f32.mrf.mxu0
  %333 = vmatprep.mubr.f32.mxu0 0.0
  %334 = vmatmul.mubr.f32.gmra.mxu0 %v237
  %v335 = vpop.f32.mrf.mxu0
  %v336 = vadd.f32 %v217, %v335
  %v337 = vpop.f32.mrf.mxu0
  %338 = vdwg.mxu0
  %339 = vst [vmem:[#allocation3] sm:$0xff] %v306
  %340 = vst [vmem:[#allocation3 + $0x8] sm:$0xff] %v311
  %341 = vst [vmem:[#allocation3 + $0x10] sm:$0xff] %v316
  %342 = vst [vmem:[#allocation3 + $0x18] sm:$0xff] %v321
  %343 = vst [vmem:[#allocation3 + $0x20] sm:$0xff] %v326
  %344 = vst [vmem:[#allocation3 + $0x28] sm:$0xff] %v331
  %345 = vst [vmem:[#allocation3 + $0x30] sm:$0xff] %v336
  %v346 = vld [vmem:[%s5 + $0x50] sm:$0xff]
  %v347 = vld [vmem:[%s5 + $0x60] sm:$0xff]
  %v348 = vld [vmem:[%s5 + $0x70] sm:$0xff]
  %v349 = vld [vmem:[%s5 + $0x80] sm:$0xff]
  %v350 = vld [vmem:[%s5 + $0x90] sm:$0xff]
  %v351 = vld [vmem:[%s5 + $0xa0] sm:$0xff]
  %v352 = vld [vmem:[%s5 + $0xb0] sm:$0xff]
  %v353 = vld [vmem:[%s5 + $0xc0] sm:$0xff]
  %s354 = smul.u32 0, 2
  %s355 = smul.addr %s354, 8
  %s356 = scalar_lea.vmem [#allocation2], %s355
  %v357 = vld [vmem:[%s356] sm:$0xff]
  %v359 = vsel %vm52, 0.0, 0
  %361 = vmatprep.subr.mxu0 0.0
  %362 = vmatpush1.msra.mxu0 0.0
  %363 = vmatprep.subr.mxu0 0.0
  %364 = vmatpush1.msra.mxu0 0.0
  %365 = vmatprep.subr.mxu0 0.0
  %366 = vmatpush1.msra.mxu0 0.0
  %367 = vmatprep.subr.mxu0 0.0
  %368 = vmatpush1.msra.mxu0 0.0
  %369 = vmatprep.subr.mxu0 0.0
  %370 = vmatpush1.msra.mxu0 0.0
  %371 = vmatprep.subr.mxu0 0.0
  %372 = vmatpush1.msra.mxu0 0.0
  %373 = vmatprep.subr.mxu0 0.0
  %374 = vmatpush1.msra.mxu0 0.0
  %375 = vmatprep.subr.mxu0 0.0
  %376 = vmatpush1.msra.mxu0 0.0
  %377 = vmatprep.subr.mxu0 0.0
  %378 = vmatpush1.msra.mxu0 0.0
  %379 = vmatprep.subr.mxu0 0.0
  %380 = vmatpush1.msra.mxu0 0.0
  %381 = vmatprep.subr.mxu0 0.0
  %382 = vmatpush1.msra.mxu0 0.0
  %383 = vmatprep.subr.mxu0 0.0
  %384 = vmatpush1.msra.mxu0 0.0
  %385 = vmatprep.subr.mxu0 0.0
  %386 = vmatpush1.msra.mxu0 %v349
  %387 = vmatprep.subr.mxu0 0.0
  %388 = vmatpush1.msra.mxu0 %v348
  %389 = vmatprep.subr.mxu0 0.0
  %390 = vmatpush1.msra.mxu0 %v347
  %391 = vmatprep.subr.mxu0 0.0
  %392 = vmatpush1.msra.mxu0 %v346
  %393 = vmatprep.subr.mxu0 0.0
  %394 = vmatpush2.msra.mxu0 0.0
  %395 = vmatprep.subr.mxu0 0.0
  %396 = vmatpush2.msra.mxu0 0.0
  %397 = vmatprep.subr.mxu0 0.0
  %398 = vmatpush2.msra.mxu0 0.0
  %399 = vmatprep.subr.mxu0 0.0
  %400 = vmatpush2.msra.mxu0 0.0
  %401 = vmatprep.subr.mxu0 0.0
  %402 = vmatpush2.msra.mxu0 0.0
  %403 = vmatprep.subr.mxu0 0.0
  %404 = vmatpush2.msra.mxu0 0.0
  %405 = vmatprep.subr.mxu0 0.0
  %406 = vmatpush2.msra.mxu0 0.0
  %407 = vmatprep.subr.mxu0 0.0
  %408 = vmatpush2.msra.mxu0 0.0
  %409 = vmatprep.subr.mxu0 0.0
  %410 = vmatpush2.msra.mxu0 0.0
  %411 = vmatprep.subr.mxu0 0.0
  %412 = vmatpush2.msra.mxu0 0.0
  %413 = vmatprep.subr.mxu0 0.0
  %414 = vmatpush2.msra.mxu0 0.0
  %415 = vmatprep.subr.mxu0 0.0
  %416 = vmatpush2.msra.mxu0 0.0
  %417 = vmatprep.subr.mxu0 0.0
  %418 = vmatpush2.msra.mxu0 0.0
  %419 = vmatprep.subr.mxu0 0.0
  %420 = vmatpush2.msra.mxu0 0.0
  %421 = vmatprep.subr.mxu0 0.0
  %422 = vmatpush2.msra.mxu0 0.0
  %423 = vmatprep.subr.mxu0 0.0
  %424 = vmatpush2.msra.mxu0 0.0
  %425 = vmatprep.mubr.f32.mxu0 0.0
  %426 = vmatmul.mubr.f32.gmra.mxu0 %v359
  %v427 = vpop.f32.mrf.mxu0
  %v428 = vadd.f32 0.0, %v427
  %v429 = vpop.f32.mrf.mxu0
  %430 = vdwg.mxu0
  %v431 = vadd.f32 %v357, %v428
  %v432 = vxor.u32 %v431, 2147483648
  %v433 = vmul.f32 %v432, 1.442695
  %v434 = vpow.pop %v433
  %v435 = vadd.f32 %v434, 1.0
  %v436 = vrcp.pop %v435
  %v437 = vmul.f32 1.0, %v436
  %v438 = vtanh.pop %v431
  %v439 = vmul.f32 %v437, 0.0
  %441 = vrot.lane.b32.xlu0 %v438, 64
  %v442 = vpop.permute.xlu0 %441
  %v444 = vmul.f32 %v437, %v442
  %446 = vrot.lane.b32.xlu0 %v444, 32
  %v447 = vpop.permute.xlu0 %446
  %v449 = vadd.f32 %v439, %v447
  %v450 = vtanh.pop %v449
  %452 = vrot.lane.b32.xlu0 %v450, 64
  %v453 = vpop.permute.xlu0 %452
  %v455 = vmul.f32 %v437, %v453
  %v456 = vld [vmem:[%s1] sm:$0xff]
  %vm457 = vcmp.gt.f32.partialorder %v456, 0.5
  %v458 = vsel %vm457, 1, 0
  %459 = vset.pattern.permute.xlu0 0
  %460 = vperm.xlu0 %459, %v458
  %v461 = vpop.permute.xlu0 %460
  %vm462 = vcmp.eq.s32.totalorder %v461, 1
  %v463 = vsel %vm462, %v455, 0.0
  %465 = vrot.lane.b32.xlu0 %v463, 32
  %v466 = vpop.permute.xlu0 %465
  %468 = vst.msk [vmem:[#allocation4] sm:$0xff] %vm52, %v466
  %v469 = vsel %vm462, %v449, 0.0
  %s470 = smul.u32 1, 2
  %s471 = smul.addr %s470, 8
  %s472 = scalar_lea.vmem [#allocation2], %s471
  %v473 = vld [vmem:[%s472] sm:$0xff]
  %v474 = vsel %vm52, %v466, 0
  %476 = vmatprep.subr.mxu0 0.0
  %477 = vmatpush1.msra.mxu0 0.0
  %478 = vmatprep.subr.mxu0 0.0
  %479 = vmatpush1.msra.mxu0 0.0
  %480 = vmatprep.subr.mxu0 0.0
  %481 = vmatpush1.msra.mxu0 0.0
  %482 = vmatprep.subr.mxu0 0.0
  %483 = vmatpush1.msra.mxu0 0.0
  %484 = vmatprep.subr.mxu0 0.0
  %485 = vmatpush1.msra.mxu0 0.0
  %486 = vmatprep.subr.mxu0 0.0
  %487 = vmatpush1.msra.mxu0 0.0
  %488 = vmatprep.subr.mxu0 0.0
  %489 = vmatpush1.msra.mxu0 0.0
  %490 = vmatprep.subr.mxu0 0.0
  %491 = vmatpush1.msra.mxu0 0.0
  %492 = vmatprep.subr.mxu0 0.0
  %493 = vmatpush1.msra.mxu0 0.0
  %494 = vmatprep.subr.mxu0 0.0
  %495 = vmatpush1.msra.mxu0 0.0
  %496 = vmatprep.subr.mxu0 0.0
  %497 = vmatpush1.msra.mxu0 0.0
  %498 = vmatprep.subr.mxu0 0.0
  %499 = vmatpush1.msra.mxu0 0.0
  %500 = vmatprep.subr.mxu0 0.0
  %501 = vmatpush1.msra.mxu0 %v349
  %502 = vmatprep.subr.mxu0 0.0
  %503 = vmatpush1.msra.mxu0 %v348
  %504 = vmatprep.subr.mxu0 0.0
  %505 = vmatpush1.msra.mxu0 %v347
  %506 = vmatprep.subr.mxu0 0.0
  %507 = vmatpush1.msra.mxu0 %v346
  %508 = vmatprep.subr.mxu0 0.0
  %509 = vmatpush2.msra.mxu0 0.0
  %510 = vmatprep.subr.mxu0 0.0
  %511 = vmatpush2.msra.mxu0 0.0
  %512 = vmatprep.subr.mxu0 0.0
  %513 = vmatpush2.msra.mxu0 0.0
  %514 = vmatprep.subr.mxu0 0.0
  %515 = vmatpush2.msra.mxu0 0.0
  %516 = vmatprep.subr.mxu0 0.0
  %517 = vmatpush2.msra.mxu0 0.0
  %518 = vmatprep.subr.mxu0 0.0
  %519 = vmatpush2.msra.mxu0 0.0
  %520 = vmatprep.subr.mxu0 0.0
  %521 = vmatpush2.msra.mxu0 0.0
  %522 = vmatprep.subr.mxu0 0.0
  %523 = vmatpush2.msra.mxu0 0.0
  %524 = vmatprep.subr.mxu0 0.0
  %525 = vmatpush2.msra.mxu0 0.0
  %526 = vmatprep.subr.mxu0 0.0
  %527 = vmatpush2.msra.mxu0 0.0
  %528 = vmatprep.subr.mxu0 0.0
  %529 = vmatpush2.msra.mxu0 0.0
  %530 = vmatprep.subr.mxu0 0.0
  %531 = vmatpush2.msra.mxu0 0.0
  %532 = vmatprep.subr.mxu0 0.0
  %533 = vmatpush2.msra.mxu0 0.0
  %534 = vmatprep.subr.mxu0 0.0
  %535 = vmatpush2.msra.mxu0 0.0
  %536 = vmatprep.subr.mxu0 0.0
  %537 = vmatpush2.msra.mxu0 0.0
  %538 = vmatprep.subr.mxu0 0.0
  %539 = vmatpush2.msra.mxu0 0.0
  %540 = vmatprep.mubr.f32.mxu0 0.0
  %541 = vmatmul.mubr.f32.gmra.mxu0 %v474
  %v542 = vpop.f32.mrf.mxu0
  %v543 = vadd.f32 0.0, %v542
  %v544 = vpop.f32.mrf.mxu0
  %545 = vdwg.mxu0
  %v546 = vadd.f32 %v473, %v543
  %v547 = vxor.u32 %v546, 2147483648
  %v548 = vmul.f32 %v547, 1.442695
  %v549 = vpow.pop %v548
  %v550 = vadd.f32 %v549, 1.0
  %v551 = vrcp.pop %v550
  %v552 = vmul.f32 1.0, %v551
  %v553 = vtanh.pop %v546
  %v554 = vmul.f32 %v552, %v469
  %556 = vrot.lane.b32.xlu0 %v553, 64
  %v557 = vpop.permute.xlu0 %556
  %v559 = vmul.f32 %v552, %v557
  %561 = vrot.lane.b32.xlu0 %v559, 32
  %v562 = vpop.permute.xlu0 %561
  %v564 = vadd.f32 %v554, %v562
  %v565 = vtanh.pop %v564
  %567 = vrot.lane.b32.xlu0 %v565, 64
  %v568 = vpop.permute.xlu0 %567
  %v570 = vmul.f32 %v552, %v568
  %s571 = scalar_lea.vmem %s1, 8
  %v572 = vld [vmem:[%s571] sm:$0xff]
  %vm573 = vcmp.gt.f32.partialorder %v572, 0.5
  %v574 = vsel %vm573, 1, 0
  %575 = vset.pattern.permute.xlu0 0
  %576 = vperm.xlu0 %575, %v574
  %v577 = vpop.permute.xlu0 %576
  %vm578 = vcmp.eq.s32.totalorder %v577, 1
  %v579 = vsel %vm578, %v570, 0.0
  %581 = vrot.lane.b32.xlu0 %v579, 32
  %v582 = vpop.permute.xlu0 %581
  %s584 = scalar_lea.vmem [#allocation4], 8
  %585 = vst.msk [vmem:[%s584] sm:$0xff] %vm52, %v582
  %v586 = vsel %vm578, %v570, %v463
  %v587 = vsel %vm578, %v564, %v469
  %s588 = smul.u32 2, 2
  %s589 = smul.addr %s588, 8
  %s590 = scalar_lea.vmem [#allocation2], %s589
  %v591 = vld [vmem:[%s590] sm:$0xff]
  %593 = vrot.lane.b32.xlu0 %v586, 32
  %v594 = vpop.permute.xlu0 %593
  %v595 = vsel %vm52, %v594, 0
  %597 = vmatprep.subr.mxu0 0.0
  %598 = vmatpush1.msra.mxu0 0.0
  %599 = vmatprep.subr.mxu0 0.0
  %600 = vmatpush1.msra.mxu0 0.0
  %601 = vmatprep.subr.mxu0 0.0
  %602 = vmatpush1.msra.mxu0 0.0
  %603 = vmatprep.subr.mxu0 0.0
  %604 = vmatpush1.msra.mxu0 0.0
  %605 = vmatprep.subr.mxu0 0.0
  %606 = vmatpush1.msra.mxu0 0.0
  %607 = vmatprep.subr.mxu0 0.0
  %608 = vmatpush1.msra.mxu0 0.0
  %609 = vmatprep.subr.mxu0 0.0
  %610 = vmatpush1.msra.mxu0 0.0
  %611 = vmatprep.subr.mxu0 0.0
  %612 = vmatpush1.msra.mxu0 0.0
  %613 = vmatprep.subr.mxu0 0.0
  %614 = vmatpush1.msra.mxu0 0.0
  %615 = vmatprep.subr.mxu0 0.0
  %616 = vmatpush1.msra.mxu0 0.0
  %617 = vmatprep.subr.mxu0 0.0
  %618 = vmatpush1.msra.mxu0 0.0
  %619 = vmatprep.subr.mxu0 0.0
  %620 = vmatpush1.msra.mxu0 0.0
  %621 = vmatprep.subr.mxu0 0.0
  %622 = vmatpush1.msra.mxu0 %v349
  %623 = vmatprep.subr.mxu0 0.0
  %624 = vmatpush1.msra.mxu0 %v348
  %625 = vmatprep.subr.mxu0 0.0
  %626 = vmatpush1.msra.mxu0 %v347
  %627 = vmatprep.subr.mxu0 0.0
  %628 = vmatpush1.msra.mxu0 %v346
  %629 = vmatprep.subr.mxu0 0.0
  %630 = vmatpush2.msra.mxu0 0.0
  %631 = vmatprep.subr.mxu0 0.0
  %632 = vmatpush2.msra.mxu0 0.0
  %633 = vmatprep.subr.mxu0 0.0
  %634 = vmatpush2.msra.mxu0 0.0
  %635 = vmatprep.subr.mxu0 0.0
  %636 = vmatpush2.msra.mxu0 0.0
  %637 = vmatprep.subr.mxu0 0.0
  %638 = vmatpush2.msra.mxu0 0.0
  %639 = vmatprep.subr.mxu0 0.0
  %640 = vmatpush2.msra.mxu0 0.0
  %641 = vmatprep.subr.mxu0 0.0
  %642 = vmatpush2.msra.mxu0 0.0
  %643 = vmatprep.subr.mxu0 0.0
  %644 = vmatpush2.msra.mxu0 0.0
  %645 = vmatprep.subr.mxu0 0.0
  %646 = vmatpush2.msra.mxu0 0.0
  %647 = vmatprep.subr.mxu0 0.0
  %648 = vmatpush2.msra.mxu0 0.0
  %649 = vmatprep.subr.mxu0 0.0
  %650 = vmatpush2.msra.mxu0 0.0
  %651 = vmatprep.subr.mxu0 0.0
  %652 = vmatpush2.msra.mxu0 0.0
  %653 = vmatprep.subr.mxu0 0.0
  %654 = vmatpush2.msra.mxu0 0.0
  %655 = vmatprep.subr.mxu0 0.0
  %656 = vmatpush2.msra.mxu0 0.0
  %657 = vmatprep.subr.mxu0 0.0
  %658 = vmatpush2.msra.mxu0 0.0
  %659 = vmatprep.subr.mxu0 0.0
  %660 = vmatpush2.msra.mxu0 0.0
  %661 = vmatprep.mubr.f32.mxu0 0.0
  %662 = vmatmul.mubr.f32.gmra.mxu0 %v595
  %v663 = vpop.f32.mrf.mxu0
  %v664 = vadd.f32 0.0, %v663
  %v665 = vpop.f32.mrf.mxu0
  %666 = vdwg.mxu0
  %v667 = vadd.f32 %v591, %v664
  %v668 = vxor.u32 %v667, 2147483648
  %v669 = vmul.f32 %v668, 1.442695
  %v670 = vpow.pop %v669
  %v671 = vadd.f32 %v670, 1.0
  %v672 = vrcp.pop %v671
  %v673 = vmul.f32 1.0, %v672
  %v674 = vtanh.pop %v667
  %v675 = vmul.f32 %v673, %v587
  %677 = vrot.lane.b32.xlu0 %v674, 64
  %v678 = vpop.permute.xlu0 %677
  %v680 = vmul.f32 %v673, %v678
  %682 = vrot.lane.b32.xlu0 %v680, 32
  %v683 = vpop.permute.xlu0 %682
  %v685 = vadd.f32 %v675, %v683
  %v686 = vtanh.pop %v685
  %688 = vrot.lane.b32.xlu0 %v686, 64
  %v689 = vpop.permute.xlu0 %688
  %v691 = vmul.f32 %v673, %v689
  %s692 = scalar_lea.vmem %s1, 16
  %v693 = vld [vmem:[%s692] sm:$0xff]
  %vm694 = vcmp.gt.f32.partialorder %v693, 0.5
  %v695 = vsel %vm694, 1, 0
  %696 = vset.pattern.permute.xlu0 0
  %697 = vperm.xlu0 %696, %v695
  %v698 = vpop.permute.xlu0 %697
  %vm699 = vcmp.eq.s32.totalorder %v698, 1
  %v700 = vsel %vm699, %v691, 0.0
  %702 = vrot.lane.b32.xlu0 %v700, 32
  %v703 = vpop.permute.xlu0 %702
  %s705 = scalar_lea.vmem [#allocation4], 16
  %706 = vst.msk [vmem:[%s705] sm:$0xff] %vm52, %v703
  %v707 = vsel %vm699, %v691, %v586
  %v708 = vsel %vm699, %v685, %v587
  %s709 = smul.u32 3, 2
  %s710 = smul.addr %s709, 8
  %s711 = scalar_lea.vmem [#allocation2], %s710
  %v712 = vld [vmem:[%s711] sm:$0xff]
  %714 = vrot.lane.b32.xlu0 %v707, 32
  %v715 = vpop.permute.xlu0 %714
  %v716 = vsel %vm52, %v715, 0
  %718 = vmatprep.subr.mxu0 0.0
  %719 = vmatpush1.msra.mxu0 0.0
  %720 = vmatprep.subr.mxu0 0.0
  %721 = vmatpush1.msra.mxu0 0.0
  %722 = vmatprep.subr.mxu0 0.0
  %723 = vmatpush1.msra.mxu0 0.0
  %724 = vmatprep.subr.mxu0 0.0
  %725 = vmatpush1.msra.mxu0 0.0
  %726 = vmatprep.subr.mxu0 0.0
  %727 = vmatpush1.msra.mxu0 0.0
  %728 = vmatprep.subr.mxu0 0.0
  %729 = vmatpush1.msra.mxu0 0.0
  %730 = vmatprep.subr.mxu0 0.0
  %731 = vmatpush1.msra.mxu0 0.0
  %732 = vmatprep.subr.mxu0 0.0
  %733 = vmatpush1.msra.mxu0 0.0
  %734 = vmatprep.subr.mxu0 0.0
  %735 = vmatpush1.msra.mxu0 0.0
  %736 = vmatprep.subr.mxu0 0.0
  %737 = vmatpush1.msra.mxu0 0.0
  %738 = vmatprep.subr.mxu0 0.0
  %739 = vmatpush1.msra.mxu0 0.0
  %740 = vmatprep.subr.mxu0 0.0
  %741 = vmatpush1.msra.mxu0 0.0
  %742 = vmatprep.subr.mxu0 0.0
  %743 = vmatpush1.msra.mxu0 %v349
  %744 = vmatprep.subr.mxu0 0.0
  %745 = vmatpush1.msra.mxu0 %v348
  %746 = vmatprep.subr.mxu0 0.0
  %747 = vmatpush1.msra.mxu0 %v347
  %748 = vmatprep.subr.mxu0 0.0
  %749 = vmatpush1.msra.mxu0 %v346
  %750 = vmatprep.subr.mxu0 0.0
  %751 = vmatpush2.msra.mxu0 0.0
  %752 = vmatprep.subr.mxu0 0.0
  %753 = vmatpush2.msra.mxu0 0.0
  %754 = vmatprep.subr.mxu0 0.0
  %755 = vmatpush2.msra.mxu0 0.0
  %756 = vmatprep.subr.mxu0 0.0
  %757 = vmatpush2.msra.mxu0 0.0
  %758 = vmatprep.subr.mxu0 0.0
  %759 = vmatpush2.msra.mxu0 0.0
  %760 = vmatprep.subr.mxu0 0.0
  %761 = vmatpush2.msra.mxu0 0.0
  %762 = vmatprep.subr.mxu0 0.0
  %763 = vmatpush2.msra.mxu0 0.0
  %764 = vmatprep.subr.mxu0 0.0
  %765 = vmatpush2.msra.mxu0 0.0
  %766 = vmatprep.subr.mxu0 0.0
  %767 = vmatpush2.msra.mxu0 0.0
  %768 = vmatprep.subr.mxu0 0.0
  %769 = vmatpush2.msra.mxu0 0.0
  %770 = vmatprep.subr.mxu0 0.0
  %771 = vmatpush2.msra.mxu0 0.0
  %772 = vmatprep.subr.mxu0 0.0
  %773 = vmatpush2.msra.mxu0 0.0
  %774 = vmatprep.subr.mxu0 0.0
  %775 = vmatpush2.msra.mxu0 0.0
  %776 = vmatprep.subr.mxu0 0.0
  %777 = vmatpush2.msra.mxu0 0.0
  %778 = vmatprep.subr.mxu0 0.0
  %779 = vmatpush2.msra.mxu0 0.0
  %780 = vmatprep.subr.mxu0 0.0
  %781 = vmatpush2.msra.mxu0 0.0
  %782 = vmatprep.mubr.f32.mxu0 0.0
  %783 = vmatmul.mubr.f32.gmra.mxu0 %v716
  %v784 = vpop.f32.mrf.mxu0
  %v785 = vadd.f32 0.0, %v784
  %v786 = vpop.f32.mrf.mxu0
  %787 = vdwg.mxu0
  %v788 = vadd.f32 %v712, %v785
  %v789 = vxor.u32 %v788, 2147483648
  %v790 = vmul.f32 %v789, 1.442695
  %v791 = vpow.pop %v790
  %v792 = vadd.f32 %v791, 1.0
  %v793 = vrcp.pop %v792
  %v794 = vmul.f32 1.0, %v793
  %v795 = vtanh.pop %v788
  %v796 = vmul.f32 %v794, %v708
  %798 = vrot.lane.b32.xlu0 %v795, 64
  %v799 = vpop.permute.xlu0 %798
  %v801 = vmul.f32 %v794, %v799
  %803 = vrot.lane.b32.xlu0 %v801, 32
  %v804 = vpop.permute.xlu0 %803
  %v806 = vadd.f32 %v796, %v804
  %v807 = vtanh.pop %v806
  %809 = vrot.lane.b32.xlu0 %v807, 64
  %v810 = vpop.permute.xlu0 %809
  %v812 = vmul.f32 %v794, %v810
  %s813 = scalar_lea.vmem %s1, 24
  %v814 = vld [vmem:[%s813] sm:$0xff]
  %vm815 = vcmp.gt.f32.partialorder %v814, 0.5
  %v816 = vsel %vm815, 1, 0
  %817 = vset.pattern.permute.xlu0 0
  %818 = vperm.xlu0 %817, %v816
  %v819 = vpop.permute.xlu0 %818
  %vm820 = vcmp.eq.s32.totalorder %v819, 1
  %v821 = vsel %vm820, %v812, 0.0
  %823 = vrot.lane.b32.xlu0 %v821, 32
  %v824 = vpop.permute.xlu0 %823
  %s826 = scalar_lea.vmem [#allocation4], 24
  %827 = vst.msk [vmem:[%s826] sm:$0xff] %vm52, %v824
  %v828 = vsel %vm820, %v812, %v707
  %v829 = vsel %vm820, %v806, %v708
  %s830 = smul.u32 4, 2
  %s831 = smul.addr %s830, 8
  %s832 = scalar_lea.vmem [#allocation2], %s831
  %v833 = vld [vmem:[%s832] sm:$0xff]
  %835 = vrot.lane.b32.xlu0 %v828, 32
  %v836 = vpop.permute.xlu0 %835
  %v837 = vsel %vm52, %v836, 0
  %839 = vmatprep.subr.mxu0 0.0
  %840 = vmatpush1.msra.mxu0 0.0
  %841 = vmatprep.subr.mxu0 0.0
  %842 = vmatpush1.msra.mxu0 0.0
  %843 = vmatprep.subr.mxu0 0.0
  %844 = vmatpush1.msra.mxu0 0.0
  %845 = vmatprep.subr.mxu0 0.0
  %846 = vmatpush1.msra.mxu0 0.0
  %847 = vmatprep.subr.mxu0 0.0
  %848 = vmatpush1.msra.mxu0 0.0
  %849 = vmatprep.subr.mxu0 0.0
  %850 = vmatpush1.msra.mxu0 0.0
  %851 = vmatprep.subr.mxu0 0.0
  %852 = vmatpush1.msra.mxu0 0.0
  %853 = vmatprep.subr.mxu0 0.0
  %854 = vmatpush1.msra.mxu0 0.0
  %855 = vmatprep.subr.mxu0 0.0
  %856 = vmatpush1.msra.mxu0 0.0
  %857 = vmatprep.subr.mxu0 0.0
  %858 = vmatpush1.msra.mxu0 0.0
  %859 = vmatprep.subr.mxu0 0.0
  %860 = vmatpush1.msra.mxu0 0.0
  %861 = vmatprep.subr.mxu0 0.0
  %862 = vmatpush1.msra.mxu0 0.0
  %863 = vmatprep.subr.mxu0 0.0
  %864 = vmatpush1.msra.mxu0 %v349
  %865 = vmatprep.subr.mxu0 0.0
  %866 = vmatpush1.msra.mxu0 %v348
  %867 = vmatprep.subr.mxu0 0.0
  %868 = vmatpush1.msra.mxu0 %v347
  %869 = vmatprep.subr.mxu0 0.0
  %870 = vmatpush1.msra.mxu0 %v346
  %871 = vmatprep.subr.mxu0 0.0
  %872 = vmatpush2.msra.mxu0 0.0
  %873 = vmatprep.subr.mxu0 0.0
  %874 = vmatpush2.msra.mxu0 0.0
  %875 = vmatprep.subr.mxu0 0.0
  %876 = vmatpush2.msra.mxu0 0.0
  %877 = vmatprep.subr.mxu0 0.0
  %878 = vmatpush2.msra.mxu0 0.0
  %879 = vmatprep.subr.mxu0 0.0
  %880 = vmatpush2.msra.mxu0 0.0
  %881 = vmatprep.subr.mxu0 0.0
  %882 = vmatpush2.msra.mxu0 0.0
  %883 = vmatprep.subr.mxu0 0.0
  %884 = vmatpush2.msra.mxu0 0.0
  %885 = vmatprep.subr.mxu0 0.0
  %886 = vmatpush2.msra.mxu0 0.0
  %887 = vmatprep.subr.mxu0 0.0
  %888 = vmatpush2.msra.mxu0 0.0
  %889 = vmatprep.subr.mxu0 0.0
  %890 = vmatpush2.msra.mxu0 0.0
  %891 = vmatprep.subr.mxu0 0.0
  %892 = vmatpush2.msra.mxu0 0.0
  %893 = vmatprep.subr.mxu0 0.0
  %894 = vmatpush2.msra.mxu0 0.0
  %895 = vmatprep.subr.mxu0 0.0
  %896 = vmatpush2.msra.mxu0 0.0
  %897 = vmatprep.subr.mxu0 0.0
  %898 = vmatpush2.msra.mxu0 0.0
  %899 = vmatprep.subr.mxu0 0.0
  %900 = vmatpush2.msra.mxu0 0.0
  %901 = vmatprep.subr.mxu0 0.0
  %902 = vmatpush2.msra.mxu0 0.0
  %903 = vmatprep.mubr.f32.mxu0 0.0
  %904 = vmatmul.mubr.f32.gmra.mxu0 %v837
  %v905 = vpop.f32.mrf.mxu0
  %v906 = vadd.f32 0.0, %v905
  %v907 = vpop.f32.mrf.mxu0
  %908 = vdwg.mxu0
  %v909 = vadd.f32 %v833, %v906
  %v910 = vxor.u32 %v909, 2147483648
  %v911 = vmul.f32 %v910, 1.442695
  %v912 = vpow.pop %v911
  %v913 = vadd.f32 %v912, 1.0
  %v914 = vrcp.pop %v913
  %v915 = vmul.f32 1.0, %v914
  %v916 = vtanh.pop %v909
  %v917 = vmul.f32 %v915, %v829
  %919 = vrot.lane.b32.xlu0 %v916, 64
  %v920 = vpop.permute.xlu0 %919
  %v922 = vmul.f32 %v915, %v920
  %924 = vrot.lane.b32.xlu0 %v922, 32
  %v925 = vpop.permute.xlu0 %924
  %v927 = vadd.f32 %v917, %v925
  %v928 = vtanh.pop %v927
  %930 = vrot.lane.b32.xlu0 %v928, 64
  %v931 = vpop.permute.xlu0 %930
  %v933 = vmul.f32 %v915, %v931
  %s934 = scalar_lea.vmem %s1, 32
  %v935 = vld [vmem:[%s934] sm:$0xff]
  %vm936 = vcmp.gt.f32.partialorder %v935, 0.5
  %v937 = vsel %vm936, 1, 0
  %938 = vset.pattern.permute.xlu0 0
  %939 = vperm.xlu0 %938, %v937
  %v940 = vpop.permute.xlu0 %939
  %vm941 = vcmp.eq.s32.totalorder %v940, 1
  %v942 = vsel %vm941, %v933, 0.0
  %944 = vrot.lane.b32.xlu0 %v942, 32
  %v945 = vpop.permute.xlu0 %944
  %s947 = scalar_lea.vmem [#allocation4], 32
  %948 = vst.msk [vmem:[%s947] sm:$0xff] %vm52, %v945
  %v949 = vsel %vm941, %v933, %v828
  %v950 = vsel %vm941, %v927, %v829
  %s951 = smul.u32 5, 2
  %s952 = smul.addr %s951, 8
  %s953 = scalar_lea.vmem [#allocation2], %s952
  %v954 = vld [vmem:[%s953] sm:$0xff]
  %956 = vrot.lane.b32.xlu0 %v949, 32
  %v957 = vpop.permute.xlu0 %956
  %v958 = vsel %vm52, %v957, 0
  %960 = vmatprep.subr.mxu0 0.0
  %961 = vmatpush1.msra.mxu0 0.0
  %962 = vmatprep.subr.mxu0 0.0
  %963 = vmatpush1.msra.mxu0 0.0
  %964 = vmatprep.subr.mxu0 0.0
  %965 = vmatpush1.msra.mxu0 0.0
  %966 = vmatprep.subr.mxu0 0.0
  %967 = vmatpush1.msra.mxu0 0.0
  %968 = vmatprep.subr.mxu0 0.0
  %969 = vmatpush1.msra.mxu0 0.0
  %970 = vmatprep.subr.mxu0 0.0
  %971 = vmatpush1.msra.mxu0 0.0
  %972 = vmatprep.subr.mxu0 0.0
  %973 = vmatpush1.msra.mxu0 0.0
  %974 = vmatprep.subr.mxu0 0.0
  %975 = vmatpush1.msra.mxu0 0.0
  %976 = vmatprep.subr.mxu0 0.0
  %977 = vmatpush1.msra.mxu0 0.0
  %978 = vmatprep.subr.mxu0 0.0
  %979 = vmatpush1.msra.mxu0 0.0
  %980 = vmatprep.subr.mxu0 0.0
  %981 = vmatpush1.msra.mxu0 0.0
  %982 = vmatprep.subr.mxu0 0.0
  %983 = vmatpush1.msra.mxu0 0.0
  %984 = vmatprep.subr.mxu0 0.0
  %985 = vmatpush1.msra.mxu0 %v349
  %986 = vmatprep.subr.mxu0 0.0
  %987 = vmatpush1.msra.mxu0 %v348
  %988 = vmatprep.subr.mxu0 0.0
  %989 = vmatpush1.msra.mxu0 %v347
  %990 = vmatprep.subr.mxu0 0.0
  %991 = vmatpush1.msra.mxu0 %v346
  %992 = vmatprep.subr.mxu0 0.0
  %993 = vmatpush2.msra.mxu0 0.0
  %994 = vmatprep.subr.mxu0 0.0
  %995 = vmatpush2.msra.mxu0 0.0
  %996 = vmatprep.subr.mxu0 0.0
  %997 = vmatpush2.msra.mxu0 0.0
  %998 = vmatprep.subr.mxu0 0.0
  %999 = vmatpush2.msra.mxu0 0.0
  %1000 = vmatprep.subr.mxu0 0.0
  %1001 = vmatpush2.msra.mxu0 0.0
  %1002 = vmatprep.subr.mxu0 0.0
  %1003 = vmatpush2.msra.mxu0 0.0
  %1004 = vmatprep.subr.mxu0 0.0
  %1005 = vmatpush2.msra.mxu0 0.0
  %1006 = vmatprep.subr.mxu0 0.0
  %1007 = vmatpush2.msra.mxu0 0.0
  %1008 = vmatprep.subr.mxu0 0.0
  %1009 = vmatpush2.msra.mxu0 0.0
  %1010 = vmatprep.subr.mxu0 0.0
  %1011 = vmatpush2.msra.mxu0 0.0
  %1012 = vmatprep.subr.mxu0 0.0
  %1013 = vmatpush2.msra.mxu0 0.0
  %1014 = vmatprep.subr.mxu0 0.0
  %1015 = vmatpush2.msra.mxu0 0.0
  %1016 = vmatprep.subr.mxu0 0.0
  %1017 = vmatpush2.msra.mxu0 0.0
  %1018 = vmatprep.subr.mxu0 0.0
  %1019 = vmatpush2.msra.mxu0 0.0
  %1020 = vmatprep.subr.mxu0 0.0
  %1021 = vmatpush2.msra.mxu0 0.0
  %1022 = vmatprep.subr.mxu0 0.0
  %1023 = vmatpush2.msra.mxu0 0.0
  %1024 = vmatprep.mubr.f32.mxu0 0.0
  %1025 = vmatmul.mubr.f32.gmra.mxu0 %v958
  %v1026 = vpop.f32.mrf.mxu0
  %v1027 = vadd.f32 0.0, %v1026
  %v1028 = vpop.f32.mrf.mxu0
  %1029 = vdwg.mxu0
  %v1030 = vadd.f32 %v954, %v1027
  %v1031 = vxor.u32 %v1030, 2147483648
  %v1032 = vmul.f32 %v1031, 1.442695
  %v1033 = vpow.pop %v1032
  %v1034 = vadd.f32 %v1033, 1.0
  %v1035 = vrcp.pop %v1034
  %v1036 = vmul.f32 1.0, %v1035
  %v1037 = vtanh.pop %v1030
  %v1038 = vmul.f32 %v1036, %v950
  %1040 = vrot.lane.b32.xlu0 %v1037, 64
  %v1041 = vpop.permute.xlu0 %1040
  %v1043 = vmul.f32 %v1036, %v1041
  %1045 = vrot.lane.b32.xlu0 %v1043, 32
  %v1046 = vpop.permute.xlu0 %1045
  %v1048 = vadd.f32 %v1038, %v1046
  %v1049 = vtanh.pop %v1048
  %1051 = vrot.lane.b32.xlu0 %v1049, 64
  %v1052 = vpop.permute.xlu0 %1051
  %v1054 = vmul.f32 %v1036, %v1052
  %s1055 = scalar_lea.vmem %s1, 40
  %v1056 = vld [vmem:[%s1055] sm:$0xff]
  %vm1057 = vcmp.gt.f32.partialorder %v1056, 0.5
  %v1058 = vsel %vm1057, 1, 0
  %1059 = vset.pattern.permute.xlu0 0
  %1060 = vperm.xlu0 %1059, %v1058
  %v1061 = vpop.permute.xlu0 %1060
  %vm1062 = vcmp.eq.s32.totalorder %v1061, 1
  %v1063 = vsel %vm1062, %v1054, 0.0
  %1065 = vrot.lane.b32.xlu0 %v1063, 32
  %v1066 = vpop.permute.xlu0 %1065
  %s1068 = scalar_lea.vmem [#allocation4], 40
  %1069 = vst.msk [vmem:[%s1068] sm:$0xff] %vm52, %v1066
  %v1070 = vsel %vm1062, %v1054, %v949
  %v1071 = vsel %vm1062, %v1048, %v950
  %s1072 = smul.u32 6, 2
  %s1073 = smul.addr %s1072, 8
  %s1074 = scalar_lea.vmem [#allocation2], %s1073
  %v1075 = vld [vmem:[%s1074] sm:$0xff]
  %1077 = vrot.lane.b32.xlu0 %v1070, 32
  %v1078 = vpop.permute.xlu0 %1077
  %v1079 = vsel %vm52, %v1078, 0
  %1081 = vmatprep.subr.mxu0 0.0
  %1082 = vmatpush1.msra.mxu0 0.0
  %1083 = vmatprep.subr.mxu0 0.0
  %1084 = vmatpush1.msra.mxu0 0.0
  %1085 = vmatprep.subr.mxu0 0.0
  %1086 = vmatpush1.msra.mxu0 0.0
  %1087 = vmatprep.subr.mxu0 0.0
  %1088 = vmatpush1.msra.mxu0 0.0
  %1089 = vmatprep.subr.mxu0 0.0
  %1090 = vmatpush1.msra.mxu0 0.0
  %1091 = vmatprep.subr.mxu0 0.0
  %1092 = vmatpush1.msra.mxu0 0.0
  %1093 = vmatprep.subr.mxu0 0.0
  %1094 = vmatpush1.msra.mxu0 0.0
  %1095 = vmatprep.subr.mxu0 0.0
  %1096 = vmatpush1.msra.mxu0 0.0
  %1097 = vmatprep.subr.mxu0 0.0
  %1098 = vmatpush1.msra.mxu0 0.0
  %1099 = vmatprep.subr.mxu0 0.0
  %1100 = vmatpush1.msra.mxu0 0.0
  %1101 = vmatprep.subr.mxu0 0.0
  %1102 = vmatpush1.msra.mxu0 0.0
  %1103 = vmatprep.subr.mxu0 0.0
  %1104 = vmatpush1.msra.mxu0 0.0
  %1105 = vmatprep.subr.mxu0 0.0
  %1106 = vmatpush1.msra.mxu0 %v349
  %1107 = vmatprep.subr.mxu0 0.0
  %1108 = vmatpush1.msra.mxu0 %v348
  %1109 = vmatprep.subr.mxu0 0.0
  %1110 = vmatpush1.msra.mxu0 %v347
  %1111 = vmatprep.subr.mxu0 0.0
  %1112 = vmatpush1.msra.mxu0 %v346
  %1113 = vmatprep.subr.mxu0 0.0
  %1114 = vmatpush2.msra.mxu0 0.0
  %1115 = vmatprep.subr.mxu0 0.0
  %1116 = vmatpush2.msra.mxu0 0.0
  %1117 = vmatprep.subr.mxu0 0.0
  %1118 = vmatpush2.msra.mxu0 0.0
  %1119 = vmatprep.subr.mxu0 0.0
  %1120 = vmatpush2.msra.mxu0 0.0
  %1121 = vmatprep.subr.mxu0 0.0
  %1122 = vmatpush2.msra.mxu0 0.0
  %1123 = vmatprep.subr.mxu0 0.0
  %1124 = vmatpush2.msra.mxu0 0.0
  %1125 = vmatprep.subr.mxu0 0.0
  %1126 = vmatpush2.msra.mxu0 0.0
  %1127 = vmatprep.subr.mxu0 0.0
  %1128 = vmatpush2.msra.mxu0 0.0
  %1129 = vmatprep.subr.mxu0 0.0
  %1130 = vmatpush2.msra.mxu0 0.0
  %1131 = vmatprep.subr.mxu0 0.0
  %1132 = vmatpush2.msra.mxu0 0.0
  %1133 = vmatprep.subr.mxu0 0.0
  %1134 = vmatpush2.msra.mxu0 0.0
  %1135 = vmatprep.subr.mxu0 0.0
  %1136 = vmatpush2.msra.mxu0 0.0
  %1137 = vmatprep.subr.mxu0 0.0
  %1138 = vmatpush2.msra.mxu0 0.0
  %1139 = vmatprep.subr.mxu0 0.0
  %1140 = vmatpush2.msra.mxu0 0.0
  %1141 = vmatprep.subr.mxu0 0.0
  %1142 = vmatpush2.msra.mxu0 0.0
  %1143 = vmatprep.subr.mxu0 0.0
  %1144 = vmatpush2.msra.mxu0 0.0
  %1145 = vmatprep.mubr.f32.mxu0 0.0
  %1146 = vmatmul.mubr.f32.gmra.mxu0 %v1079
  %v1147 = vpop.f32.mrf.mxu0
  %v1148 = vadd.f32 0.0, %v1147
  %v1149 = vpop.f32.mrf.mxu0
  %1150 = vdwg.mxu0
  %v1151 = vadd.f32 %v1075, %v1148
  %v1152 = vxor.u32 %v1151, 2147483648
  %v1153 = vmul.f32 %v1152, 1.442695
  %v1154 = vpow.pop %v1153
  %v1155 = vadd.f32 %v1154, 1.0
  %v1156 = vrcp.pop %v1155
  %v1157 = vmul.f32 1.0, %v1156
  %v1158 = vtanh.pop %v1151
  %v1159 = vmul.f32 %v1157, %v1071
  %1161 = vrot.lane.b32.xlu0 %v1158, 64
  %v1162 = vpop.permute.xlu0 %1161
  %v1164 = vmul.f32 %v1157, %v1162
  %1166 = vrot.lane.b32.xlu0 %v1164, 32
  %v1167 = vpop.permute.xlu0 %1166
  %v1169 = vadd.f32 %v1159, %v1167
  %v1170 = vtanh.pop %v1169
  %1172 = vrot.lane.b32.xlu0 %v1170, 64
  %v1173 = vpop.permute.xlu0 %1172
  %v1175 = vmul.f32 %v1157, %v1173
  %s1176 = scalar_lea.vmem %s1, 48
  %v1177 = vld [vmem:[%s1176] sm:$0xff]
  %vm1178 = vcmp.gt.f32.partialorder %v1177, 0.5
  %v1179 = vsel %vm1178, 1, 0
  %1180 = vset.pattern.permute.xlu0 0
  %1181 = vperm.xlu0 %1180, %v1179
  %v1182 = vpop.permute.xlu0 %1181
  %vm1183 = vcmp.eq.s32.totalorder %v1182, 1
  %v1184 = vsel %vm1183, %v1175, 0.0
  %1186 = vrot.lane.b32.xlu0 %v1184, 32
  %v1187 = vpop.permute.xlu0 %1186
  %s1189 = scalar_lea.vmem [#allocation4], 48
  %1190 = vst.msk [vmem:[%s1189] sm:$0xff] %vm52, %v1187
  %v1191 = vsel %vm1183, %v1175, %v1070
  %v1192 = vsel %vm1183, %v1169, %v1071
  %s1193 = smul.u32 7, 2
  %s1194 = smul.addr %s1193, 8
  %s1195 = scalar_lea.vmem [#allocation2], %s1194
  %v1196 = vld [vmem:[%s1195] sm:$0xff]
  %1198 = vrot.lane.b32.xlu0 %v1191, 32
  %v1199 = vpop.permute.xlu0 %1198
  %v1200 = vsel %vm52, %v1199, 0
  %1202 = vmatprep.subr.mxu0 0.0
  %1203 = vmatpush1.msra.mxu0 0.0
  %1204 = vmatprep.subr.mxu0 0.0
  %1205 = vmatpush1.msra.mxu0 0.0
  %1206 = vmatprep.subr.mxu0 0.0
  %1207 = vmatpush1.msra.mxu0 0.0
  %1208 = vmatprep.subr.mxu0 0.0
  %1209 = vmatpush1.msra.mxu0 0.0
  %1210 = vmatprep.subr.mxu0 0.0
  %1211 = vmatpush1.msra.mxu0 0.0
  %1212 = vmatprep.subr.mxu0 0.0
  %1213 = vmatpush1.msra.mxu0 0.0
  %1214 = vmatprep.subr.mxu0 0.0
  %1215 = vmatpush1.msra.mxu0 0.0
  %1216 = vmatprep.subr.mxu0 0.0
  %1217 = vmatpush1.msra.mxu0 0.0
  %1218 = vmatprep.subr.mxu0 0.0
  %1219 = vmatpush1.msra.mxu0 0.0
  %1220 = vmatprep.subr.mxu0 0.0
  %1221 = vmatpush1.msra.mxu0 0.0
  %1222 = vmatprep.subr.mxu0 0.0
  %1223 = vmatpush1.msra.mxu0 0.0
  %1224 = vmatprep.subr.mxu0 0.0
  %1225 = vmatpush1.msra.mxu0 0.0
  %1226 = vmatprep.subr.mxu0 0.0
  %1227 = vmatpush1.msra.mxu0 %v349
  %1228 = vmatprep.subr.mxu0 0.0
  %1229 = vmatpush1.msra.mxu0 %v348
  %1230 = vmatprep.subr.mxu0 0.0
  %1231 = vmatpush1.msra.mxu0 %v347
  %1232 = vmatprep.subr.mxu0 0.0
  %1233 = vmatpush1.msra.mxu0 %v346
  %1234 = vmatprep.subr.mxu0 0.0
  %1235 = vmatpush2.msra.mxu0 0.0
  %1236 = vmatprep.subr.mxu0 0.0
  %1237 = vmatpush2.msra.mxu0 0.0
  %1238 = vmatprep.subr.mxu0 0.0
  %1239 = vmatpush2.msra.mxu0 0.0
  %1240 = vmatprep.subr.mxu0 0.0
  %1241 = vmatpush2.msra.mxu0 0.0
  %1242 = vmatprep.subr.mxu0 0.0
  %1243 = vmatpush2.msra.mxu0 0.0
  %1244 = vmatprep.subr.mxu0 0.0
  %1245 = vmatpush2.msra.mxu0 0.0
  %1246 = vmatprep.subr.mxu0 0.0
  %1247 = vmatpush2.msra.mxu0 0.0
  %1248 = vmatprep.subr.mxu0 0.0
  %1249 = vmatpush2.msra.mxu0 0.0
  %1250 = vmatprep.subr.mxu0 0.0
  %1251 = vmatpush2.msra.mxu0 0.0
  %1252 = vmatprep.subr.mxu0 0.0
  %1253 = vmatpush2.msra.mxu0 0.0
  %1254 = vmatprep.subr.mxu0 0.0
  %1255 = vmatpush2.msra.mxu0 0.0
  %1256 = vmatprep.subr.mxu0 0.0
  %1257 = vmatpush2.msra.mxu0 0.0
  %1258 = vmatprep.subr.mxu0 0.0
  %1259 = vmatpush2.msra.mxu0 0.0
  %1260 = vmatprep.subr.mxu0 0.0
  %1261 = vmatpush2.msra.mxu0 0.0
  %1262 = vmatprep.subr.mxu0 0.0
  %1263 = vmatpush2.msra.mxu0 0.0
  %1264 = vmatprep.subr.mxu0 0.0
  %1265 = vmatpush2.msra.mxu0 0.0
  %1266 = vmatprep.mubr.f32.mxu0 0.0
  %1267 = vmatmul.mubr.f32.gmra.mxu0 %v1200
  %v1268 = vpop.f32.mrf.mxu0
  %v1269 = vadd.f32 0.0, %v1268
  %v1270 = vpop.f32.mrf.mxu0
  %1271 = vdwg.mxu0
  %v1272 = vadd.f32 %v1196, %v1269
  %v1273 = vxor.u32 %v1272, 2147483648
  %v1274 = vmul.f32 %v1273, 1.442695
  %v1275 = vpow.pop %v1274
  %v1276 = vadd.f32 %v1275, 1.0
  %v1277 = vrcp.pop %v1276
  %v1278 = vmul.f32 1.0, %v1277
  %v1279 = vtanh.pop %v1272
  %v1280 = vmul.f32 %v1278, %v1192
  %1282 = vrot.lane.b32.xlu0 %v1279, 64
  %v1283 = vpop.permute.xlu0 %1282
  %v1285 = vmul.f32 %v1278, %v1283
  %1287 = vrot.lane.b32.xlu0 %v1285, 32
  %v1288 = vpop.permute.xlu0 %1287
  %v1290 = vadd.f32 %v1280, %v1288
  %v1291 = vtanh.pop %v1290
  %1293 = vrot.lane.b32.xlu0 %v1291, 64
  %v1294 = vpop.permute.xlu0 %1293
  %v1296 = vmul.f32 %v1278, %v1294
  %s1297 = scalar_lea.vmem %s1, 56
  %v1298 = vld [vmem:[%s1297] sm:$0xff]
  %vm1299 = vcmp.gt.f32.partialorder %v1298, 0.5
  %v1300 = vsel %vm1299, 1, 0
  %1301 = vset.pattern.permute.xlu0 0
  %1302 = vperm.xlu0 %1301, %v1300
  %v1303 = vpop.permute.xlu0 %1302
  %vm1304 = vcmp.eq.s32.totalorder %v1303, 1
  %v1305 = vsel %vm1304, %v1296, 0.0
  %1307 = vrot.lane.b32.xlu0 %v1305, 32
  %v1308 = vpop.permute.xlu0 %1307
  %s1310 = scalar_lea.vmem [#allocation4], 56
  %1311 = vst.msk [vmem:[%s1310] sm:$0xff] %vm52, %v1308
  %v1312 = vsel %vm1304, %v1296, %v1191
  %v1313 = vsel %vm1304, %v1290, %v1192
  %v1314 = vld [vmem:[%s1195 + $0x8] sm:$0xff]
  %1315 = vmatprep.subr.mxu0 0.0
  %1316 = vmatpush1.msra.mxu0 0.0
  %1317 = vmatprep.subr.mxu0 0.0
  %1318 = vmatpush1.msra.mxu0 0.0
  %1319 = vmatprep.subr.mxu0 0.0
  %1320 = vmatpush1.msra.mxu0 0.0
  %1321 = vmatprep.subr.mxu0 0.0
  %1322 = vmatpush1.msra.mxu0 0.0
  %1323 = vmatprep.subr.mxu0 0.0
  %1324 = vmatpush1.msra.mxu0 0.0
  %1325 = vmatprep.subr.mxu0 0.0
  %1326 = vmatpush1.msra.mxu0 0.0
  %1327 = vmatprep.subr.mxu0 0.0
  %1328 = vmatpush1.msra.mxu0 0.0
  %1329 = vmatprep.subr.mxu0 0.0
  %1330 = vmatpush1.msra.mxu0 0.0
  %1331 = vmatprep.subr.mxu0 0.0
  %1332 = vmatpush1.msra.mxu0 0.0
  %1333 = vmatprep.subr.mxu0 0.0
  %1334 = vmatpush1.msra.mxu0 0.0
  %1335 = vmatprep.subr.mxu0 0.0
  %1336 = vmatpush1.msra.mxu0 0.0
  %1337 = vmatprep.subr.mxu0 0.0
  %1338 = vmatpush1.msra.mxu0 0.0
  %1339 = vmatprep.subr.mxu0 0.0
  %1340 = vmatpush1.msra.mxu0 %v353
  %1341 = vmatprep.subr.mxu0 0.0
  %1342 = vmatpush1.msra.mxu0 %v352
  %1343 = vmatprep.subr.mxu0 0.0
  %1344 = vmatpush1.msra.mxu0 %v351
  %1345 = vmatprep.subr.mxu0 0.0
  %1346 = vmatpush1.msra.mxu0 %v350
  %1347 = vmatprep.subr.mxu0 0.0
  %1348 = vmatpush2.msra.mxu0 0.0
  %1349 = vmatprep.subr.mxu0 0.0
  %1350 = vmatpush2.msra.mxu0 0.0
  %1351 = vmatprep.subr.mxu0 0.0
  %1352 = vmatpush2.msra.mxu0 0.0
  %1353 = vmatprep.subr.mxu0 0.0
  %1354 = vmatpush2.msra.mxu0 0.0
  %1355 = vmatprep.subr.mxu0 0.0
  %1356 = vmatpush2.msra.mxu0 0.0
  %1357 = vmatprep.subr.mxu0 0.0
  %1358 = vmatpush2.msra.mxu0 0.0
  %1359 = vmatprep.subr.mxu0 0.0
  %1360 = vmatpush2.msra.mxu0 0.0
  %1361 = vmatprep.subr.mxu0 0.0
  %1362 = vmatpush2.msra.mxu0 0.0
  %1363 = vmatprep.subr.mxu0 0.0
  %1364 = vmatpush2.msra.mxu0 0.0
  %1365 = vmatprep.subr.mxu0 0.0
  %1366 = vmatpush2.msra.mxu0 0.0
  %1367 = vmatprep.subr.mxu0 0.0
  %1368 = vmatpush2.msra.mxu0 0.0
  %1369 = vmatprep.subr.mxu0 0.0
  %1370 = vmatpush2.msra.mxu0 0.0
  %1371 = vmatprep.subr.mxu0 0.0
  %1372 = vmatpush2.msra.mxu0 0.0
  %1373 = vmatprep.subr.mxu0 0.0
  %1374 = vmatpush2.msra.mxu0 0.0
  %1375 = vmatprep.subr.mxu0 0.0
  %1376 = vmatpush2.msra.mxu0 0.0
  %1377 = vmatprep.subr.mxu0 0.0
  %1378 = vmatpush2.msra.mxu0 0.0
  %1379 = vmatprep.mubr.f32.mxu0 0.0
  %1380 = vmatmul.mubr.f32.gmra.mxu0 %v359
  %v1381 = vpop.f32.mrf.mxu0
  %v1382 = vadd.f32 0.0, %v1381
  %v1383 = vpop.f32.mrf.mxu0
  %1384 = vdwg.mxu0
  %v1385 = vadd.f32 %v1314, %v1382
  %v1386 = vxor.u32 %v1385, 2147483648
  %v1387 = vmul.f32 %v1386, 1.442695
  %v1388 = vpow.pop %v1387
  %v1389 = vadd.f32 %v1388, 1.0
  %v1390 = vrcp.pop %v1389
  %v1391 = vmul.f32 1.0, %v1390
  %v1392 = vtanh.pop %v1385
  %v1393 = vmul.f32 %v1391, 0.0
  %1395 = vrot.lane.b32.xlu0 %v1392, 64
  %v1396 = vpop.permute.xlu0 %1395
  %v1398 = vmul.f32 %v1391, %v1396
  %1400 = vrot.lane.b32.xlu0 %v1398, 32
  %v1401 = vpop.permute.xlu0 %1400
  %v1403 = vadd.f32 %v1393, %v1401
  %v1404 = vtanh.pop %v1403
  %1406 = vrot.lane.b32.xlu0 %v1404, 64
  %v1407 = vpop.permute.xlu0 %1406
  %v1409 = vmul.f32 %v1391, %v1407
  %v1410 = vld [vmem:[%s1297] sm:$0xff]
  %vm1411 = vcmp.gt.f32.partialorder %v1410, 0.5
  %v1412 = vsel %vm1411, 1, 0
  %1413 = vset.pattern.permute.xlu0 0
  %1414 = vperm.xlu0 %1413, %v1412
  %v1415 = vpop.permute.xlu0 %1414
  %vm1416 = vcmp.eq.s32.totalorder %v1415, 1
  %v1417 = vsel %vm1416, %v1409, 0.0
  %1419 = vrot.lane.b32.xlu0 %v1417, 32
  %v1420 = vpop.permute.xlu0 %1419
  %s1422 = scalar_lea.vmem [#allocation5], 56
  %1423 = vst.msk [vmem:[%s1422] sm:$0xff] %vm52, %v1420
  %v1424 = vsel %vm1416, %v1403, 0.0
  %v1425 = vld [vmem:[%s1074 + $0x8] sm:$0xff]
  %v1426 = vsel %vm52, %v1420, 0
  %1428 = vmatprep.subr.mxu0 0.0
  %1429 = vmatpush1.msra.mxu0 0.0
  %1430 = vmatprep.subr.mxu0 0.0
  %1431 = vmatpush1.msra.mxu0 0.0
  %1432 = vmatprep.subr.mxu0 0.0
  %1433 = vmatpush1.msra.mxu0 0.0
  %1434 = vmatprep.subr.mxu0 0.0
  %1435 = vmatpush1.msra.mxu0 0.0
  %1436 = vmatprep.subr.mxu0 0.0
  %1437 = vmatpush1.msra.mxu0 0.0
  %1438 = vmatprep.subr.mxu0 0.0
  %1439 = vmatpush1.msra.mxu0 0.0
  %1440 = vmatprep.subr.mxu0 0.0
  %1441 = vmatpush1.msra.mxu0 0.0
  %1442 = vmatprep.subr.mxu0 0.0
  %1443 = vmatpush1.msra.mxu0 0.0
  %1444 = vmatprep.subr.mxu0 0.0
  %1445 = vmatpush1.msra.mxu0 0.0
  %1446 = vmatprep.subr.mxu0 0.0
  %1447 = vmatpush1.msra.mxu0 0.0
  %1448 = vmatprep.subr.mxu0 0.0
  %1449 = vmatpush1.msra.mxu0 0.0
  %1450 = vmatprep.subr.mxu0 0.0
  %1451 = vmatpush1.msra.mxu0 0.0
  %1452 = vmatprep.subr.mxu0 0.0
  %1453 = vmatpush1.msra.mxu0 %v353
  %1454 = vmatprep.subr.mxu0 0.0
  %1455 = vmatpush1.msra.mxu0 %v352
  %1456 = vmatprep.subr.mxu0 0.0
  %1457 = vmatpush1.msra.mxu0 %v351
  %1458 = vmatprep.subr.mxu0 0.0
  %1459 = vmatpush1.msra.mxu0 %v350
  %1460 = vmatprep.subr.mxu0 0.0
  %1461 = vmatpush2.msra.mxu0 0.0
  %1462 = vmatprep.subr.mxu0 0.0
  %1463 = vmatpush2.msra.mxu0 0.0
  %1464 = vmatprep.subr.mxu0 0.0
  %1465 = vmatpush2.msra.mxu0 0.0
  %1466 = vmatprep.subr.mxu0 0.0
  %1467 = vmatpush2.msra.mxu0 0.0
  %1468 = vmatprep.subr.mxu0 0.0
  %1469 = vmatpush2.msra.mxu0 0.0
  %1470 = vmatprep.subr.mxu0 0.0
  %1471 = vmatpush2.msra.mxu0 0.0
  %1472 = vmatprep.subr.mxu0 0.0
  %1473 = vmatpush2.msra.mxu0 0.0
  %1474 = vmatprep.subr.mxu0 0.0
  %1475 = vmatpush2.msra.mxu0 0.0
  %1476 = vmatprep.subr.mxu0 0.0
  %1477 = vmatpush2.msra.mxu0 0.0
  %1478 = vmatprep.subr.mxu0 0.0
  %1479 = vmatpush2.msra.mxu0 0.0
  %1480 = vmatprep.subr.mxu0 0.0
  %1481 = vmatpush2.msra.mxu0 0.0
  %1482 = vmatprep.subr.mxu0 0.0
  %1483 = vmatpush2.msra.mxu0 0.0
  %1484 = vmatprep.subr.mxu0 0.0
  %1485 = vmatpush2.msra.mxu0 0.0
  %1486 = vmatprep.subr.mxu0 0.0
  %1487 = vmatpush2.msra.mxu0 0.0
  %1488 = vmatprep.subr.mxu0 0.0
  %1489 = vmatpush2.msra.mxu0 0.0
  %1490 = vmatprep.subr.mxu0 0.0
  %1491 = vmatpush2.msra.mxu0 0.0
  %1492 = vmatprep.mubr.f32.mxu0 0.0
  %1493 = vmatmul.mubr.f32.gmra.mxu0 %v1426
  %v1494 = vpop.f32.mrf.mxu0
  %v1495 = vadd.f32 0.0, %v1494
  %v1496 = vpop.f32.mrf.mxu0
  %1497 = vdwg.mxu0
  %v1498 = vadd.f32 %v1425, %v1495
  %v1499 = vxor.u32 %v1498, 2147483648
  %v1500 = vmul.f32 %v1499, 1.442695
  %v1501 = vpow.pop %v1500
  %v1502 = vadd.f32 %v1501, 1.0
  %v1503 = vrcp.pop %v1502
  %v1504 = vmul.f32 1.0, %v1503
  %v1505 = vtanh.pop %v1498
  %v1506 = vmul.f32 %v1504, %v1424
  %1508 = vrot.lane.b32.xlu0 %v1505, 64
  %v1509 = vpop.permute.xlu0 %1508
  %v1511 = vmul.f32 %v1504, %v1509
  %1513 = vrot.lane.b32.xlu0 %v1511, 32
  %v1514 = vpop.permute.xlu0 %1513
  %v1516 = vadd.f32 %v1506, %v1514
  %v1517 = vtanh.pop %v1516
  %1519 = vrot.lane.b32.xlu0 %v1517, 64
  %v1520 = vpop.permute.xlu0 %1519
  %v1522 = vmul.f32 %v1504, %v1520
  %v1523 = vld [vmem:[%s1176] sm:$0xff]
  %vm1524 = vcmp.gt.f32.partialorder %v1523, 0.5
  %v1525 = vsel %vm1524, 1, 0
  %1526 = vset.pattern.permute.xlu0 0
  %1527 = vperm.xlu0 %1526, %v1525
  %v1528 = vpop.permute.xlu0 %1527
  %vm1529 = vcmp.eq.s32.totalorder %v1528, 1
  %v1530 = vsel %vm1529, %v1522, 0.0
  %1532 = vrot.lane.b32.xlu0 %v1530, 32
  %v1533 = vpop.permute.xlu0 %1532
  %s1535 = scalar_lea.vmem [#allocation5], 48
  %1536 = vst.msk [vmem:[%s1535] sm:$0xff] %vm52, %v1533
  %v1537 = vsel %vm1529, %v1522, %v1417
  %v1538 = vsel %vm1529, %v1516, %v1424
  %v1539 = vld [vmem:[%s953 + $0x8] sm:$0xff]
  %1541 = vrot.lane.b32.xlu0 %v1537, 32
  %v1542 = vpop.permute.xlu0 %1541
  %v1543 = vsel %vm52, %v1542, 0
  %1545 = vmatprep.subr.mxu0 0.0
  %1546 = vmatpush1.msra.mxu0 0.0
  %1547 = vmatprep.subr.mxu0 0.0
  %1548 = vmatpush1.msra.mxu0 0.0
  %1549 = vmatprep.subr.mxu0 0.0
  %1550 = vmatpush1.msra.mxu0 0.0
  %1551 = vmatprep.subr.mxu0 0.0
  %1552 = vmatpush1.msra.mxu0 0.0
  %1553 = vmatprep.subr.mxu0 0.0
  %1554 = vmatpush1.msra.mxu0 0.0
  %1555 = vmatprep.subr.mxu0 0.0
  %1556 = vmatpush1.msra.mxu0 0.0
  %1557 = vmatprep.subr.mxu0 0.0
  %1558 = vmatpush1.msra.mxu0 0.0
  %1559 = vmatprep.subr.mxu0 0.0
  %1560 = vmatpush1.msra.mxu0 0.0
  %1561 = vmatprep.subr.mxu0 0.0
  %1562 = vmatpush1.msra.mxu0 0.0
  %1563 = vmatprep.subr.mxu0 0.0
  %1564 = vmatpush1.msra.mxu0 0.0
  %1565 = vmatprep.subr.mxu0 0.0
  %1566 = vmatpush1.msra.mxu0 0.0
  %1567 = vmatprep.subr.mxu0 0.0
  %1568 = vmatpush1.msra.mxu0 0.0
  %1569 = vmatprep.subr.mxu0 0.0
  %1570 = vmatpush1.msra.mxu0 %v353
  %1571 = vmatprep.subr.mxu0 0.0
  %1572 = vmatpush1.msra.mxu0 %v352
  %1573 = vmatprep.subr.mxu0 0.0
  %1574 = vmatpush1.msra.mxu0 %v351
  %1575 = vmatprep.subr.mxu0 0.0
  %1576 = vmatpush1.msra.mxu0 %v350
  %1577 = vmatprep.subr.mxu0 0.0
  %1578 = vmatpush2.msra.mxu0 0.0
  %1579 = vmatprep.subr.mxu0 0.0
  %1580 = vmatpush2.msra.mxu0 0.0
  %1581 = vmatprep.subr.mxu0 0.0
  %1582 = vmatpush2.msra.mxu0 0.0
  %1583 = vmatprep.subr.mxu0 0.0
  %1584 = vmatpush2.msra.mxu0 0.0
  %1585 = vmatprep.subr.mxu0 0.0
  %1586 = vmatpush2.msra.mxu0 0.0
  %1587 = vmatprep.subr.mxu0 0.0
  %1588 = vmatpush2.msra.mxu0 0.0
  %1589 = vmatprep.subr.mxu0 0.0
  %1590 = vmatpush2.msra.mxu0 0.0
  %1591 = vmatprep.subr.mxu0 0.0
  %1592 = vmatpush2.msra.mxu0 0.0
  %1593 = vmatprep.subr.mxu0 0.0
  %1594 = vmatpush2.msra.mxu0 0.0
  %1595 = vmatprep.subr.mxu0 0.0
  %1596 = vmatpush2.msra.mxu0 0.0
  %1597 = vmatprep.subr.mxu0 0.0
  %1598 = vmatpush2.msra.mxu0 0.0
  %1599 = vmatprep.subr.mxu0 0.0
  %1600 = vmatpush2.msra.mxu0 0.0
  %1601 = vmatprep.subr.mxu0 0.0
  %1602 = vmatpush2.msra.mxu0 0.0
  %1603 = vmatprep.subr.mxu0 0.0
  %1604 = vmatpush2.msra.mxu0 0.0
  %1605 = vmatprep.subr.mxu0 0.0
  %1606 = vmatpush2.msra.mxu0 0.0
  %1607 = vmatprep.subr.mxu0 0.0
  %1608 = vmatpush2.msra.mxu0 0.0
  %1609 = vmatprep.mubr.f32.mxu0 0.0
  %1610 = vmatmul.mubr.f32.gmra.mxu0 %v1543
  %v1611 = vpop.f32.mrf.mxu0
  %v1612 = vadd.f32 0.0, %v1611
  %v1613 = vpop.f32.mrf.mxu0
  %1614 = vdwg.mxu0
  %v1615 = vadd.f32 %v1539, %v1612
  %v1616 = vxor.u32 %v1615, 2147483648
  %v1617 = vmul.f32 %v1616, 1.442695
  %v1618 = vpow.pop %v1617
  %v1619 = vadd.f32 %v1618, 1.0
  %v1620 = vrcp.pop %v1619
  %v1621 = vmul.f32 1.0, %v1620
  %v1622 = vtanh.pop %v1615
  %v1623 = vmul.f32 %v1621, %v1538
  %1625 = vrot.lane.b32.xlu0 %v1622, 64
  %v1626 = vpop.permute.xlu0 %1625
  %v1628 = vmul.f32 %v1621, %v1626
  %1630 = vrot.lane.b32.xlu0 %v1628, 32
  %v1631 = vpop.permute.xlu0 %1630
  %v1633 = vadd.f32 %v1623, %v1631
  %v1634 = vtanh.pop %v1633
  %1636 = vrot.lane.b32.xlu0 %v1634, 64
  %v1637 = vpop.permute.xlu0 %1636
  %v1639 = vmul.f32 %v1621, %v1637
  %v1640 = vld [vmem:[%s1055] sm:$0xff]
  %vm1641 = vcmp.gt.f32.partialorder %v1640, 0.5
  %v1642 = vsel %vm1641, 1, 0
  %1643 = vset.pattern.permute.xlu0 0
  %1644 = vperm.xlu0 %1643, %v1642
  %v1645 = vpop.permute.xlu0 %1644
  %vm1646 = vcmp.eq.s32.totalorder %v1645, 1
  %v1647 = vsel %vm1646, %v1639, 0.0
  %1649 = vrot.lane.b32.xlu0 %v1647, 32
  %v1650 = vpop.permute.xlu0 %1649
  %s1652 = scalar_lea.vmem [#allocation5], 40
  %1653 = vst.msk [vmem:[%s1652] sm:$0xff] %vm52, %v1650
  %v1654 = vsel %vm1646, %v1639, %v1537
  %v1655 = vsel %vm1646, %v1633, %v1538
  %v1656 = vld [vmem:[%s832 + $0x8] sm:$0xff]
  %1658 = vrot.lane.b32.xlu0 %v1654, 32
  %v1659 = vpop.permute.xlu0 %1658
  %v1660 = vsel %vm52, %v1659, 0
  %1662 = vmatprep.subr.mxu0 0.0
  %1663 = vmatpush1.msra.mxu0 0.0
  %1664 = vmatprep.subr.mxu0 0.0
  %1665 = vmatpush1.msra.mxu0 0.0
  %1666 = vmatprep.subr.mxu0 0.0
  %1667 = vmatpush1.msra.mxu0 0.0
  %1668 = vmatprep.subr.mxu0 0.0
  %1669 = vmatpush1.msra.mxu0 0.0
  %1670 = vmatprep.subr.mxu0 0.0
  %1671 = vmatpush1.msra.mxu0 0.0
  %1672 = vmatprep.subr.mxu0 0.0
  %1673 = vmatpush1.msra.mxu0 0.0
  %1674 = vmatprep.subr.mxu0 0.0
  %1675 = vmatpush1.msra.mxu0 0.0
  %1676 = vmatprep.subr.mxu0 0.0
  %1677 = vmatpush1.msra.mxu0 0.0
  %1678 = vmatprep.subr.mxu0 0.0
  %1679 = vmatpush1.msra.mxu0 0.0
  %1680 = vmatprep.subr.mxu0 0.0
  %1681 = vmatpush1.msra.mxu0 0.0
  %1682 = vmatprep.subr.mxu0 0.0
  %1683 = vmatpush1.msra.mxu0 0.0
  %1684 = vmatprep.subr.mxu0 0.0
  %1685 = vmatpush1.msra.mxu0 0.0
  %1686 = vmatprep.subr.mxu0 0.0
  %1687 = vmatpush1.msra.mxu0 %v353
  %1688 = vmatprep.subr.mxu0 0.0
  %1689 = vmatpush1.msra.mxu0 %v352
  %1690 = vmatprep.subr.mxu0 0.0
  %1691 = vmatpush1.msra.mxu0 %v351
  %1692 = vmatprep.subr.mxu0 0.0
  %1693 = vmatpush1.msra.mxu0 %v350
  %1694 = vmatprep.subr.mxu0 0.0
  %1695 = vmatpush2.msra.mxu0 0.0
  %1696 = vmatprep.subr.mxu0 0.0
  %1697 = vmatpush2.msra.mxu0 0.0
  %1698 = vmatprep.subr.mxu0 0.0
  %1699 = vmatpush2.msra.mxu0 0.0
  %1700 = vmatprep.subr.mxu0 0.0
  %1701 = vmatpush2.msra.mxu0 0.0
  %1702 = vmatprep.subr.mxu0 0.0
  %1703 = vmatpush2.msra.mxu0 0.0
  %1704 = vmatprep.subr.mxu0 0.0
  %1705 = vmatpush2.msra.mxu0 0.0
  %1706 = vmatprep.subr.mxu0 0.0
  %1707 = vmatpush2.msra.mxu0 0.0
  %1708 = vmatprep.subr.mxu0 0.0
  %1709 = vmatpush2.msra.mxu0 0.0
  %1710 = vmatprep.subr.mxu0 0.0
  %1711 = vmatpush2.msra.mxu0 0.0
  %1712 = vmatprep.subr.mxu0 0.0
  %1713 = vmatpush2.msra.mxu0 0.0
  %1714 = vmatprep.subr.mxu0 0.0
  %1715 = vmatpush2.msra.mxu0 0.0
  %1716 = vmatprep.subr.mxu0 0.0
  %1717 = vmatpush2.msra.mxu0 0.0
  %1718 = vmatprep.subr.mxu0 0.0
  %1719 = vmatpush2.msra.mxu0 0.0
  %1720 = vmatprep.subr.mxu0 0.0
  %1721 = vmatpush2.msra.mxu0 0.0
  %1722 = vmatprep.subr.mxu0 0.0
  %1723 = vmatpush2.msra.mxu0 0.0
  %1724 = vmatprep.subr.mxu0 0.0
  %1725 = vmatpush2.msra.mxu0 0.0
  %1726 = vmatprep.mubr.f32.mxu0 0.0
  %1727 = vmatmul.mubr.f32.gmra.mxu0 %v1660
  %v1728 = vpop.f32.mrf.mxu0
  %v1729 = vadd.f32 0.0, %v1728
  %v1730 = vpop.f32.mrf.mxu0
  %1731 = vdwg.mxu0
  %v1732 = vadd.f32 %v1656, %v1729
  %v1733 = vxor.u32 %v1732, 2147483648
  %v1734 = vmul.f32 %v1733, 1.442695
  %v1735 = vpow.pop %v1734
  %v1736 = vadd.f32 %v1735, 1.0
  %v1737 = vrcp.pop %v1736
  %v1738 = vmul.f32 1.0, %v1737
  %v1739 = vtanh.pop %v1732
  %v1740 = vmul.f32 %v1738, %v1655
  %1742 = vrot.lane.b32.xlu0 %v1739, 64
  %v1743 = vpop.permute.xlu0 %1742
  %v1745 = vmul.f32 %v1738, %v1743
  %1747 = vrot.lane.b32.xlu0 %v1745, 32
  %v1748 = vpop.permute.xlu0 %1747
  %v1750 = vadd.f32 %v1740, %v1748
  %v1751 = vtanh.pop %v1750
  %1753 = vrot.lane.b32.xlu0 %v1751, 64
  %v1754 = vpop.permute.xlu0 %1753
  %v1756 = vmul.f32 %v1738, %v1754
  %v1757 = vld [vmem:[%s934] sm:$0xff]
  %vm1758 = vcmp.gt.f32.partialorder %v1757, 0.5
  %v1759 = vsel %vm1758, 1, 0
  %1760 = vset.pattern.permute.xlu0 0
  %1761 = vperm.xlu0 %1760, %v1759
  %v1762 = vpop.permute.xlu0 %1761
  %vm1763 = vcmp.eq.s32.totalorder %v1762, 1
  %v1764 = vsel %vm1763, %v1756, 0.0
  %1766 = vrot.lane.b32.xlu0 %v1764, 32
  %v1767 = vpop.permute.xlu0 %1766
  %s1769 = scalar_lea.vmem [#allocation5], 32
  %1770 = vst.msk [vmem:[%s1769] sm:$0xff] %vm52, %v1767
  %v1771 = vsel %vm1763, %v1756, %v1654
  %v1772 = vsel %vm1763, %v1750, %v1655
  %v1773 = vld [vmem:[%s711 + $0x8] sm:$0xff]
  %1775 = vrot.lane.b32.xlu0 %v1771, 32
  %v1776 = vpop.permute.xlu0 %1775
  %v1777 = vsel %vm52, %v1776, 0
  %1779 = vmatprep.subr.mxu0 0.0
  %1780 = vmatpush1.msra.mxu0 0.0
  %1781 = vmatprep.subr.mxu0 0.0
  %1782 = vmatpush1.msra.mxu0 0.0
  %1783 = vmatprep.subr.mxu0 0.0
  %1784 = vmatpush1.msra.mxu0 0.0
  %1785 = vmatprep.subr.mxu0 0.0
  %1786 = vmatpush1.msra.mxu0 0.0
  %1787 = vmatprep.subr.mxu0 0.0
  %1788 = vmatpush1.msra.mxu0 0.0
  %1789 = vmatprep.subr.mxu0 0.0
  %1790 = vmatpush1.msra.mxu0 0.0
  %1791 = vmatprep.subr.mxu0 0.0
  %1792 = vmatpush1.msra.mxu0 0.0
  %1793 = vmatprep.subr.mxu0 0.0
  %1794 = vmatpush1.msra.mxu0 0.0
  %1795 = vmatprep.subr.mxu0 0.0
  %1796 = vmatpush1.msra.mxu0 0.0
  %1797 = vmatprep.subr.mxu0 0.0
  %1798 = vmatpush1.msra.mxu0 0.0
  %1799 = vmatprep.subr.mxu0 0.0
  %1800 = vmatpush1.msra.mxu0 0.0
  %1801 = vmatprep.subr.mxu0 0.0
  %1802 = vmatpush1.msra.mxu0 0.0
  %1803 = vmatprep.subr.mxu0 0.0
  %1804 = vmatpush1.msra.mxu0 %v353
  %1805 = vmatprep.subr.mxu0 0.0
  %1806 = vmatpush1.msra.mxu0 %v352
  %1807 = vmatprep.subr.mxu0 0.0
  %1808 = vmatpush1.msra.mxu0 %v351
  %1809 = vmatprep.subr.mxu0 0.0
  %1810 = vmatpush1.msra.mxu0 %v350
  %1811 = vmatprep.subr.mxu0 0.0
  %1812 = vmatpush2.msra.mxu0 0.0
  %1813 = vmatprep.subr.mxu0 0.0
  %1814 = vmatpush2.msra.mxu0 0.0
  %1815 = vmatprep.subr.mxu0 0.0
  %1816 = vmatpush2.msra.mxu0 0.0
  %1817 = vmatprep.subr.mxu0 0.0
  %1818 = vmatpush2.msra.mxu0 0.0
  %1819 = vmatprep.subr.mxu0 0.0
  %1820 = vmatpush2.msra.mxu0 0.0
  %1821 = vmatprep.subr.mxu0 0.0
  %1822 = vmatpush2.msra.mxu0 0.0
  %1823 = vmatprep.subr.mxu0 0.0
  %1824 = vmatpush2.msra.mxu0 0.0
  %1825 = vmatprep.subr.mxu0 0.0
  %1826 = vmatpush2.msra.mxu0 0.0
  %1827 = vmatprep.subr.mxu0 0.0
  %1828 = vmatpush2.msra.mxu0 0.0
  %1829 = vmatprep.subr.mxu0 0.0
  %1830 = vmatpush2.msra.mxu0 0.0
  %1831 = vmatprep.subr.mxu0 0.0
  %1832 = vmatpush2.msra.mxu0 0.0
  %1833 = vmatprep.subr.mxu0 0.0
  %1834 = vmatpush2.msra.mxu0 0.0
  %1835 = vmatprep.subr.mxu0 0.0
  %1836 = vmatpush2.msra.mxu0 0.0
  %1837 = vmatprep.subr.mxu0 0.0
  %1838 = vmatpush2.msra.mxu0 0.0
  %1839 = vmatprep.subr.mxu0 0.0
  %1840 = vmatpush2.msra.mxu0 0.0
  %1841 = vmatprep.subr.mxu0 0.0
  %1842 = vmatpush2.msra.mxu0 0.0
  %1843 = vmatprep.mubr.f32.mxu0 0.0
  %1844 = vmatmul.mubr.f32.gmra.mxu0 %v1777
  %v1845 = vpop.f32.mrf.mxu0
  %v1846 = vadd.f32 0.0, %v1845
  %v1847 = vpop.f32.mrf.mxu0
  %1848 = vdwg.mxu0
  %v1849 = vadd.f32 %v1773, %v1846
  %v1850 = vxor.u32 %v1849, 2147483648
  %v1851 = vmul.f32 %v1850, 1.442695
  %v1852 = vpow.pop %v1851
  %v1853 = vadd.f32 %v1852, 1.0
  %v1854 = vrcp.pop %v1853
  %v1855 = vmul.f32 1.0, %v1854
  %v1856 = vtanh.pop %v1849
  %v1857 = vmul.f32 %v1855, %v1772
  %1859 = vrot.lane.b32.xlu0 %v1856, 64
  %v1860 = vpop.permute.xlu0 %1859
  %v1862 = vmul.f32 %v1855, %v1860
  %1864 = vrot.lane.b32.xlu0 %v1862, 32
  %v1865 = vpop.permute.xlu0 %1864
  %v1867 = vadd.f32 %v1857, %v1865
  %v1868 = vtanh.pop %v1867
  %1870 = vrot.lane.b32.xlu0 %v1868, 64
  %v1871 = vpop.permute.xlu0 %1870
  %v1873 = vmul.f32 %v1855, %v1871
  %v1874 = vld [vmem:[%s813] sm:$0xff]
  %vm1875 = vcmp.gt.f32.partialorder %v1874, 0.5
  %v1876 = vsel %vm1875, 1, 0
  %1877 = vset.pattern.permute.xlu0 0
  %1878 = vperm.xlu0 %1877, %v1876
  %v1879 = vpop.permute.xlu0 %1878
  %vm1880 = vcmp.eq.s32.totalorder %v1879, 1
  %v1881 = vsel %vm1880, %v1873, 0.0
  %1883 = vrot.lane.b32.xlu0 %v1881, 32
  %v1884 = vpop.permute.xlu0 %1883
  %s1886 = scalar_lea.vmem [#allocation5], 24
  %1887 = vst.msk [vmem:[%s1886] sm:$0xff] %vm52, %v1884
  %v1888 = vsel %vm1880, %v1873, %v1771
  %v1889 = vsel %vm1880, %v1867, %v1772
  %v1890 = vld [vmem:[%s590 + $0x8] sm:$0xff]
  %1892 = vrot.lane.b32.xlu0 %v1888, 32
  %v1893 = vpop.permute.xlu0 %1892
  %v1894 = vsel %vm52, %v1893, 0
  %1896 = vmatprep.subr.mxu0 0.0
  %1897 = vmatpush1.msra.mxu0 0.0
  %1898 = vmatprep.subr.mxu0 0.0
  %1899 = vmatpush1.msra.mxu0 0.0
  %1900 = vmatprep.subr.mxu0 0.0
  %1901 = vmatpush1.msra.mxu0 0.0
  %1902 = vmatprep.subr.mxu0 0.0
  %1903 = vmatpush1.msra.mxu0 0.0
  %1904 = vmatprep.subr.mxu0 0.0
  %1905 = vmatpush1.msra.mxu0 0.0
  %1906 = vmatprep.subr.mxu0 0.0
  %1907 = vmatpush1.msra.mxu0 0.0
  %1908 = vmatprep.subr.mxu0 0.0
  %1909 = vmatpush1.msra.mxu0 0.0
  %1910 = vmatprep.subr.mxu0 0.0
  %1911 = vmatpush1.msra.mxu0 0.0
  %1912 = vmatprep.subr.mxu0 0.0
  %1913 = vmatpush1.msra.mxu0 0.0
  %1914 = vmatprep.subr.mxu0 0.0
  %1915 = vmatpush1.msra.mxu0 0.0
  %1916 = vmatprep.subr.mxu0 0.0
  %1917 = vmatpush1.msra.mxu0 0.0
  %1918 = vmatprep.subr.mxu0 0.0
  %1919 = vmatpush1.msra.mxu0 0.0
  %1920 = vmatprep.subr.mxu0 0.0
  %1921 = vmatpush1.msra.mxu0 %v353
  %1922 = vmatprep.subr.mxu0 0.0
  %1923 = vmatpush1.msra.mxu0 %v352
  %1924 = vmatprep.subr.mxu0 0.0
  %1925 = vmatpush1.msra.mxu0 %v351
  %1926 = vmatprep.subr.mxu0 0.0
  %1927 = vmatpush1.msra.mxu0 %v350
  %1928 = vmatprep.subr.mxu0 0.0
  %1929 = vmatpush2.msra.mxu0 0.0
  %1930 = vmatprep.subr.mxu0 0.0
  %1931 = vmatpush2.msra.mxu0 0.0
  %1932 = vmatprep.subr.mxu0 0.0
  %1933 = vmatpush2.msra.mxu0 0.0
  %1934 = vmatprep.subr.mxu0 0.0
  %1935 = vmatpush2.msra.mxu0 0.0
  %1936 = vmatprep.subr.mxu0 0.0
  %1937 = vmatpush2.msra.mxu0 0.0
  %1938 = vmatprep.subr.mxu0 0.0
  %1939 = vmatpush2.msra.mxu0 0.0
  %1940 = vmatprep.subr.mxu0 0.0
  %1941 = vmatpush2.msra.mxu0 0.0
  %1942 = vmatprep.subr.mxu0 0.0
  %1943 = vmatpush2.msra.mxu0 0.0
  %1944 = vmatprep.subr.mxu0 0.0
  %1945 = vmatpush2.msra.mxu0 0.0
  %1946 = vmatprep.subr.mxu0 0.0
  %1947 = vmatpush2.msra.mxu0 0.0
  %1948 = vmatprep.subr.mxu0 0.0
  %1949 = vmatpush2.msra.mxu0 0.0
  %1950 = vmatprep.subr.mxu0 0.0
  %1951 = vmatpush2.msra.mxu0 0.0
  %1952 = vmatprep.subr.mxu0 0.0
  %1953 = vmatpush2.msra.mxu0 0.0
  %1954 = vmatprep.subr.mxu0 0.0
  %1955 = vmatpush2.msra.mxu0 0.0
  %1956 = vmatprep.subr.mxu0 0.0
  %1957 = vmatpush2.msra.mxu0 0.0
  %1958 = vmatprep.subr.mxu0 0.0
  %1959 = vmatpush2.msra.mxu0 0.0
  %1960 = vmatprep.mubr.f32.mxu0 0.0
  %1961 = vmatmul.mubr.f32.gmra.mxu0 %v1894
  %v1962 = vpop.f32.mrf.mxu0
  %v1963 = vadd.f32 0.0, %v1962
  %v1964 = vpop.f32.mrf.mxu0
  %1965 = vdwg.mxu0
  %v1966 = vadd.f32 %v1890, %v1963
  %v1967 = vxor.u32 %v1966, 2147483648
  %v1968 = vmul.f32 %v1967, 1.442695
  %v1969 = vpow.pop %v1968
  %v1970 = vadd.f32 %v1969, 1.0
  %v1971 = vrcp.pop %v1970
  %v1972 = vmul.f32 1.0, %v1971
  %v1973 = vtanh.pop %v1966
  %v1974 = vmul.f32 %v1972, %v1889
  %1976 = vrot.lane.b32.xlu0 %v1973, 64
  %v1977 = vpop.permute.xlu0 %1976
  %v1979 = vmul.f32 %v1972, %v1977
  %1981 = vrot.lane.b32.xlu0 %v1979, 32
  %v1982 = vpop.permute.xlu0 %1981
  %v1984 = vadd.f32 %v1974, %v1982
  %v1985 = vtanh.pop %v1984
  %1987 = vrot.lane.b32.xlu0 %v1985, 64
  %v1988 = vpop.permute.xlu0 %1987
  %v1990 = vmul.f32 %v1972, %v1988
  %v1991 = vld [vmem:[%s692] sm:$0xff]
  %vm1992 = vcmp.gt.f32.partialorder %v1991, 0.5
  %v1993 = vsel %vm1992, 1, 0
  %1994 = vset.pattern.permute.xlu0 0
  %1995 = vperm.xlu0 %1994, %v1993
  %v1996 = vpop.permute.xlu0 %1995
  %vm1997 = vcmp.eq.s32.totalorder %v1996, 1
  %v1998 = vsel %vm1997, %v1990, 0.0
  %2000 = vrot.lane.b32.xlu0 %v1998, 32
  %v2001 = vpop.permute.xlu0 %2000
  %s2003 = scalar_lea.vmem [#allocation5], 16
  %2004 = vst.msk [vmem:[%s2003] sm:$0xff] %vm52, %v2001
  %v2005 = vsel %vm1997, %v1990, %v1888
  %v2006 = vsel %vm1997, %v1984, %v1889
  %v2007 = vld [vmem:[%s472 + $0x8] sm:$0xff]
  %2009 = vrot.lane.b32.xlu0 %v2005, 32
  %v2010 = vpop.permute.xlu0 %2009
  %v2011 = vsel %vm52, %v2010, 0
  %2013 = vmatprep.subr.mxu0 0.0
  %2014 = vmatpush1.msra.mxu0 0.0
  %2015 = vmatprep.subr.mxu0 0.0
  %2016 = vmatpush1.msra.mxu0 0.0
  %2017 = vmatprep.subr.mxu0 0.0
  %2018 = vmatpush1.msra.mxu0 0.0
  %2019 = vmatprep.subr.mxu0 0.0
  %2020 = vmatpush1.msra.mxu0 0.0
  %2021 = vmatprep.subr.mxu0 0.0
  %2022 = vmatpush1.msra.mxu0 0.0
  %2023 = vmatprep.subr.mxu0 0.0
  %2024 = vmatpush1.msra.mxu0 0.0
  %2025 = vmatprep.subr.mxu0 0.0
  %2026 = vmatpush1.msra.mxu0 0.0
  %2027 = vmatprep.subr.mxu0 0.0
  %2028 = vmatpush1.msra.mxu0 0.0
  %2029 = vmatprep.subr.mxu0 0.0
  %2030 = vmatpush1.msra.mxu0 0.0
  %2031 = vmatprep.subr.mxu0 0.0
  %2032 = vmatpush1.msra.mxu0 0.0
  %2033 = vmatprep.subr.mxu0 0.0
  %2034 = vmatpush1.msra.mxu0 0.0
  %2035 = vmatprep.subr.mxu0 0.0
  %2036 = vmatpush1.msra.mxu0 0.0
  %2037 = vmatprep.subr.mxu0 0.0
  %2038 = vmatpush1.msra.mxu0 %v353
  %2039 = vmatprep.subr.mxu0 0.0
  %2040 = vmatpush1.msra.mxu0 %v352
  %2041 = vmatprep.subr.mxu0 0.0
  %2042 = vmatpush1.msra.mxu0 %v351
  %2043 = vmatprep.subr.mxu0 0.0
  %2044 = vmatpush1.msra.mxu0 %v350
  %2045 = vmatprep.subr.mxu0 0.0
  %2046 = vmatpush2.msra.mxu0 0.0
  %2047 = vmatprep.subr.mxu0 0.0
  %2048 = vmatpush2.msra.mxu0 0.0
  %2049 = vmatprep.subr.mxu0 0.0
  %2050 = vmatpush2.msra.mxu0 0.0
  %2051 = vmatprep.subr.mxu0 0.0
  %2052 = vmatpush2.msra.mxu0 0.0
  %2053 = vmatprep.subr.mxu0 0.0
  %2054 = vmatpush2.msra.mxu0 0.0
  %2055 = vmatprep.subr.mxu0 0.0
  %2056 = vmatpush2.msra.mxu0 0.0
  %2057 = vmatprep.subr.mxu0 0.0
  %2058 = vmatpush2.msra.mxu0 0.0
  %2059 = vmatprep.subr.mxu0 0.0
  %2060 = vmatpush2.msra.mxu0 0.0
  %2061 = vmatprep.subr.mxu0 0.0
  %2062 = vmatpush2.msra.mxu0 0.0
  %2063 = vmatprep.subr.mxu0 0.0
  %2064 = vmatpush2.msra.mxu0 0.0
  %2065 = vmatprep.subr.mxu0 0.0
  %2066 = vmatpush2.msra.mxu0 0.0
  %2067 = vmatprep.subr.mxu0 0.0
  %2068 = vmatpush2.msra.mxu0 0.0
  %2069 = vmatprep.subr.mxu0 0.0
  %2070 = vmatpush2.msra.mxu0 0.0
  %2071 = vmatprep.subr.mxu0 0.0
  %2072 = vmatpush2.msra.mxu0 0.0
  %2073 = vmatprep.subr.mxu0 0.0
  %2074 = vmatpush2.msra.mxu0 0.0
  %2075 = vmatprep.subr.mxu0 0.0
  %2076 = vmatpush2.msra.mxu0 0.0
  %2077 = vmatprep.mubr.f32.mxu0 0.0
  %2078 = vmatmul.mubr.f32.gmra.mxu0 %v2011
  %v2079 = vpop.f32.mrf.mxu0
  %v2080 = vadd.f32 0.0, %v2079
  %v2081 = vpop.f32.mrf.mxu0
  %2082 = vdwg.mxu0
  %v2083 = vadd.f32 %v2007, %v2080
  %v2084 = vxor.u32 %v2083, 2147483648
  %v2085 = vmul.f32 %v2084, 1.442695
  %v2086 = vpow.pop %v2085
  %v2087 = vadd.f32 %v2086, 1.0
  %v2088 = vrcp.pop %v2087
  %v2089 = vmul.f32 1.0, %v2088
  %v2090 = vtanh.pop %v2083
  %v2091 = vmul.f32 %v2089, %v2006
  %2093 = vrot.lane.b32.xlu0 %v2090, 64
  %v2094 = vpop.permute.xlu0 %2093
  %v2096 = vmul.f32 %v2089, %v2094
  %2098 = vrot.lane.b32.xlu0 %v2096, 32
  %v2099 = vpop.permute.xlu0 %2098
  %v2101 = vadd.f32 %v2091, %v2099
  %v2102 = vtanh.pop %v2101
  %2104 = vrot.lane.b32.xlu0 %v2102, 64
  %v2105 = vpop.permute.xlu0 %2104
  %v2107 = vmul.f32 %v2089, %v2105
  %v2108 = vld [vmem:[%s571] sm:$0xff]
  %vm2109 = vcmp.gt.f32.partialorder %v2108, 0.5
  %v2110 = vsel %vm2109, 1, 0
  %2111 = vset.pattern.permute.xlu0 0
  %2112 = vperm.xlu0 %2111, %v2110
  %v2113 = vpop.permute.xlu0 %2112
  %vm2114 = vcmp.eq.s32.totalorder %v2113, 1
  %v2115 = vsel %vm2114, %v2107, 0.0
  %2117 = vrot.lane.b32.xlu0 %v2115, 32
  %v2118 = vpop.permute.xlu0 %2117
  %s2120 = scalar_lea.vmem [#allocation5], 8
  %2121 = vst.msk [vmem:[%s2120] sm:$0xff] %vm52, %v2118
  %v2122 = vsel %vm2114, %v2107, %v2005
  %v2123 = vsel %vm2114, %v2101, %v2006
  %v2124 = vld [vmem:[%s356 + $0x8] sm:$0xff]
  %2126 = vrot.lane.b32.xlu0 %v2122, 32
  %v2127 = vpop.permute.xlu0 %2126
  %v2128 = vsel %vm52, %v2127, 0
  %2130 = vmatprep.subr.mxu0 0.0
  %2131 = vmatpush1.msra.mxu0 0.0
  %2132 = vmatprep.subr.mxu0 0.0
  %2133 = vmatpush1.msra.mxu0 0.0
  %2134 = vmatprep.subr.mxu0 0.0
  %2135 = vmatpush1.msra.mxu0 0.0
  %2136 = vmatprep.subr.mxu0 0.0
  %2137 = vmatpush1.msra.mxu0 0.0
  %2138 = vmatprep.subr.mxu0 0.0
  %2139 = vmatpush1.msra.mxu0 0.0
  %2140 = vmatprep.subr.mxu0 0.0
  %2141 = vmatpush1.msra.mxu0 0.0
  %2142 = vmatprep.subr.mxu0 0.0
  %2143 = vmatpush1.msra.mxu0 0.0
  %2144 = vmatprep.subr.mxu0 0.0
  %2145 = vmatpush1.msra.mxu0 0.0
  %2146 = vmatprep.subr.mxu0 0.0
  %2147 = vmatpush1.msra.mxu0 0.0
  %2148 = vmatprep.subr.mxu0 0.0
  %2149 = vmatpush1.msra.mxu0 0.0
  %2150 = vmatprep.subr.mxu0 0.0
  %2151 = vmatpush1.msra.mxu0 0.0
  %2152 = vmatprep.subr.mxu0 0.0
  %2153 = vmatpush1.msra.mxu0 0.0
  %2154 = vmatprep.subr.mxu0 0.0
  %2155 = vmatpush1.msra.mxu0 %v353
  %2156 = vmatprep.subr.mxu0 0.0
  %2157 = vmatpush1.msra.mxu0 %v352
  %2158 = vmatprep.subr.mxu0 0.0
  %2159 = vmatpush1.msra.mxu0 %v351
  %2160 = vmatprep.subr.mxu0 0.0
  %2161 = vmatpush1.msra.mxu0 %v350
  %2162 = vmatprep.subr.mxu0 0.0
  %2163 = vmatpush2.msra.mxu0 0.0
  %2164 = vmatprep.subr.mxu0 0.0
  %2165 = vmatpush2.msra.mxu0 0.0
  %2166 = vmatprep.subr.mxu0 0.0
  %2167 = vmatpush2.msra.mxu0 0.0
  %2168 = vmatprep.subr.mxu0 0.0
  %2169 = vmatpush2.msra.mxu0 0.0
  %2170 = vmatprep.subr.mxu0 0.0
  %2171 = vmatpush2.msra.mxu0 0.0
  %2172 = vmatprep.subr.mxu0 0.0
  %2173 = vmatpush2.msra.mxu0 0.0
  %2174 = vmatprep.subr.mxu0 0.0
  %2175 = vmatpush2.msra.mxu0 0.0
  %2176 = vmatprep.subr.mxu0 0.0
  %2177 = vmatpush2.msra.mxu0 0.0
  %2178 = vmatprep.subr.mxu0 0.0
  %2179 = vmatpush2.msra.mxu0 0.0
  %2180 = vmatprep.subr.mxu0 0.0
  %2181 = vmatpush2.msra.mxu0 0.0
  %2182 = vmatprep.subr.mxu0 0.0
  %2183 = vmatpush2.msra.mxu0 0.0
  %2184 = vmatprep.subr.mxu0 0.0
  %2185 = vmatpush2.msra.mxu0 0.0
  %2186 = vmatprep.subr.mxu0 0.0
  %2187 = vmatpush2.msra.mxu0 0.0
  %2188 = vmatprep.subr.mxu0 0.0
  %2189 = vmatpush2.msra.mxu0 0.0
  %2190 = vmatprep.subr.mxu0 0.0
  %2191 = vmatpush2.msra.mxu0 0.0
  %2192 = vmatprep.subr.mxu0 0.0
  %2193 = vmatpush2.msra.mxu0 0.0
  %2194 = vmatprep.mubr.f32.mxu0 0.0
  %2195 = vmatmul.mubr.f32.gmra.mxu0 %v2128
  %v2196 = vpop.f32.mrf.mxu0
  %v2197 = vadd.f32 0.0, %v2196
  %v2198 = vpop.f32.mrf.mxu0
  %2199 = vdwg.mxu0
  %v2200 = vadd.f32 %v2124, %v2197
  %v2201 = vxor.u32 %v2200, 2147483648
  %v2202 = vmul.f32 %v2201, 1.442695
  %v2203 = vpow.pop %v2202
  %v2204 = vadd.f32 %v2203, 1.0
  %v2205 = vrcp.pop %v2204
  %v2206 = vmul.f32 1.0, %v2205
  %v2207 = vtanh.pop %v2200
  %v2208 = vmul.f32 %v2206, %v2123
  %2210 = vrot.lane.b32.xlu0 %v2207, 64
  %v2211 = vpop.permute.xlu0 %2210
  %v2213 = vmul.f32 %v2206, %v2211
  %2215 = vrot.lane.b32.xlu0 %v2213, 32
  %v2216 = vpop.permute.xlu0 %2215
  %v2218 = vadd.f32 %v2208, %v2216
  %v2219 = vtanh.pop %v2218
  %2221 = vrot.lane.b32.xlu0 %v2219, 64
  %v2222 = vpop.permute.xlu0 %2221
  %v2224 = vmul.f32 %v2206, %v2222
  %v2225 = vld [vmem:[%s1] sm:$0xff]
  %vm2226 = vcmp.gt.f32.partialorder %v2225, 0.5
  %v2227 = vsel %vm2226, 1, 0
  %2228 = vset.pattern.permute.xlu0 0
  %2229 = vperm.xlu0 %2228, %v2227
  %v2230 = vpop.permute.xlu0 %2229
  %vm2231 = vcmp.eq.s32.totalorder %v2230, 1
  %v2232 = vsel %vm2231, %v2224, 0.0
  %2234 = vrot.lane.b32.xlu0 %v2232, 32
  %v2235 = vpop.permute.xlu0 %2234
  %2237 = vst.msk [vmem:[#allocation5] sm:$0xff] %vm52, %v2235
  %v2238 = vsel %vm2231, %v2224, %v2122
  %v2239 = vsel %vm2231, %v2218, %v2123
  %2241 = vrot.lane.b32.xlu0 %v1312, 32
  %v2242 = vpop.permute.xlu0 %2241
  %2245 = vrot.lane.b32.xlu0 %v2238, 64
  %v2246 = vpop.permute.xlu0 %2245
  %v2248 = vsel %vm52, %v2242, %v2246
  %2250 = vrot.lane.b32.xlu0 %v1313, 96
  %v2251 = vpop.permute.xlu0 %2250
  %v2253 = vsel %vm52, %v2251, %v2239
  %v2254 = vld [vmem:[%s5 + $0xd0] sm:$0xff]
  %v2255 = vld [vmem:[%s5 + $0xe0] sm:$0xff]
  %v2256 = vld [vmem:[%s5 + $0xf0] sm:$0xff]
  %v2257 = vld [vmem:[%s5 + $0x100] sm:$0xff]
  %v2258 = vld [vmem:[%s5 + $0x110] sm:$0xff]
  %v2259 = vld [vmem:[%s5 + $0x120] sm:$0xff]
  %v2260 = vld [vmem:[%s5 + $0x130] sm:$0xff]
  %v2261 = vld [vmem:[%s5 + $0x140] sm:$0xff]
  %vm2262 = vcmask 523264
  %v2264 = vsel %vm2262, %v2248, 0
  %2266 = vmatprep.subr.mxu0 0.0
  %2267 = vmatpush1.msra.mxu0 0.0
  %2268 = vmatprep.subr.mxu0 0.0
  %2269 = vmatpush1.msra.mxu0 0.0
  %2270 = vmatprep.subr.mxu0 0.0
  %2271 = vmatpush1.msra.mxu0 0.0
  %2272 = vmatprep.subr.mxu0 0.0
  %2273 = vmatpush1.msra.mxu0 0.0
  %2274 = vmatprep.subr.mxu0 0.0
  %2275 = vmatpush1.msra.mxu0 0.0
  %2276 = vmatprep.subr.mxu0 0.0
  %2277 = vmatpush1.msra.mxu0 0.0
  %2278 = vmatprep.subr.mxu0 0.0
  %2279 = vmatpush1.msra.mxu0 0.0
  %2280 = vmatprep.subr.mxu0 0.0
  %2281 = vmatpush1.msra.mxu0 0.0
  %2282 = vmatprep.subr.mxu0 0.0
  %2283 = vmatpush1.msra.mxu0 %v2261
  %2284 = vmatprep.subr.mxu0 0.0
  %2285 = vmatpush1.msra.mxu0 %v2260
  %2286 = vmatprep.subr.mxu0 0.0
  %2287 = vmatpush1.msra.mxu0 %v2259
  %2288 = vmatprep.subr.mxu0 0.0
  %2289 = vmatpush1.msra.mxu0 %v2258
  %2290 = vmatprep.subr.mxu0 0.0
  %2291 = vmatpush1.msra.mxu0 %v2257
  %2292 = vmatprep.subr.mxu0 0.0
  %2293 = vmatpush1.msra.mxu0 %v2256
  %2294 = vmatprep.subr.mxu0 0.0
  %2295 = vmatpush1.msra.mxu0 %v2255
  %2296 = vmatprep.subr.mxu0 0.0
  %2297 = vmatpush1.msra.mxu0 %v2254
  %2298 = vmatprep.subr.mxu0 0.0
  %2299 = vmatpush2.msra.mxu0 0.0
  %2300 = vmatprep.subr.mxu0 0.0
  %2301 = vmatpush2.msra.mxu0 0.0
  %2302 = vmatprep.subr.mxu0 0.0
  %2303 = vmatpush2.msra.mxu0 0.0
  %2304 = vmatprep.subr.mxu0 0.0
  %2305 = vmatpush2.msra.mxu0 0.0
  %2306 = vmatprep.subr.mxu0 0.0
  %2307 = vmatpush2.msra.mxu0 0.0
  %2308 = vmatprep.subr.mxu0 0.0
  %2309 = vmatpush2.msra.mxu0 0.0
  %2310 = vmatprep.subr.mxu0 0.0
  %2311 = vmatpush2.msra.mxu0 0.0
  %2312 = vmatprep.subr.mxu0 0.0
  %2313 = vmatpush2.msra.mxu0 0.0
  %2314 = vmatprep.subr.mxu0 0.0
  %2315 = vmatpush2.msra.mxu0 0.0
  %2316 = vmatprep.subr.mxu0 0.0
  %2317 = vmatpush2.msra.mxu0 0.0
  %2318 = vmatprep.subr.mxu0 0.0
  %2319 = vmatpush2.msra.mxu0 0.0
  %2320 = vmatprep.subr.mxu0 0.0
  %2321 = vmatpush2.msra.mxu0 0.0
  %2322 = vmatprep.subr.mxu0 0.0
  %2323 = vmatpush2.msra.mxu0 0.0
  %2324 = vmatprep.subr.mxu0 0.0
  %2325 = vmatpush2.msra.mxu0 0.0
  %2326 = vmatprep.subr.mxu0 0.0
  %2327 = vmatpush2.msra.mxu0 0.0
  %2328 = vmatprep.subr.mxu0 0.0
  %2329 = vmatpush2.msra.mxu0 0.0
  %2330 = vmatprep.mubr.f32.mxu0 0.0
  %2331 = vmatmul.mubr.f32.gmra.mxu0 %v2264
  %v2332 = vpop.f32.mrf.mxu0
  %v2333 = vadd.f32 0.0, %v2332
  %v2334 = vpop.f32.mrf.mxu0
  %2335 = vdwg.mxu0
  %v2336 = vld [vmem:[%s5 + $0x150] sm:$0xff]
  %v2337 = vld [vmem:[%s5 + $0x160] sm:$0xff]
  %v2338 = vld [vmem:[%s5 + $0x170] sm:$0xff]
  %v2339 = vld [vmem:[%s5 + $0x180] sm:$0xff]
  %v2340 = vld [vmem:[%s5 + $0x190] sm:$0xff]
  %v2341 = vld [vmem:[%s5 + $0x1a0] sm:$0xff]
  %v2342 = vld [vmem:[%s5 + $0x1b0] sm:$0xff]
  %v2343 = vld [vmem:[%s5 + $0x1c0] sm:$0xff]
  %v2345 = vsel %vm2262, %v2253, 0
  %2347 = vmatprep.subr.mxu0 0.0
  %2348 = vmatpush1.msra.mxu0 0.0
  %2349 = vmatprep.subr.mxu0 0.0
  %2350 = vmatpush1.msra.mxu0 0.0
  %2351 = vmatprep.subr.mxu0 0.0
  %2352 = vmatpush1.msra.mxu0 0.0
  %2353 = vmatprep.subr.mxu0 0.0
  %2354 = vmatpush1.msra.mxu0 0.0
  %2355 = vmatprep.subr.mxu0 0.0
  %2356 = vmatpush1.msra.mxu0 0.0
  %2357 = vmatprep.subr.mxu0 0.0
  %2358 = vmatpush1.msra.mxu0 0.0
  %2359 = vmatprep.subr.mxu0 0.0
  %2360 = vmatpush1.msra.mxu0 0.0
  %2361 = vmatprep.subr.mxu0 0.0
  %2362 = vmatpush1.msra.mxu0 0.0
  %2363 = vmatprep.subr.mxu0 0.0
  %2364 = vmatpush1.msra.mxu0 %v2343
  %2365 = vmatprep.subr.mxu0 0.0
  %2366 = vmatpush1.msra.mxu0 %v2342
  %2367 = vmatprep.subr.mxu0 0.0
  %2368 = vmatpush1.msra.mxu0 %v2341
  %2369 = vmatprep.subr.mxu0 0.0
  %2370 = vmatpush1.msra.mxu0 %v2340
  %2371 = vmatprep.subr.mxu0 0.0
  %2372 = vmatpush1.msra.mxu0 %v2339
  %2373 = vmatprep.subr.mxu0 0.0
  %2374 = vmatpush1.msra.mxu0 %v2338
  %2375 = vmatprep.subr.mxu0 0.0
  %2376 = vmatpush1.msra.mxu0 %v2337
  %2377 = vmatprep.subr.mxu0 0.0
  %2378 = vmatpush1.msra.mxu0 %v2336
  %2379 = vmatprep.subr.mxu0 0.0
  %2380 = vmatpush2.msra.mxu0 0.0
  %2381 = vmatprep.subr.mxu0 0.0
  %2382 = vmatpush2.msra.mxu0 0.0
  %2383 = vmatprep.subr.mxu0 0.0
  %2384 = vmatpush2.msra.mxu0 0.0
  %2385 = vmatprep.subr.mxu0 0.0
  %2386 = vmatpush2.msra.mxu0 0.0
  %2387 = vmatprep.subr.mxu0 0.0
  %2388 = vmatpush2.msra.mxu0 0.0
  %2389 = vmatprep.subr.mxu0 0.0
  %2390 = vmatpush2.msra.mxu0 0.0
  %2391 = vmatprep.subr.mxu0 0.0
  %2392 = vmatpush2.msra.mxu0 0.0
  %2393 = vmatprep.subr.mxu0 0.0
  %2394 = vmatpush2.msra.mxu0 0.0
  %2395 = vmatprep.subr.mxu0 0.0
  %2396 = vmatpush2.msra.mxu0 0.0
  %2397 = vmatprep.subr.mxu0 0.0
  %2398 = vmatpush2.msra.mxu0 0.0
  %2399 = vmatprep.subr.mxu0 0.0
  %2400 = vmatpush2.msra.mxu0 0.0
  %2401 = vmatprep.subr.mxu0 0.0
  %2402 = vmatpush2.msra.mxu0 0.0
  %2403 = vmatprep.subr.mxu0 0.0
  %2404 = vmatpush2.msra.mxu0 0.0
  %2405 = vmatprep.subr.mxu0 0.0
  %2406 = vmatpush2.msra.mxu0 0.0
  %2407 = vmatprep.subr.mxu0 0.0
  %2408 = vmatpush2.msra.mxu0 0.0
  %2409 = vmatprep.subr.mxu0 0.0
  %2410 = vmatpush2.msra.mxu0 0.0
  %2411 = vmatprep.mubr.f32.mxu0 0.0
  %2412 = vmatmul.mubr.f32.gmra.mxu0 %v2345
  %v2413 = vpop.f32.mrf.mxu0
  %v2414 = vadd.f32 0.0, %v2413
  %v2415 = vpop.f32.mrf.mxu0
  %2416 = vdwg.mxu0
  %v2417 = vld [vmem:[%s5 + $0x1d0] sm:$0xff]
  %v2418 = vld [vmem:[%s5 + $0x1e0] sm:$0xff]
  %v2419 = vld [vmem:[%s5 + $0x1f0] sm:$0xff]
  %v2420 = vld [vmem:[%s5 + $0x200] sm:$0xff]
  %v2421 = vld [vmem:[%s5 + $0x210] sm:$0xff]
  %v2422 = vld [vmem:[%s5 + $0x220] sm:$0xff]
  %v2423 = vld [vmem:[%s5 + $0x230] sm:$0xff]
  %v2424 = vld [vmem:[%s5 + $0x240] sm:$0xff]
  %v2425 = vld [vmem:[#allocation4] sm:$0xff]
  %v2426 = vld [vmem:[#allocation5] sm:$0xff]
  %2428 = vrot.lane.b32.xlu0 %v2426, 32
  %v2429 = vpop.permute.xlu0 %2428
  %v2431 = vsel %vm52, %v2425, %v2429
  %v2433 = vsel %vm2262, %v2431, 0
  %2435 = vmatprep.subr.mxu0 0.0
  %2436 = vmatpush1.msra.mxu0 0.0
  %2437 = vmatprep.subr.mxu0 0.0
  %2438 = vmatpush1.msra.mxu0 0.0
  %2439 = vmatprep.subr.mxu0 0.0
  %2440 = vmatpush1.msra.mxu0 0.0
  %2441 = vmatprep.subr.mxu0 0.0
  %2442 = vmatpush1.msra.mxu0 0.0
  %2443 = vmatprep.subr.mxu0 0.0
  %2444 = vmatpush1.msra.mxu0 0.0
  %2445 = vmatprep.subr.mxu0 0.0
  %2446 = vmatpush1.msra.mxu0 0.0
  %2447 = vmatprep.subr.mxu0 0.0
  %2448 = vmatpush1.msra.mxu0 0.0
  %2449 = vmatprep.subr.mxu0 0.0
  %2450 = vmatpush1.msra.mxu0 0.0
  %2451 = vmatprep.subr.mxu0 0.0
  %2452 = vmatpush1.msra.mxu0 %v2424
  %2453 = vmatprep.subr.mxu0 0.0
  %2454 = vmatpush1.msra.mxu0 %v2423
  %2455 = vmatprep.subr.mxu0 0.0
  %2456 = vmatpush1.msra.mxu0 %v2422
  %2457 = vmatprep.subr.mxu0 0.0
  %2458 = vmatpush1.msra.mxu0 %v2421
  %2459 = vmatprep.subr.mxu0 0.0
  %2460 = vmatpush1.msra.mxu0 %v2420
  %2461 = vmatprep.subr.mxu0 0.0
  %2462 = vmatpush1.msra.mxu0 %v2419
  %2463 = vmatprep.subr.mxu0 0.0
  %2464 = vmatpush1.msra.mxu0 %v2418
  %2465 = vmatprep.subr.mxu0 0.0
  %2466 = vmatpush1.msra.mxu0 %v2417
  %2467 = vmatprep.subr.mxu0 0.0
  %2468 = vmatpush2.msra.mxu0 0.0
  %2469 = vmatprep.subr.mxu0 0.0
  %2470 = vmatpush2.msra.mxu0 0.0
  %2471 = vmatprep.subr.mxu0 0.0
  %2472 = vmatpush2.msra.mxu0 0.0
  %2473 = vmatprep.subr.mxu0 0.0
  %2474 = vmatpush2.msra.mxu0 0.0
  %2475 = vmatprep.subr.mxu0 0.0
  %2476 = vmatpush2.msra.mxu0 0.0
  %2477 = vmatprep.subr.mxu0 0.0
  %2478 = vmatpush2.msra.mxu0 0.0
  %2479 = vmatprep.subr.mxu0 0.0
  %2480 = vmatpush2.msra.mxu0 0.0
  %2481 = vmatprep.subr.mxu0 0.0
  %2482 = vmatpush2.msra.mxu0 0.0
  %2483 = vmatprep.subr.mxu0 0.0
  %2484 = vmatpush2.msra.mxu0 0.0
  %2485 = vmatprep.subr.mxu0 0.0
  %2486 = vmatpush2.msra.mxu0 0.0
  %2487 = vmatprep.subr.mxu0 0.0
  %2488 = vmatpush2.msra.mxu0 0.0
  %2489 = vmatprep.subr.mxu0 0.0
  %2490 = vmatpush2.msra.mxu0 0.0
  %2491 = vmatprep.subr.mxu0 0.0
  %2492 = vmatpush2.msra.mxu0 0.0
  %2493 = vmatprep.subr.mxu0 0.0
  %2494 = vmatpush2.msra.mxu0 0.0
  %2495 = vmatprep.subr.mxu0 0.0
  %2496 = vmatpush2.msra.mxu0 0.0
  %2497 = vmatprep.subr.mxu0 0.0
  %2498 = vmatpush2.msra.mxu0 0.0
  %2499 = vmatprep.mubr.f32.mxu0 0.0
  %2500 = vmatmul.mubr.f32.gmra.mxu0 %v2433
  %v2501 = vpop.f32.mrf.mxu0
  %v2502 = vadd.f32 0.0, %v2501
  %v2503 = vpop.f32.mrf.mxu0
  %2504 = vdwg.mxu0
  %2505 = vst.msk [vmem:[#allocation6] sm:$0xff] %vm52, %v2502
  %v2506 = vld [vmem:[%s584] sm:$0xff]
  %v2507 = vld [vmem:[%s2120] sm:$0xff]
  %2509 = vrot.lane.b32.xlu0 %v2507, 32
  %v2510 = vpop.permute.xlu0 %2509
  %v2512 = vsel %vm52, %v2506, %v2510
  %v2514 = vsel %vm2262, %v2512, 0
  %2516 = vmatprep.subr.mxu0 0.0
  %2517 = vmatpush1.msra.mxu0 0.0
  %2518 = vmatprep.subr.mxu0 0.0
  %2519 = vmatpush1.msra.mxu0 0.0
  %2520 = vmatprep.subr.mxu0 0.0
  %2521 = vmatpush1.msra.mxu0 0.0
  %2522 = vmatprep.subr.mxu0 0.0
  %2523 = vmatpush1.msra.mxu0 0.0
  %2524 = vmatprep.subr.mxu0 0.0
  %2525 = vmatpush1.msra.mxu0 0.0
  %2526 = vmatprep.subr.mxu0 0.0
  %2527 = vmatpush1.msra.mxu0 0.0
  %2528 = vmatprep.subr.mxu0 0.0
  %2529 = vmatpush1.msra.mxu0 0.0
  %2530 = vmatprep.subr.mxu0 0.0
  %2531 = vmatpush1.msra.mxu0 0.0
  %2532 = vmatprep.subr.mxu0 0.0
  %2533 = vmatpush1.msra.mxu0 %v2424
  %2534 = vmatprep.subr.mxu0 0.0
  %2535 = vmatpush1.msra.mxu0 %v2423
  %2536 = vmatprep.subr.mxu0 0.0
  %2537 = vmatpush1.msra.mxu0 %v2422
  %2538 = vmatprep.subr.mxu0 0.0
  %2539 = vmatpush1.msra.mxu0 %v2421
  %2540 = vmatprep.subr.mxu0 0.0
  %2541 = vmatpush1.msra.mxu0 %v2420
  %2542 = vmatprep.subr.mxu0 0.0
  %2543 = vmatpush1.msra.mxu0 %v2419
  %2544 = vmatprep.subr.mxu0 0.0
  %2545 = vmatpush1.msra.mxu0 %v2418
  %2546 = vmatprep.subr.mxu0 0.0
  %2547 = vmatpush1.msra.mxu0 %v2417
  %2548 = vmatprep.subr.mxu0 0.0
  %2549 = vmatpush2.msra.mxu0 0.0
  %2550 = vmatprep.subr.mxu0 0.0
  %2551 = vmatpush2.msra.mxu0 0.0
  %2552 = vmatprep.subr.mxu0 0.0
  %2553 = vmatpush2.msra.mxu0 0.0
  %2554 = vmatprep.subr.mxu0 0.0
  %2555 = vmatpush2.msra.mxu0 0.0
  %2556 = vmatprep.subr.mxu0 0.0
  %2557 = vmatpush2.msra.mxu0 0.0
  %2558 = vmatprep.subr.mxu0 0.0
  %2559 = vmatpush2.msra.mxu0 0.0
  %2560 = vmatprep.subr.mxu0 0.0
  %2561 = vmatpush2.msra.mxu0 0.0
  %2562 = vmatprep.subr.mxu0 0.0
  %2563 = vmatpush2.msra.mxu0 0.0
  %2564 = vmatprep.subr.mxu0 0.0
  %2565 = vmatpush2.msra.mxu0 0.0
  %2566 = vmatprep.subr.mxu0 0.0
  %2567 = vmatpush2.msra.mxu0 0.0
  %2568 = vmatprep.subr.mxu0 0.0
  %2569 = vmatpush2.msra.mxu0 0.0
  %2570 = vmatprep.subr.mxu0 0.0
  %2571 = vmatpush2.msra.mxu0 0.0
  %2572 = vmatprep.subr.mxu0 0.0
  %2573 = vmatpush2.msra.mxu0 0.0
  %2574 = vmatprep.subr.mxu0 0.0
  %2575 = vmatpush2.msra.mxu0 0.0
  %2576 = vmatprep.subr.mxu0 0.0
  %2577 = vmatpush2.msra.mxu0 0.0
  %2578 = vmatprep.subr.mxu0 0.0
  %2579 = vmatpush2.msra.mxu0 0.0
  %2580 = vmatprep.mubr.f32.mxu0 0.0
  %2581 = vmatmul.mubr.f32.gmra.mxu0 %v2514
  %v2582 = vpop.f32.mrf.mxu0
  %v2583 = vadd.f32 0.0, %v2582
  %v2584 = vpop.f32.mrf.mxu0
  %2585 = vdwg.mxu0
  %s2586 = scalar_lea.vmem [#allocation6], 8
  %2587 = vst.msk [vmem:[%s2586] sm:$0xff] %vm52, %v2583
  %v2588 = vld [vmem:[%s705] sm:$0xff]
  %v2589 = vld [vmem:[%s2003] sm:$0xff]
  %2591 = vrot.lane.b32.xlu0 %v2589, 32
  %v2592 = vpop.permute.xlu0 %2591
  %v2594 = vsel %vm52, %v2588, %v2592
  %v2596 = vsel %vm2262, %v2594, 0
  %2598 = vmatprep.subr.mxu0 0.0
  %2599 = vmatpush1.msra.mxu0 0.0
  %2600 = vmatprep.subr.mxu0 0.0
  %2601 = vmatpush1.msra.mxu0 0.0
  %2602 = vmatprep.subr.mxu0 0.0
  %2603 = vmatpush1.msra.mxu0 0.0
  %2604 = vmatprep.subr.mxu0 0.0
  %2605 = vmatpush1.msra.mxu0 0.0
  %2606 = vmatprep.subr.mxu0 0.0
  %2607 = vmatpush1.msra.mxu0 0.0
  %2608 = vmatprep.subr.mxu0 0.0
  %2609 = vmatpush1.msra.mxu0 0.0
  %2610 = vmatprep.subr.mxu0 0.0
  %2611 = vmatpush1.msra.mxu0 0.0
  %2612 = vmatprep.subr.mxu0 0.0
  %2613 = vmatpush1.msra.mxu0 0.0
  %2614 = vmatprep.subr.mxu0 0.0
  %2615 = vmatpush1.msra.mxu0 %v2424
  %2616 = vmatprep.subr.mxu0 0.0
  %2617 = vmatpush1.msra.mxu0 %v2423
  %2618 = vmatprep.subr.mxu0 0.0
  %2619 = vmatpush1.msra.mxu0 %v2422
  %2620 = vmatprep.subr.mxu0 0.0
  %2621 = vmatpush1.msra.mxu0 %v2421
  %2622 = vmatprep.subr.mxu0 0.0
  %2623 = vmatpush1.msra.mxu0 %v2420
  %2624 = vmatprep.subr.mxu0 0.0
  %2625 = vmatpush1.msra.mxu0 %v2419
  %2626 = vmatprep.subr.mxu0 0.0
  %2627 = vmatpush1.msra.mxu0 %v2418
  %2628 = vmatprep.subr.mxu0 0.0
  %2629 = vmatpush1.msra.mxu0 %v2417
  %2630 = vmatprep.subr.mxu0 0.0
  %2631 = vmatpush2.msra.mxu0 0.0
  %2632 = vmatprep.subr.mxu0 0.0
  %2633 = vmatpush2.msra.mxu0 0.0
  %2634 = vmatprep.subr.mxu0 0.0
  %2635 = vmatpush2.msra.mxu0 0.0
  %2636 = vmatprep.subr.mxu0 0.0
  %2637 = vmatpush2.msra.mxu0 0.0
  %2638 = vmatprep.subr.mxu0 0.0
  %2639 = vmatpush2.msra.mxu0 0.0
  %2640 = vmatprep.subr.mxu0 0.0
  %2641 = vmatpush2.msra.mxu0 0.0
  %2642 = vmatprep.subr.mxu0 0.0
  %2643 = vmatpush2.msra.mxu0 0.0
  %2644 = vmatprep.subr.mxu0 0.0
  %2645 = vmatpush2.msra.mxu0 0.0
  %2646 = vmatprep.subr.mxu0 0.0
  %2647 = vmatpush2.msra.mxu0 0.0
  %2648 = vmatprep.subr.mxu0 0.0
  %2649 = vmatpush2.msra.mxu0 0.0
  %2650 = vmatprep.subr.mxu0 0.0
  %2651 = vmatpush2.msra.mxu0 0.0
  %2652 = vmatprep.subr.mxu0 0.0
  %2653 = vmatpush2.msra.mxu0 0.0
  %2654 = vmatprep.subr.mxu0 0.0
  %2655 = vmatpush2.msra.mxu0 0.0
  %2656 = vmatprep.subr.mxu0 0.0
  %2657 = vmatpush2.msra.mxu0 0.0
  %2658 = vmatprep.subr.mxu0 0.0
  %2659 = vmatpush2.msra.mxu0 0.0
  %2660 = vmatprep.subr.mxu0 0.0
  %2661 = vmatpush2.msra.mxu0 0.0
  %2662 = vmatprep.mubr.f32.mxu0 0.0
  %2663 = vmatmul.mubr.f32.gmra.mxu0 %v2596
  %v2664 = vpop.f32.mrf.mxu0
  %v2665 = vadd.f32 0.0, %v2664
  %v2666 = vpop.f32.mrf.mxu0
  %2667 = vdwg.mxu0
  %s2668 = scalar_lea.vmem [#allocation6], 16
  %2669 = vst.msk [vmem:[%s2668] sm:$0xff] %vm52, %v2665
  %v2670 = vld [vmem:[%s826] sm:$0xff]
  %v2671 = vld [vmem:[%s1886] sm:$0xff]
  %2673 = vrot.lane.b32.xlu0 %v2671, 32
  %v2674 = vpop.permute.xlu0 %2673
  %v2676 = vsel %vm52, %v2670, %v2674
  %v2678 = vsel %vm2262, %v2676, 0
  %2680 = vmatprep.subr.mxu0 0.0
  %2681 = vmatpush1.msra.mxu0 0.0
  %2682 = vmatprep.subr.mxu0 0.0
  %2683 = vmatpush1.msra.mxu0 0.0
  %2684 = vmatprep.subr.mxu0 0.0
  %2685 = vmatpush1.msra.mxu0 0.0
  %2686 = vmatprep.subr.mxu0 0.0
  %2687 = vmatpush1.msra.mxu0 0.0
  %2688 = vmatprep.subr.mxu0 0.0
  %2689 = vmatpush1.msra.mxu0 0.0
  %2690 = vmatprep.subr.mxu0 0.0
  %2691 = vmatpush1.msra.mxu0 0.0
  %2692 = vmatprep.subr.mxu0 0.0
  %2693 = vmatpush1.msra.mxu0 0.0
  %2694 = vmatprep.subr.mxu0 0.0
  %2695 = vmatpush1.msra.mxu0 0.0
  %2696 = vmatprep.subr.mxu0 0.0
  %2697 = vmatpush1.msra.mxu0 %v2424
  %2698 = vmatprep.subr.mxu0 0.0
  %2699 = vmatpush1.msra.mxu0 %v2423
  %2700 = vmatprep.subr.mxu0 0.0
  %2701 = vmatpush1.msra.mxu0 %v2422
  %2702 = vmatprep.subr.mxu0 0.0
  %2703 = vmatpush1.msra.mxu0 %v2421
  %2704 = vmatprep.subr.mxu0 0.0
  %2705 = vmatpush1.msra.mxu0 %v2420
  %2706 = vmatprep.subr.mxu0 0.0
  %2707 = vmatpush1.msra.mxu0 %v2419
  %2708 = vmatprep.subr.mxu0 0.0
  %2709 = vmatpush1.msra.mxu0 %v2418
  %2710 = vmatprep.subr.mxu0 0.0
  %2711 = vmatpush1.msra.mxu0 %v2417
  %2712 = vmatprep.subr.mxu0 0.0
  %2713 = vmatpush2.msra.mxu0 0.0
  %2714 = vmatprep.subr.mxu0 0.0
  %2715 = vmatpush2.msra.mxu0 0.0
  %2716 = vmatprep.subr.mxu0 0.0
  %2717 = vmatpush2.msra.mxu0 0.0
  %2718 = vmatprep.subr.mxu0 0.0
  %2719 = vmatpush2.msra.mxu0 0.0
  %2720 = vmatprep.subr.mxu0 0.0
  %2721 = vmatpush2.msra.mxu0 0.0
  %2722 = vmatprep.subr.mxu0 0.0
  %2723 = vmatpush2.msra.mxu0 0.0
  %2724 = vmatprep.subr.mxu0 0.0
  %2725 = vmatpush2.msra.mxu0 0.0
  %2726 = vmatprep.subr.mxu0 0.0
  %2727 = vmatpush2.msra.mxu0 0.0
  %2728 = vmatprep.subr.mxu0 0.0
  %2729 = vmatpush2.msra.mxu0 0.0
  %2730 = vmatprep.subr.mxu0 0.0
  %2731 = vmatpush2.msra.mxu0 0.0
  %2732 = vmatprep.subr.mxu0 0.0
  %2733 = vmatpush2.msra.mxu0 0.0
  %2734 = vmatprep.subr.mxu0 0.0
  %2735 = vmatpush2.msra.mxu0 0.0
  %2736 = vmatprep.subr.mxu0 0.0
  %2737 = vmatpush2.msra.mxu0 0.0
  %2738 = vmatprep.subr.mxu0 0.0
  %2739 = vmatpush2.msra.mxu0 0.0
  %2740 = vmatprep.subr.mxu0 0.0
  %2741 = vmatpush2.msra.mxu0 0.0
  %2742 = vmatprep.subr.mxu0 0.0
  %2743 = vmatpush2.msra.mxu0 0.0
  %2744 = vmatprep.mubr.f32.mxu0 0.0
  %2745 = vmatmul.mubr.f32.gmra.mxu0 %v2678
  %v2746 = vpop.f32.mrf.mxu0
  %v2747 = vadd.f32 0.0, %v2746
  %v2748 = vpop.f32.mrf.mxu0
  %2749 = vdwg.mxu0
  %s2750 = scalar_lea.vmem [#allocation6], 24
  %2751 = vst.msk [vmem:[%s2750] sm:$0xff] %vm52, %v2747
  %v2752 = vld [vmem:[%s947] sm:$0xff]
  %v2753 = vld [vmem:[%s1769] sm:$0xff]
  %2755 = vrot.lane.b32.xlu0 %v2753, 32
  %v2756 = vpop.permute.xlu0 %2755
  %v2758 = vsel %vm52, %v2752, %v2756
  %v2760 = vsel %vm2262, %v2758, 0
  %2762 = vmatprep.subr.mxu0 0.0
  %2763 = vmatpush1.msra.mxu0 0.0
  %2764 = vmatprep.subr.mxu0 0.0
  %2765 = vmatpush1.msra.mxu0 0.0
  %2766 = vmatprep.subr.mxu0 0.0
  %2767 = vmatpush1.msra.mxu0 0.0
  %2768 = vmatprep.subr.mxu0 0.0
  %2769 = vmatpush1.msra.mxu0 0.0
  %2770 = vmatprep.subr.mxu0 0.0
  %2771 = vmatpush1.msra.mxu0 0.0
  %2772 = vmatprep.subr.mxu0 0.0
  %2773 = vmatpush1.msra.mxu0 0.0
  %2774 = vmatprep.subr.mxu0 0.0
  %2775 = vmatpush1.msra.mxu0 0.0
  %2776 = vmatprep.subr.mxu0 0.0
  %2777 = vmatpush1.msra.mxu0 0.0
  %2778 = vmatprep.subr.mxu0 0.0
  %2779 = vmatpush1.msra.mxu0 %v2424
  %2780 = vmatprep.subr.mxu0 0.0
  %2781 = vmatpush1.msra.mxu0 %v2423
  %2782 = vmatprep.subr.mxu0 0.0
  %2783 = vmatpush1.msra.mxu0 %v2422
  %2784 = vmatprep.subr.mxu0 0.0
  %2785 = vmatpush1.msra.mxu0 %v2421
  %2786 = vmatprep.subr.mxu0 0.0
  %2787 = vmatpush1.msra.mxu0 %v2420
  %2788 = vmatprep.subr.mxu0 0.0
  %2789 = vmatpush1.msra.mxu0 %v2419
  %2790 = vmatprep.subr.mxu0 0.0
  %2791 = vmatpush1.msra.mxu0 %v2418
  %2792 = vmatprep.subr.mxu0 0.0
  %2793 = vmatpush1.msra.mxu0 %v2417
  %2794 = vmatprep.subr.mxu0 0.0
  %2795 = vmatpush2.msra.mxu0 0.0
  %2796 = vmatprep.subr.mxu0 0.0
  %2797 = vmatpush2.msra.mxu0 0.0
  %2798 = vmatprep.subr.mxu0 0.0
  %2799 = vmatpush2.msra.mxu0 0.0
  %2800 = vmatprep.subr.mxu0 0.0
  %2801 = vmatpush2.msra.mxu0 0.0
  %2802 = vmatprep.subr.mxu0 0.0
  %2803 = vmatpush2.msra.mxu0 0.0
  %2804 = vmatprep.subr.mxu0 0.0
  %2805 = vmatpush2.msra.mxu0 0.0
  %2806 = vmatprep.subr.mxu0 0.0
  %2807 = vmatpush2.msra.mxu0 0.0
  %2808 = vmatprep.subr.mxu0 0.0
  %2809 = vmatpush2.msra.mxu0 0.0
  %2810 = vmatprep.subr.mxu0 0.0
  %2811 = vmatpush2.msra.mxu0 0.0
  %2812 = vmatprep.subr.mxu0 0.0
  %2813 = vmatpush2.msra.mxu0 0.0
  %2814 = vmatprep.subr.mxu0 0.0
  %2815 = vmatpush2.msra.mxu0 0.0
  %2816 = vmatprep.subr.mxu0 0.0
  %2817 = vmatpush2.msra.mxu0 0.0
  %2818 = vmatprep.subr.mxu0 0.0
  %2819 = vmatpush2.msra.mxu0 0.0
  %2820 = vmatprep.subr.mxu0 0.0
  %2821 = vmatpush2.msra.mxu0 0.0
  %2822 = vmatprep.subr.mxu0 0.0
  %2823 = vmatpush2.msra.mxu0 0.0
  %2824 = vmatprep.subr.mxu0 0.0
  %2825 = vmatpush2.msra.mxu0 0.0
  %2826 = vmatprep.mubr.f32.mxu0 0.0
  %2827 = vmatmul.mubr.f32.gmra.mxu0 %v2760
  %v2828 = vpop.f32.mrf.mxu0
  %v2829 = vadd.f32 0.0, %v2828
  %v2830 = vpop.f32.mrf.mxu0
  %2831 = vdwg.mxu0
  %s2832 = scalar_lea.vmem [#allocation6], 32
  %2833 = vst.msk [vmem:[%s2832] sm:$0xff] %vm52, %v2829
  %v2834 = vld [vmem:[%s1068] sm:$0xff]
  %v2835 = vld [vmem:[%s1652] sm:$0xff]
  %2837 = vrot.lane.b32.xlu0 %v2835, 32
  %v2838 = vpop.permute.xlu0 %2837
  %v2840 = vsel %vm52, %v2834, %v2838
  %v2842 = vsel %vm2262, %v2840, 0
  %2844 = vmatprep.subr.mxu0 0.0
  %2845 = vmatpush1.msra.mxu0 0.0
  %2846 = vmatprep.subr.mxu0 0.0
  %2847 = vmatpush1.msra.mxu0 0.0
  %2848 = vmatprep.subr.mxu0 0.0
  %2849 = vmatpush1.msra.mxu0 0.0
  %2850 = vmatprep.subr.mxu0 0.0
  %2851 = vmatpush1.msra.mxu0 0.0
  %2852 = vmatprep.subr.mxu0 0.0
  %2853 = vmatpush1.msra.mxu0 0.0
  %2854 = vmatprep.subr.mxu0 0.0
  %2855 = vmatpush1.msra.mxu0 0.0
  %2856 = vmatprep.subr.mxu0 0.0
  %2857 = vmatpush1.msra.mxu0 0.0
  %2858 = vmatprep.subr.mxu0 0.0
  %2859 = vmatpush1.msra.mxu0 0.0
  %2860 = vmatprep.subr.mxu0 0.0
  %2861 = vmatpush1.msra.mxu0 %v2424
  %2862 = vmatprep.subr.mxu0 0.0
  %2863 = vmatpush1.msra.mxu0 %v2423
  %2864 = vmatprep.subr.mxu0 0.0
  %2865 = vmatpush1.msra.mxu0 %v2422
  %2866 = vmatprep.subr.mxu0 0.0
  %2867 = vmatpush1.msra.mxu0 %v2421
  %2868 = vmatprep.subr.mxu0 0.0
  %2869 = vmatpush1.msra.mxu0 %v2420
  %2870 = vmatprep.subr.mxu0 0.0
  %2871 = vmatpush1.msra.mxu0 %v2419
  %2872 = vmatprep.subr.mxu0 0.0
  %2873 = vmatpush1.msra.mxu0 %v2418
  %2874 = vmatprep.subr.mxu0 0.0
  %2875 = vmatpush1.msra.mxu0 %v2417
  %2876 = vmatprep.subr.mxu0 0.0
  %2877 = vmatpush2.msra.mxu0 0.0
  %2878 = vmatprep.subr.mxu0 0.0
  %2879 = vmatpush2.msra.mxu0 0.0
  %2880 = vmatprep.subr.mxu0 0.0
  %2881 = vmatpush2.msra.mxu0 0.0
  %2882 = vmatprep.subr.mxu0 0.0
  %2883 = vmatpush2.msra.mxu0 0.0
  %2884 = vmatprep.subr.mxu0 0.0
  %2885 = vmatpush2.msra.mxu0 0.0
  %2886 = vmatprep.subr.mxu0 0.0
  %2887 = vmatpush2.msra.mxu0 0.0
  %2888 = vmatprep.subr.mxu0 0.0
  %2889 = vmatpush2.msra.mxu0 0.0
  %2890 = vmatprep.subr.mxu0 0.0
  %2891 = vmatpush2.msra.mxu0 0.0
  %2892 = vmatprep.subr.mxu0 0.0
  %2893 = vmatpush2.msra.mxu0 0.0
  %2894 = vmatprep.subr.mxu0 0.0
  %2895 = vmatpush2.msra.mxu0 0.0
  %2896 = vmatprep.subr.mxu0 0.0
  %2897 = vmatpush2.msra.mxu0 0.0
  %2898 = vmatprep.subr.mxu0 0.0
  %2899 = vmatpush2.msra.mxu0 0.0
  %2900 = vmatprep.subr.mxu0 0.0
  %2901 = vmatpush2.msra.mxu0 0.0
  %2902 = vmatprep.subr.mxu0 0.0
  %2903 = vmatpush2.msra.mxu0 0.0
  %2904 = vmatprep.subr.mxu0 0.0
  %2905 = vmatpush2.msra.mxu0 0.0
  %2906 = vmatprep.subr.mxu0 0.0
  %2907 = vmatpush2.msra.mxu0 0.0
  %2908 = vmatprep.mubr.f32.mxu0 0.0
  %2909 = vmatmul.mubr.f32.gmra.mxu0 %v2842
  %v2910 = vpop.f32.mrf.mxu0
  %v2911 = vadd.f32 0.0, %v2910
  %v2912 = vpop.f32.mrf.mxu0
  %2913 = vdwg.mxu0
  %s2914 = scalar_lea.vmem [#allocation6], 40
  %2915 = vst.msk [vmem:[%s2914] sm:$0xff] %vm52, %v2911
  %v2916 = vld [vmem:[%s1189] sm:$0xff]
  %v2917 = vld [vmem:[%s1535] sm:$0xff]
  %2919 = vrot.lane.b32.xlu0 %v2917, 32
  %v2920 = vpop.permute.xlu0 %2919
  %v2922 = vsel %vm52, %v2916, %v2920
  %v2924 = vsel %vm2262, %v2922, 0
  %2926 = vmatprep.subr.mxu0 0.0
  %2927 = vmatpush1.msra.mxu0 0.0
  %2928 = vmatprep.subr.mxu0 0.0
  %2929 = vmatpush1.msra.mxu0 0.0
  %2930 = vmatprep.subr.mxu0 0.0
  %2931 = vmatpush1.msra.mxu0 0.0
  %2932 = vmatprep.subr.mxu0 0.0
  %2933 = vmatpush1.msra.mxu0 0.0
  %2934 = vmatprep.subr.mxu0 0.0
  %2935 = vmatpush1.msra.mxu0 0.0
  %2936 = vmatprep.subr.mxu0 0.0
  %2937 = vmatpush1.msra.mxu0 0.0
  %2938 = vmatprep.subr.mxu0 0.0
  %2939 = vmatpush1.msra.mxu0 0.0
  %2940 = vmatprep.subr.mxu0 0.0
  %2941 = vmatpush1.msra.mxu0 0.0
  %2942 = vmatprep.subr.mxu0 0.0
  %2943 = vmatpush1.msra.mxu0 %v2424
  %2944 = vmatprep.subr.mxu0 0.0
  %2945 = vmatpush1.msra.mxu0 %v2423
  %2946 = vmatprep.subr.mxu0 0.0
  %2947 = vmatpush1.msra.mxu0 %v2422
  %2948 = vmatprep.subr.mxu0 0.0
  %2949 = vmatpush1.msra.mxu0 %v2421
  %2950 = vmatprep.subr.mxu0 0.0
  %2951 = vmatpush1.msra.mxu0 %v2420
  %2952 = vmatprep.subr.mxu0 0.0
  %2953 = vmatpush1.msra.mxu0 %v2419
  %2954 = vmatprep.subr.mxu0 0.0
  %2955 = vmatpush1.msra.mxu0 %v2418
  %2956 = vmatprep.subr.mxu0 0.0
  %2957 = vmatpush1.msra.mxu0 %v2417
  %2958 = vmatprep.subr.mxu0 0.0
  %2959 = vmatpush2.msra.mxu0 0.0
  %2960 = vmatprep.subr.mxu0 0.0
  %2961 = vmatpush2.msra.mxu0 0.0
  %2962 = vmatprep.subr.mxu0 0.0
  %2963 = vmatpush2.msra.mxu0 0.0
  %2964 = vmatprep.subr.mxu0 0.0
  %2965 = vmatpush2.msra.mxu0 0.0
  %2966 = vmatprep.subr.mxu0 0.0
  %2967 = vmatpush2.msra.mxu0 0.0
  %2968 = vmatprep.subr.mxu0 0.0
  %2969 = vmatpush2.msra.mxu0 0.0
  %2970 = vmatprep.subr.mxu0 0.0
  %2971 = vmatpush2.msra.mxu0 0.0
  %2972 = vmatprep.subr.mxu0 0.0
  %2973 = vmatpush2.msra.mxu0 0.0
  %2974 = vmatprep.subr.mxu0 0.0
  %2975 = vmatpush2.msra.mxu0 0.0
  %2976 = vmatprep.subr.mxu0 0.0
  %2977 = vmatpush2.msra.mxu0 0.0
  %2978 = vmatprep.subr.mxu0 0.0
  %2979 = vmatpush2.msra.mxu0 0.0
  %2980 = vmatprep.subr.mxu0 0.0
  %2981 = vmatpush2.msra.mxu0 0.0
  %2982 = vmatprep.subr.mxu0 0.0
  %2983 = vmatpush2.msra.mxu0 0.0
  %2984 = vmatprep.subr.mxu0 0.0
  %2985 = vmatpush2.msra.mxu0 0.0
  %2986 = vmatprep.subr.mxu0 0.0
  %2987 = vmatpush2.msra.mxu0 0.0
  %2988 = vmatprep.subr.mxu0 0.0
  %2989 = vmatpush2.msra.mxu0 0.0
  %2990 = vmatprep.mubr.f32.mxu0 0.0
  %2991 = vmatmul.mubr.f32.gmra.mxu0 %v2924
  %v2992 = vpop.f32.mrf.mxu0
  %v2993 = vadd.f32 0.0, %v2992
  %v2994 = vpop.f32.mrf.mxu0
  %2995 = vdwg.mxu0
  %s2996 = scalar_lea.vmem [#allocation6], 48
  %2997 = vst.msk [vmem:[%s2996] sm:$0xff] %vm52, %v2993
  %v2998 = vld [vmem:[%s1310] sm:$0xff]
  %v2999 = vld [vmem:[%s1422] sm:$0xff]
  %3001 = vrot.lane.b32.xlu0 %v2999, 32
  %v3002 = vpop.permute.xlu0 %3001
  %v3004 = vsel %vm52, %v2998, %v3002
  %v3006 = vsel %vm2262, %v3004, 0
  %3008 = vmatprep.subr.mxu0 0.0
  %3009 = vmatpush1.msra.mxu0 0.0
  %3010 = vmatprep.subr.mxu0 0.0
  %3011 = vmatpush1.msra.mxu0 0.0
  %3012 = vmatprep.subr.mxu0 0.0
  %3013 = vmatpush1.msra.mxu0 0.0
  %3014 = vmatprep.subr.mxu0 0.0
  %3015 = vmatpush1.msra.mxu0 0.0
  %3016 = vmatprep.subr.mxu0 0.0
  %3017 = vmatpush1.msra.mxu0 0.0
  %3018 = vmatprep.subr.mxu0 0.0
  %3019 = vmatpush1.msra.mxu0 0.0
  %3020 = vmatprep.subr.mxu0 0.0
  %3021 = vmatpush1.msra.mxu0 0.0
  %3022 = vmatprep.subr.mxu0 0.0
  %3023 = vmatpush1.msra.mxu0 0.0
  %3024 = vmatprep.subr.mxu0 0.0
  %3025 = vmatpush1.msra.mxu0 %v2424
  %3026 = vmatprep.subr.mxu0 0.0
  %3027 = vmatpush1.msra.mxu0 %v2423
  %3028 = vmatprep.subr.mxu0 0.0
  %3029 = vmatpush1.msra.mxu0 %v2422
  %3030 = vmatprep.subr.mxu0 0.0
  %3031 = vmatpush1.msra.mxu0 %v2421
  %3032 = vmatprep.subr.mxu0 0.0
  %3033 = vmatpush1.msra.mxu0 %v2420
  %3034 = vmatprep.subr.mxu0 0.0
  %3035 = vmatpush1.msra.mxu0 %v2419
  %3036 = vmatprep.subr.mxu0 0.0
  %3037 = vmatpush1.msra.mxu0 %v2418
  %3038 = vmatprep.subr.mxu0 0.0
  %3039 = vmatpush1.msra.mxu0 %v2417
  %3040 = vmatprep.subr.mxu0 0.0
  %3041 = vmatpush2.msra.mxu0 0.0
  %3042 = vmatprep.subr.mxu0 0.0
  %3043 = vmatpush2.msra.mxu0 0.0
  %3044 = vmatprep.subr.mxu0 0.0
  %3045 = vmatpush2.msra.mxu0 0.0
  %3046 = vmatprep.subr.mxu0 0.0
  %3047 = vmatpush2.msra.mxu0 0.0
  %3048 = vmatprep.subr.mxu0 0.0
  %3049 = vmatpush2.msra.mxu0 0.0
  %3050 = vmatprep.subr.mxu0 0.0
  %3051 = vmatpush2.msra.mxu0 0.0
  %3052 = vmatprep.subr.mxu0 0.0
  %3053 = vmatpush2.msra.mxu0 0.0
  %3054 = vmatprep.subr.mxu0 0.0
  %3055 = vmatpush2.msra.mxu0 0.0
  %3056 = vmatprep.subr.mxu0 0.0
  %3057 = vmatpush2.msra.mxu0 0.0
  %3058 = vmatprep.subr.mxu0 0.0
  %3059 = vmatpush2.msra.mxu0 0.0
  %3060 = vmatprep.subr.mxu0 0.0
  %3061 = vmatpush2.msra.mxu0 0.0
  %3062 = vmatprep.subr.mxu0 0.0
  %3063 = vmatpush2.msra.mxu0 0.0
  %3064 = vmatprep.subr.mxu0 0.0
  %3065 = vmatpush2.msra.mxu0 0.0
  %3066 = vmatprep.subr.mxu0 0.0
  %3067 = vmatpush2.msra.mxu0 0.0
  %3068 = vmatprep.subr.mxu0 0.0
  %3069 = vmatpush2.msra.mxu0 0.0
  %3070 = vmatprep.subr.mxu0 0.0
  %3071 = vmatpush2.msra.mxu0 0.0
  %3072 = vmatprep.mubr.f32.mxu0 0.0
  %3073 = vmatmul.mubr.f32.gmra.mxu0 %v3006
  %v3074 = vpop.f32.mrf.mxu0
  %v3075 = vadd.f32 0.0, %v3074
  %v3076 = vpop.f32.mrf.mxu0
  %3077 = vdwg.mxu0
  %s3078 = scalar_lea.vmem [#allocation6], 56
  %3079 = vst.msk [vmem:[%s3078] sm:$0xff] %vm52, %v3075
  %v3080 = vld [vmem:[#allocation4] sm:$0xff]
  %v3081 = vld [vmem:[#allocation4 + $0x8] sm:$0xff]
  %v3082 = vld [vmem:[#allocation4 + $0x10] sm:$0xff]
  %v3083 = vld [vmem:[#allocation4 + $0x18] sm:$0xff]
  %v3084 = vld [vmem:[#allocation4 + $0x20] sm:$0xff]
  %v3085 = vld [vmem:[#allocation4 + $0x28] sm:$0xff]
  %v3086 = vld [vmem:[#allocation4 + $0x30] sm:$0xff]
  %v3087 = vld [vmem:[#allocation4 + $0x38] sm:$0xff]
  %v3088 = vld [vmem:[#allocation5] sm:$0xff]
  %v3089 = vld [vmem:[#allocation5 + $0x8] sm:$0xff]
  %v3090 = vld [vmem:[#allocation5 + $0x10] sm:$0xff]
  %v3091 = vld [vmem:[#allocation5 + $0x18] sm:$0xff]
  %v3092 = vld [vmem:[#allocation5 + $0x20] sm:$0xff]
  %v3093 = vld [vmem:[#allocation5 + $0x28] sm:$0xff]
  %v3094 = vld [vmem:[#allocation5 + $0x30] sm:$0xff]
  %v3095 = vld [vmem:[#allocation5 + $0x38] sm:$0xff]
  %v3096 = vld [vmem:[#allocation6] sm:$0xff]
  %v3097 = vld [vmem:[#allocation6 + $0x8] sm:$0xff]
  %v3098 = vld [vmem:[#allocation6 + $0x10] sm:$0xff]
  %v3099 = vld [vmem:[#allocation6 + $0x18] sm:$0xff]
  %v3100 = vld [vmem:[#allocation6 + $0x20] sm:$0xff]
  %v3101 = vld [vmem:[#allocation6 + $0x28] sm:$0xff]
  %v3102 = vld [vmem:[#allocation6 + $0x30] sm:$0xff]
  %v3103 = vld [vmem:[#allocation6 + $0x38] sm:$0xff]
  %v3104 = vld [vmem:[%s1] sm:$0xff]
  %v3105 = vld [vmem:[%s1 + $0x8] sm:$0xff]
  %v3106 = vld [vmem:[%s1 + $0x10] sm:$0xff]
  %v3107 = vld [vmem:[%s1 + $0x18] sm:$0xff]
  %v3108 = vld [vmem:[%s1 + $0x20] sm:$0xff]
  %v3109 = vld [vmem:[%s1 + $0x28] sm:$0xff]
  %v3110 = vld [vmem:[%s1 + $0x30] sm:$0xff]
  %v3111 = vld [vmem:[%s1 + $0x38] sm:$0xff]
  %vm3112 = vcmp.gt.f32.partialorder %v3104, 0.5
  %vm3113 = vcmp.gt.f32.partialorder %v3105, 0.5
  %vm3114 = vcmp.gt.f32.partialorder %v3106, 0.5
  %vm3115 = vcmp.gt.f32.partialorder %v3107, 0.5
  %vm3116 = vcmp.gt.f32.partialorder %v3108, 0.5
  %vm3117 = vcmp.gt.f32.partialorder %v3109, 0.5
  %vm3118 = vcmp.gt.f32.partialorder %v3110, 0.5
  %vm3119 = vcmp.gt.f32.partialorder %v3111, 0.5
  %v3120 = vsel %vm3112, 0.0, -1e+30
  %v3121 = vsel %vm3113, 0.0, -1e+30
  %v3122 = vsel %vm3114, 0.0, -1e+30
  %v3123 = vsel %vm3115, 0.0, -1e+30
  %v3124 = vsel %vm3116, 0.0, -1e+30
  %v3125 = vsel %vm3117, 0.0, -1e+30
  %v3126 = vsel %vm3118, 0.0, -1e+30
  %v3127 = vsel %vm3119, 0.0, -1e+30
  %v3128 = vld [vmem:[%s5 + $0x2a0] sm:$0xff]
  %v3129 = vld [vmem:[%s5 + $0x2b0] sm:$0xff]
  %v3130 = vld [vmem:[%s5 + $0x2c0] sm:$0xff]
  %v3131 = vld [vmem:[%s5 + $0x2d0] sm:$0xff]
  %v3132 = vld [vmem:[%s5 + $0x2e0] sm:$0xff]
  %v3133 = vld [vmem:[%s5 + $0x2f0] sm:$0xff]
  %v3134 = vld [vmem:[%s5 + $0x300] sm:$0xff]
  %v3135 = vld [vmem:[%s5 + $0x310] sm:$0xff]
  %v3136 = vld [vmem:[%s5 + $0x320] sm:$0xff]
  %v3137 = vld [vmem:[%s5 + $0x330] sm:$0xff]
  %v3138 = vld [vmem:[%s5 + $0x340] sm:$0xff]
  %v3139 = vld [vmem:[%s5 + $0x350] sm:$0xff]
  %v3140 = vld [vmem:[%s5 + $0x360] sm:$0xff]
  %v3141 = vld [vmem:[%s5 + $0x370] sm:$0xff]
  %v3142 = vld [vmem:[%s5 + $0x380] sm:$0xff]
  %v3143 = vld [vmem:[%s5 + $0x390] sm:$0xff]
  %v3144 = vld [vmem:[%s5 + $0x3a0] sm:$0xff]
  %v3145 = vld [vmem:[%s5 + $0x3b0] sm:$0xff]
  %v3146 = vld [vmem:[%s5 + $0x3c0] sm:$0xff]
  %v3147 = vld [vmem:[%s5 + $0x3d0] sm:$0xff]
  %3149 = vrot.lane.b32.xlu0 %v2333, 32
  %v3150 = vpop.permute.xlu0 %3149
  %v3152 = vsel %vm52, 0.0, %v3150
  %v3153 = vld [vmem:[#allocation3] sm:$0xff]
  %v3155 = vsel %vm2262, %v3152, 0
  %3157 = vmatprep.subr.mxu0 0.0
  %3158 = vmatpush1.msra.mxu0 0.0
  %3159 = vmatprep.subr.mxu0 0.0
  %3160 = vmatpush1.msra.mxu0 0.0
  %3161 = vmatprep.subr.mxu0 0.0
  %3162 = vmatpush1.msra.mxu0 0.0
  %3163 = vmatprep.subr.mxu0 0.0
  %3164 = vmatpush1.msra.mxu0 0.0
  %3165 = vmatprep.subr.mxu0 0.0
  %3166 = vmatpush1.msra.mxu0 0.0
  %3167 = vmatprep.subr.mxu0 0.0
  %3168 = vmatpush1.msra.mxu0 0.0
  %3169 = vmatprep.subr.mxu0 0.0
  %3170 = vmatpush1.msra.mxu0 0.0
  %3171 = vmatprep.subr.mxu0 0.0
  %3172 = vmatpush1.msra.mxu0 0.0
  %3173 = vmatprep.subr.mxu0 0.0
  %3174 = vmatpush1.msra.mxu0 %v3135
  %3175 = vmatprep.subr.mxu0 0.0
  %3176 = vmatpush1.msra.mxu0 %v3134
  %3177 = vmatprep.subr.mxu0 0.0
  %3178 = vmatpush1.msra.mxu0 %v3133
  %3179 = vmatprep.subr.mxu0 0.0
  %3180 = vmatpush1.msra.mxu0 %v3132
  %3181 = vmatprep.subr.mxu0 0.0
  %3182 = vmatpush1.msra.mxu0 %v3131
  %3183 = vmatprep.subr.mxu0 0.0
  %3184 = vmatpush1.msra.mxu0 %v3130
  %3185 = vmatprep.subr.mxu0 0.0
  %3186 = vmatpush1.msra.mxu0 %v3129
  %3187 = vmatprep.subr.mxu0 0.0
  %3188 = vmatpush1.msra.mxu0 %v3128
  %3189 = vmatprep.subr.mxu0 0.0
  %3190 = vmatpush2.msra.mxu0 0.0
  %3191 = vmatprep.subr.mxu0 0.0
  %3192 = vmatpush2.msra.mxu0 0.0
  %3193 = vmatprep.subr.mxu0 0.0
  %3194 = vmatpush2.msra.mxu0 0.0
  %3195 = vmatprep.subr.mxu0 0.0
  %3196 = vmatpush2.msra.mxu0 0.0
  %3197 = vmatprep.subr.mxu0 0.0
  %3198 = vmatpush2.msra.mxu0 0.0
  %3199 = vmatprep.subr.mxu0 0.0
  %3200 = vmatpush2.msra.mxu0 0.0
  %3201 = vmatprep.subr.mxu0 0.0
  %3202 = vmatpush2.msra.mxu0 0.0
  %3203 = vmatprep.subr.mxu0 0.0
  %3204 = vmatpush2.msra.mxu0 0.0
  %3205 = vmatprep.subr.mxu0 0.0
  %3206 = vmatpush2.msra.mxu0 0.0
  %3207 = vmatprep.subr.mxu0 0.0
  %3208 = vmatpush2.msra.mxu0 0.0
  %3209 = vmatprep.subr.mxu0 0.0
  %3210 = vmatpush2.msra.mxu0 0.0
  %3211 = vmatprep.subr.mxu0 0.0
  %3212 = vmatpush2.msra.mxu0 0.0
  %3213 = vmatprep.subr.mxu0 0.0
  %3214 = vmatpush2.msra.mxu0 0.0
  %3215 = vmatprep.subr.mxu0 0.0
  %3216 = vmatpush2.msra.mxu0 0.0
  %3217 = vmatprep.subr.mxu0 0.0
  %3218 = vmatpush2.msra.mxu0 0.0
  %3219 = vmatprep.subr.mxu0 0.0
  %3220 = vmatpush2.msra.mxu0 0.0
  %3221 = vmatprep.mubr.f32.mxu0 0.0
  %3222 = vmatmul.mubr.f32.gmra.mxu0 %v3155
  %v3223 = vpop.f32.mrf.mxu0
  %v3224 = vadd.f32 0.0, %v3223
  %v3225 = vpop.f32.mrf.mxu0
  %3226 = vdwg.mxu0
  %v3227 = vadd.f32 %v3153, %v3224
  %v3228 = vxor.u32 %v3227, 2147483648
  %v3229 = vmul.f32 %v3228, 1.442695
  %v3230 = vpow.pop %v3229
  %v3231 = vadd.f32 %v3230, 1.0
  %v3232 = vrcp.pop %v3231
  %v3233 = vmul.f32 1.0, %v3232
  %v3234 = vtanh.pop %v3227
  %3236 = vrot.lane.b32.xlu0 %v2414, 32
  %v3237 = vpop.permute.xlu0 %3236
  %v3239 = vmul.f32 %v3233, %v3237
  %3241 = vrot.lane.b32.xlu0 %v3234, 64
  %v3242 = vpop.permute.xlu0 %3241
  %v3244 = vmul.f32 %v3233, %v3242
  %3246 = vrot.lane.b32.xlu0 %v3244, 32
  %v3247 = vpop.permute.xlu0 %3246
  %v3249 = vadd.f32 %v3239, %v3247
  %v3250 = vtanh.pop %v3249
  %3252 = vrot.lane.b32.xlu0 %v3250, 64
  %v3253 = vpop.permute.xlu0 %3252
  %v3255 = vmul.f32 %v3233, %v3253
  %3257 = vrot.lane.b32.xlu0 %v3255, 32
  %v3258 = vpop.permute.xlu0 %3257
  %v3260 = vmul.f32 %v3096, %v3258
  %v3261 = vmul.f32 %v3097, %v3258
  %v3262 = vmul.f32 %v3098, %v3258
  %v3263 = vmul.f32 %v3099, %v3258
  %v3264 = vmul.f32 %v3100, %v3258
  %v3265 = vmul.f32 %v3101, %v3258
  %v3266 = vmul.f32 %v3102, %v3258
  %v3267 = vmul.f32 %v3103, %v3258
  %v3268 = vsel %vm52, %v3260, 0.0
  %3269 = vadd.xlane.f32.xlu0 %v3268
  %v3270 = vpop.xlane.xlu0 %3269
  %v3271 = vsel %vm52, %v3261, 0.0
  %3272 = vadd.xlane.f32.xlu0 %v3271
  %v3273 = vpop.xlane.xlu0 %3272
  %v3274 = vsel %vm52, %v3262, 0.0
  %3275 = vadd.xlane.f32.xlu0 %v3274
  %v3276 = vpop.xlane.xlu0 %3275
  %v3277 = vsel %vm52, %v3263, 0.0
  %3278 = vadd.xlane.f32.xlu0 %v3277
  %v3279 = vpop.xlane.xlu0 %3278
  %v3280 = vsel %vm52, %v3264, 0.0
  %3281 = vadd.xlane.f32.xlu0 %v3280
  %v3282 = vpop.xlane.xlu0 %3281
  %v3283 = vsel %vm52, %v3265, 0.0
  %3284 = vadd.xlane.f32.xlu0 %v3283
  %v3285 = vpop.xlane.xlu0 %3284
  %v3286 = vsel %vm52, %v3266, 0.0
  %3287 = vadd.xlane.f32.xlu0 %v3286
  %v3288 = vpop.xlane.xlu0 %3287
  %v3289 = vsel %vm52, %v3267, 0.0
  %3290 = vadd.xlane.f32.xlu0 %v3289
  %v3291 = vpop.xlane.xlu0 %3290
  %v3292 = vadd.f32 %v3270, %v3120
  %v3293 = vadd.f32 %v3273, %v3121
  %v3294 = vadd.f32 %v3276, %v3122
  %v3295 = vadd.f32 %v3279, %v3123
  %v3296 = vadd.f32 %v3282, %v3124
  %v3297 = vadd.f32 %v3285, %v3125
  %v3298 = vadd.f32 %v3288, %v3126
  %v3299 = vadd.f32 %v3291, %v3127
  %vm3300 = vcmask 7168
  %v3301 = vsel %vm3300, %v3292, -inf
  %v3302 = vsel %vm3300, %v3293, -inf
  %v3303 = vsel %vm3300, %v3294, -inf
  %v3304 = vsel %vm3300, %v3295, -inf
  %v3305 = vsel %vm3300, %v3296, -inf
  %v3306 = vmax.f32 %v3301, %v3305
  %v3307 = vsel %vm3300, %v3297, -inf
  %v3308 = vmax.f32 %v3302, %v3307
  %v3309 = vsel %vm3300, %v3298, -inf
  %v3310 = vmax.f32 %v3303, %v3309
  %v3311 = vsel %vm3300, %v3299, -inf
  %v3312 = vmax.f32 %v3304, %v3311
  %v3313 = vmax.f32 %v3306, %v3308
  %v3314 = vmax.f32 %v3310, %v3312
  %v3315 = vmax.f32 %v3313, %v3314
  %v3316 = vsub.f32 %v3292, %v3315
  %v3317 = vsub.f32 %v3293, %v3315
  %v3318 = vsub.f32 %v3294, %v3315
  %v3319 = vsub.f32 %v3295, %v3315
  %v3320 = vsub.f32 %v3296, %v3315
  %v3321 = vsub.f32 %v3297, %v3315
  %v3322 = vsub.f32 %v3298, %v3315
  %v3323 = vsub.f32 %v3299, %v3315
  %v3324 = vmul.f32 %v3316, 1.442695
  %v3325 = vpow.pop %v3324
  %v3326 = vmul.f32 %v3317, 1.442695
  %v3327 = vpow.pop %v3326
  %v3328 = vmul.f32 %v3318, 1.442695
  %v3329 = vpow.pop %v3328
  %v3330 = vmul.f32 %v3319, 1.442695
  %v3331 = vpow.pop %v3330
  %v3332 = vmul.f32 %v3320, 1.442695
  %v3333 = vpow.pop %v3332
  %v3334 = vmul.f32 %v3321, 1.442695
  %v3335 = vpow.pop %v3334
  %v3336 = vmul.f32 %v3322, 1.442695
  %v3337 = vpow.pop %v3336
  %v3338 = vmul.f32 %v3323, 1.442695
  %v3339 = vpow.pop %v3338
  %v3340 = vsel %vm3300, %v3325, 0.0
  %v3341 = vsel %vm3300, %v3327, 0.0
  %v3342 = vadd.f32 %v3340, %v3341
  %v3343 = vsel %vm3300, %v3329, 0.0
  %v3344 = vadd.f32 %v3342, %v3343
  %v3345 = vsel %vm3300, %v3331, 0.0
  %v3346 = vadd.f32 %v3344, %v3345
  %v3347 = vsel %vm3300, %v3333, 0.0
  %v3348 = vadd.f32 %v3346, %v3347
  %v3349 = vsel %vm3300, %v3335, 0.0
  %v3350 = vadd.f32 %v3348, %v3349
  %v3351 = vsel %vm3300, %v3337, 0.0
  %v3352 = vadd.f32 %v3350, %v3351
  %v3353 = vsel %vm3300, %v3339, 0.0
  %v3354 = vadd.f32 %v3352, %v3353
  %v3355 = vrcp.pop %v3354
  %v3356 = vmul.f32 %v3325, %v3355
  %v3357 = vmul.f32 %v3327, %v3355
  %v3358 = vmul.f32 %v3329, %v3355
  %v3359 = vmul.f32 %v3331, %v3355
  %v3360 = vmul.f32 %v3333, %v3355
  %v3361 = vmul.f32 %v3335, %v3355
  %v3362 = vmul.f32 %v3337, %v3355
  %v3363 = vmul.f32 %v3339, %v3355
  %3365 = vset.pattern.permute.xlu0 0
  %3366 = vperm.xlu0 %3365, %v3356
  %v3367 = vpop.permute.xlu0 %3366
  %3370 = vset.pattern.permute.xlu0 0
  %3371 = vperm.xlu0 %3370, %v3357
  %v3372 = vpop.permute.xlu0 %3371
  %3375 = vset.pattern.permute.xlu0 0
  %3376 = vperm.xlu0 %3375, %v3358
  %v3377 = vpop.permute.xlu0 %3376
  %3380 = vset.pattern.permute.xlu0 0
  %3381 = vperm.xlu0 %3380, %v3359
  %v3382 = vpop.permute.xlu0 %3381
  %3385 = vset.pattern.permute.xlu0 0
  %3386 = vperm.xlu0 %3385, %v3360
  %v3387 = vpop.permute.xlu0 %3386
  %3390 = vset.pattern.permute.xlu0 0
  %3391 = vperm.xlu0 %3390, %v3361
  %v3392 = vpop.permute.xlu0 %3391
  %3395 = vset.pattern.permute.xlu0 0
  %3396 = vperm.xlu0 %3395, %v3362
  %v3397 = vpop.permute.xlu0 %3396
  %3400 = vset.pattern.permute.xlu0 0
  %3401 = vperm.xlu0 %3400, %v3363
  %v3402 = vpop.permute.xlu0 %3401
  %v3404 = vmul.f32 %v3367, %v3080
  %v3405 = vmul.f32 %v3372, %v3081
  %v3406 = vmul.f32 %v3377, %v3082
  %v3407 = vmul.f32 %v3382, %v3083
  %v3408 = vmul.f32 %v3387, %v3084
  %v3409 = vmul.f32 %v3392, %v3085
  %v3410 = vmul.f32 %v3397, %v3086
  %v3411 = vmul.f32 %v3402, %v3087
  %v3412 = vsel %vm52, %v3404, 0.0
  %v3413 = vsel %vm52, %v3405, 0.0
  %v3414 = vadd.f32 %v3412, %v3413
  %v3415 = vsel %vm52, %v3406, 0.0
  %v3416 = vadd.f32 %v3414, %v3415
  %v3417 = vsel %vm52, %v3407, 0.0
  %v3418 = vadd.f32 %v3416, %v3417
  %v3419 = vsel %vm52, %v3408, 0.0
  %v3420 = vadd.f32 %v3418, %v3419
  %v3421 = vsel %vm52, %v3409, 0.0
  %v3422 = vadd.f32 %v3420, %v3421
  %v3423 = vsel %vm52, %v3410, 0.0
  %v3424 = vadd.f32 %v3422, %v3423
  %v3425 = vsel %vm52, %v3411, 0.0
  %v3426 = vadd.f32 %v3424, %v3425
  %v3427 = vmul.f32 %v3367, %v3088
  %v3428 = vmul.f32 %v3372, %v3089
  %v3429 = vmul.f32 %v3377, %v3090
  %v3430 = vmul.f32 %v3382, %v3091
  %v3431 = vmul.f32 %v3387, %v3092
  %v3432 = vmul.f32 %v3392, %v3093
  %v3433 = vmul.f32 %v3397, %v3094
  %v3434 = vmul.f32 %v3402, %v3095
  %v3435 = vsel %vm52, %v3427, 0.0
  %v3436 = vsel %vm52, %v3428, 0.0
  %v3437 = vadd.f32 %v3435, %v3436
  %v3438 = vsel %vm52, %v3429, 0.0
  %v3439 = vadd.f32 %v3437, %v3438
  %v3440 = vsel %vm52, %v3430, 0.0
  %v3441 = vadd.f32 %v3439, %v3440
  %v3442 = vsel %vm52, %v3431, 0.0
  %v3443 = vadd.f32 %v3441, %v3442
  %v3444 = vsel %vm52, %v3432, 0.0
  %v3445 = vadd.f32 %v3443, %v3444
  %v3446 = vsel %vm52, %v3433, 0.0
  %v3447 = vadd.f32 %v3445, %v3446
  %v3448 = vsel %vm52, %v3434, 0.0
  %v3449 = vadd.f32 %v3447, %v3448
  %3451 = vrot.lane.b32.xlu0 %v3449, 32
  %v3452 = vpop.permute.xlu0 %3451
  %3454 = vrot.lane.b32.xlu0 %v3255, 96
  %v3455 = vpop.permute.xlu0 %3454
  %v3457 = vsel %vm52, %v3426, %v3452
  %v3458 = vsel %vm2262, %v3457, %v3455
  %vm3459 = vcmask 785408
  %v3461 = vsel %vm3459, %v3458, 0
  %3463 = vmatprep.subr.mxu0 0.0
  %3464 = vmatpush1.msra.mxu0 0.0
  %3465 = vmatprep.subr.mxu0 0.0
  %3466 = vmatpush1.msra.mxu0 0.0
  %3467 = vmatprep.subr.mxu0 0.0
  %3468 = vmatpush1.msra.mxu0 0.0
  %3469 = vmatprep.subr.mxu0 0.0
  %3470 = vmatpush1.msra.mxu0 0.0
  %3471 = vmatprep.subr.mxu0 0.0
  %3472 = vmatpush1.msra.mxu0 %v3147
  %3473 = vmatprep.subr.mxu0 0.0
  %3474 = vmatpush1.msra.mxu0 %v3146
  %3475 = vmatprep.subr.mxu0 0.0
  %3476 = vmatpush1.msra.mxu0 %v3145
  %3477 = vmatprep.subr.mxu0 0.0
  %3478 = vmatpush1.msra.mxu0 %v3144
  %3479 = vmatprep.subr.mxu0 0.0
  %3480 = vmatpush1.msra.mxu0 %v3143
  %3481 = vmatprep.subr.mxu0 0.0
  %3482 = vmatpush1.msra.mxu0 %v3142
  %3483 = vmatprep.subr.mxu0 0.0
  %3484 = vmatpush1.msra.mxu0 %v3141
  %3485 = vmatprep.subr.mxu0 0.0
  %3486 = vmatpush1.msra.mxu0 %v3140
  %3487 = vmatprep.subr.mxu0 0.0
  %3488 = vmatpush1.msra.mxu0 %v3139
  %3489 = vmatprep.subr.mxu0 0.0
  %3490 = vmatpush1.msra.mxu0 %v3138
  %3491 = vmatprep.subr.mxu0 0.0
  %3492 = vmatpush1.msra.mxu0 %v3137
  %3493 = vmatprep.subr.mxu0 0.0
  %3494 = vmatpush1.msra.mxu0 %v3136
  %3495 = vmatprep.subr.mxu0 0.0
  %3496 = vmatpush2.msra.mxu0 0.0
  %3497 = vmatprep.subr.mxu0 0.0
  %3498 = vmatpush2.msra.mxu0 0.0
  %3499 = vmatprep.subr.mxu0 0.0
  %3500 = vmatpush2.msra.mxu0 0.0
  %3501 = vmatprep.subr.mxu0 0.0
  %3502 = vmatpush2.msra.mxu0 0.0
  %3503 = vmatprep.subr.mxu0 0.0
  %3504 = vmatpush2.msra.mxu0 0.0
  %3505 = vmatprep.subr.mxu0 0.0
  %3506 = vmatpush2.msra.mxu0 0.0
  %3507 = vmatprep.subr.mxu0 0.0
  %3508 = vmatpush2.msra.mxu0 0.0
  %3509 = vmatprep.subr.mxu0 0.0
  %3510 = vmatpush2.msra.mxu0 0.0
  %3511 = vmatprep.subr.mxu0 0.0
  %3512 = vmatpush2.msra.mxu0 0.0
  %3513 = vmatprep.subr.mxu0 0.0
  %3514 = vmatpush2.msra.mxu0 0.0
  %3515 = vmatprep.subr.mxu0 0.0
  %3516 = vmatpush2.msra.mxu0 0.0
  %3517 = vmatprep.subr.mxu0 0.0
  %3518 = vmatpush2.msra.mxu0 0.0
  %3519 = vmatprep.subr.mxu0 0.0
  %3520 = vmatpush2.msra.mxu0 0.0
  %3521 = vmatprep.subr.mxu0 0.0
  %3522 = vmatpush2.msra.mxu0 0.0
  %3523 = vmatprep.subr.mxu0 0.0
  %3524 = vmatpush2.msra.mxu0 0.0
  %3525 = vmatprep.subr.mxu0 0.0
  %3526 = vmatpush2.msra.mxu0 0.0
  %3527 = vmatprep.mubr.f32.mxu0 0.0
  %3528 = vmatmul.mubr.f32.gmra.mxu0 %v3461
  %v3529 = vpop.f32.mrf.mxu0
  %v3530 = vadd.f32 0.0, %v3529
  %v3531 = vpop.f32.mrf.mxu0
  %3532 = vdwg.mxu0
  %v3533 = vtanh.pop %v3530
  %3534 = vst.msk [vmem:[#allocation7] sm:$0xff] %vm52, %v3533
  %3535 = vrot.lane.b32.xlu0 %v3255, 64
  %v3536 = vpop.permute.xlu0 %3535
  %v3538 = vsel %vm52, %v3533, %v3536
  %s3539 = scalar_lea.vmem [#allocation3], 8
  %v3540 = vld [vmem:[%s3539] sm:$0xff]
  %v3542 = vsel %vm2262, %v3538, 0
  %3544 = vmatprep.subr.mxu0 0.0
  %3545 = vmatpush1.msra.mxu0 0.0
  %3546 = vmatprep.subr.mxu0 0.0
  %3547 = vmatpush1.msra.mxu0 0.0
  %3548 = vmatprep.subr.mxu0 0.0
  %3549 = vmatpush1.msra.mxu0 0.0
  %3550 = vmatprep.subr.mxu0 0.0
  %3551 = vmatpush1.msra.mxu0 0.0
  %3552 = vmatprep.subr.mxu0 0.0
  %3553 = vmatpush1.msra.mxu0 0.0
  %3554 = vmatprep.subr.mxu0 0.0
  %3555 = vmatpush1.msra.mxu0 0.0
  %3556 = vmatprep.subr.mxu0 0.0
  %3557 = vmatpush1.msra.mxu0 0.0
  %3558 = vmatprep.subr.mxu0 0.0
  %3559 = vmatpush1.msra.mxu0 0.0
  %3560 = vmatprep.subr.mxu0 0.0
  %3561 = vmatpush1.msra.mxu0 %v3135
  %3562 = vmatprep.subr.mxu0 0.0
  %3563 = vmatpush1.msra.mxu0 %v3134
  %3564 = vmatprep.subr.mxu0 0.0
  %3565 = vmatpush1.msra.mxu0 %v3133
  %3566 = vmatprep.subr.mxu0 0.0
  %3567 = vmatpush1.msra.mxu0 %v3132
  %3568 = vmatprep.subr.mxu0 0.0
  %3569 = vmatpush1.msra.mxu0 %v3131
  %3570 = vmatprep.subr.mxu0 0.0
  %3571 = vmatpush1.msra.mxu0 %v3130
  %3572 = vmatprep.subr.mxu0 0.0
  %3573 = vmatpush1.msra.mxu0 %v3129
  %3574 = vmatprep.subr.mxu0 0.0
  %3575 = vmatpush1.msra.mxu0 %v3128
  %3576 = vmatprep.subr.mxu0 0.0
  %3577 = vmatpush2.msra.mxu0 0.0
  %3578 = vmatprep.subr.mxu0 0.0
  %3579 = vmatpush2.msra.mxu0 0.0
  %3580 = vmatprep.subr.mxu0 0.0
  %3581 = vmatpush2.msra.mxu0 0.0
  %3582 = vmatprep.subr.mxu0 0.0
  %3583 = vmatpush2.msra.mxu0 0.0
  %3584 = vmatprep.subr.mxu0 0.0
  %3585 = vmatpush2.msra.mxu0 0.0
  %3586 = vmatprep.subr.mxu0 0.0
  %3587 = vmatpush2.msra.mxu0 0.0
  %3588 = vmatprep.subr.mxu0 0.0
  %3589 = vmatpush2.msra.mxu0 0.0
  %3590 = vmatprep.subr.mxu0 0.0
  %3591 = vmatpush2.msra.mxu0 0.0
  %3592 = vmatprep.subr.mxu0 0.0
  %3593 = vmatpush2.msra.mxu0 0.0
  %3594 = vmatprep.subr.mxu0 0.0
  %3595 = vmatpush2.msra.mxu0 0.0
  %3596 = vmatprep.subr.mxu0 0.0
  %3597 = vmatpush2.msra.mxu0 0.0
  %3598 = vmatprep.subr.mxu0 0.0
  %3599 = vmatpush2.msra.mxu0 0.0
  %3600 = vmatprep.subr.mxu0 0.0
  %3601 = vmatpush2.msra.mxu0 0.0
  %3602 = vmatprep.subr.mxu0 0.0
  %3603 = vmatpush2.msra.mxu0 0.0
  %3604 = vmatprep.subr.mxu0 0.0
  %3605 = vmatpush2.msra.mxu0 0.0
  %3606 = vmatprep.subr.mxu0 0.0
  %3607 = vmatpush2.msra.mxu0 0.0
  %3608 = vmatprep.mubr.f32.mxu0 0.0
  %3609 = vmatmul.mubr.f32.gmra.mxu0 %v3542
  %v3610 = vpop.f32.mrf.mxu0
  %v3611 = vadd.f32 0.0, %v3610
  %v3612 = vpop.f32.mrf.mxu0
  %3613 = vdwg.mxu0
  %v3614 = vadd.f32 %v3540, %v3611
  %v3615 = vxor.u32 %v3614, 2147483648
  %v3616 = vmul.f32 %v3615, 1.442695
  %v3617 = vpow.pop %v3616
  %v3618 = vadd.f32 %v3617, 1.0
  %v3619 = vrcp.pop %v3618
  %v3620 = vmul.f32 1.0, %v3619
  %v3621 = vtanh.pop %v3614
  %v3622 = vmul.f32 %v3620, %v3249
  %3624 = vrot.lane.b32.xlu0 %v3621, 64
  %v3625 = vpop.permute.xlu0 %3624
  %v3627 = vmul.f32 %v3620, %v3625
  %3629 = vrot.lane.b32.xlu0 %v3627, 32
  %v3630 = vpop.permute.xlu0 %3629
  %v3632 = vadd.f32 %v3622, %v3630
  %v3633 = vtanh.pop %v3632
  %3635 = vrot.lane.b32.xlu0 %v3633, 64
  %v3636 = vpop.permute.xlu0 %3635
  %v3638 = vmul.f32 %v3620, %v3636
  %3640 = vrot.lane.b32.xlu0 %v3638, 32
  %v3641 = vpop.permute.xlu0 %3640
  %v3643 = vmul.f32 %v3096, %v3641
  %v3644 = vmul.f32 %v3097, %v3641
  %v3645 = vmul.f32 %v3098, %v3641
  %v3646 = vmul.f32 %v3099, %v3641
  %v3647 = vmul.f32 %v3100, %v3641
  %v3648 = vmul.f32 %v3101, %v3641
  %v3649 = vmul.f32 %v3102, %v3641
  %v3650 = vmul.f32 %v3103, %v3641
  %v3651 = vsel %vm52, %v3643, 0.0
  %3652 = vadd.xlane.f32.xlu0 %v3651
  %v3653 = vpop.xlane.xlu0 %3652
  %v3654 = vsel %vm52, %v3644, 0.0
  %3655 = vadd.xlane.f32.xlu0 %v3654
  %v3656 = vpop.xlane.xlu0 %3655
  %v3657 = vsel %vm52, %v3645, 0.0
  %3658 = vadd.xlane.f32.xlu0 %v3657
  %v3659 = vpop.xlane.xlu0 %3658
  %v3660 = vsel %vm52, %v3646, 0.0
  %3661 = vadd.xlane.f32.xlu0 %v3660
  %v3662 = vpop.xlane.xlu0 %3661
  %v3663 = vsel %vm52, %v3647, 0.0
  %3664 = vadd.xlane.f32.xlu0 %v3663
  %v3665 = vpop.xlane.xlu0 %3664
  %v3666 = vsel %vm52, %v3648, 0.0
  %3667 = vadd.xlane.f32.xlu0 %v3666
  %v3668 = vpop.xlane.xlu0 %3667
  %v3669 = vsel %vm52, %v3649, 0.0
  %3670 = vadd.xlane.f32.xlu0 %v3669
  %v3671 = vpop.xlane.xlu0 %3670
  %v3672 = vsel %vm52, %v3650, 0.0
  %3673 = vadd.xlane.f32.xlu0 %v3672
  %v3674 = vpop.xlane.xlu0 %3673
  %v3675 = vadd.f32 %v3653, %v3120
  %v3676 = vadd.f32 %v3656, %v3121
  %v3677 = vadd.f32 %v3659, %v3122
  %v3678 = vadd.f32 %v3662, %v3123
  %v3679 = vadd.f32 %v3665, %v3124
  %v3680 = vadd.f32 %v3668, %v3125
  %v3681 = vadd.f32 %v3671, %v3126
  %v3682 = vadd.f32 %v3674, %v3127
  %v3683 = vsel %vm3300, %v3675, -inf
  %v3684 = vsel %vm3300, %v3676, -inf
  %v3685 = vsel %vm3300, %v3677, -inf
  %v3686 = vsel %vm3300, %v3678, -inf
  %v3687 = vsel %vm3300, %v3679, -inf
  %v3688 = vmax.f32 %v3683, %v3687
  %v3689 = vsel %vm3300, %v3680, -inf
  %v3690 = vmax.f32 %v3684, %v3689
  %v3691 = vsel %vm3300, %v3681, -inf
  %v3692 = vmax.f32 %v3685, %v3691
  %v3693 = vsel %vm3300, %v3682, -inf
  %v3694 = vmax.f32 %v3686, %v3693
  %v3695 = vmax.f32 %v3688, %v3690
  %v3696 = vmax.f32 %v3692, %v3694
  %v3697 = vmax.f32 %v3695, %v3696
  %v3698 = vsub.f32 %v3675, %v3697
  %v3699 = vsub.f32 %v3676, %v3697
  %v3700 = vsub.f32 %v3677, %v3697
  %v3701 = vsub.f32 %v3678, %v3697
  %v3702 = vsub.f32 %v3679, %v3697
  %v3703 = vsub.f32 %v3680, %v3697
  %v3704 = vsub.f32 %v3681, %v3697
  %v3705 = vsub.f32 %v3682, %v3697
  %v3706 = vmul.f32 %v3698, 1.442695
  %v3707 = vpow.pop %v3706
  %v3708 = vmul.f32 %v3699, 1.442695
  %v3709 = vpow.pop %v3708
  %v3710 = vmul.f32 %v3700, 1.442695
  %v3711 = vpow.pop %v3710
  %v3712 = vmul.f32 %v3701, 1.442695
  %v3713 = vpow.pop %v3712
  %v3714 = vmul.f32 %v3702, 1.442695
  %v3715 = vpow.pop %v3714
  %v3716 = vmul.f32 %v3703, 1.442695
  %v3717 = vpow.pop %v3716
  %v3718 = vmul.f32 %v3704, 1.442695
  %v3719 = vpow.pop %v3718
  %v3720 = vmul.f32 %v3705, 1.442695
  %v3721 = vpow.pop %v3720
  %v3722 = vsel %vm3300, %v3707, 0.0
  %v3723 = vsel %vm3300, %v3709, 0.0
  %v3724 = vadd.f32 %v3722, %v3723
  %v3725 = vsel %vm3300, %v3711, 0.0
  %v3726 = vadd.f32 %v3724, %v3725
  %v3727 = vsel %vm3300, %v3713, 0.0
  %v3728 = vadd.f32 %v3726, %v3727
  %v3729 = vsel %vm3300, %v3715, 0.0
  %v3730 = vadd.f32 %v3728, %v3729
  %v3731 = vsel %vm3300, %v3717, 0.0
  %v3732 = vadd.f32 %v3730, %v3731
  %v3733 = vsel %vm3300, %v3719, 0.0
  %v3734 = vadd.f32 %v3732, %v3733
  %v3735 = vsel %vm3300, %v3721, 0.0
  %v3736 = vadd.f32 %v3734, %v3735
  %v3737 = vrcp.pop %v3736
  %v3738 = vmul.f32 %v3707, %v3737
  %v3739 = vmul.f32 %v3709, %v3737
  %v3740 = vmul.f32 %v3711, %v3737
  %v3741 = vmul.f32 %v3713, %v3737
  %v3742 = vmul.f32 %v3715, %v3737
  %v3743 = vmul.f32 %v3717, %v3737
  %v3744 = vmul.f32 %v3719, %v3737
  %v3745 = vmul.f32 %v3721, %v3737
  %3747 = vset.pattern.permute.xlu0 0
  %3748 = vperm.xlu0 %3747, %v3738
  %v3749 = vpop.permute.xlu0 %3748
  %3752 = vset.pattern.permute.xlu0 0
  %3753 = vperm.xlu0 %3752, %v3739
  %v3754 = vpop.permute.xlu0 %3753
  %3757 = vset.pattern.permute.xlu0 0
  %3758 = vperm.xlu0 %3757, %v3740
  %v3759 = vpop.permute.xlu0 %3758
  %3762 = vset.pattern.permute.xlu0 0
  %3763 = vperm.xlu0 %3762, %v3741
  %v3764 = vpop.permute.xlu0 %3763
  %3767 = vset.pattern.permute.xlu0 0
  %3768 = vperm.xlu0 %3767, %v3742
  %v3769 = vpop.permute.xlu0 %3768
  %3772 = vset.pattern.permute.xlu0 0
  %3773 = vperm.xlu0 %3772, %v3743
  %v3774 = vpop.permute.xlu0 %3773
  %3777 = vset.pattern.permute.xlu0 0
  %3778 = vperm.xlu0 %3777, %v3744
  %v3779 = vpop.permute.xlu0 %3778
  %3782 = vset.pattern.permute.xlu0 0
  %3783 = vperm.xlu0 %3782, %v3745
  %v3784 = vpop.permute.xlu0 %3783
  %v3786 = vmul.f32 %v3749, %v3080
  %v3787 = vmul.f32 %v3754, %v3081
  %v3788 = vmul.f32 %v3759, %v3082
  %v3789 = vmul.f32 %v3764, %v3083
  %v3790 = vmul.f32 %v3769, %v3084
  %v3791 = vmul.f32 %v3774, %v3085
  %v3792 = vmul.f32 %v3779, %v3086
  %v3793 = vmul.f32 %v3784, %v3087
  %v3794 = vsel %vm52, %v3786, 0.0
  %v3795 = vsel %vm52, %v3787, 0.0
  %v3796 = vadd.f32 %v3794, %v3795
  %v3797 = vsel %vm52, %v3788, 0.0
  %v3798 = vadd.f32 %v3796, %v3797
  %v3799 = vsel %vm52, %v3789, 0.0
  %v3800 = vadd.f32 %v3798, %v3799
  %v3801 = vsel %vm52, %v3790, 0.0
  %v3802 = vadd.f32 %v3800, %v3801
  %v3803 = vsel %vm52, %v3791, 0.0
  %v3804 = vadd.f32 %v3802, %v3803
  %v3805 = vsel %vm52, %v3792, 0.0
  %v3806 = vadd.f32 %v3804, %v3805
  %v3807 = vsel %vm52, %v3793, 0.0
  %v3808 = vadd.f32 %v3806, %v3807
  %v3809 = vmul.f32 %v3749, %v3088
  %v3810 = vmul.f32 %v3754, %v3089
  %v3811 = vmul.f32 %v3759, %v3090
  %v3812 = vmul.f32 %v3764, %v3091
  %v3813 = vmul.f32 %v3769, %v3092
  %v3814 = vmul.f32 %v3774, %v3093
  %v3815 = vmul.f32 %v3779, %v3094
  %v3816 = vmul.f32 %v3784, %v3095
  %v3817 = vsel %vm52, %v3809, 0.0
  %v3818 = vsel %vm52, %v3810, 0.0
  %v3819 = vadd.f32 %v3817, %v3818
  %v3820 = vsel %vm52, %v3811, 0.0
  %v3821 = vadd.f32 %v3819, %v3820
  %v3822 = vsel %vm52, %v3812, 0.0
  %v3823 = vadd.f32 %v3821, %v3822
  %v3824 = vsel %vm52, %v3813, 0.0
  %v3825 = vadd.f32 %v3823, %v3824
  %v3826 = vsel %vm52, %v3814, 0.0
  %v3827 = vadd.f32 %v3825, %v3826
  %v3828 = vsel %vm52, %v3815, 0.0
  %v3829 = vadd.f32 %v3827, %v3828
  %v3830 = vsel %vm52, %v3816, 0.0
  %v3831 = vadd.f32 %v3829, %v3830
  %3833 = vrot.lane.b32.xlu0 %v3831, 32
  %v3834 = vpop.permute.xlu0 %3833
  %3836 = vrot.lane.b32.xlu0 %v3638, 96
  %v3837 = vpop.permute.xlu0 %3836
  %v3839 = vsel %vm52, %v3808, %v3834
  %v3840 = vsel %vm2262, %v3839, %v3837
  %v3842 = vsel %vm3459, %v3840, 0
  %3844 = vmatprep.subr.mxu0 0.0
  %3845 = vmatpush1.msra.mxu0 0.0
  %3846 = vmatprep.subr.mxu0 0.0
  %3847 = vmatpush1.msra.mxu0 0.0
  %3848 = vmatprep.subr.mxu0 0.0
  %3849 = vmatpush1.msra.mxu0 0.0
  %3850 = vmatprep.subr.mxu0 0.0
  %3851 = vmatpush1.msra.mxu0 0.0
  %3852 = vmatprep.subr.mxu0 0.0
  %3853 = vmatpush1.msra.mxu0 %v3147
  %3854 = vmatprep.subr.mxu0 0.0
  %3855 = vmatpush1.msra.mxu0 %v3146
  %3856 = vmatprep.subr.mxu0 0.0
  %3857 = vmatpush1.msra.mxu0 %v3145
  %3858 = vmatprep.subr.mxu0 0.0
  %3859 = vmatpush1.msra.mxu0 %v3144
  %3860 = vmatprep.subr.mxu0 0.0
  %3861 = vmatpush1.msra.mxu0 %v3143
  %3862 = vmatprep.subr.mxu0 0.0
  %3863 = vmatpush1.msra.mxu0 %v3142
  %3864 = vmatprep.subr.mxu0 0.0
  %3865 = vmatpush1.msra.mxu0 %v3141
  %3866 = vmatprep.subr.mxu0 0.0
  %3867 = vmatpush1.msra.mxu0 %v3140
  %3868 = vmatprep.subr.mxu0 0.0
  %3869 = vmatpush1.msra.mxu0 %v3139
  %3870 = vmatprep.subr.mxu0 0.0
  %3871 = vmatpush1.msra.mxu0 %v3138
  %3872 = vmatprep.subr.mxu0 0.0
  %3873 = vmatpush1.msra.mxu0 %v3137
  %3874 = vmatprep.subr.mxu0 0.0
  %3875 = vmatpush1.msra.mxu0 %v3136
  %3876 = vmatprep.subr.mxu0 0.0
  %3877 = vmatpush2.msra.mxu0 0.0
  %3878 = vmatprep.subr.mxu0 0.0
  %3879 = vmatpush2.msra.mxu0 0.0
  %3880 = vmatprep.subr.mxu0 0.0
  %3881 = vmatpush2.msra.mxu0 0.0
  %3882 = vmatprep.subr.mxu0 0.0
  %3883 = vmatpush2.msra.mxu0 0.0
  %3884 = vmatprep.subr.mxu0 0.0
  %3885 = vmatpush2.msra.mxu0 0.0
  %3886 = vmatprep.subr.mxu0 0.0
  %3887 = vmatpush2.msra.mxu0 0.0
  %3888 = vmatprep.subr.mxu0 0.0
  %3889 = vmatpush2.msra.mxu0 0.0
  %3890 = vmatprep.subr.mxu0 0.0
  %3891 = vmatpush2.msra.mxu0 0.0
  %3892 = vmatprep.subr.mxu0 0.0
  %3893 = vmatpush2.msra.mxu0 0.0
  %3894 = vmatprep.subr.mxu0 0.0
  %3895 = vmatpush2.msra.mxu0 0.0
  %3896 = vmatprep.subr.mxu0 0.0
  %3897 = vmatpush2.msra.mxu0 0.0
  %3898 = vmatprep.subr.mxu0 0.0
  %3899 = vmatpush2.msra.mxu0 0.0
  %3900 = vmatprep.subr.mxu0 0.0
  %3901 = vmatpush2.msra.mxu0 0.0
  %3902 = vmatprep.subr.mxu0 0.0
  %3903 = vmatpush2.msra.mxu0 0.0
  %3904 = vmatprep.subr.mxu0 0.0
  %3905 = vmatpush2.msra.mxu0 0.0
  %3906 = vmatprep.subr.mxu0 0.0
  %3907 = vmatpush2.msra.mxu0 0.0
  %3908 = vmatprep.mubr.f32.mxu0 0.0
  %3909 = vmatmul.mubr.f32.gmra.mxu0 %v3842
  %v3910 = vpop.f32.mrf.mxu0
  %v3911 = vadd.f32 0.0, %v3910
  %v3912 = vpop.f32.mrf.mxu0
  %3913 = vdwg.mxu0
  %v3914 = vtanh.pop %v3911
  %s3915 = scalar_lea.vmem [#allocation7], 8
  %3916 = vst.msk [vmem:[%s3915] sm:$0xff] %vm52, %v3914
  %3917 = vrot.lane.b32.xlu0 %v3638, 64
  %v3918 = vpop.permute.xlu0 %3917
  %v3920 = vsel %vm52, %v3914, %v3918
  %s3921 = scalar_lea.vmem [#allocation3], 16
  %v3922 = vld [vmem:[%s3921] sm:$0xff]
  %v3924 = vsel %vm2262, %v3920, 0
  %3926 = vmatprep.subr.mxu0 0.0
  %3927 = vmatpush1.msra.mxu0 0.0
  %3928 = vmatprep.subr.mxu0 0.0
  %3929 = vmatpush1.msra.mxu0 0.0
  %3930 = vmatprep.subr.mxu0 0.0
  %3931 = vmatpush1.msra.mxu0 0.0
  %3932 = vmatprep.subr.mxu0 0.0
  %3933 = vmatpush1.msra.mxu0 0.0
  %3934 = vmatprep.subr.mxu0 0.0
  %3935 = vmatpush1.msra.mxu0 0.0
  %3936 = vmatprep.subr.mxu0 0.0
  %3937 = vmatpush1.msra.mxu0 0.0
  %3938 = vmatprep.subr.mxu0 0.0
  %3939 = vmatpush1.msra.mxu0 0.0
  %3940 = vmatprep.subr.mxu0 0.0
  %3941 = vmatpush1.msra.mxu0 0.0
  %3942 = vmatprep.subr.mxu0 0.0
  %3943 = vmatpush1.msra.mxu0 %v3135
  %3944 = vmatprep.subr.mxu0 0.0
  %3945 = vmatpush1.msra.mxu0 %v3134
  %3946 = vmatprep.subr.mxu0 0.0
  %3947 = vmatpush1.msra.mxu0 %v3133
  %3948 = vmatprep.subr.mxu0 0.0
  %3949 = vmatpush1.msra.mxu0 %v3132
  %3950 = vmatprep.subr.mxu0 0.0
  %3951 = vmatpush1.msra.mxu0 %v3131
  %3952 = vmatprep.subr.mxu0 0.0
  %3953 = vmatpush1.msra.mxu0 %v3130
  %3954 = vmatprep.subr.mxu0 0.0
  %3955 = vmatpush1.msra.mxu0 %v3129
  %3956 = vmatprep.subr.mxu0 0.0
  %3957 = vmatpush1.msra.mxu0 %v3128
  %3958 = vmatprep.subr.mxu0 0.0
  %3959 = vmatpush2.msra.mxu0 0.0
  %3960 = vmatprep.subr.mxu0 0.0
  %3961 = vmatpush2.msra.mxu0 0.0
  %3962 = vmatprep.subr.mxu0 0.0
  %3963 = vmatpush2.msra.mxu0 0.0
  %3964 = vmatprep.subr.mxu0 0.0
  %3965 = vmatpush2.msra.mxu0 0.0
  %3966 = vmatprep.subr.mxu0 0.0
  %3967 = vmatpush2.msra.mxu0 0.0
  %3968 = vmatprep.subr.mxu0 0.0
  %3969 = vmatpush2.msra.mxu0 0.0
  %3970 = vmatprep.subr.mxu0 0.0
  %3971 = vmatpush2.msra.mxu0 0.0
  %3972 = vmatprep.subr.mxu0 0.0
  %3973 = vmatpush2.msra.mxu0 0.0
  %3974 = vmatprep.subr.mxu0 0.0
  %3975 = vmatpush2.msra.mxu0 0.0
  %3976 = vmatprep.subr.mxu0 0.0
  %3977 = vmatpush2.msra.mxu0 0.0
  %3978 = vmatprep.subr.mxu0 0.0
  %3979 = vmatpush2.msra.mxu0 0.0
  %3980 = vmatprep.subr.mxu0 0.0
  %3981 = vmatpush2.msra.mxu0 0.0
  %3982 = vmatprep.subr.mxu0 0.0
  %3983 = vmatpush2.msra.mxu0 0.0
  %3984 = vmatprep.subr.mxu0 0.0
  %3985 = vmatpush2.msra.mxu0 0.0
  %3986 = vmatprep.subr.mxu0 0.0
  %3987 = vmatpush2.msra.mxu0 0.0
  %3988 = vmatprep.subr.mxu0 0.0
  %3989 = vmatpush2.msra.mxu0 0.0
  %3990 = vmatprep.mubr.f32.mxu0 0.0
  %3991 = vmatmul.mubr.f32.gmra.mxu0 %v3924
  %v3992 = vpop.f32.mrf.mxu0
  %v3993 = vadd.f32 0.0, %v3992
  %v3994 = vpop.f32.mrf.mxu0
  %3995 = vdwg.mxu0
  %v3996 = vadd.f32 %v3922, %v3993
  %v3997 = vxor.u32 %v3996, 2147483648
  %v3998 = vmul.f32 %v3997, 1.442695
  %v3999 = vpow.pop %v3998
  %v4000 = vadd.f32 %v3999, 1.0
  %v4001 = vrcp.pop %v4000
  %v4002 = vmul.f32 1.0, %v4001
  %v4003 = vtanh.pop %v3996
  %v4004 = vmul.f32 %v4002, %v3632
  %4006 = vrot.lane.b32.xlu0 %v4003, 64
  %v4007 = vpop.permute.xlu0 %4006
  %v4009 = vmul.f32 %v4002, %v4007
  %4011 = vrot.lane.b32.xlu0 %v4009, 32
  %v4012 = vpop.permute.xlu0 %4011
  %v4014 = vadd.f32 %v4004, %v4012
  %v4015 = vtanh.pop %v4014
  %4017 = vrot.lane.b32.xlu0 %v4015, 64
  %v4018 = vpop.permute.xlu0 %4017
  %v4020 = vmul.f32 %v4002, %v4018
  %4022 = vrot.lane.b32.xlu0 %v4020, 32
  %v4023 = vpop.permute.xlu0 %4022
  %v4025 = vmul.f32 %v3096, %v4023
  %v4026 = vmul.f32 %v3097, %v4023
  %v4027 = vmul.f32 %v3098, %v4023
  %v4028 = vmul.f32 %v3099, %v4023
  %v4029 = vmul.f32 %v3100, %v4023
  %v4030 = vmul.f32 %v3101, %v4023
  %v4031 = vmul.f32 %v3102, %v4023
  %v4032 = vmul.f32 %v3103, %v4023
  %v4033 = vsel %vm52, %v4025, 0.0
  %4034 = vadd.xlane.f32.xlu0 %v4033
  %v4035 = vpop.xlane.xlu0 %4034
  %v4036 = vsel %vm52, %v4026, 0.0
  %4037 = vadd.xlane.f32.xlu0 %v4036
  %v4038 = vpop.xlane.xlu0 %4037
  %v4039 = vsel %vm52, %v4027, 0.0
  %4040 = vadd.xlane.f32.xlu0 %v4039
  %v4041 = vpop.xlane.xlu0 %4040
  %v4042 = vsel %vm52, %v4028, 0.0
  %4043 = vadd.xlane.f32.xlu0 %v4042
  %v4044 = vpop.xlane.xlu0 %4043
  %v4045 = vsel %vm52, %v4029, 0.0
  %4046 = vadd.xlane.f32.xlu0 %v4045
  %v4047 = vpop.xlane.xlu0 %4046
  %v4048 = vsel %vm52, %v4030, 0.0
  %4049 = vadd.xlane.f32.xlu0 %v4048
  %v4050 = vpop.xlane.xlu0 %4049
  %v4051 = vsel %vm52, %v4031, 0.0
  %4052 = vadd.xlane.f32.xlu0 %v4051
  %v4053 = vpop.xlane.xlu0 %4052
  %v4054 = vsel %vm52, %v4032, 0.0
  %4055 = vadd.xlane.f32.xlu0 %v4054
  %v4056 = vpop.xlane.xlu0 %4055
  %v4057 = vadd.f32 %v4035, %v3120
  %v4058 = vadd.f32 %v4038, %v3121
  %v4059 = vadd.f32 %v4041, %v3122
  %v4060 = vadd.f32 %v4044, %v3123
  %v4061 = vadd.f32 %v4047, %v3124
  %v4062 = vadd.f32 %v4050, %v3125
  %v4063 = vadd.f32 %v4053, %v3126
  %v4064 = vadd.f32 %v4056, %v3127
  %v4065 = vsel %vm3300, %v4057, -inf
  %v4066 = vsel %vm3300, %v4058, -inf
  %v4067 = vsel %vm3300, %v4059, -inf
  %v4068 = vsel %vm3300, %v4060, -inf
  %v4069 = vsel %vm3300, %v4061, -inf
  %v4070 = vmax.f32 %v4065, %v4069
  %v4071 = vsel %vm3300, %v4062, -inf
  %v4072 = vmax.f32 %v4066, %v4071
  %v4073 = vsel %vm3300, %v4063, -inf
  %v4074 = vmax.f32 %v4067, %v4073
  %v4075 = vsel %vm3300, %v4064, -inf
  %v4076 = vmax.f32 %v4068, %v4075
  %v4077 = vmax.f32 %v4070, %v4072
  %v4078 = vmax.f32 %v4074, %v4076
  %v4079 = vmax.f32 %v4077, %v4078
  %v4080 = vsub.f32 %v4057, %v4079
  %v4081 = vsub.f32 %v4058, %v4079
  %v4082 = vsub.f32 %v4059, %v4079
  %v4083 = vsub.f32 %v4060, %v4079
  %v4084 = vsub.f32 %v4061, %v4079
  %v4085 = vsub.f32 %v4062, %v4079
  %v4086 = vsub.f32 %v4063, %v4079
  %v4087 = vsub.f32 %v4064, %v4079
  %v4088 = vmul.f32 %v4080, 1.442695
  %v4089 = vpow.pop %v4088
  %v4090 = vmul.f32 %v4081, 1.442695
  %v4091 = vpow.pop %v4090
  %v4092 = vmul.f32 %v4082, 1.442695
  %v4093 = vpow.pop %v4092
  %v4094 = vmul.f32 %v4083, 1.442695
  %v4095 = vpow.pop %v4094
  %v4096 = vmul.f32 %v4084, 1.442695
  %v4097 = vpow.pop %v4096
  %v4098 = vmul.f32 %v4085, 1.442695
  %v4099 = vpow.pop %v4098
  %v4100 = vmul.f32 %v4086, 1.442695
  %v4101 = vpow.pop %v4100
  %v4102 = vmul.f32 %v4087, 1.442695
  %v4103 = vpow.pop %v4102
  %v4104 = vsel %vm3300, %v4089, 0.0
  %v4105 = vsel %vm3300, %v4091, 0.0
  %v4106 = vadd.f32 %v4104, %v4105
  %v4107 = vsel %vm3300, %v4093, 0.0
  %v4108 = vadd.f32 %v4106, %v4107
  %v4109 = vsel %vm3300, %v4095, 0.0
  %v4110 = vadd.f32 %v4108, %v4109
  %v4111 = vsel %vm3300, %v4097, 0.0
  %v4112 = vadd.f32 %v4110, %v4111
  %v4113 = vsel %vm3300, %v4099, 0.0
  %v4114 = vadd.f32 %v4112, %v4113
  %v4115 = vsel %vm3300, %v4101, 0.0
  %v4116 = vadd.f32 %v4114, %v4115
  %v4117 = vsel %vm3300, %v4103, 0.0
  %v4118 = vadd.f32 %v4116, %v4117
  %v4119 = vrcp.pop %v4118
  %v4120 = vmul.f32 %v4089, %v4119
  %v4121 = vmul.f32 %v4091, %v4119
  %v4122 = vmul.f32 %v4093, %v4119
  %v4123 = vmul.f32 %v4095, %v4119
  %v4124 = vmul.f32 %v4097, %v4119
  %v4125 = vmul.f32 %v4099, %v4119
  %v4126 = vmul.f32 %v4101, %v4119
  %v4127 = vmul.f32 %v4103, %v4119
  %4129 = vset.pattern.permute.xlu0 0
  %4130 = vperm.xlu0 %4129, %v4120
  %v4131 = vpop.permute.xlu0 %4130
  %4134 = vset.pattern.permute.xlu0 0
  %4135 = vperm.xlu0 %4134, %v4121
  %v4136 = vpop.permute.xlu0 %4135
  %4139 = vset.pattern.permute.xlu0 0
  %4140 = vperm.xlu0 %4139, %v4122
  %v4141 = vpop.permute.xlu0 %4140
  %4144 = vset.pattern.permute.xlu0 0
  %4145 = vperm.xlu0 %4144, %v4123
  %v4146 = vpop.permute.xlu0 %4145
  %4149 = vset.pattern.permute.xlu0 0
  %4150 = vperm.xlu0 %4149, %v4124
  %v4151 = vpop.permute.xlu0 %4150
  %4154 = vset.pattern.permute.xlu0 0
  %4155 = vperm.xlu0 %4154, %v4125
  %v4156 = vpop.permute.xlu0 %4155
  %4159 = vset.pattern.permute.xlu0 0
  %4160 = vperm.xlu0 %4159, %v4126
  %v4161 = vpop.permute.xlu0 %4160
  %4164 = vset.pattern.permute.xlu0 0
  %4165 = vperm.xlu0 %4164, %v4127
  %v4166 = vpop.permute.xlu0 %4165
  %v4168 = vmul.f32 %v4131, %v3080
  %v4169 = vmul.f32 %v4136, %v3081
  %v4170 = vmul.f32 %v4141, %v3082
  %v4171 = vmul.f32 %v4146, %v3083
  %v4172 = vmul.f32 %v4151, %v3084
  %v4173 = vmul.f32 %v4156, %v3085
  %v4174 = vmul.f32 %v4161, %v3086
  %v4175 = vmul.f32 %v4166, %v3087
  %v4176 = vsel %vm52, %v4168, 0.0
  %v4177 = vsel %vm52, %v4169, 0.0
  %v4178 = vadd.f32 %v4176, %v4177
  %v4179 = vsel %vm52, %v4170, 0.0
  %v4180 = vadd.f32 %v4178, %v4179
  %v4181 = vsel %vm52, %v4171, 0.0
  %v4182 = vadd.f32 %v4180, %v4181
  %v4183 = vsel %vm52, %v4172, 0.0
  %v4184 = vadd.f32 %v4182, %v4183
  %v4185 = vsel %vm52, %v4173, 0.0
  %v4186 = vadd.f32 %v4184, %v4185
  %v4187 = vsel %vm52, %v4174, 0.0
  %v4188 = vadd.f32 %v4186, %v4187
  %v4189 = vsel %vm52, %v4175, 0.0
  %v4190 = vadd.f32 %v4188, %v4189
  %v4191 = vmul.f32 %v4131, %v3088
  %v4192 = vmul.f32 %v4136, %v3089
  %v4193 = vmul.f32 %v4141, %v3090
  %v4194 = vmul.f32 %v4146, %v3091
  %v4195 = vmul.f32 %v4151, %v3092
  %v4196 = vmul.f32 %v4156, %v3093
  %v4197 = vmul.f32 %v4161, %v3094
  %v4198 = vmul.f32 %v4166, %v3095
  %v4199 = vsel %vm52, %v4191, 0.0
  %v4200 = vsel %vm52, %v4192, 0.0
  %v4201 = vadd.f32 %v4199, %v4200
  %v4202 = vsel %vm52, %v4193, 0.0
  %v4203 = vadd.f32 %v4201, %v4202
  %v4204 = vsel %vm52, %v4194, 0.0
  %v4205 = vadd.f32 %v4203, %v4204
  %v4206 = vsel %vm52, %v4195, 0.0
  %v4207 = vadd.f32 %v4205, %v4206
  %v4208 = vsel %vm52, %v4196, 0.0
  %v4209 = vadd.f32 %v4207, %v4208
  %v4210 = vsel %vm52, %v4197, 0.0
  %v4211 = vadd.f32 %v4209, %v4210
  %v4212 = vsel %vm52, %v4198, 0.0
  %v4213 = vadd.f32 %v4211, %v4212
  %4215 = vrot.lane.b32.xlu0 %v4213, 32
  %v4216 = vpop.permute.xlu0 %4215
  %4218 = vrot.lane.b32.xlu0 %v4020, 96
  %v4219 = vpop.permute.xlu0 %4218
  %v4221 = vsel %vm52, %v4190, %v4216
  %v4222 = vsel %vm2262, %v4221, %v4219
  %v4224 = vsel %vm3459, %v4222, 0
  %4226 = vmatprep.subr.mxu0 0.0
  %4227 = vmatpush1.msra.mxu0 0.0
  %4228 = vmatprep.subr.mxu0 0.0
  %4229 = vmatpush1.msra.mxu0 0.0
  %4230 = vmatprep.subr.mxu0 0.0
  %4231 = vmatpush1.msra.mxu0 0.0
  %4232 = vmatprep.subr.mxu0 0.0
  %4233 = vmatpush1.msra.mxu0 0.0
  %4234 = vmatprep.subr.mxu0 0.0
  %4235 = vmatpush1.msra.mxu0 %v3147
  %4236 = vmatprep.subr.mxu0 0.0
  %4237 = vmatpush1.msra.mxu0 %v3146
  %4238 = vmatprep.subr.mxu0 0.0
  %4239 = vmatpush1.msra.mxu0 %v3145
  %4240 = vmatprep.subr.mxu0 0.0
  %4241 = vmatpush1.msra.mxu0 %v3144
  %4242 = vmatprep.subr.mxu0 0.0
  %4243 = vmatpush1.msra.mxu0 %v3143
  %4244 = vmatprep.subr.mxu0 0.0
  %4245 = vmatpush1.msra.mxu0 %v3142
  %4246 = vmatprep.subr.mxu0 0.0
  %4247 = vmatpush1.msra.mxu0 %v3141
  %4248 = vmatprep.subr.mxu0 0.0
  %4249 = vmatpush1.msra.mxu0 %v3140
  %4250 = vmatprep.subr.mxu0 0.0
  %4251 = vmatpush1.msra.mxu0 %v3139
  %4252 = vmatprep.subr.mxu0 0.0
  %4253 = vmatpush1.msra.mxu0 %v3138
  %4254 = vmatprep.subr.mxu0 0.0
  %4255 = vmatpush1.msra.mxu0 %v3137
  %4256 = vmatprep.subr.mxu0 0.0
  %4257 = vmatpush1.msra.mxu0 %v3136
  %4258 = vmatprep.subr.mxu0 0.0
  %4259 = vmatpush2.msra.mxu0 0.0
  %4260 = vmatprep.subr.mxu0 0.0
  %4261 = vmatpush2.msra.mxu0 0.0
  %4262 = vmatprep.subr.mxu0 0.0
  %4263 = vmatpush2.msra.mxu0 0.0
  %4264 = vmatprep.subr.mxu0 0.0
  %4265 = vmatpush2.msra.mxu0 0.0
  %4266 = vmatprep.subr.mxu0 0.0
  %4267 = vmatpush2.msra.mxu0 0.0
  %4268 = vmatprep.subr.mxu0 0.0
  %4269 = vmatpush2.msra.mxu0 0.0
  %4270 = vmatprep.subr.mxu0 0.0
  %4271 = vmatpush2.msra.mxu0 0.0
  %4272 = vmatprep.subr.mxu0 0.0
  %4273 = vmatpush2.msra.mxu0 0.0
  %4274 = vmatprep.subr.mxu0 0.0
  %4275 = vmatpush2.msra.mxu0 0.0
  %4276 = vmatprep.subr.mxu0 0.0
  %4277 = vmatpush2.msra.mxu0 0.0
  %4278 = vmatprep.subr.mxu0 0.0
  %4279 = vmatpush2.msra.mxu0 0.0
  %4280 = vmatprep.subr.mxu0 0.0
  %4281 = vmatpush2.msra.mxu0 0.0
  %4282 = vmatprep.subr.mxu0 0.0
  %4283 = vmatpush2.msra.mxu0 0.0
  %4284 = vmatprep.subr.mxu0 0.0
  %4285 = vmatpush2.msra.mxu0 0.0
  %4286 = vmatprep.subr.mxu0 0.0
  %4287 = vmatpush2.msra.mxu0 0.0
  %4288 = vmatprep.subr.mxu0 0.0
  %4289 = vmatpush2.msra.mxu0 0.0
  %4290 = vmatprep.mubr.f32.mxu0 0.0
  %4291 = vmatmul.mubr.f32.gmra.mxu0 %v4224
  %v4292 = vpop.f32.mrf.mxu0
  %v4293 = vadd.f32 0.0, %v4292
  %v4294 = vpop.f32.mrf.mxu0
  %4295 = vdwg.mxu0
  %v4296 = vtanh.pop %v4293
  %s4297 = scalar_lea.vmem [#allocation7], 16
  %4298 = vst.msk [vmem:[%s4297] sm:$0xff] %vm52, %v4296
  %4299 = vrot.lane.b32.xlu0 %v4020, 64
  %v4300 = vpop.permute.xlu0 %4299
  %v4302 = vsel %vm52, %v4296, %v4300
  %s4303 = scalar_lea.vmem [#allocation3], 24
  %v4304 = vld [vmem:[%s4303] sm:$0xff]
  %v4306 = vsel %vm2262, %v4302, 0
  %4308 = vmatprep.subr.mxu0 0.0
  %4309 = vmatpush1.msra.mxu0 0.0
  %4310 = vmatprep.subr.mxu0 0.0
  %4311 = vmatpush1.msra.mxu0 0.0
  %4312 = vmatprep.subr.mxu0 0.0
  %4313 = vmatpush1.msra.mxu0 0.0
  %4314 = vmatprep.subr.mxu0 0.0
  %4315 = vmatpush1.msra.mxu0 0.0
  %4316 = vmatprep.subr.mxu0 0.0
  %4317 = vmatpush1.msra.mxu0 0.0
  %4318 = vmatprep.subr.mxu0 0.0
  %4319 = vmatpush1.msra.mxu0 0.0
  %4320 = vmatprep.subr.mxu0 0.0
  %4321 = vmatpush1.msra.mxu0 0.0
  %4322 = vmatprep.subr.mxu0 0.0
  %4323 = vmatpush1.msra.mxu0 0.0
  %4324 = vmatprep.subr.mxu0 0.0
  %4325 = vmatpush1.msra.mxu0 %v3135
  %4326 = vmatprep.subr.mxu0 0.0
  %4327 = vmatpush1.msra.mxu0 %v3134
  %4328 = vmatprep.subr.mxu0 0.0
  %4329 = vmatpush1.msra.mxu0 %v3133
  %4330 = vmatprep.subr.mxu0 0.0
  %4331 = vmatpush1.msra.mxu0 %v3132
  %4332 = vmatprep.subr.mxu0 0.0
  %4333 = vmatpush1.msra.mxu0 %v3131
  %4334 = vmatprep.subr.mxu0 0.0
  %4335 = vmatpush1.msra.mxu0 %v3130
  %4336 = vmatprep.subr.mxu0 0.0
  %4337 = vmatpush1.msra.mxu0 %v3129
  %4338 = vmatprep.subr.mxu0 0.0
  %4339 = vmatpush1.msra.mxu0 %v3128
  %4340 = vmatprep.subr.mxu0 0.0
  %4341 = vmatpush2.msra.mxu0 0.0
  %4342 = vmatprep.subr.mxu0 0.0
  %4343 = vmatpush2.msra.mxu0 0.0
  %4344 = vmatprep.subr.mxu0 0.0
  %4345 = vmatpush2.msra.mxu0 0.0
  %4346 = vmatprep.subr.mxu0 0.0
  %4347 = vmatpush2.msra.mxu0 0.0
  %4348 = vmatprep.subr.mxu0 0.0
  %4349 = vmatpush2.msra.mxu0 0.0
  %4350 = vmatprep.subr.mxu0 0.0
  %4351 = vmatpush2.msra.mxu0 0.0
  %4352 = vmatprep.subr.mxu0 0.0
  %4353 = vmatpush2.msra.mxu0 0.0
  %4354 = vmatprep.subr.mxu0 0.0
  %4355 = vmatpush2.msra.mxu0 0.0
  %4356 = vmatprep.subr.mxu0 0.0
  %4357 = vmatpush2.msra.mxu0 0.0
  %4358 = vmatprep.subr.mxu0 0.0
  %4359 = vmatpush2.msra.mxu0 0.0
  %4360 = vmatprep.subr.mxu0 0.0
  %4361 = vmatpush2.msra.mxu0 0.0
  %4362 = vmatprep.subr.mxu0 0.0
  %4363 = vmatpush2.msra.mxu0 0.0
  %4364 = vmatprep.subr.mxu0 0.0
  %4365 = vmatpush2.msra.mxu0 0.0
  %4366 = vmatprep.subr.mxu0 0.0
  %4367 = vmatpush2.msra.mxu0 0.0
  %4368 = vmatprep.subr.mxu0 0.0
  %4369 = vmatpush2.msra.mxu0 0.0
  %4370 = vmatprep.subr.mxu0 0.0
  %4371 = vmatpush2.msra.mxu0 0.0
  %4372 = vmatprep.mubr.f32.mxu0 0.0
  %4373 = vmatmul.mubr.f32.gmra.mxu0 %v4306
  %v4374 = vpop.f32.mrf.mxu0
  %v4375 = vadd.f32 0.0, %v4374
  %v4376 = vpop.f32.mrf.mxu0
  %4377 = vdwg.mxu0
  %v4378 = vadd.f32 %v4304, %v4375
  %v4379 = vxor.u32 %v4378, 2147483648
  %v4380 = vmul.f32 %v4379, 1.442695
  %v4381 = vpow.pop %v4380
  %v4382 = vadd.f32 %v4381, 1.0
  %v4383 = vrcp.pop %v4382
  %v4384 = vmul.f32 1.0, %v4383
  %v4385 = vtanh.pop %v4378
  %v4386 = vmul.f32 %v4384, %v4014
  %4388 = vrot.lane.b32.xlu0 %v4385, 64
  %v4389 = vpop.permute.xlu0 %4388
  %v4391 = vmul.f32 %v4384, %v4389
  %4393 = vrot.lane.b32.xlu0 %v4391, 32
  %v4394 = vpop.permute.xlu0 %4393
  %v4396 = vadd.f32 %v4386, %v4394
  %v4397 = vtanh.pop %v4396
  %4399 = vrot.lane.b32.xlu0 %v4397, 64
  %v4400 = vpop.permute.xlu0 %4399
  %v4402 = vmul.f32 %v4384, %v4400
  %4404 = vrot.lane.b32.xlu0 %v4402, 32
  %v4405 = vpop.permute.xlu0 %4404
  %v4407 = vmul.f32 %v3096, %v4405
  %v4408 = vmul.f32 %v3097, %v4405
  %v4409 = vmul.f32 %v3098, %v4405
  %v4410 = vmul.f32 %v3099, %v4405
  %v4411 = vmul.f32 %v3100, %v4405
  %v4412 = vmul.f32 %v3101, %v4405
  %v4413 = vmul.f32 %v3102, %v4405
  %v4414 = vmul.f32 %v3103, %v4405
  %v4415 = vsel %vm52, %v4407, 0.0
  %4416 = vadd.xlane.f32.xlu0 %v4415
  %v4417 = vpop.xlane.xlu0 %4416
  %v4418 = vsel %vm52, %v4408, 0.0
  %4419 = vadd.xlane.f32.xlu0 %v4418
  %v4420 = vpop.xlane.xlu0 %4419
  %v4421 = vsel %vm52, %v4409, 0.0
  %4422 = vadd.xlane.f32.xlu0 %v4421
  %v4423 = vpop.xlane.xlu0 %4422
  %v4424 = vsel %vm52, %v4410, 0.0
  %4425 = vadd.xlane.f32.xlu0 %v4424
  %v4426 = vpop.xlane.xlu0 %4425
  %v4427 = vsel %vm52, %v4411, 0.0
  %4428 = vadd.xlane.f32.xlu0 %v4427
  %v4429 = vpop.xlane.xlu0 %4428
  %v4430 = vsel %vm52, %v4412, 0.0
  %4431 = vadd.xlane.f32.xlu0 %v4430
  %v4432 = vpop.xlane.xlu0 %4431
  %v4433 = vsel %vm52, %v4413, 0.0
  %4434 = vadd.xlane.f32.xlu0 %v4433
  %v4435 = vpop.xlane.xlu0 %4434
  %v4436 = vsel %vm52, %v4414, 0.0
  %4437 = vadd.xlane.f32.xlu0 %v4436
  %v4438 = vpop.xlane.xlu0 %4437
  %v4439 = vadd.f32 %v4417, %v3120
  %v4440 = vadd.f32 %v4420, %v3121
  %v4441 = vadd.f32 %v4423, %v3122
  %v4442 = vadd.f32 %v4426, %v3123
  %v4443 = vadd.f32 %v4429, %v3124
  %v4444 = vadd.f32 %v4432, %v3125
  %v4445 = vadd.f32 %v4435, %v3126
  %v4446 = vadd.f32 %v4438, %v3127
  %v4447 = vsel %vm3300, %v4439, -inf
  %v4448 = vsel %vm3300, %v4440, -inf
  %v4449 = vsel %vm3300, %v4441, -inf
  %v4450 = vsel %vm3300, %v4442, -inf
  %v4451 = vsel %vm3300, %v4443, -inf
  %v4452 = vmax.f32 %v4447, %v4451
  %v4453 = vsel %vm3300, %v4444, -inf
  %v4454 = vmax.f32 %v4448, %v4453
  %v4455 = vsel %vm3300, %v4445, -inf
  %v4456 = vmax.f32 %v4449, %v4455
  %v4457 = vsel %vm3300, %v4446, -inf
  %v4458 = vmax.f32 %v4450, %v4457
  %v4459 = vmax.f32 %v4452, %v4454
  %v4460 = vmax.f32 %v4456, %v4458
  %v4461 = vmax.f32 %v4459, %v4460
  %v4462 = vsub.f32 %v4439, %v4461
  %v4463 = vsub.f32 %v4440, %v4461
  %v4464 = vsub.f32 %v4441, %v4461
  %v4465 = vsub.f32 %v4442, %v4461
  %v4466 = vsub.f32 %v4443, %v4461
  %v4467 = vsub.f32 %v4444, %v4461
  %v4468 = vsub.f32 %v4445, %v4461
  %v4469 = vsub.f32 %v4446, %v4461
  %v4470 = vmul.f32 %v4462, 1.442695
  %v4471 = vpow.pop %v4470
  %v4472 = vmul.f32 %v4463, 1.442695
  %v4473 = vpow.pop %v4472
  %v4474 = vmul.f32 %v4464, 1.442695
  %v4475 = vpow.pop %v4474
  %v4476 = vmul.f32 %v4465, 1.442695
  %v4477 = vpow.pop %v4476
  %v4478 = vmul.f32 %v4466, 1.442695
  %v4479 = vpow.pop %v4478
  %v4480 = vmul.f32 %v4467, 1.442695
  %v4481 = vpow.pop %v4480
  %v4482 = vmul.f32 %v4468, 1.442695
  %v4483 = vpow.pop %v4482
  %v4484 = vmul.f32 %v4469, 1.442695
  %v4485 = vpow.pop %v4484
  %v4486 = vsel %vm3300, %v4471, 0.0
  %v4487 = vsel %vm3300, %v4473, 0.0
  %v4488 = vadd.f32 %v4486, %v4487
  %v4489 = vsel %vm3300, %v4475, 0.0
  %v4490 = vadd.f32 %v4488, %v4489
  %v4491 = vsel %vm3300, %v4477, 0.0
  %v4492 = vadd.f32 %v4490, %v4491
  %v4493 = vsel %vm3300, %v4479, 0.0
  %v4494 = vadd.f32 %v4492, %v4493
  %v4495 = vsel %vm3300, %v4481, 0.0
  %v4496 = vadd.f32 %v4494, %v4495
  %v4497 = vsel %vm3300, %v4483, 0.0
  %v4498 = vadd.f32 %v4496, %v4497
  %v4499 = vsel %vm3300, %v4485, 0.0
  %v4500 = vadd.f32 %v4498, %v4499
  %v4501 = vrcp.pop %v4500
  %v4502 = vmul.f32 %v4471, %v4501
  %v4503 = vmul.f32 %v4473, %v4501
  %v4504 = vmul.f32 %v4475, %v4501
  %v4505 = vmul.f32 %v4477, %v4501
  %v4506 = vmul.f32 %v4479, %v4501
  %v4507 = vmul.f32 %v4481, %v4501
  %v4508 = vmul.f32 %v4483, %v4501
  %v4509 = vmul.f32 %v4485, %v4501
  %4511 = vset.pattern.permute.xlu0 0
  %4512 = vperm.xlu0 %4511, %v4502
  %v4513 = vpop.permute.xlu0 %4512
  %4516 = vset.pattern.permute.xlu0 0
  %4517 = vperm.xlu0 %4516, %v4503
  %v4518 = vpop.permute.xlu0 %4517
  %4521 = vset.pattern.permute.xlu0 0
  %4522 = vperm.xlu0 %4521, %v4504
  %v4523 = vpop.permute.xlu0 %4522
  %4526 = vset.pattern.permute.xlu0 0
  %4527 = vperm.xlu0 %4526, %v4505
  %v4528 = vpop.permute.xlu0 %4527
  %4531 = vset.pattern.permute.xlu0 0
  %4532 = vperm.xlu0 %4531, %v4506
  %v4533 = vpop.permute.xlu0 %4532
  %4536 = vset.pattern.permute.xlu0 0
  %4537 = vperm.xlu0 %4536, %v4507
  %v4538 = vpop.permute.xlu0 %4537
  %4541 = vset.pattern.permute.xlu0 0
  %4542 = vperm.xlu0 %4541, %v4508
  %v4543 = vpop.permute.xlu0 %4542
  %4546 = vset.pattern.permute.xlu0 0
  %4547 = vperm.xlu0 %4546, %v4509
  %v4548 = vpop.permute.xlu0 %4547
  %v4550 = vmul.f32 %v4513, %v3080
  %v4551 = vmul.f32 %v4518, %v3081
  %v4552 = vmul.f32 %v4523, %v3082
  %v4553 = vmul.f32 %v4528, %v3083
  %v4554 = vmul.f32 %v4533, %v3084
  %v4555 = vmul.f32 %v4538, %v3085
  %v4556 = vmul.f32 %v4543, %v3086
  %v4557 = vmul.f32 %v4548, %v3087
  %v4558 = vsel %vm52, %v4550, 0.0
  %v4559 = vsel %vm52, %v4551, 0.0
  %v4560 = vadd.f32 %v4558, %v4559
  %v4561 = vsel %vm52, %v4552, 0.0
  %v4562 = vadd.f32 %v4560, %v4561
  %v4563 = vsel %vm52, %v4553, 0.0
  %v4564 = vadd.f32 %v4562, %v4563
  %v4565 = vsel %vm52, %v4554, 0.0
  %v4566 = vadd.f32 %v4564, %v4565
  %v4567 = vsel %vm52, %v4555, 0.0
  %v4568 = vadd.f32 %v4566, %v4567
  %v4569 = vsel %vm52, %v4556, 0.0
  %v4570 = vadd.f32 %v4568, %v4569
  %v4571 = vsel %vm52, %v4557, 0.0
  %v4572 = vadd.f32 %v4570, %v4571
  %v4573 = vmul.f32 %v4513, %v3088
  %v4574 = vmul.f32 %v4518, %v3089
  %v4575 = vmul.f32 %v4523, %v3090
  %v4576 = vmul.f32 %v4528, %v3091
  %v4577 = vmul.f32 %v4533, %v3092
  %v4578 = vmul.f32 %v4538, %v3093
  %v4579 = vmul.f32 %v4543, %v3094
  %v4580 = vmul.f32 %v4548, %v3095
  %v4581 = vsel %vm52, %v4573, 0.0
  %v4582 = vsel %vm52, %v4574, 0.0
  %v4583 = vadd.f32 %v4581, %v4582
  %v4584 = vsel %vm52, %v4575, 0.0
  %v4585 = vadd.f32 %v4583, %v4584
  %v4586 = vsel %vm52, %v4576, 0.0
  %v4587 = vadd.f32 %v4585, %v4586
  %v4588 = vsel %vm52, %v4577, 0.0
  %v4589 = vadd.f32 %v4587, %v4588
  %v4590 = vsel %vm52, %v4578, 0.0
  %v4591 = vadd.f32 %v4589, %v4590
  %v4592 = vsel %vm52, %v4579, 0.0
  %v4593 = vadd.f32 %v4591, %v4592
  %v4594 = vsel %vm52, %v4580, 0.0
  %v4595 = vadd.f32 %v4593, %v4594
  %4597 = vrot.lane.b32.xlu0 %v4595, 32
  %v4598 = vpop.permute.xlu0 %4597
  %4600 = vrot.lane.b32.xlu0 %v4402, 96
  %v4601 = vpop.permute.xlu0 %4600
  %v4603 = vsel %vm52, %v4572, %v4598
  %v4604 = vsel %vm2262, %v4603, %v4601
  %v4606 = vsel %vm3459, %v4604, 0
  %4608 = vmatprep.subr.mxu0 0.0
  %4609 = vmatpush1.msra.mxu0 0.0
  %4610 = vmatprep.subr.mxu0 0.0
  %4611 = vmatpush1.msra.mxu0 0.0
  %4612 = vmatprep.subr.mxu0 0.0
  %4613 = vmatpush1.msra.mxu0 0.0
  %4614 = vmatprep.subr.mxu0 0.0
  %4615 = vmatpush1.msra.mxu0 0.0
  %4616 = vmatprep.subr.mxu0 0.0
  %4617 = vmatpush1.msra.mxu0 %v3147
  %4618 = vmatprep.subr.mxu0 0.0
  %4619 = vmatpush1.msra.mxu0 %v3146
  %4620 = vmatprep.subr.mxu0 0.0
  %4621 = vmatpush1.msra.mxu0 %v3145
  %4622 = vmatprep.subr.mxu0 0.0
  %4623 = vmatpush1.msra.mxu0 %v3144
  %4624 = vmatprep.subr.mxu0 0.0
  %4625 = vmatpush1.msra.mxu0 %v3143
  %4626 = vmatprep.subr.mxu0 0.0
  %4627 = vmatpush1.msra.mxu0 %v3142
  %4628 = vmatprep.subr.mxu0 0.0
  %4629 = vmatpush1.msra.mxu0 %v3141
  %4630 = vmatprep.subr.mxu0 0.0
  %4631 = vmatpush1.msra.mxu0 %v3140
  %4632 = vmatprep.subr.mxu0 0.0
  %4633 = vmatpush1.msra.mxu0 %v3139
  %4634 = vmatprep.subr.mxu0 0.0
  %4635 = vmatpush1.msra.mxu0 %v3138
  %4636 = vmatprep.subr.mxu0 0.0
  %4637 = vmatpush1.msra.mxu0 %v3137
  %4638 = vmatprep.subr.mxu0 0.0
  %4639 = vmatpush1.msra.mxu0 %v3136
  %4640 = vmatprep.subr.mxu0 0.0
  %4641 = vmatpush2.msra.mxu0 0.0
  %4642 = vmatprep.subr.mxu0 0.0
  %4643 = vmatpush2.msra.mxu0 0.0
  %4644 = vmatprep.subr.mxu0 0.0
  %4645 = vmatpush2.msra.mxu0 0.0
  %4646 = vmatprep.subr.mxu0 0.0
  %4647 = vmatpush2.msra.mxu0 0.0
  %4648 = vmatprep.subr.mxu0 0.0
  %4649 = vmatpush2.msra.mxu0 0.0
  %4650 = vmatprep.subr.mxu0 0.0
  %4651 = vmatpush2.msra.mxu0 0.0
  %4652 = vmatprep.subr.mxu0 0.0
  %4653 = vmatpush2.msra.mxu0 0.0
  %4654 = vmatprep.subr.mxu0 0.0
  %4655 = vmatpush2.msra.mxu0 0.0
  %4656 = vmatprep.subr.mxu0 0.0
  %4657 = vmatpush2.msra.mxu0 0.0
  %4658 = vmatprep.subr.mxu0 0.0
  %4659 = vmatpush2.msra.mxu0 0.0
  %4660 = vmatprep.subr.mxu0 0.0
  %4661 = vmatpush2.msra.mxu0 0.0
  %4662 = vmatprep.subr.mxu0 0.0
  %4663 = vmatpush2.msra.mxu0 0.0
  %4664 = vmatprep.subr.mxu0 0.0
  %4665 = vmatpush2.msra.mxu0 0.0
  %4666 = vmatprep.subr.mxu0 0.0
  %4667 = vmatpush2.msra.mxu0 0.0
  %4668 = vmatprep.subr.mxu0 0.0
  %4669 = vmatpush2.msra.mxu0 0.0
  %4670 = vmatprep.subr.mxu0 0.0
  %4671 = vmatpush2.msra.mxu0 0.0
  %4672 = vmatprep.mubr.f32.mxu0 0.0
  %4673 = vmatmul.mubr.f32.gmra.mxu0 %v4606
  %v4674 = vpop.f32.mrf.mxu0
  %v4675 = vadd.f32 0.0, %v4674
  %v4676 = vpop.f32.mrf.mxu0
  %4677 = vdwg.mxu0
  %v4678 = vtanh.pop %v4675
  %s4679 = scalar_lea.vmem [#allocation7], 24
  %4680 = vst.msk [vmem:[%s4679] sm:$0xff] %vm52, %v4678
  %4681 = vrot.lane.b32.xlu0 %v4402, 64
  %v4682 = vpop.permute.xlu0 %4681
  %v4684 = vsel %vm52, %v4678, %v4682
  %s4685 = scalar_lea.vmem [#allocation3], 32
  %v4686 = vld [vmem:[%s4685] sm:$0xff]
  %v4688 = vsel %vm2262, %v4684, 0
  %4690 = vmatprep.subr.mxu0 0.0
  %4691 = vmatpush1.msra.mxu0 0.0
  %4692 = vmatprep.subr.mxu0 0.0
  %4693 = vmatpush1.msra.mxu0 0.0
  %4694 = vmatprep.subr.mxu0 0.0
  %4695 = vmatpush1.msra.mxu0 0.0
  %4696 = vmatprep.subr.mxu0 0.0
  %4697 = vmatpush1.msra.mxu0 0.0
  %4698 = vmatprep.subr.mxu0 0.0
  %4699 = vmatpush1.msra.mxu0 0.0
  %4700 = vmatprep.subr.mxu0 0.0
  %4701 = vmatpush1.msra.mxu0 0.0
  %4702 = vmatprep.subr.mxu0 0.0
  %4703 = vmatpush1.msra.mxu0 0.0
  %4704 = vmatprep.subr.mxu0 0.0
  %4705 = vmatpush1.msra.mxu0 0.0
  %4706 = vmatprep.subr.mxu0 0.0
  %4707 = vmatpush1.msra.mxu0 %v3135
  %4708 = vmatprep.subr.mxu0 0.0
  %4709 = vmatpush1.msra.mxu0 %v3134
  %4710 = vmatprep.subr.mxu0 0.0
  %4711 = vmatpush1.msra.mxu0 %v3133
  %4712 = vmatprep.subr.mxu0 0.0
  %4713 = vmatpush1.msra.mxu0 %v3132
  %4714 = vmatprep.subr.mxu0 0.0
  %4715 = vmatpush1.msra.mxu0 %v3131
  %4716 = vmatprep.subr.mxu0 0.0
  %4717 = vmatpush1.msra.mxu0 %v3130
  %4718 = vmatprep.subr.mxu0 0.0
  %4719 = vmatpush1.msra.mxu0 %v3129
  %4720 = vmatprep.subr.mxu0 0.0
  %4721 = vmatpush1.msra.mxu0 %v3128
  %4722 = vmatprep.subr.mxu0 0.0
  %4723 = vmatpush2.msra.mxu0 0.0
  %4724 = vmatprep.subr.mxu0 0.0
  %4725 = vmatpush2.msra.mxu0 0.0
  %4726 = vmatprep.subr.mxu0 0.0
  %4727 = vmatpush2.msra.mxu0 0.0
  %4728 = vmatprep.subr.mxu0 0.0
  %4729 = vmatpush2.msra.mxu0 0.0
  %4730 = vmatprep.subr.mxu0 0.0
  %4731 = vmatpush2.msra.mxu0 0.0
  %4732 = vmatprep.subr.mxu0 0.0
  %4733 = vmatpush2.msra.mxu0 0.0
  %4734 = vmatprep.subr.mxu0 0.0
  %4735 = vmatpush2.msra.mxu0 0.0
  %4736 = vmatprep.subr.mxu0 0.0
  %4737 = vmatpush2.msra.mxu0 0.0
  %4738 = vmatprep.subr.mxu0 0.0
  %4739 = vmatpush2.msra.mxu0 0.0
  %4740 = vmatprep.subr.mxu0 0.0
  %4741 = vmatpush2.msra.mxu0 0.0
  %4742 = vmatprep.subr.mxu0 0.0
  %4743 = vmatpush2.msra.mxu0 0.0
  %4744 = vmatprep.subr.mxu0 0.0
  %4745 = vmatpush2.msra.mxu0 0.0
  %4746 = vmatprep.subr.mxu0 0.0
  %4747 = vmatpush2.msra.mxu0 0.0
  %4748 = vmatprep.subr.mxu0 0.0
  %4749 = vmatpush2.msra.mxu0 0.0
  %4750 = vmatprep.subr.mxu0 0.0
  %4751 = vmatpush2.msra.mxu0 0.0
  %4752 = vmatprep.subr.mxu0 0.0
  %4753 = vmatpush2.msra.mxu0 0.0
  %4754 = vmatprep.mubr.f32.mxu0 0.0
  %4755 = vmatmul.mubr.f32.gmra.mxu0 %v4688
  %v4756 = vpop.f32.mrf.mxu0
  %v4757 = vadd.f32 0.0, %v4756
  %v4758 = vpop.f32.mrf.mxu0
  %4759 = vdwg.mxu0
  %v4760 = vadd.f32 %v4686, %v4757
  %v4761 = vxor.u32 %v4760, 2147483648
  %v4762 = vmul.f32 %v4761, 1.442695
  %v4763 = vpow.pop %v4762
  %v4764 = vadd.f32 %v4763, 1.0
  %v4765 = vrcp.pop %v4764
  %v4766 = vmul.f32 1.0, %v4765
  %v4767 = vtanh.pop %v4760
  %v4768 = vmul.f32 %v4766, %v4396
  %4770 = vrot.lane.b32.xlu0 %v4767, 64
  %v4771 = vpop.permute.xlu0 %4770
  %v4773 = vmul.f32 %v4766, %v4771
  %4775 = vrot.lane.b32.xlu0 %v4773, 32
  %v4776 = vpop.permute.xlu0 %4775
  %v4778 = vadd.f32 %v4768, %v4776
  %v4779 = vtanh.pop %v4778
  %4781 = vrot.lane.b32.xlu0 %v4779, 64
  %v4782 = vpop.permute.xlu0 %4781
  %v4784 = vmul.f32 %v4766, %v4782
  %4786 = vrot.lane.b32.xlu0 %v4784, 32
  %v4787 = vpop.permute.xlu0 %4786
  %v4789 = vmul.f32 %v3096, %v4787
  %v4790 = vmul.f32 %v3097, %v4787
  %v4791 = vmul.f32 %v3098, %v4787
  %v4792 = vmul.f32 %v3099, %v4787
  %v4793 = vmul.f32 %v3100, %v4787
  %v4794 = vmul.f32 %v3101, %v4787
  %v4795 = vmul.f32 %v3102, %v4787
  %v4796 = vmul.f32 %v3103, %v4787
  %v4797 = vsel %vm52, %v4789, 0.0
  %4798 = vadd.xlane.f32.xlu0 %v4797
  %v4799 = vpop.xlane.xlu0 %4798
  %v4800 = vsel %vm52, %v4790, 0.0
  %4801 = vadd.xlane.f32.xlu0 %v4800
  %v4802 = vpop.xlane.xlu0 %4801
  %v4803 = vsel %vm52, %v4791, 0.0
  %4804 = vadd.xlane.f32.xlu0 %v4803
  %v4805 = vpop.xlane.xlu0 %4804
  %v4806 = vsel %vm52, %v4792, 0.0
  %4807 = vadd.xlane.f32.xlu0 %v4806
  %v4808 = vpop.xlane.xlu0 %4807
  %v4809 = vsel %vm52, %v4793, 0.0
  %4810 = vadd.xlane.f32.xlu0 %v4809
  %v4811 = vpop.xlane.xlu0 %4810
  %v4812 = vsel %vm52, %v4794, 0.0
  %4813 = vadd.xlane.f32.xlu0 %v4812
  %v4814 = vpop.xlane.xlu0 %4813
  %v4815 = vsel %vm52, %v4795, 0.0
  %4816 = vadd.xlane.f32.xlu0 %v4815
  %v4817 = vpop.xlane.xlu0 %4816
  %v4818 = vsel %vm52, %v4796, 0.0
  %4819 = vadd.xlane.f32.xlu0 %v4818
  %v4820 = vpop.xlane.xlu0 %4819
  %v4821 = vadd.f32 %v4799, %v3120
  %v4822 = vadd.f32 %v4802, %v3121
  %v4823 = vadd.f32 %v4805, %v3122
  %v4824 = vadd.f32 %v4808, %v3123
  %v4825 = vadd.f32 %v4811, %v3124
  %v4826 = vadd.f32 %v4814, %v3125
  %v4827 = vadd.f32 %v4817, %v3126
  %v4828 = vadd.f32 %v4820, %v3127
  %v4829 = vsel %vm3300, %v4821, -inf
  %v4830 = vsel %vm3300, %v4822, -inf
  %v4831 = vsel %vm3300, %v4823, -inf
  %v4832 = vsel %vm3300, %v4824, -inf
  %v4833 = vsel %vm3300, %v4825, -inf
  %v4834 = vmax.f32 %v4829, %v4833
  %v4835 = vsel %vm3300, %v4826, -inf
  %v4836 = vmax.f32 %v4830, %v4835
  %v4837 = vsel %vm3300, %v4827, -inf
  %v4838 = vmax.f32 %v4831, %v4837
  %v4839 = vsel %vm3300, %v4828, -inf
  %v4840 = vmax.f32 %v4832, %v4839
  %v4841 = vmax.f32 %v4834, %v4836
  %v4842 = vmax.f32 %v4838, %v4840
  %v4843 = vmax.f32 %v4841, %v4842
  %v4844 = vsub.f32 %v4821, %v4843
  %v4845 = vsub.f32 %v4822, %v4843
  %v4846 = vsub.f32 %v4823, %v4843
  %v4847 = vsub.f32 %v4824, %v4843
  %v4848 = vsub.f32 %v4825, %v4843
  %v4849 = vsub.f32 %v4826, %v4843
  %v4850 = vsub.f32 %v4827, %v4843
  %v4851 = vsub.f32 %v4828, %v4843
  %v4852 = vmul.f32 %v4844, 1.442695
  %v4853 = vpow.pop %v4852
  %v4854 = vmul.f32 %v4845, 1.442695
  %v4855 = vpow.pop %v4854
  %v4856 = vmul.f32 %v4846, 1.442695
  %v4857 = vpow.pop %v4856
  %v4858 = vmul.f32 %v4847, 1.442695
  %v4859 = vpow.pop %v4858
  %v4860 = vmul.f32 %v4848, 1.442695
  %v4861 = vpow.pop %v4860
  %v4862 = vmul.f32 %v4849, 1.442695
  %v4863 = vpow.pop %v4862
  %v4864 = vmul.f32 %v4850, 1.442695
  %v4865 = vpow.pop %v4864
  %v4866 = vmul.f32 %v4851, 1.442695
  %v4867 = vpow.pop %v4866
  %v4868 = vsel %vm3300, %v4853, 0.0
  %v4869 = vsel %vm3300, %v4855, 0.0
  %v4870 = vadd.f32 %v4868, %v4869
  %v4871 = vsel %vm3300, %v4857, 0.0
  %v4872 = vadd.f32 %v4870, %v4871
  %v4873 = vsel %vm3300, %v4859, 0.0
  %v4874 = vadd.f32 %v4872, %v4873
  %v4875 = vsel %vm3300, %v4861, 0.0
  %v4876 = vadd.f32 %v4874, %v4875
  %v4877 = vsel %vm3300, %v4863, 0.0
  %v4878 = vadd.f32 %v4876, %v4877
  %v4879 = vsel %vm3300, %v4865, 0.0
  %v4880 = vadd.f32 %v4878, %v4879
  %v4881 = vsel %vm3300, %v4867, 0.0
  %v4882 = vadd.f32 %v4880, %v4881
  %v4883 = vrcp.pop %v4882
  %v4884 = vmul.f32 %v4853, %v4883
  %v4885 = vmul.f32 %v4855, %v4883
  %v4886 = vmul.f32 %v4857, %v4883
  %v4887 = vmul.f32 %v4859, %v4883
  %v4888 = vmul.f32 %v4861, %v4883
  %v4889 = vmul.f32 %v4863, %v4883
  %v4890 = vmul.f32 %v4865, %v4883
  %v4891 = vmul.f32 %v4867, %v4883
  %4893 = vset.pattern.permute.xlu0 0
  %4894 = vperm.xlu0 %4893, %v4884
  %v4895 = vpop.permute.xlu0 %4894
  %4898 = vset.pattern.permute.xlu0 0
  %4899 = vperm.xlu0 %4898, %v4885
  %v4900 = vpop.permute.xlu0 %4899
  %4903 = vset.pattern.permute.xlu0 0
  %4904 = vperm.xlu0 %4903, %v4886
  %v4905 = vpop.permute.xlu0 %4904
  %4908 = vset.pattern.permute.xlu0 0
  %4909 = vperm.xlu0 %4908, %v4887
  %v4910 = vpop.permute.xlu0 %4909
  %4913 = vset.pattern.permute.xlu0 0
  %4914 = vperm.xlu0 %4913, %v4888
  %v4915 = vpop.permute.xlu0 %4914
  %4918 = vset.pattern.permute.xlu0 0
  %4919 = vperm.xlu0 %4918, %v4889
  %v4920 = vpop.permute.xlu0 %4919
  %4923 = vset.pattern.permute.xlu0 0
  %4924 = vperm.xlu0 %4923, %v4890
  %v4925 = vpop.permute.xlu0 %4924
  %4928 = vset.pattern.permute.xlu0 0
  %4929 = vperm.xlu0 %4928, %v4891
  %v4930 = vpop.permute.xlu0 %4929
  %v4932 = vmul.f32 %v4895, %v3080
  %v4933 = vmul.f32 %v4900, %v3081
  %v4934 = vmul.f32 %v4905, %v3082
  %v4935 = vmul.f32 %v4910, %v3083
  %v4936 = vmul.f32 %v4915, %v3084
  %v4937 = vmul.f32 %v4920, %v3085
  %v4938 = vmul.f32 %v4925, %v3086
  %v4939 = vmul.f32 %v4930, %v3087
  %v4940 = vsel %vm52, %v4932, 0.0
  %v4941 = vsel %vm52, %v4933, 0.0
  %v4942 = vadd.f32 %v4940, %v4941
  %v4943 = vsel %vm52, %v4934, 0.0
  %v4944 = vadd.f32 %v4942, %v4943
  %v4945 = vsel %vm52, %v4935, 0.0
  %v4946 = vadd.f32 %v4944, %v4945
  %v4947 = vsel %vm52, %v4936, 0.0
  %v4948 = vadd.f32 %v4946, %v4947
  %v4949 = vsel %vm52, %v4937, 0.0
  %v4950 = vadd.f32 %v4948, %v4949
  %v4951 = vsel %vm52, %v4938, 0.0
  %v4952 = vadd.f32 %v4950, %v4951
  %v4953 = vsel %vm52, %v4939, 0.0
  %v4954 = vadd.f32 %v4952, %v4953
  %v4955 = vmul.f32 %v4895, %v3088
  %v4956 = vmul.f32 %v4900, %v3089
  %v4957 = vmul.f32 %v4905, %v3090
  %v4958 = vmul.f32 %v4910, %v3091
  %v4959 = vmul.f32 %v4915, %v3092
  %v4960 = vmul.f32 %v4920, %v3093
  %v4961 = vmul.f32 %v4925, %v3094
  %v4962 = vmul.f32 %v4930, %v3095
  %v4963 = vsel %vm52, %v4955, 0.0
  %v4964 = vsel %vm52, %v4956, 0.0
  %v4965 = vadd.f32 %v4963, %v4964
  %v4966 = vsel %vm52, %v4957, 0.0
  %v4967 = vadd.f32 %v4965, %v4966
  %v4968 = vsel %vm52, %v4958, 0.0
  %v4969 = vadd.f32 %v4967, %v4968
  %v4970 = vsel %vm52, %v4959, 0.0
  %v4971 = vadd.f32 %v4969, %v4970
  %v4972 = vsel %vm52, %v4960, 0.0
  %v4973 = vadd.f32 %v4971, %v4972
  %v4974 = vsel %vm52, %v4961, 0.0
  %v4975 = vadd.f32 %v4973, %v4974
  %v4976 = vsel %vm52, %v4962, 0.0
  %v4977 = vadd.f32 %v4975, %v4976
  %4979 = vrot.lane.b32.xlu0 %v4977, 32
  %v4980 = vpop.permute.xlu0 %4979
  %4982 = vrot.lane.b32.xlu0 %v4784, 96
  %v4983 = vpop.permute.xlu0 %4982
  %v4985 = vsel %vm52, %v4954, %v4980
  %v4986 = vsel %vm2262, %v4985, %v4983
  %v4988 = vsel %vm3459, %v4986, 0
  %4990 = vmatprep.subr.mxu0 0.0
  %4991 = vmatpush1.msra.mxu0 0.0
  %4992 = vmatprep.subr.mxu0 0.0
  %4993 = vmatpush1.msra.mxu0 0.0
  %4994 = vmatprep.subr.mxu0 0.0
  %4995 = vmatpush1.msra.mxu0 0.0
  %4996 = vmatprep.subr.mxu0 0.0
  %4997 = vmatpush1.msra.mxu0 0.0
  %4998 = vmatprep.subr.mxu0 0.0
  %4999 = vmatpush1.msra.mxu0 %v3147
  %5000 = vmatprep.subr.mxu0 0.0
  %5001 = vmatpush1.msra.mxu0 %v3146
  %5002 = vmatprep.subr.mxu0 0.0
  %5003 = vmatpush1.msra.mxu0 %v3145
  %5004 = vmatprep.subr.mxu0 0.0
  %5005 = vmatpush1.msra.mxu0 %v3144
  %5006 = vmatprep.subr.mxu0 0.0
  %5007 = vmatpush1.msra.mxu0 %v3143
  %5008 = vmatprep.subr.mxu0 0.0
  %5009 = vmatpush1.msra.mxu0 %v3142
  %5010 = vmatprep.subr.mxu0 0.0
  %5011 = vmatpush1.msra.mxu0 %v3141
  %5012 = vmatprep.subr.mxu0 0.0
  %5013 = vmatpush1.msra.mxu0 %v3140
  %5014 = vmatprep.subr.mxu0 0.0
  %5015 = vmatpush1.msra.mxu0 %v3139
  %5016 = vmatprep.subr.mxu0 0.0
  %5017 = vmatpush1.msra.mxu0 %v3138
  %5018 = vmatprep.subr.mxu0 0.0
  %5019 = vmatpush1.msra.mxu0 %v3137
  %5020 = vmatprep.subr.mxu0 0.0
  %5021 = vmatpush1.msra.mxu0 %v3136
  %5022 = vmatprep.subr.mxu0 0.0
  %5023 = vmatpush2.msra.mxu0 0.0
  %5024 = vmatprep.subr.mxu0 0.0
  %5025 = vmatpush2.msra.mxu0 0.0
  %5026 = vmatprep.subr.mxu0 0.0
  %5027 = vmatpush2.msra.mxu0 0.0
  %5028 = vmatprep.subr.mxu0 0.0
  %5029 = vmatpush2.msra.mxu0 0.0
  %5030 = vmatprep.subr.mxu0 0.0
  %5031 = vmatpush2.msra.mxu0 0.0
  %5032 = vmatprep.subr.mxu0 0.0
  %5033 = vmatpush2.msra.mxu0 0.0
  %5034 = vmatprep.subr.mxu0 0.0
  %5035 = vmatpush2.msra.mxu0 0.0
  %5036 = vmatprep.subr.mxu0 0.0
  %5037 = vmatpush2.msra.mxu0 0.0
  %5038 = vmatprep.subr.mxu0 0.0
  %5039 = vmatpush2.msra.mxu0 0.0
  %5040 = vmatprep.subr.mxu0 0.0
  %5041 = vmatpush2.msra.mxu0 0.0
  %5042 = vmatprep.subr.mxu0 0.0
  %5043 = vmatpush2.msra.mxu0 0.0
  %5044 = vmatprep.subr.mxu0 0.0
  %5045 = vmatpush2.msra.mxu0 0.0
  %5046 = vmatprep.subr.mxu0 0.0
  %5047 = vmatpush2.msra.mxu0 0.0
  %5048 = vmatprep.subr.mxu0 0.0
  %5049 = vmatpush2.msra.mxu0 0.0
  %5050 = vmatprep.subr.mxu0 0.0
  %5051 = vmatpush2.msra.mxu0 0.0
  %5052 = vmatprep.subr.mxu0 0.0
  %5053 = vmatpush2.msra.mxu0 0.0
  %5054 = vmatprep.mubr.f32.mxu0 0.0
  %5055 = vmatmul.mubr.f32.gmra.mxu0 %v4988
  %v5056 = vpop.f32.mrf.mxu0
  %v5057 = vadd.f32 0.0, %v5056
  %v5058 = vpop.f32.mrf.mxu0
  %5059 = vdwg.mxu0
  %v5060 = vtanh.pop %v5057
  %s5061 = scalar_lea.vmem [#allocation7], 32
  %5062 = vst.msk [vmem:[%s5061] sm:$0xff] %vm52, %v5060
  %5063 = vrot.lane.b32.xlu0 %v4784, 64
  %v5064 = vpop.permute.xlu0 %5063
  %v5066 = vsel %vm52, %v5060, %v5064
  %s5067 = scalar_lea.vmem [#allocation3], 40
  %v5068 = vld [vmem:[%s5067] sm:$0xff]
  %v5070 = vsel %vm2262, %v5066, 0
  %5072 = vmatprep.subr.mxu0 0.0
  %5073 = vmatpush1.msra.mxu0 0.0
  %5074 = vmatprep.subr.mxu0 0.0
  %5075 = vmatpush1.msra.mxu0 0.0
  %5076 = vmatprep.subr.mxu0 0.0
  %5077 = vmatpush1.msra.mxu0 0.0
  %5078 = vmatprep.subr.mxu0 0.0
  %5079 = vmatpush1.msra.mxu0 0.0
  %5080 = vmatprep.subr.mxu0 0.0
  %5081 = vmatpush1.msra.mxu0 0.0
  %5082 = vmatprep.subr.mxu0 0.0
  %5083 = vmatpush1.msra.mxu0 0.0
  %5084 = vmatprep.subr.mxu0 0.0
  %5085 = vmatpush1.msra.mxu0 0.0
  %5086 = vmatprep.subr.mxu0 0.0
  %5087 = vmatpush1.msra.mxu0 0.0
  %5088 = vmatprep.subr.mxu0 0.0
  %5089 = vmatpush1.msra.mxu0 %v3135
  %5090 = vmatprep.subr.mxu0 0.0
  %5091 = vmatpush1.msra.mxu0 %v3134
  %5092 = vmatprep.subr.mxu0 0.0
  %5093 = vmatpush1.msra.mxu0 %v3133
  %5094 = vmatprep.subr.mxu0 0.0
  %5095 = vmatpush1.msra.mxu0 %v3132
  %5096 = vmatprep.subr.mxu0 0.0
  %5097 = vmatpush1.msra.mxu0 %v3131
  %5098 = vmatprep.subr.mxu0 0.0
  %5099 = vmatpush1.msra.mxu0 %v3130
  %5100 = vmatprep.subr.mxu0 0.0
  %5101 = vmatpush1.msra.mxu0 %v3129
  %5102 = vmatprep.subr.mxu0 0.0
  %5103 = vmatpush1.msra.mxu0 %v3128
  %5104 = vmatprep.subr.mxu0 0.0
  %5105 = vmatpush2.msra.mxu0 0.0
  %5106 = vmatprep.subr.mxu0 0.0
  %5107 = vmatpush2.msra.mxu0 0.0
  %5108 = vmatprep.subr.mxu0 0.0
  %5109 = vmatpush2.msra.mxu0 0.0
  %5110 = vmatprep.subr.mxu0 0.0
  %5111 = vmatpush2.msra.mxu0 0.0
  %5112 = vmatprep.subr.mxu0 0.0
  %5113 = vmatpush2.msra.mxu0 0.0
  %5114 = vmatprep.subr.mxu0 0.0
  %5115 = vmatpush2.msra.mxu0 0.0
  %5116 = vmatprep.subr.mxu0 0.0
  %5117 = vmatpush2.msra.mxu0 0.0
  %5118 = vmatprep.subr.mxu0 0.0
  %5119 = vmatpush2.msra.mxu0 0.0
  %5120 = vmatprep.subr.mxu0 0.0
  %5121 = vmatpush2.msra.mxu0 0.0
  %5122 = vmatprep.subr.mxu0 0.0
  %5123 = vmatpush2.msra.mxu0 0.0
  %5124 = vmatprep.subr.mxu0 0.0
  %5125 = vmatpush2.msra.mxu0 0.0
  %5126 = vmatprep.subr.mxu0 0.0
  %5127 = vmatpush2.msra.mxu0 0.0
  %5128 = vmatprep.subr.mxu0 0.0
  %5129 = vmatpush2.msra.mxu0 0.0
  %5130 = vmatprep.subr.mxu0 0.0
  %5131 = vmatpush2.msra.mxu0 0.0
  %5132 = vmatprep.subr.mxu0 0.0
  %5133 = vmatpush2.msra.mxu0 0.0
  %5134 = vmatprep.subr.mxu0 0.0
  %5135 = vmatpush2.msra.mxu0 0.0
  %5136 = vmatprep.mubr.f32.mxu0 0.0
  %5137 = vmatmul.mubr.f32.gmra.mxu0 %v5070
  %v5138 = vpop.f32.mrf.mxu0
  %v5139 = vadd.f32 0.0, %v5138
  %v5140 = vpop.f32.mrf.mxu0
  %5141 = vdwg.mxu0
  %v5142 = vadd.f32 %v5068, %v5139
  %v5143 = vxor.u32 %v5142, 2147483648
  %v5144 = vmul.f32 %v5143, 1.442695
  %v5145 = vpow.pop %v5144
  %v5146 = vadd.f32 %v5145, 1.0
  %v5147 = vrcp.pop %v5146
  %v5148 = vmul.f32 1.0, %v5147
  %v5149 = vtanh.pop %v5142
  %v5150 = vmul.f32 %v5148, %v4778
  %5152 = vrot.lane.b32.xlu0 %v5149, 64
  %v5153 = vpop.permute.xlu0 %5152
  %v5155 = vmul.f32 %v5148, %v5153
  %5157 = vrot.lane.b32.xlu0 %v5155, 32
  %v5158 = vpop.permute.xlu0 %5157
  %v5160 = vadd.f32 %v5150, %v5158
  %v5161 = vtanh.pop %v5160
  %5163 = vrot.lane.b32.xlu0 %v5161, 64
  %v5164 = vpop.permute.xlu0 %5163
  %v5166 = vmul.f32 %v5148, %v5164
  %5168 = vrot.lane.b32.xlu0 %v5166, 32
  %v5169 = vpop.permute.xlu0 %5168
  %v5171 = vmul.f32 %v3096, %v5169
  %v5172 = vmul.f32 %v3097, %v5169
  %v5173 = vmul.f32 %v3098, %v5169
  %v5174 = vmul.f32 %v3099, %v5169
  %v5175 = vmul.f32 %v3100, %v5169
  %v5176 = vmul.f32 %v3101, %v5169
  %v5177 = vmul.f32 %v3102, %v5169
  %v5178 = vmul.f32 %v3103, %v5169
  %v5179 = vsel %vm52, %v5171, 0.0
  %5180 = vadd.xlane.f32.xlu0 %v5179
  %v5181 = vpop.xlane.xlu0 %5180
  %v5182 = vsel %vm52, %v5172, 0.0
  %5183 = vadd.xlane.f32.xlu0 %v5182
  %v5184 = vpop.xlane.xlu0 %5183
  %v5185 = vsel %vm52, %v5173, 0.0
  %5186 = vadd.xlane.f32.xlu0 %v5185
  %v5187 = vpop.xlane.xlu0 %5186
  %v5188 = vsel %vm52, %v5174, 0.0
  %5189 = vadd.xlane.f32.xlu0 %v5188
  %v5190 = vpop.xlane.xlu0 %5189
  %v5191 = vsel %vm52, %v5175, 0.0
  %5192 = vadd.xlane.f32.xlu0 %v5191
  %v5193 = vpop.xlane.xlu0 %5192
  %v5194 = vsel %vm52, %v5176, 0.0
  %5195 = vadd.xlane.f32.xlu0 %v5194
  %v5196 = vpop.xlane.xlu0 %5195
  %v5197 = vsel %vm52, %v5177, 0.0
  %5198 = vadd.xlane.f32.xlu0 %v5197
  %v5199 = vpop.xlane.xlu0 %5198
  %v5200 = vsel %vm52, %v5178, 0.0
  %5201 = vadd.xlane.f32.xlu0 %v5200
  %v5202 = vpop.xlane.xlu0 %5201
  %v5203 = vadd.f32 %v5181, %v3120
  %v5204 = vadd.f32 %v5184, %v3121
  %v5205 = vadd.f32 %v5187, %v3122
  %v5206 = vadd.f32 %v5190, %v3123
  %v5207 = vadd.f32 %v5193, %v3124
  %v5208 = vadd.f32 %v5196, %v3125
  %v5209 = vadd.f32 %v5199, %v3126
  %v5210 = vadd.f32 %v5202, %v3127
  %v5211 = vsel %vm3300, %v5203, -inf
  %v5212 = vsel %vm3300, %v5204, -inf
  %v5213 = vsel %vm3300, %v5205, -inf
  %v5214 = vsel %vm3300, %v5206, -inf
  %v5215 = vsel %vm3300, %v5207, -inf
  %v5216 = vmax.f32 %v5211, %v5215
  %v5217 = vsel %vm3300, %v5208, -inf
  %v5218 = vmax.f32 %v5212, %v5217
  %v5219 = vsel %vm3300, %v5209, -inf
  %v5220 = vmax.f32 %v5213, %v5219
  %v5221 = vsel %vm3300, %v5210, -inf
  %v5222 = vmax.f32 %v5214, %v5221
  %v5223 = vmax.f32 %v5216, %v5218
  %v5224 = vmax.f32 %v5220, %v5222
  %v5225 = vmax.f32 %v5223, %v5224
  %v5226 = vsub.f32 %v5203, %v5225
  %v5227 = vsub.f32 %v5204, %v5225
  %v5228 = vsub.f32 %v5205, %v5225
  %v5229 = vsub.f32 %v5206, %v5225
  %v5230 = vsub.f32 %v5207, %v5225
  %v5231 = vsub.f32 %v5208, %v5225
  %v5232 = vsub.f32 %v5209, %v5225
  %v5233 = vsub.f32 %v5210, %v5225
  %v5234 = vmul.f32 %v5226, 1.442695
  %v5235 = vpow.pop %v5234
  %v5236 = vmul.f32 %v5227, 1.442695
  %v5237 = vpow.pop %v5236
  %v5238 = vmul.f32 %v5228, 1.442695
  %v5239 = vpow.pop %v5238
  %v5240 = vmul.f32 %v5229, 1.442695
  %v5241 = vpow.pop %v5240
  %v5242 = vmul.f32 %v5230, 1.442695
  %v5243 = vpow.pop %v5242
  %v5244 = vmul.f32 %v5231, 1.442695
  %v5245 = vpow.pop %v5244
  %v5246 = vmul.f32 %v5232, 1.442695
  %v5247 = vpow.pop %v5246
  %v5248 = vmul.f32 %v5233, 1.442695
  %v5249 = vpow.pop %v5248
  %v5250 = vsel %vm3300, %v5235, 0.0
  %v5251 = vsel %vm3300, %v5237, 0.0
  %v5252 = vadd.f32 %v5250, %v5251
  %v5253 = vsel %vm3300, %v5239, 0.0
  %v5254 = vadd.f32 %v5252, %v5253
  %v5255 = vsel %vm3300, %v5241, 0.0
  %v5256 = vadd.f32 %v5254, %v5255
  %v5257 = vsel %vm3300, %v5243, 0.0
  %v5258 = vadd.f32 %v5256, %v5257
  %v5259 = vsel %vm3300, %v5245, 0.0
  %v5260 = vadd.f32 %v5258, %v5259
  %v5261 = vsel %vm3300, %v5247, 0.0
  %v5262 = vadd.f32 %v5260, %v5261
  %v5263 = vsel %vm3300, %v5249, 0.0
  %v5264 = vadd.f32 %v5262, %v5263
  %v5265 = vrcp.pop %v5264
  %v5266 = vmul.f32 %v5235, %v5265
  %v5267 = vmul.f32 %v5237, %v5265
  %v5268 = vmul.f32 %v5239, %v5265
  %v5269 = vmul.f32 %v5241, %v5265
  %v5270 = vmul.f32 %v5243, %v5265
  %v5271 = vmul.f32 %v5245, %v5265
  %v5272 = vmul.f32 %v5247, %v5265
  %v5273 = vmul.f32 %v5249, %v5265
  %5275 = vset.pattern.permute.xlu0 0
  %5276 = vperm.xlu0 %5275, %v5266
  %v5277 = vpop.permute.xlu0 %5276
  %5280 = vset.pattern.permute.xlu0 0
  %5281 = vperm.xlu0 %5280, %v5267
  %v5282 = vpop.permute.xlu0 %5281
  %5285 = vset.pattern.permute.xlu0 0
  %5286 = vperm.xlu0 %5285, %v5268
  %v5287 = vpop.permute.xlu0 %5286
  %5290 = vset.pattern.permute.xlu0 0
  %5291 = vperm.xlu0 %5290, %v5269
  %v5292 = vpop.permute.xlu0 %5291
  %5295 = vset.pattern.permute.xlu0 0
  %5296 = vperm.xlu0 %5295, %v5270
  %v5297 = vpop.permute.xlu0 %5296
  %5300 = vset.pattern.permute.xlu0 0
  %5301 = vperm.xlu0 %5300, %v5271
  %v5302 = vpop.permute.xlu0 %5301
  %5305 = vset.pattern.permute.xlu0 0
  %5306 = vperm.xlu0 %5305, %v5272
  %v5307 = vpop.permute.xlu0 %5306
  %5310 = vset.pattern.permute.xlu0 0
  %5311 = vperm.xlu0 %5310, %v5273
  %v5312 = vpop.permute.xlu0 %5311
  %v5314 = vmul.f32 %v5277, %v3080
  %v5315 = vmul.f32 %v5282, %v3081
  %v5316 = vmul.f32 %v5287, %v3082
  %v5317 = vmul.f32 %v5292, %v3083
  %v5318 = vmul.f32 %v5297, %v3084
  %v5319 = vmul.f32 %v5302, %v3085
  %v5320 = vmul.f32 %v5307, %v3086
  %v5321 = vmul.f32 %v5312, %v3087
  %v5322 = vsel %vm52, %v5314, 0.0
  %v5323 = vsel %vm52, %v5315, 0.0
  %v5324 = vadd.f32 %v5322, %v5323
  %v5325 = vsel %vm52, %v5316, 0.0
  %v5326 = vadd.f32 %v5324, %v5325
  %v5327 = vsel %vm52, %v5317, 0.0
  %v5328 = vadd.f32 %v5326, %v5327
  %v5329 = vsel %vm52, %v5318, 0.0
  %v5330 = vadd.f32 %v5328, %v5329
  %v5331 = vsel %vm52, %v5319, 0.0
  %v5332 = vadd.f32 %v5330, %v5331
  %v5333 = vsel %vm52, %v5320, 0.0
  %v5334 = vadd.f32 %v5332, %v5333
  %v5335 = vsel %vm52, %v5321, 0.0
  %v5336 = vadd.f32 %v5334, %v5335
  %v5337 = vmul.f32 %v5277, %v3088
  %v5338 = vmul.f32 %v5282, %v3089
  %v5339 = vmul.f32 %v5287, %v3090
  %v5340 = vmul.f32 %v5292, %v3091
  %v5341 = vmul.f32 %v5297, %v3092
  %v5342 = vmul.f32 %v5302, %v3093
  %v5343 = vmul.f32 %v5307, %v3094
  %v5344 = vmul.f32 %v5312, %v3095
  %v5345 = vsel %vm52, %v5337, 0.0
  %v5346 = vsel %vm52, %v5338, 0.0
  %v5347 = vadd.f32 %v5345, %v5346
  %v5348 = vsel %vm52, %v5339, 0.0
  %v5349 = vadd.f32 %v5347, %v5348
  %v5350 = vsel %vm52, %v5340, 0.0
  %v5351 = vadd.f32 %v5349, %v5350
  %v5352 = vsel %vm52, %v5341, 0.0
  %v5353 = vadd.f32 %v5351, %v5352
  %v5354 = vsel %vm52, %v5342, 0.0
  %v5355 = vadd.f32 %v5353, %v5354
  %v5356 = vsel %vm52, %v5343, 0.0
  %v5357 = vadd.f32 %v5355, %v5356
  %v5358 = vsel %vm52, %v5344, 0.0
  %v5359 = vadd.f32 %v5357, %v5358
  %5361 = vrot.lane.b32.xlu0 %v5359, 32
  %v5362 = vpop.permute.xlu0 %5361
  %5364 = vrot.lane.b32.xlu0 %v5166, 96
  %v5365 = vpop.permute.xlu0 %5364
  %v5367 = vsel %vm52, %v5336, %v5362
  %v5368 = vsel %vm2262, %v5367, %v5365
  %v5370 = vsel %vm3459, %v5368, 0
  %5372 = vmatprep.subr.mxu0 0.0
  %5373 = vmatpush1.msra.mxu0 0.0
  %5374 = vmatprep.subr.mxu0 0.0
  %5375 = vmatpush1.msra.mxu0 0.0
  %5376 = vmatprep.subr.mxu0 0.0
  %5377 = vmatpush1.msra.mxu0 0.0
  %5378 = vmatprep.subr.mxu0 0.0
  %5379 = vmatpush1.msra.mxu0 0.0
  %5380 = vmatprep.subr.mxu0 0.0
  %5381 = vmatpush1.msra.mxu0 %v3147
  %5382 = vmatprep.subr.mxu0 0.0
  %5383 = vmatpush1.msra.mxu0 %v3146
  %5384 = vmatprep.subr.mxu0 0.0
  %5385 = vmatpush1.msra.mxu0 %v3145
  %5386 = vmatprep.subr.mxu0 0.0
  %5387 = vmatpush1.msra.mxu0 %v3144
  %5388 = vmatprep.subr.mxu0 0.0
  %5389 = vmatpush1.msra.mxu0 %v3143
  %5390 = vmatprep.subr.mxu0 0.0
  %5391 = vmatpush1.msra.mxu0 %v3142
  %5392 = vmatprep.subr.mxu0 0.0
  %5393 = vmatpush1.msra.mxu0 %v3141
  %5394 = vmatprep.subr.mxu0 0.0
  %5395 = vmatpush1.msra.mxu0 %v3140
  %5396 = vmatprep.subr.mxu0 0.0
  %5397 = vmatpush1.msra.mxu0 %v3139
  %5398 = vmatprep.subr.mxu0 0.0
  %5399 = vmatpush1.msra.mxu0 %v3138
  %5400 = vmatprep.subr.mxu0 0.0
  %5401 = vmatpush1.msra.mxu0 %v3137
  %5402 = vmatprep.subr.mxu0 0.0
  %5403 = vmatpush1.msra.mxu0 %v3136
  %5404 = vmatprep.subr.mxu0 0.0
  %5405 = vmatpush2.msra.mxu0 0.0
  %5406 = vmatprep.subr.mxu0 0.0
  %5407 = vmatpush2.msra.mxu0 0.0
  %5408 = vmatprep.subr.mxu0 0.0
  %5409 = vmatpush2.msra.mxu0 0.0
  %5410 = vmatprep.subr.mxu0 0.0
  %5411 = vmatpush2.msra.mxu0 0.0
  %5412 = vmatprep.subr.mxu0 0.0
  %5413 = vmatpush2.msra.mxu0 0.0
  %5414 = vmatprep.subr.mxu0 0.0
  %5415 = vmatpush2.msra.mxu0 0.0
  %5416 = vmatprep.subr.mxu0 0.0
  %5417 = vmatpush2.msra.mxu0 0.0
  %5418 = vmatprep.subr.mxu0 0.0
  %5419 = vmatpush2.msra.mxu0 0.0
  %5420 = vmatprep.subr.mxu0 0.0
  %5421 = vmatpush2.msra.mxu0 0.0
  %5422 = vmatprep.subr.mxu0 0.0
  %5423 = vmatpush2.msra.mxu0 0.0
  %5424 = vmatprep.subr.mxu0 0.0
  %5425 = vmatpush2.msra.mxu0 0.0
  %5426 = vmatprep.subr.mxu0 0.0
  %5427 = vmatpush2.msra.mxu0 0.0
  %5428 = vmatprep.subr.mxu0 0.0
  %5429 = vmatpush2.msra.mxu0 0.0
  %5430 = vmatprep.subr.mxu0 0.0
  %5431 = vmatpush2.msra.mxu0 0.0
  %5432 = vmatprep.subr.mxu0 0.0
  %5433 = vmatpush2.msra.mxu0 0.0
  %5434 = vmatprep.subr.mxu0 0.0
  %5435 = vmatpush2.msra.mxu0 0.0
  %5436 = vmatprep.mubr.f32.mxu0 0.0
  %5437 = vmatmul.mubr.f32.gmra.mxu0 %v5370
  %v5438 = vpop.f32.mrf.mxu0
  %v5439 = vadd.f32 0.0, %v5438
  %v5440 = vpop.f32.mrf.mxu0
  %5441 = vdwg.mxu0
  %v5442 = vtanh.pop %v5439
  %s5443 = scalar_lea.vmem [#allocation7], 40
  %5444 = vst.msk [vmem:[%s5443] sm:$0xff] %vm52, %v5442
  %5445 = vrot.lane.b32.xlu0 %v5166, 64
  %v5446 = vpop.permute.xlu0 %5445
  %v5448 = vsel %vm52, %v5442, %v5446
  %s5449 = scalar_lea.vmem [#allocation3], 48
  %v5450 = vld [vmem:[%s5449] sm:$0xff]
  %v5452 = vsel %vm2262, %v5448, 0
  %5454 = vmatprep.subr.mxu0 0.0
  %5455 = vmatpush1.msra.mxu0 0.0
  %5456 = vmatprep.subr.mxu0 0.0
  %5457 = vmatpush1.msra.mxu0 0.0
  %5458 = vmatprep.subr.mxu0 0.0
  %5459 = vmatpush1.msra.mxu0 0.0
  %5460 = vmatprep.subr.mxu0 0.0
  %5461 = vmatpush1.msra.mxu0 0.0
  %5462 = vmatprep.subr.mxu0 0.0
  %5463 = vmatpush1.msra.mxu0 0.0
  %5464 = vmatprep.subr.mxu0 0.0
  %5465 = vmatpush1.msra.mxu0 0.0
  %5466 = vmatprep.subr.mxu0 0.0
  %5467 = vmatpush1.msra.mxu0 0.0
  %5468 = vmatprep.subr.mxu0 0.0
  %5469 = vmatpush1.msra.mxu0 0.0
  %5470 = vmatprep.subr.mxu0 0.0
  %5471 = vmatpush1.msra.mxu0 %v3135
  %5472 = vmatprep.subr.mxu0 0.0
  %5473 = vmatpush1.msra.mxu0 %v3134
  %5474 = vmatprep.subr.mxu0 0.0
  %5475 = vmatpush1.msra.mxu0 %v3133
  %5476 = vmatprep.subr.mxu0 0.0
  %5477 = vmatpush1.msra.mxu0 %v3132
  %5478 = vmatprep.subr.mxu0 0.0
  %5479 = vmatpush1.msra.mxu0 %v3131
  %5480 = vmatprep.subr.mxu0 0.0
  %5481 = vmatpush1.msra.mxu0 %v3130
  %5482 = vmatprep.subr.mxu0 0.0
  %5483 = vmatpush1.msra.mxu0 %v3129
  %5484 = vmatprep.subr.mxu0 0.0
  %5485 = vmatpush1.msra.mxu0 %v3128
  %5486 = vmatprep.subr.mxu0 0.0
  %5487 = vmatpush2.msra.mxu0 0.0
  %5488 = vmatprep.subr.mxu0 0.0
  %5489 = vmatpush2.msra.mxu0 0.0
  %5490 = vmatprep.subr.mxu0 0.0
  %5491 = vmatpush2.msra.mxu0 0.0
  %5492 = vmatprep.subr.mxu0 0.0
  %5493 = vmatpush2.msra.mxu0 0.0
  %5494 = vmatprep.subr.mxu0 0.0
  %5495 = vmatpush2.msra.mxu0 0.0
  %5496 = vmatprep.subr.mxu0 0.0
  %5497 = vmatpush2.msra.mxu0 0.0
  %5498 = vmatprep.subr.mxu0 0.0
  %5499 = vmatpush2.msra.mxu0 0.0
  %5500 = vmatprep.subr.mxu0 0.0
  %5501 = vmatpush2.msra.mxu0 0.0
  %5502 = vmatprep.subr.mxu0 0.0
  %5503 = vmatpush2.msra.mxu0 0.0
  %5504 = vmatprep.subr.mxu0 0.0
  %5505 = vmatpush2.msra.mxu0 0.0
  %5506 = vmatprep.subr.mxu0 0.0
  %5507 = vmatpush2.msra.mxu0 0.0
  %5508 = vmatprep.subr.mxu0 0.0
  %5509 = vmatpush2.msra.mxu0 0.0
  %5510 = vmatprep.subr.mxu0 0.0
  %5511 = vmatpush2.msra.mxu0 0.0
  %5512 = vmatprep.subr.mxu0 0.0
  %5513 = vmatpush2.msra.mxu0 0.0
  %5514 = vmatprep.subr.mxu0 0.0
  %5515 = vmatpush2.msra.mxu0 0.0
  %5516 = vmatprep.subr.mxu0 0.0
  %5517 = vmatpush2.msra.mxu0 0.0
  %5518 = vmatprep.mubr.f32.mxu0 0.0
  %5519 = vmatmul.mubr.f32.gmra.mxu0 %v5452
  %v5520 = vpop.f32.mrf.mxu0
  %v5521 = vadd.f32 0.0, %v5520
  %v5522 = vpop.f32.mrf.mxu0
  %5523 = vdwg.mxu0
  %v5524 = vadd.f32 %v5450, %v5521
  %v5525 = vxor.u32 %v5524, 2147483648
  %v5526 = vmul.f32 %v5525, 1.442695
  %v5527 = vpow.pop %v5526
  %v5528 = vadd.f32 %v5527, 1.0
  %v5529 = vrcp.pop %v5528
  %v5530 = vmul.f32 1.0, %v5529
  %v5531 = vtanh.pop %v5524
  %v5532 = vmul.f32 %v5530, %v5160
  %5534 = vrot.lane.b32.xlu0 %v5531, 64
  %v5535 = vpop.permute.xlu0 %5534
  %v5537 = vmul.f32 %v5530, %v5535
  %5539 = vrot.lane.b32.xlu0 %v5537, 32
  %v5540 = vpop.permute.xlu0 %5539
  %v5542 = vadd.f32 %v5532, %v5540
  %v5543 = vtanh.pop %v5542
  %5545 = vrot.lane.b32.xlu0 %v5543, 64
  %v5546 = vpop.permute.xlu0 %5545
  %v5548 = vmul.f32 %v5530, %v5546
  %5550 = vrot.lane.b32.xlu0 %v5548, 32
  %v5551 = vpop.permute.xlu0 %5550
  %v5553 = vmul.f32 %v3096, %v5551
  %v5554 = vmul.f32 %v3097, %v5551
  %v5555 = vmul.f32 %v3098, %v5551
  %v5556 = vmul.f32 %v3099, %v5551
  %v5557 = vmul.f32 %v3100, %v5551
  %v5558 = vmul.f32 %v3101, %v5551
  %v5559 = vmul.f32 %v3102, %v5551
  %v5560 = vmul.f32 %v3103, %v5551
  %v5561 = vsel %vm52, %v5553, 0.0
  %5562 = vadd.xlane.f32.xlu0 %v5561
  %v5563 = vpop.xlane.xlu0 %5562
  %v5564 = vsel %vm52, %v5554, 0.0
  %5565 = vadd.xlane.f32.xlu0 %v5564
  %v5566 = vpop.xlane.xlu0 %5565
  %v5567 = vsel %vm52, %v5555, 0.0
  %5568 = vadd.xlane.f32.xlu0 %v5567
  %v5569 = vpop.xlane.xlu0 %5568
  %v5570 = vsel %vm52, %v5556, 0.0
  %5571 = vadd.xlane.f32.xlu0 %v5570
  %v5572 = vpop.xlane.xlu0 %5571
  %v5573 = vsel %vm52, %v5557, 0.0
  %5574 = vadd.xlane.f32.xlu0 %v5573
  %v5575 = vpop.xlane.xlu0 %5574
  %v5576 = vsel %vm52, %v5558, 0.0
  %5577 = vadd.xlane.f32.xlu0 %v5576
  %v5578 = vpop.xlane.xlu0 %5577
  %v5579 = vsel %vm52, %v5559, 0.0
  %5580 = vadd.xlane.f32.xlu0 %v5579
  %v5581 = vpop.xlane.xlu0 %5580
  %v5582 = vsel %vm52, %v5560, 0.0
  %5583 = vadd.xlane.f32.xlu0 %v5582
  %v5584 = vpop.xlane.xlu0 %5583
  %v5585 = vadd.f32 %v5563, %v3120
  %v5586 = vadd.f32 %v5566, %v3121
  %v5587 = vadd.f32 %v5569, %v3122
  %v5588 = vadd.f32 %v5572, %v3123
  %v5589 = vadd.f32 %v5575, %v3124
  %v5590 = vadd.f32 %v5578, %v3125
  %v5591 = vadd.f32 %v5581, %v3126
  %v5592 = vadd.f32 %v5584, %v3127
  %v5593 = vsel %vm3300, %v5585, -inf
  %v5594 = vsel %vm3300, %v5586, -inf
  %v5595 = vsel %vm3300, %v5587, -inf
  %v5596 = vsel %vm3300, %v5588, -inf
  %v5597 = vsel %vm3300, %v5589, -inf
  %v5598 = vmax.f32 %v5593, %v5597
  %v5599 = vsel %vm3300, %v5590, -inf
  %v5600 = vmax.f32 %v5594, %v5599
  %v5601 = vsel %vm3300, %v5591, -inf
  %v5602 = vmax.f32 %v5595, %v5601
  %v5603 = vsel %vm3300, %v5592, -inf
  %v5604 = vmax.f32 %v5596, %v5603
  %v5605 = vmax.f32 %v5598, %v5600
  %v5606 = vmax.f32 %v5602, %v5604
  %v5607 = vmax.f32 %v5605, %v5606
  %v5608 = vsub.f32 %v5585, %v5607
  %v5609 = vsub.f32 %v5586, %v5607
  %v5610 = vsub.f32 %v5587, %v5607
  %v5611 = vsub.f32 %v5588, %v5607
  %v5612 = vsub.f32 %v5589, %v5607
  %v5613 = vsub.f32 %v5590, %v5607
  %v5614 = vsub.f32 %v5591, %v5607
  %v5615 = vsub.f32 %v5592, %v5607
  %v5616 = vmul.f32 %v5608, 1.442695
  %v5617 = vpow.pop %v5616
  %v5618 = vmul.f32 %v5609, 1.442695
  %v5619 = vpow.pop %v5618
  %v5620 = vmul.f32 %v5610, 1.442695
  %v5621 = vpow.pop %v5620
  %v5622 = vmul.f32 %v5611, 1.442695
  %v5623 = vpow.pop %v5622
  %v5624 = vmul.f32 %v5612, 1.442695
  %v5625 = vpow.pop %v5624
  %v5626 = vmul.f32 %v5613, 1.442695
  %v5627 = vpow.pop %v5626
  %v5628 = vmul.f32 %v5614, 1.442695
  %v5629 = vpow.pop %v5628
  %v5630 = vmul.f32 %v5615, 1.442695
  %v5631 = vpow.pop %v5630
  %v5632 = vsel %vm3300, %v5617, 0.0
  %v5633 = vsel %vm3300, %v5619, 0.0
  %v5634 = vadd.f32 %v5632, %v5633
  %v5635 = vsel %vm3300, %v5621, 0.0
  %v5636 = vadd.f32 %v5634, %v5635
  %v5637 = vsel %vm3300, %v5623, 0.0
  %v5638 = vadd.f32 %v5636, %v5637
  %v5639 = vsel %vm3300, %v5625, 0.0
  %v5640 = vadd.f32 %v5638, %v5639
  %v5641 = vsel %vm3300, %v5627, 0.0
  %v5642 = vadd.f32 %v5640, %v5641
  %v5643 = vsel %vm3300, %v5629, 0.0
  %v5644 = vadd.f32 %v5642, %v5643
  %v5645 = vsel %vm3300, %v5631, 0.0
  %v5646 = vadd.f32 %v5644, %v5645
  %v5647 = vrcp.pop %v5646
  %v5648 = vmul.f32 %v5617, %v5647
  %v5649 = vmul.f32 %v5619, %v5647
  %v5650 = vmul.f32 %v5621, %v5647
  %v5651 = vmul.f32 %v5623, %v5647
  %v5652 = vmul.f32 %v5625, %v5647
  %v5653 = vmul.f32 %v5627, %v5647
  %v5654 = vmul.f32 %v5629, %v5647
  %v5655 = vmul.f32 %v5631, %v5647
  %5657 = vset.pattern.permute.xlu0 0
  %5658 = vperm.xlu0 %5657, %v5648
  %v5659 = vpop.permute.xlu0 %5658
  %5662 = vset.pattern.permute.xlu0 0
  %5663 = vperm.xlu0 %5662, %v5649
  %v5664 = vpop.permute.xlu0 %5663
  %5667 = vset.pattern.permute.xlu0 0
  %5668 = vperm.xlu0 %5667, %v5650
  %v5669 = vpop.permute.xlu0 %5668
  %5672 = vset.pattern.permute.xlu0 0
  %5673 = vperm.xlu0 %5672, %v5651
  %v5674 = vpop.permute.xlu0 %5673
  %5677 = vset.pattern.permute.xlu0 0
  %5678 = vperm.xlu0 %5677, %v5652
  %v5679 = vpop.permute.xlu0 %5678
  %5682 = vset.pattern.permute.xlu0 0
  %5683 = vperm.xlu0 %5682, %v5653
  %v5684 = vpop.permute.xlu0 %5683
  %5687 = vset.pattern.permute.xlu0 0
  %5688 = vperm.xlu0 %5687, %v5654
  %v5689 = vpop.permute.xlu0 %5688
  %5692 = vset.pattern.permute.xlu0 0
  %5693 = vperm.xlu0 %5692, %v5655
  %v5694 = vpop.permute.xlu0 %5693
  %v5696 = vmul.f32 %v5659, %v3080
  %v5697 = vmul.f32 %v5664, %v3081
  %v5698 = vmul.f32 %v5669, %v3082
  %v5699 = vmul.f32 %v5674, %v3083
  %v5700 = vmul.f32 %v5679, %v3084
  %v5701 = vmul.f32 %v5684, %v3085
  %v5702 = vmul.f32 %v5689, %v3086
  %v5703 = vmul.f32 %v5694, %v3087
  %v5704 = vsel %vm52, %v5696, 0.0
  %v5705 = vsel %vm52, %v5697, 0.0
  %v5706 = vadd.f32 %v5704, %v5705
  %v5707 = vsel %vm52, %v5698, 0.0
  %v5708 = vadd.f32 %v5706, %v5707
  %v5709 = vsel %vm52, %v5699, 0.0
  %v5710 = vadd.f32 %v5708, %v5709
  %v5711 = vsel %vm52, %v5700, 0.0
  %v5712 = vadd.f32 %v5710, %v5711
  %v5713 = vsel %vm52, %v5701, 0.0
  %v5714 = vadd.f32 %v5712, %v5713
  %v5715 = vsel %vm52, %v5702, 0.0
  %v5716 = vadd.f32 %v5714, %v5715
  %v5717 = vsel %vm52, %v5703, 0.0
  %v5718 = vadd.f32 %v5716, %v5717
  %v5719 = vmul.f32 %v5659, %v3088
  %v5720 = vmul.f32 %v5664, %v3089
  %v5721 = vmul.f32 %v5669, %v3090
  %v5722 = vmul.f32 %v5674, %v3091
  %v5723 = vmul.f32 %v5679, %v3092
  %v5724 = vmul.f32 %v5684, %v3093
  %v5725 = vmul.f32 %v5689, %v3094
  %v5726 = vmul.f32 %v5694, %v3095
  %v5727 = vsel %vm52, %v5719, 0.0
  %v5728 = vsel %vm52, %v5720, 0.0
  %v5729 = vadd.f32 %v5727, %v5728
  %v5730 = vsel %vm52, %v5721, 0.0
  %v5731 = vadd.f32 %v5729, %v5730
  %v5732 = vsel %vm52, %v5722, 0.0
  %v5733 = vadd.f32 %v5731, %v5732
  %v5734 = vsel %vm52, %v5723, 0.0
  %v5735 = vadd.f32 %v5733, %v5734
  %v5736 = vsel %vm52, %v5724, 0.0
  %v5737 = vadd.f32 %v5735, %v5736
  %v5738 = vsel %vm52, %v5725, 0.0
  %v5739 = vadd.f32 %v5737, %v5738
  %v5740 = vsel %vm52, %v5726, 0.0
  %v5741 = vadd.f32 %v5739, %v5740
  %5743 = vrot.lane.b32.xlu0 %v5741, 32
  %v5744 = vpop.permute.xlu0 %5743
  %5746 = vrot.lane.b32.xlu0 %v5548, 96
  %v5747 = vpop.permute.xlu0 %5746
  %v5749 = vsel %vm52, %v5718, %v5744
  %v5750 = vsel %vm2262, %v5749, %v5747
  %v5752 = vsel %vm3459, %v5750, 0
  %5754 = vmatprep.subr.mxu0 0.0
  %5755 = vmatpush1.msra.mxu0 0.0
  %5756 = vmatprep.subr.mxu0 0.0
  %5757 = vmatpush1.msra.mxu0 0.0
  %5758 = vmatprep.subr.mxu0 0.0
  %5759 = vmatpush1.msra.mxu0 0.0
  %5760 = vmatprep.subr.mxu0 0.0
  %5761 = vmatpush1.msra.mxu0 0.0
  %5762 = vmatprep.subr.mxu0 0.0
  %5763 = vmatpush1.msra.mxu0 %v3147
  %5764 = vmatprep.subr.mxu0 0.0
  %5765 = vmatpush1.msra.mxu0 %v3146
  %5766 = vmatprep.subr.mxu0 0.0
  %5767 = vmatpush1.msra.mxu0 %v3145
  %5768 = vmatprep.subr.mxu0 0.0
  %5769 = vmatpush1.msra.mxu0 %v3144
  %5770 = vmatprep.subr.mxu0 0.0
  %5771 = vmatpush1.msra.mxu0 %v3143
  %5772 = vmatprep.subr.mxu0 0.0
  %5773 = vmatpush1.msra.mxu0 %v3142
  %5774 = vmatprep.subr.mxu0 0.0
  %5775 = vmatpush1.msra.mxu0 %v3141
  %5776 = vmatprep.subr.mxu0 0.0
  %5777 = vmatpush1.msra.mxu0 %v3140
  %5778 = vmatprep.subr.mxu0 0.0
  %5779 = vmatpush1.msra.mxu0 %v3139
  %5780 = vmatprep.subr.mxu0 0.0
  %5781 = vmatpush1.msra.mxu0 %v3138
  %5782 = vmatprep.subr.mxu0 0.0
  %5783 = vmatpush1.msra.mxu0 %v3137
  %5784 = vmatprep.subr.mxu0 0.0
  %5785 = vmatpush1.msra.mxu0 %v3136
  %5786 = vmatprep.subr.mxu0 0.0
  %5787 = vmatpush2.msra.mxu0 0.0
  %5788 = vmatprep.subr.mxu0 0.0
  %5789 = vmatpush2.msra.mxu0 0.0
  %5790 = vmatprep.subr.mxu0 0.0
  %5791 = vmatpush2.msra.mxu0 0.0
  %5792 = vmatprep.subr.mxu0 0.0
  %5793 = vmatpush2.msra.mxu0 0.0
  %5794 = vmatprep.subr.mxu0 0.0
  %5795 = vmatpush2.msra.mxu0 0.0
  %5796 = vmatprep.subr.mxu0 0.0
  %5797 = vmatpush2.msra.mxu0 0.0
  %5798 = vmatprep.subr.mxu0 0.0
  %5799 = vmatpush2.msra.mxu0 0.0
  %5800 = vmatprep.subr.mxu0 0.0
  %5801 = vmatpush2.msra.mxu0 0.0
  %5802 = vmatprep.subr.mxu0 0.0
  %5803 = vmatpush2.msra.mxu0 0.0
  %5804 = vmatprep.subr.mxu0 0.0
  %5805 = vmatpush2.msra.mxu0 0.0
  %5806 = vmatprep.subr.mxu0 0.0
  %5807 = vmatpush2.msra.mxu0 0.0
  %5808 = vmatprep.subr.mxu0 0.0
  %5809 = vmatpush2.msra.mxu0 0.0
  %5810 = vmatprep.subr.mxu0 0.0
  %5811 = vmatpush2.msra.mxu0 0.0
  %5812 = vmatprep.subr.mxu0 0.0
  %5813 = vmatpush2.msra.mxu0 0.0
  %5814 = vmatprep.subr.mxu0 0.0
  %5815 = vmatpush2.msra.mxu0 0.0
  %5816 = vmatprep.subr.mxu0 0.0
  %5817 = vmatpush2.msra.mxu0 0.0
  %5818 = vmatprep.mubr.f32.mxu0 0.0
  %5819 = vmatmul.mubr.f32.gmra.mxu0 %v5752
  %v5820 = vpop.f32.mrf.mxu0
  %v5821 = vadd.f32 0.0, %v5820
  %v5822 = vpop.f32.mrf.mxu0
  %5823 = vdwg.mxu0
  %v5824 = vtanh.pop %v5821
  %s5825 = scalar_lea.vmem [#allocation7], 48
  %5826 = vst.msk [vmem:[%s5825] sm:$0xff] %vm52, %v5824
  %v5827 = vld [vmem:[#allocation7] sm:$0xff]
  %v5828 = vld [vmem:[#allocation7 + $0x8] sm:$0xff]
  %v5829 = vld [vmem:[#allocation7 + $0x10] sm:$0xff]
  %v5830 = vld [vmem:[#allocation7 + $0x18] sm:$0xff]
  %v5831 = vld [vmem:[#allocation7 + $0x20] sm:$0xff]
  %v5832 = vld [vmem:[#allocation7 + $0x28] sm:$0xff]
  %v5833 = vld [vmem:[#allocation7 + $0x30] sm:$0xff]
  %v5834 = vld [vmem:[%s5 + $0x3e0] sm:$0xff]
  %v5835 = vld [vmem:[%s5 + $0x3f0] sm:$0xff]
  %v5836 = vld [vmem:[%s5 + $0x400] sm:$0xff]
  %v5837 = vld [vmem:[%s5 + $0x410] sm:$0xff]
  %v5839 = vsel %vm52, %v5827, 0
  %v5842 = vsel %vm52, %v5828, 0
  %v5845 = vsel %vm52, %v5829, 0
  %v5848 = vsel %vm52, %v5830, 0
  %v5851 = vsel %vm52, %v5831, 0
  %v5854 = vsel %vm52, %v5832, 0
  %v5857 = vsel %vm52, %v5833, 0
  %5859 = vmatprep.subr.mxu0 0.0
  %5860 = vmatpush1.msra.mxu0 0.0
  %5861 = vmatprep.subr.mxu0 0.0
  %5862 = vmatpush1.msra.mxu0 0.0
  %5863 = vmatprep.subr.mxu0 0.0
  %5864 = vmatpush1.msra.mxu0 0.0
  %5865 = vmatprep.subr.mxu0 0.0
  %5866 = vmatpush1.msra.mxu0 0.0
  %5867 = vmatprep.subr.mxu0 0.0
  %5868 = vmatpush1.msra.mxu0 0.0
  %5869 = vmatprep.subr.mxu0 0.0
  %5870 = vmatpush1.msra.mxu0 0.0
  %5871 = vmatprep.subr.mxu0 0.0
  %5872 = vmatpush1.msra.mxu0 0.0
  %5873 = vmatprep.subr.mxu0 0.0
  %5874 = vmatpush1.msra.mxu0 0.0
  %5875 = vmatprep.subr.mxu0 0.0
  %5876 = vmatpush1.msra.mxu0 0.0
  %5877 = vmatprep.subr.mxu0 0.0
  %5878 = vmatpush1.msra.mxu0 0.0
  %5879 = vmatprep.subr.mxu0 0.0
  %5880 = vmatpush1.msra.mxu0 0.0
  %5881 = vmatprep.subr.mxu0 0.0
  %5882 = vmatpush1.msra.mxu0 0.0
  %5883 = vmatprep.subr.mxu0 0.0
  %5884 = vmatpush1.msra.mxu0 %v5837
  %5885 = vmatprep.subr.mxu0 0.0
  %5886 = vmatpush1.msra.mxu0 %v5836
  %5887 = vmatprep.subr.mxu0 0.0
  %5888 = vmatpush1.msra.mxu0 %v5835
  %5889 = vmatprep.subr.mxu0 0.0
  %5890 = vmatpush1.msra.mxu0 %v5834
  %5891 = vmatprep.subr.mxu0 0.0
  %5892 = vmatpush2.msra.mxu0 0.0
  %5893 = vmatprep.subr.mxu0 0.0
  %5894 = vmatpush2.msra.mxu0 0.0
  %5895 = vmatprep.subr.mxu0 0.0
  %5896 = vmatpush2.msra.mxu0 0.0
  %5897 = vmatprep.subr.mxu0 0.0
  %5898 = vmatpush2.msra.mxu0 0.0
  %5899 = vmatprep.subr.mxu0 0.0
  %5900 = vmatpush2.msra.mxu0 0.0
  %5901 = vmatprep.subr.mxu0 0.0
  %5902 = vmatpush2.msra.mxu0 0.0
  %5903 = vmatprep.subr.mxu0 0.0
  %5904 = vmatpush2.msra.mxu0 0.0
  %5905 = vmatprep.subr.mxu0 0.0
  %5906 = vmatpush2.msra.mxu0 0.0
  %5907 = vmatprep.subr.mxu0 0.0
  %5908 = vmatpush2.msra.mxu0 0.0
  %5909 = vmatprep.subr.mxu0 0.0
  %5910 = vmatpush2.msra.mxu0 0.0
  %5911 = vmatprep.subr.mxu0 0.0
  %5912 = vmatpush2.msra.mxu0 0.0
  %5913 = vmatprep.subr.mxu0 0.0
  %5914 = vmatpush2.msra.mxu0 0.0
  %5915 = vmatprep.subr.mxu0 0.0
  %5916 = vmatpush2.msra.mxu0 0.0
  %5917 = vmatprep.subr.mxu0 0.0
  %5918 = vmatpush2.msra.mxu0 0.0
  %5919 = vmatprep.subr.mxu0 0.0
  %5920 = vmatpush2.msra.mxu0 0.0
  %5921 = vmatprep.subr.mxu0 0.0
  %5922 = vmatpush2.msra.mxu0 0.0
  %5923 = vmatprep.mubr.f32.mxu0 0.0
  %5924 = vmatmul.mubr.f32.gmra.mxu0 %v5839
  %v5925 = vpop.f32.mrf.mxu0
  %v5926 = vadd.f32 0.0, %v5925
  %v5927 = vpop.f32.mrf.mxu0
  %5928 = vmatprep.mubr.f32.mxu0 0.0
  %5929 = vmatmul.mubr.f32.gmra.mxu0 %v5842
  %v5930 = vpop.f32.mrf.mxu0
  %v5931 = vadd.f32 0.0, %v5930
  %v5932 = vpop.f32.mrf.mxu0
  %5933 = vmatprep.mubr.f32.mxu0 0.0
  %5934 = vmatmul.mubr.f32.gmra.mxu0 %v5845
  %v5935 = vpop.f32.mrf.mxu0
  %v5936 = vadd.f32 0.0, %v5935
  %v5937 = vpop.f32.mrf.mxu0
  %5938 = vmatprep.mubr.f32.mxu0 0.0
  %5939 = vmatmul.mubr.f32.gmra.mxu0 %v5848
  %v5940 = vpop.f32.mrf.mxu0
  %v5941 = vadd.f32 0.0, %v5940
  %v5942 = vpop.f32.mrf.mxu0
  %5943 = vmatprep.mubr.f32.mxu0 0.0
  %5944 = vmatmul.mubr.f32.gmra.mxu0 %v5851
  %v5945 = vpop.f32.mrf.mxu0
  %v5946 = vadd.f32 0.0, %v5945
  %v5947 = vpop.f32.mrf.mxu0
  %5948 = vmatprep.mubr.f32.mxu0 0.0
  %5949 = vmatmul.mubr.f32.gmra.mxu0 %v5854
  %v5950 = vpop.f32.mrf.mxu0
  %v5951 = vadd.f32 0.0, %v5950
  %v5952 = vpop.f32.mrf.mxu0
  %5953 = vmatprep.mubr.f32.mxu0 0.0
  %5954 = vmatmul.mubr.f32.gmra.mxu0 %v5857
  %v5955 = vpop.f32.mrf.mxu0
  %v5956 = vadd.f32 0.0, %v5955
  %v5957 = vpop.f32.mrf.mxu0
  %5958 = vdwg.mxu0
  %v5959 = vsel %vm2262, %v5926, -inf
  %5960 = vmax.xlane.f32.xlu0 %v5959
  %v5961 = vpop.xlane.xlu0 %5960
  %v5962 = vsel %vm2262, %v5931, -inf
  %5963 = vmax.xlane.f32.xlu0 %v5962
  %v5964 = vpop.xlane.xlu0 %5963
  %v5965 = vsel %vm2262, %v5936, -inf
  %5966 = vmax.xlane.f32.xlu0 %v5965
  %v5967 = vpop.xlane.xlu0 %5966
  %v5968 = vsel %vm2262, %v5941, -inf
  %5969 = vmax.xlane.f32.xlu0 %v5968
  %v5970 = vpop.xlane.xlu0 %5969
  %v5971 = vsel %vm2262, %v5946, -inf
  %5972 = vmax.xlane.f32.xlu0 %v5971
  %v5973 = vpop.xlane.xlu0 %5972
  %v5974 = vsel %vm2262, %v5951, -inf
  %5975 = vmax.xlane.f32.xlu0 %v5974
  %v5976 = vpop.xlane.xlu0 %5975
  %v5977 = vsel %vm2262, %v5956, -inf
  %5978 = vmax.xlane.f32.xlu0 %v5977
  %v5979 = vpop.xlane.xlu0 %5978
  %v5980 = vsub.f32 %v5926, %v5961
  %v5981 = vsub.f32 %v5931, %v5964
  %v5982 = vsub.f32 %v5936, %v5967
  %v5983 = vsub.f32 %v5941, %v5970
  %v5984 = vsub.f32 %v5946, %v5973
  %v5985 = vsub.f32 %v5951, %v5976
  %v5986 = vsub.f32 %v5956, %v5979
  %v5987 = vmul.f32 %v5980, 1.442695
  %v5988 = vpow.pop %v5987
  %v5989 = vmul.f32 %v5981, 1.442695
  %v5990 = vpow.pop %v5989
  %v5991 = vmul.f32 %v5982, 1.442695
  %v5992 = vpow.pop %v5991
  %v5993 = vmul.f32 %v5983, 1.442695
  %v5994 = vpow.pop %v5993
  %v5995 = vmul.f32 %v5984, 1.442695
  %v5996 = vpow.pop %v5995
  %v5997 = vmul.f32 %v5985, 1.442695
  %v5998 = vpow.pop %v5997
  %v5999 = vmul.f32 %v5986, 1.442695
  %v6000 = vpow.pop %v5999
  %v6001 = vsel %vm2262, %v5988, 0.0
  %6002 = vadd.xlane.f32.xlu0 %v6001
  %v6003 = vpop.xlane.xlu0 %6002
  %v6004 = vsel %vm2262, %v5990, 0.0
  %6005 = vadd.xlane.f32.xlu0 %v6004
  %v6006 = vpop.xlane.xlu0 %6005
  %v6007 = vsel %vm2262, %v5992, 0.0
  %6008 = vadd.xlane.f32.xlu0 %v6007
  %v6009 = vpop.xlane.xlu0 %6008
  %v6010 = vsel %vm2262, %v5994, 0.0
  %6011 = vadd.xlane.f32.xlu0 %v6010
  %v6012 = vpop.xlane.xlu0 %6011
  %v6013 = vsel %vm2262, %v5996, 0.0
  %6014 = vadd.xlane.f32.xlu0 %v6013
  %v6015 = vpop.xlane.xlu0 %6014
  %v6016 = vsel %vm2262, %v5998, 0.0
  %6017 = vadd.xlane.f32.xlu0 %v6016
  %v6018 = vpop.xlane.xlu0 %6017
  %v6019 = vsel %vm2262, %v6000, 0.0
  %6020 = vadd.xlane.f32.xlu0 %v6019
  %v6021 = vpop.xlane.xlu0 %6020
  %v6022 = vlog2.pop %v6003
  %v6023 = vmul.f32 %v6022, 0.6931472
  %v6024 = vlog2.pop %v6006
  %v6025 = vmul.f32 %v6024, 0.6931472
  %v6026 = vlog2.pop %v6009
  %v6027 = vmul.f32 %v6026, 0.6931472
  %v6028 = vlog2.pop %v6012
  %v6029 = vmul.f32 %v6028, 0.6931472
  %v6030 = vlog2.pop %v6015
  %v6031 = vmul.f32 %v6030, 0.6931472
  %v6032 = vlog2.pop %v6018
  %v6033 = vmul.f32 %v6032, 0.6931472
  %v6034 = vlog2.pop %v6021
  %v6035 = vmul.f32 %v6034, 0.6931472
  %v6036 = vadd.f32 %v5961, %v6023
  %v6037 = vadd.f32 %v5964, %v6025
  %v6038 = vadd.f32 %v5967, %v6027
  %v6039 = vadd.f32 %v5970, %v6029
  %v6040 = vadd.f32 %v5973, %v6031
  %v6041 = vadd.f32 %v5976, %v6033
  %v6042 = vadd.f32 %v5979, %v6035
  %v6043 = vsub.f32 %v5926, %v6036
  %v6044 = vsub.f32 %v5931, %v6037
  %v6045 = vsub.f32 %v5936, %v6038
  %v6046 = vsub.f32 %v5941, %v6039
  %v6047 = vsub.f32 %v5946, %v6040
  %v6048 = vsub.f32 %v5951, %v6041
  %v6049 = vsub.f32 %v5956, %v6042
  %v6050 = vld [vmem:[%s3] sm:$0xff]
  %v6051 = vld [vmem:[%s3 + $0x8] sm:$0xff]
  %v6052 = vld [vmem:[%s3 + $0x10] sm:$0xff]
  %v6053 = vld [vmem:[%s3 + $0x18] sm:$0xff]
  %v6054 = vld [vmem:[%s3 + $0x20] sm:$0xff]
  %v6055 = vld [vmem:[%s3 + $0x28] sm:$0xff]
  %v6056 = vld [vmem:[%s3 + $0x30] sm:$0xff]
  %v6057 = vmul.f32 %v6043, %v6050
  %v6058 = vmul.f32 %v6044, %v6051
  %v6059 = vmul.f32 %v6045, %v6052
  %v6060 = vmul.f32 %v6046, %v6053
  %v6061 = vmul.f32 %v6047, %v6054
  %v6062 = vmul.f32 %v6048, %v6055
  %v6063 = vmul.f32 %v6049, %v6056
  %v6064 = vld [vmem:[%s4] sm:$0xff]
  %vm6065 = vcmask 457728
  %v6067 = vsel %vm6065, %v6064, 0
  %6069 = vmatprep.subr.mxu0 0.0
  %6070 = vmatpush1.msra.mxu0 0.0
  %6071 = vmatprep.subr.mxu0 0.0
  %6072 = vmatpush1.msra.mxu0 0.0
  %6073 = vmatprep.subr.mxu0 0.0
  %6074 = vmatpush1.msra.mxu0 0.0
  %6075 = vmatprep.subr.mxu0 0.0
  %6076 = vmatpush1.msra.mxu0 0.0
  %6077 = vmatprep.subr.mxu0 0.0
  %6078 = vmatpush1.msra.mxu0 0.0
  %6079 = vmatprep.subr.mxu0 0.0
  %6080 = vmatpush1.msra.mxu0 0.0
  %6081 = vmatprep.subr.mxu0 0.0
  %6082 = vmatpush1.msra.mxu0 0.0
  %6083 = vmatprep.subr.mxu0 0.0
  %6084 = vmatpush1.msra.mxu0 0.0
  %6085 = vmatprep.subr.mxu0 0.0
  %6086 = vmatpush1.msra.mxu0 0.0
  %6087 = vmatprep.subr.mxu0 0.0
  %6088 = vmatpush1.msra.mxu0 %v6063
  %6089 = vmatprep.subr.mxu0 0.0
  %6090 = vmatpush1.msra.mxu0 %v6062
  %6091 = vmatprep.subr.mxu0 0.0
  %6092 = vmatpush1.msra.mxu0 %v6061
  %6093 = vmatprep.subr.mxu0 0.0
  %6094 = vmatpush1.msra.mxu0 %v6060
  %6095 = vmatprep.subr.mxu0 0.0
  %6096 = vmatpush1.msra.mxu0 %v6059
  %6097 = vmatprep.subr.mxu0 0.0
  %6098 = vmatpush1.msra.mxu0 %v6058
  %6099 = vmatprep.subr.mxu0 0.0
  %6100 = vmatpush1.msra.mxu0 %v6057
  %6101 = vmatprep.subr.mxu0 0.0
  %6102 = vmatpush2.msra.mxu0 0.0
  %6103 = vmatprep.subr.mxu0 0.0
  %6104 = vmatpush2.msra.mxu0 0.0
  %6105 = vmatprep.subr.mxu0 0.0
  %6106 = vmatpush2.msra.mxu0 0.0
  %6107 = vmatprep.subr.mxu0 0.0
  %6108 = vmatpush2.msra.mxu0 0.0
  %6109 = vmatprep.subr.mxu0 0.0
  %6110 = vmatpush2.msra.mxu0 0.0
  %6111 = vmatprep.subr.mxu0 0.0
  %6112 = vmatpush2.msra.mxu0 0.0
  %6113 = vmatprep.subr.mxu0 0.0
  %6114 = vmatpush2.msra.mxu0 0.0
  %6115 = vmatprep.subr.mxu0 0.0
  %6116 = vmatpush2.msra.mxu0 0.0
  %6117 = vmatprep.subr.mxu0 0.0
  %6118 = vmatpush2.msra.mxu0 0.0
  %6119 = vmatprep.subr.mxu0 0.0
  %6120 = vmatpush2.msra.mxu0 0.0
  %6121 = vmatprep.subr.mxu0 0.0
  %6122 = vmatpush2.msra.mxu0 0.0
  %6123 = vmatprep.subr.mxu0 0.0
  %6124 = vmatpush2.msra.mxu0 0.0
  %6125 = vmatprep.subr.mxu0 0.0
  %6126 = vmatpush2.msra.mxu0 0.0
  %6127 = vmatprep.subr.mxu0 0.0
  %6128 = vmatpush2.msra.mxu0 0.0
  %6129 = vmatprep.subr.mxu0 0.0
  %6130 = vmatpush2.msra.mxu0 0.0
  %6131 = vmatprep.subr.mxu0 0.0
  %6132 = vmatpush2.msra.mxu0 0.0
  %6133 = vmatprep.mubr.f32.mxu0 0.0
  %6134 = vmatmul.mubr.f32.gmra.mxu0 %v6067
  %v6135 = vpop.f32.mrf.mxu0
  %v6136 = vadd.f32 0.0, %v6135
  %v6137 = vpop.f32.mrf.mxu0
  %6138 = vdwg.mxu0
  %v6139 = vsel %vm2262, %v6136, 0.0
  %6140 = vadd.xlane.f32.xlu0 %v6139
  %v6141 = vpop.xlane.xlu0 %6140
  %6142 = vst.msk [vmem:[%s6] sm:$0xff] %vm3300, %v6141
  // Predicated region
  $region26: #{nmt_forward.1} parent=0 // pred_check
    _
  $region27: #{nmt_forward.1} parent=0 // pred_check_branch
    %6144 = sbr.rel (0) target = $region29
  $region28: #{nmt_forward.1} parent=0 // pred_region
    _
  $region29: #{nmt_forward.1} parent=0 // pred_fallthru
    _
  // Predicated region
  $region30: #{nmt_forward.1} parent=0 // pred_check
    _
  $region31: #{nmt_forward.1} parent=0 // pred_check_branch
    %6146 = sbr.rel (0) target = $region33
  $region32: #{nmt_forward.1} parent=0 // pred_region
    _
  $region33: #{nmt_forward.1} parent=0 // pred_fallthru
    _

</llo_original>
